<compile_context>
chip_gen: v5e
topology: v5e:2x2
jax: 0.10.0
libtpu: 0.0.40
codegen_flags: <defaults>
</compile_context>

<pallas_src>
import itertools

import jax
import jax.numpy as jnp
from jax.experimental import pallas as pl
from jax.experimental.pallas import tpu as pltpu


def _ceil_to(x, m):
    return ((x + m - 1) // m) * m


def _cdiv(a, b):
    return -(-a // b)


# --------------------------------------------------------------------------- #
# Stage 1 kernel (one-time):  M[b, k*E+e] = sum_d img[b, d] * G[k, d, e]
#   img_ref : (B, D)   bf16
#   g_ref   : (D, TN)  bf16   column-tile of G laid out (D, 2E*E), k-major
#   m_ref   : (B, TN)  f32
# --------------------------------------------------------------------------- #
def img_hyper_kernel(img_ref, g_ref, m_ref):
    m_ref[...] = jnp.dot(img_ref[...], g_ref[...],
                         preferred_element_type=jnp.float32)


# --------------------------------------------------------------------------- #
# Stage 2 kernel (grid over pair chunks):
#   m_ref     : (B, 2E, E)   f32   precomputed img@G, shared across chunks
#   e_ref     : (PT, 2E)     f32   pair embeddings for this chunk
#   w_ref     : (1, E)       f32   score head (first column of w_out)
#   score_ref : (B, PT, 1)   f32   un-normalized pair scores
#   feat_ref  : (B, PT, E)   f32   L2-normalized pair features
# The pair dimension PT is the MXU M-dim; the small image batch is a static
# unrolled loop of tiny (PT,2E)x(2E,E) dots.  Constant-index inputs (m, w) are
# only ~16 KB, so their default double-buffering is negligible.
# --------------------------------------------------------------------------- #
def pair_chunk_kernel(m_ref, e_ref, w_ref, score_ref, feat_ref):
    e = e_ref[...]                                   # (PT, 2E)
    w = w_ref[...]                                   # (1, E)
    for b in range(m_ref.shape[0]):                  # static unroll, B small
        f = jnp.maximum(
            jnp.dot(e, m_ref[b], preferred_element_type=jnp.float32), 0.0)  # (PT, E)
        # Pair score from the UN-normalized features (matches comp_network).
        score_ref[b] = jnp.sum(f * w, axis=-1, keepdims=True)               # (PT, 1)
        # L2 normalization (epsilon avoids NaN if ReLU zeroes a whole row;
        # zero-padded pair rows stay exactly zero and are cropped later).
        nsq = jnp.sum(f * f, axis=-1, keepdims=True)                        # (PT, 1)
        feat_ref[b] = f * jax.lax.rsqrt(nsq + 1e-12)                        # (PT, E)


# --------------------------------------------------------------------------- #
# Wrapper: Pallas-backed equivalent of CompositionalModel.val_forward's hot loop.
#   img_feat : (B, D)       f32   flattened image features (D = C*H*W)
#   pair_emb : (P, 2E)      f32   per-pair conditioning [attr_emb ; obj_emb]
#   hyper_g  : (2E, D*E)    f32   hyper-network weight
#   w_out    : (E, 1)       f32   classifier head (first column = pair score)
# Returns pair_scores (B, P) and L2-normalized pair_feats (B, P, E).
# --------------------------------------------------------------------------- #
@jax.jit
def compositional_val_forward(img_feat, pair_emb, hyper_g, w_out):
    B, D = img_feat.shape
    P, K2 = pair_emb.shape                       # K2 = 2 * emb_dim
    E = w_out.shape[0]
    KE = K2 * E
    assert hyper_g.shape == (K2, D * E)

    # One-time weight prep (XLA glue, a few MB): lay hyper_g out as (D, 2E*E)
    # with k-major columns so stage 1 is a single lane-dense matmul.  bf16 is
    # used only for this one-time img@G read (documented semantic deviation).
    gflat = jnp.transpose(hyper_g.reshape(K2, D, E), (1, 0, 2)).reshape(D, KE)
    gflat = gflat.astype(jnp.bfloat16)
    img_bf = img_feat.astype(jnp.bfloat16)

    # Stage-1 column tiling: keep each bf16 tile <= 4 MiB so the double buffer
    # stays far under every generation's VMEM (v7x 64 MiB included).
    tn_budget = max(128, (4 * 1024 * 1024 // (D * 2)) // 128 * 128)
    if KE <= tn_budget:
        TN, KE_pad = KE, KE
    else:
        TN = tn_budget
        KE_pad = _ceil_to(KE, TN)
        gflat = jnp.pad(gflat, ((0, 0), (0, KE_pad - KE)))

    m2 = pl.pallas_call(
        img_hyper_kernel,
        out_shape=jax.ShapeDtypeStruct((B, KE_pad), jnp.float32),
        grid_spec=pltpu.PrefetchScalarGridSpec(
            num_scalar_prefetch=0,
            grid=(KE_pad // TN,),
            in_specs=[pl.BlockSpec((B, D), lambda c: (0, 0)),
                      pl.BlockSpec((D, TN), lambda c: (0, c))],
            out_specs=pl.BlockSpec((B, TN), lambda c: (0, c)),
        ),
        compiler_params=pltpu.CompilerParams(
            dimension_semantics=("parallel",),
            vmem_limit_bytes=32 * 1024 * 1024),
    )(img_bf, gflat)
    # 16 KB-scale reshape to (B, 2E, E) — negligible XLA glue, no HBM concern.
    m = m2[:, :KE].reshape(B, K2, E)

    # Pair chunking: <=512 pairs per chunk and >=2 chunks when P allows, so the
    # "parallel" grid axis can feed both v7x TensorCores; every chunk row count
    # is a multiple of 8 (sublane tiling).  No O(PT^2) constants anywhere.
    target_chunks = max(2, _cdiv(P, 512))
    PT = _ceil_to(max(1, _cdiv(P, target_chunks)), 8)
    n_chunks = _cdiv(P, PT)
    P_pad = n_chunks * PT

    e_pad = jnp.pad(pair_emb.astype(jnp.float32), ((0, P_pad - P), (0, 0)))
    w_row = w_out[:, 0].reshape(1, E).astype(jnp.float32)

    scores3, feats = pl.pallas_call(
        pair_chunk_kernel,
        out_shape=(jax.ShapeDtypeStruct((B, P_pad, 1), jnp.float32),
                   jax.ShapeDtypeStruct((B, P_pad, E), jnp.float32)),
        grid_spec=pltpu.PrefetchScalarGridSpec(
            num_scalar_prefetch=0,
            grid=(n_chunks,),
            in_specs=[pl.BlockSpec((B, K2, E), lambda c: (0, 0, 0)),   # M (shared)
                      pl.BlockSpec((PT, K2), lambda c: (c, 0)),        # pair emb chunk
                      pl.BlockSpec((1, E), lambda c: (0, 0))],         # score head
            out_specs=[pl.BlockSpec((B, PT, 1), lambda c: (0, c, 0)),
                       pl.BlockSpec((B, PT, E), lambda c: (0, c, 0))],
        ),
        compiler_params=pltpu.CompilerParams(
            dimension_semantics=("parallel",)),
    )(m, e_pad, w_row)

    pair_scores = scores3[:, :P, 0]                  # (B, P)
    pair_feats = feats[:, :P, :]                     # (B, P, E)
    return pair_scores, pair_feats


def compose_pair_embeddings(val_attrs, val_objs, attr_emb, obj_emb):
    """`compose` input prep: per-pair conditioning vector e_p = [attr_emb ; obj_emb].

    This is the only per-pair tensor the kernel ever consumes — the composed
    (D, E) weight of each pair is never materialized (reassociation).
    """
    return jnp.concatenate([attr_emb[val_attrs], obj_emb[val_objs]], axis=-1)


def reference_val_forward(img_feat, pair_emb, hyper_g, w_out):
    """Pure-JAX f32 reference with the ORIGINAL compose-then-apply ordering."""
    E = w_out.shape[0]
    K2 = pair_emb.shape[1]
    D = img_feat.shape[1]
    g3 = hyper_g.reshape(K2, D, E)
    w_all = jnp.einsum("pk,kde->pde", pair_emb, g3)                    # (P, D, E)
    feat = jnp.maximum(jnp.einsum("bd,pde->bpe", img_feat, w_all), 0.0)
    score = jnp.einsum("bpe,e->bp", feat, w_out[:, 0])
    feat_n = feat * jax.lax.rsqrt(jnp.sum(feat * feat, -1, keepdims=True) + 1e-12)
    return score, feat_n


if __name__ == "__main__":
    key = jax.random.PRNGKey(0)
    k_img, k_attr, k_obj, k_hyper, k_out = jax.random.split(key, 5)

    # Problem sizes (small, consistent with the module).
    B, C, H, W = 2, 4, 16, 16             # image batch (NCHW)
    num_attrs, num_objs = 4, 3
    emb_dim = 32                          # args.emb_dim
    feat_dim = C * H * W                  # 1024

    # dset.pairs = all (attr, obj) combinations; val_attrs / val_objs indices.
    pairs = list(itertools.product(range(num_attrs), range(num_objs)))
    val_attrs = jnp.array([a for a, _ in pairs], dtype=jnp.int32)
    val_objs = jnp.array([o for _, o in pairs], dtype=jnp.int32)
    P = len(pairs)

    # Deterministic synthetic parameters (no checkpoint loading).
    attr_emb = jax.random.normal(k_attr, (num_attrs, emb_dim), jnp.float32) * 0.1
    obj_emb = jax.random.normal(k_obj, (num_objs, emb_dim), jnp.float32) * 0.1
    hyper_g = jax.random.normal(k_hyper, (2 * emb_dim, feat_dim * emb_dim),
                                jnp.float32) * 0.02
    w_out = jax.random.normal(k_out, (emb_dim, 1), jnp.float32) * 0.1

    # Input image, NCHW -> flattened features (glue).
    x = jax.random.normal(k_img, (B, C, H, W), jnp.float32)
    img_feat = x.reshape(B, -1)                              # (B, D)

    # Tiny per-pair conditioning vectors; the composed weights never exist.
    pair_emb = compose_pair_embeddings(val_attrs, val_objs, attr_emb, obj_emb)

    pair_scores, pair_feats = compositional_val_forward(
        img_feat, pair_emb, hyper_g, w_out)
    jax.block_until_ready((pair_scores, pair_feats))

    # Correctness check against the true f32 compose-then-apply reference.
    # The only deviation is the bf16 one-time img@G precompute (plus TPU
    # default matmul precision on both sides), bounded well inside these
    # tolerances for the given magnitudes.
    ref_scores, ref_feats = reference_val_forward(img_feat, pair_emb, hyper_g, w_out)

    assert pair_scores.shape == (B, P)
    assert pair_feats.shape == (B, P, emb_dim)
    assert jnp.allclose(pair_scores, ref_scores, rtol=3e-2, atol=2e-2)
    assert jnp.allclose(pair_feats, ref_feats, rtol=3e-2, atol=2e-2)

    # TODO(synk): the {(attr, obj): score} python-dict assembly and the training
    # loss bookkeeping of forward() are host-side glue, not kernel work.
    print("KERNEL_OK")
</pallas_src>

<mosaic_0001>
module attributes {stable_mosaic.version = 11 : i64} {
  func.func @img_hyper_kernel(%arg0: i32, %arg1: memref<2x1024xbf16, #tpu.memory_space<vmem>>, %arg2: memref<1024x2048xbf16, #tpu.memory_space<vmem>>, %arg3: memref<2x2048xf32, #tpu.memory_space<vmem>>) attributes {dimension_semantics = [#tpu.dimension_semantics<parallel>], iteration_bounds = array<i64: 1>, scalar_prefetch = 0 : i64, scratch_operands = 0 : i64, tpu.core_type = #tpu.core_type<tc>, window_params = [{pipeline_mode = #tpu.pipeline_mode<synchronous>, transform_indices = @transform_0, window_bounds = array<i64: 2, 1024>}, {transform_indices = @transform_1, window_bounds = array<i64: 1024, 2048>}, {transform_indices = @transform_2, window_bounds = array<i64: 2, 2048>}]} {
    %c0 = arith.constant 0 : index
    %c0_0 = arith.constant 0 : index
    %0 = vector.load %arg1[%c0, %c0_0] : memref<2x1024xbf16, #tpu.memory_space<vmem>>, vector<2x1024xbf16>
    %c0_1 = arith.constant 0 : index
    %c0_2 = arith.constant 0 : index
    %1 = vector.load %arg2[%c0_1, %c0_2] : memref<1024x2048xbf16, #tpu.memory_space<vmem>>, vector<1024x2048xbf16>
    %cst = arith.constant dense<0.000000e+00> : vector<2x2048xf32>
    %2 = tpu.matmul %0, %1, %cst {dimension_numbers = #tpu.dot_dimension_numbers<[1], [0], [0], [1], [0, 0, 1, 1], [], []>} : vector<2x1024xbf16>, vector<1024x2048xbf16>, vector<2x2048xf32> -> vector<2x2048xf32>
    %c0_3 = arith.constant 0 : index
    %c0_4 = arith.constant 0 : index
    %3 = vector.load %arg3[%c0_3, %c0_4] : memref<2x2048xf32, #tpu.memory_space<vmem>>, vector<2x2048xf32>
    tpu.vector_store %arg3[%c0_3, %c0_4], %2 {strides = array<i32>} : memref<2x2048xf32, #tpu.memory_space<vmem>>, vector<2x2048xf32>,
    return
  }
  func.func @transform_0(%arg0: i32) -> (i32, i32) {
    %c0_i32 = arith.constant 0 : i32
    %c0_i32_0 = arith.constant 0 : i32
    %c0_i32_1 = arith.constant 0 : i32
    return %c0_i32, %c0_i32_0 : i32, i32
  }
  func.func @transform_1(%arg0: i32) -> (i32, i32) {
    %c0_i32 = arith.constant 0 : i32
    %c0_i32_0 = arith.constant 0 : i32
    return %c0_i32, %arg0 : i32, i32
  }
  func.func @transform_2(%arg0: i32) -> (i32, i32) {
    %c0_i32 = arith.constant 0 : i32
    %c0_i32_0 = arith.constant 0 : i32
    return %c0_i32, %arg0 : i32, i32
  }
}

module attributes {stable_mosaic.version = 11 : i64} {
  func.func @pair_chunk_kernel(%arg0: i32, %arg1: memref<2x64x32xf32, #tpu.memory_space<vmem>>, %arg2: memref<8x64xf32, #tpu.memory_space<vmem>>, %arg3: memref<1x32xf32, #tpu.memory_space<vmem>>, %arg4: memref<2x8x1xf32, #tpu.memory_space<vmem>>, %arg5: memref<2x8x32xf32, #tpu.memory_space<vmem>>) attributes {dimension_semantics = [#tpu.dimension_semantics<parallel>], iteration_bounds = array<i64: 2>, scalar_prefetch = 0 : i64, scratch_operands = 0 : i64, tpu.core_type = #tpu.core_type<tc>, window_params = [{pipeline_mode = #tpu.pipeline_mode<synchronous>, transform_indices = @transform_0, window_bounds = array<i64: 2, 64, 32>}, {transform_indices = @transform_1, window_bounds = array<i64: 8, 64>}, {pipeline_mode = #tpu.pipeline_mode<synchronous>, transform_indices = @transform_2, window_bounds = array<i64: 1, 32>}, {transform_indices = @transform_3, window_bounds = array<i64: 2, 8, 1>}, {transform_indices = @transform_4, window_bounds = array<i64: 2, 8, 32>}]} {
    %c0 = arith.constant 0 : index
    %c0_0 = arith.constant 0 : index
    %0 = vector.load %arg2[%c0, %c0_0] : memref<8x64xf32, #tpu.memory_space<vmem>>, vector<8x64xf32>
    %c0_1 = arith.constant 0 : index
    %c0_2 = arith.constant 0 : index
    %1 = vector.load %arg3[%c0_1, %c0_2] : memref<1x32xf32, #tpu.memory_space<vmem>>, vector<1x32xf32>
    %c0_3 = arith.constant 0 : index
    %c0_4 = arith.constant 0 : index
    %c0_5 = arith.constant 0 : index
    %2 = vector.load %arg1[%c0_3, %c0_4, %c0_5] : memref<2x64x32xf32, #tpu.memory_space<vmem>>, vector<1x64x32xf32>
    %3 = vector.shape_cast %2 : vector<1x64x32xf32> to vector<64x32xf32>
    %cst = arith.constant dense<0.000000e+00> : vector<8x32xf32>
    %4 = tpu.matmul %0, %3, %cst {dimension_numbers = #tpu.dot_dimension_numbers<[1], [0], [0], [1], [0, 0, 1, 1], [], []>} : vector<8x64xf32>, vector<64x32xf32>, vector<8x32xf32> -> vector<8x32xf32>
    %cst_6 = arith.constant 0.000000e+00 : f32
    %5 = vector.broadcast %cst_6 : f32 to vector<8x32xf32>
    %6 = arith.maximumf %4, %5 : vector<8x32xf32>
    %7 = vector.broadcast %1 : vector<1x32xf32> to vector<8x32xf32>
    %8 = arith.mulf %6, %7 : vector<8x32xf32>
    %cst_7 = arith.constant dense<0.000000e+00> : vector<8xf32>
    %9 = vector.multi_reduction <add>, %8, %cst_7 [1] : vector<8x32xf32> to vector<8xf32>
    %10 = vector.shape_cast %9 : vector<8xf32> to vector<8x1xf32>
    %c0_8 = arith.constant 0 : index
    %c0_9 = arith.constant 0 : index
    %c0_10 = arith.constant 0 : index
    %11 = vector.load %arg4[%c0_8, %c0_9, %c0_10] : memref<2x8x1xf32, #tpu.memory_space<vmem>>, vector<1x8x1xf32>
    %12 = vector.shape_cast %11 : vector<1x8x1xf32> to vector<8x1xf32>
    %13 = vector.shape_cast %10 : vector<8x1xf32> to vector<1x8x1xf32>
    tpu.vector_store %arg4[%c0_8, %c0_9, %c0_10], %13 {strides = array<i32>} : memref<2x8x1xf32, #tpu.memory_space<vmem>>, vector<1x8x1xf32>,
    %14 = arith.mulf %6, %6 : vector<8x32xf32>
    %cst_11 = arith.constant dense<0.000000e+00> : vector<8xf32>
    %15 = vector.multi_reduction <add>, %14, %cst_11 [1] : vector<8x32xf32> to vector<8xf32>
    %16 = vector.shape_cast %15 : vector<8xf32> to vector<8x1xf32>
    %cst_12 = arith.constant 9.99999996E-13 : f32
    %17 = vector.broadcast %cst_12 : f32 to vector<8x1xf32>
    %18 = arith.addf %16, %17 : vector<8x1xf32>
    %19 = math.rsqrt %18 : vector<8x1xf32>
    %20 = vector.broadcast %19 : vector<8x1xf32> to vector<8x32xf32>
    %21 = arith.mulf %6, %20 : vector<8x32xf32>
    %c0_13 = arith.constant 0 : index
    %c0_14 = arith.constant 0 : index
    %c0_15 = arith.constant 0 : index
    %22 = vector.load %arg5[%c0_13, %c0_14, %c0_15] : memref<2x8x32xf32, #tpu.memory_space<vmem>>, vector<1x8x32xf32>
    %23 = vector.shape_cast %22 : vector<1x8x32xf32> to vector<8x32xf32>
    %24 = vector.shape_cast %21 : vector<8x32xf32> to vector<1x8x32xf32>
    tpu.vector_store %arg5[%c0_13, %c0_14, %c0_15], %24 {strides = array<i32>} : memref<2x8x32xf32, #tpu.memory_space<vmem>>, vector<1x8x32xf32>,
    %c1 = arith.constant 1 : index
    %c0_16 = arith.constant 0 : index
    %c0_17 = arith.constant 0 : index
    %25 = vector.load %arg1[%c1, %c0_16, %c0_17] : memref<2x64x32xf32, #tpu.memory_space<vmem>>, vector<1x64x32xf32>
    %26 = vector.shape_cast %25 : vector<1x64x32xf32> to vector<64x32xf32>
    %cst_18 = arith.constant dense<0.000000e+00> : vector<8x32xf32>
    %27 = tpu.matmul %0, %26, %cst_18 {dimension_numbers = #tpu.dot_dimension_numbers<[1], [0], [0], [1], [0, 0, 1, 1], [], []>} : vector<8x64xf32>, vector<64x32xf32>, vector<8x32xf32> -> vector<8x32xf32>
    %cst_19 = arith.constant 0.000000e+00 : f32
    %28 = vector.broadcast %cst_19 : f32 to vector<8x32xf32>
    %29 = arith.maximumf %27, %28 : vector<8x32xf32>
    %30 = vector.broadcast %1 : vector<1x32xf32> to vector<8x32xf32>
    %31 = arith.mulf %29, %30 : vector<8x32xf32>
    %cst_20 = arith.constant dense<0.000000e+00> : vector<8xf32>
    %32 = vector.multi_reduction <add>, %31, %cst_20 [1] : vector<8x32xf32> to vector<8xf32>
    %33 = vector.shape_cast %32 : vector<8xf32> to vector<8x1xf32>
    %c1_21 = arith.constant 1 : index
    %c0_22 = arith.constant 0 : index
    %c0_23 = arith.constant 0 : index
    %34 = vector.load %arg4[%c1_21, %c0_22, %c0_23] : memref<2x8x1xf32, #tpu.memory_space<vmem>>, vector<1x8x1xf32>
    %35 = vector.shape_cast %34 : vector<1x8x1xf32> to vector<8x1xf32>
    %36 = vector.shape_cast %33 : vector<8x1xf32> to vector<1x8x1xf32>
    tpu.vector_store %arg4[%c1_21, %c0_22, %c0_23], %36 {strides = array<i32>} : memref<2x8x1xf32, #tpu.memory_space<vmem>>, vector<1x8x1xf32>,
    %37 = arith.mulf %29, %29 : vector<8x32xf32>
    %cst_24 = arith.constant dense<0.000000e+00> : vector<8xf32>
    %38 = vector.multi_reduction <add>, %37, %cst_24 [1] : vector<8x32xf32> to vector<8xf32>
    %39 = vector.shape_cast %38 : vector<8xf32> to vector<8x1xf32>
    %cst_25 = arith.constant 9.99999996E-13 : f32
    %40 = vector.broadcast %cst_25 : f32 to vector<8x1xf32>
    %41 = arith.addf %39, %40 : vector<8x1xf32>
    %42 = math.rsqrt %41 : vector<8x1xf32>
    %43 = vector.broadcast %42 : vector<8x1xf32> to vector<8x32xf32>
    %44 = arith.mulf %29, %43 : vector<8x32xf32>
    %c1_26 = arith.constant 1 : index
    %c0_27 = arith.constant 0 : index
    %c0_28 = arith.constant 0 : index
    %45 = vector.load %arg5[%c1_26, %c0_27, %c0_28] : memref<2x8x32xf32, #tpu.memory_space<vmem>>, vector<1x8x32xf32>
    %46 = vector.shape_cast %45 : vector<1x8x32xf32> to vector<8x32xf32>
    %47 = vector.shape_cast %44 : vector<8x32xf32> to vector<1x8x32xf32>
    tpu.vector_store %arg5[%c1_26, %c0_27, %c0_28], %47 {strides = array<i32>} : memref<2x8x32xf32, #tpu.memory_space<vmem>>, vector<1x8x32xf32>,
    return
  }
  func.func @transform_0(%arg0: i32) -> (i32, i32, i32) {
    %c0_i32 = arith.constant 0 : i32
    %c0_i32_0 = arith.constant 0 : i32
    %c0_i32_1 = arith.constant 0 : i32
    %c0_i32_2 = arith.constant 0 : i32
    return %c0_i32, %c0_i32_0, %c0_i32_1 : i32, i32, i32
  }
  func.func @transform_1(%arg0: i32) -> (i32, i32) {
    %c0_i32 = arith.constant 0 : i32
    %c0_i32_0 = arith.constant 0 : i32
    return %arg0, %c0_i32 : i32, i32
  }
  func.func @transform_2(%arg0: i32) -> (i32, i32) {
    %c0_i32 = arith.constant 0 : i32
    %c0_i32_0 = arith.constant 0 : i32
    %c0_i32_1 = arith.constant 0 : i32
    return %c0_i32, %c0_i32_0 : i32, i32
  }
  func.func @transform_3(%arg0: i32) -> (i32, i32, i32) {
    %c0_i32 = arith.constant 0 : i32
    %c0_i32_0 = arith.constant 0 : i32
    %c0_i32_1 = arith.constant 0 : i32
    return %c0_i32, %arg0, %c0_i32_0 : i32, i32, i32
  }
  func.func @transform_4(%arg0: i32) -> (i32, i32, i32) {
    %c0_i32 = arith.constant 0 : i32
    %c0_i32_0 = arith.constant 0 : i32
    %c0_i32_1 = arith.constant 0 : i32
    return %c0_i32, %arg0, %c0_i32_0 : i32, i32, i32
  }
}

</mosaic_0001>

<llo_original>
// kernel: compositional_val_forward.3
$region0: #{compositional_val_forward.3}
  #allocation0 [shape = 'u32[]', space=smem, size = 0x4, offset = 0x4, fixed_abs, tag = 'smem constant byte address 0x4 - core index']
  #allocation1 [shape = 'u32[72,128]{1,0:T(1,128)}', space=vmem, size = 0x9000, scoped, tag = 'internal scratch']
  %s0 = inlined_call_operand.vmem [shape: f32[2,64,32], index: 0, kind: input, shape index: {}]
  %s1 = inlined_call_operand.vmem [shape: f32[16,64], index: 1, kind: input, shape index: {}]
  %s2 = inlined_call_operand.vmem [shape: f32[1,32], index: 2, kind: input, shape index: {}]
  %s3 = inlined_call_operand.vmem [shape: f32[2,16,1], index: 3, kind: output, shape index: {0}]
  %s4 = inlined_call_operand.vmem [shape: f32[2,16,32], index: 4, kind: output, shape index: {1}]
  %5 = xla_tuple %s3, %s4
  %s6 = sld [smem:[#allocation0]]
  $region121: #{compositional_val_forward.3} parent=0
    _
  %s8 = ssub.s32 1, %s6
  %s9 = scalar_select 0, %s8, %s6
  $region1: #{compositional_val_forward.3} parent=0
    #allocation2 [shape = 'u8[16384]{0}', space=vmem, size = 0x4000, scoped, tag = 'output window, operand 0']
    #allocation3 [shape = 'u8[16384]{0}', space=vmem, size = 0x4000, scoped, tag = 'output window, operand 1']
    loop: start=0, step=1, limit=4
    $region2: #{compositional_val_forward.3} parent=1 // loop_pre_header
      _
    $region3: #{compositional_val_forward.3} parent=1 // loop_header
      %s11 = sphi 0, %s15
      %p12 = scmp.ge.s32.totalorder %s11, 4
      %s19 = sphi 0, %s19
      %s21 = sphi 0, %s19
      %s22 = sphi 0, %s21
      %s36 = sphi 0, %s22
      %s42 = sphi 0, %s44
      %s45 = sphi 0, %s42
      %s46 = sphi 0, %s45
      %s62 = sphi 0, %s46
      %s66 = sphi 0, %s66
      %s68 = sphi 0, %s66
      %s69 = sphi 0, %s68
      %s83 = sphi 0, %s69
      %s89 = sphi 0, %s91
      %s92 = sphi 0, %s89
      %s93 = sphi 0, %s92
      %s109 = sphi 0, %s93
      %s115 = sphi 0, %s117
      %s118 = sphi 0, %s115
      %s119 = sphi 0, %s118
      %s135 = sphi 0, %s119
    $region4: #{compositional_val_forward.3} parent=1 // loop_header_branch
      %14 = sbr.rel (%p12) target = $region8
    $region5: #{compositional_val_forward.3} parent=1 // loop_body
      %s16 = ssub.s32 %s11, 1
      %s17 = ssub.s32 %s11, 2
      %s18 = sadd.s32 %s11, 1
      %s20 = sadd.s32 %s19, 1
      %p23 = scmp.eq.s32.totalorder %s11, 1
      %p24 = scmp.ne.s32.totalorder %s19, %s21
      %p25 = scmp.eq.s32.totalorder %s11, 0
      %p26 = por %p24, %p25
      %p27 = scmp.ne.s32.totalorder %s19, %s21
      %p28 = scmp.eq.s32.totalorder %s16, 1
      %p29 = por %p27, %p28
      %p30 = scmp.ne.s32.totalorder %s21, %s22
      %p31 = scmp.eq.s32.totalorder %s16, 0
      %p32 = por %p30, %p31
      %p33 = scmp.ne.s32.totalorder %s21, %s22
      %p34 = scmp.eq.s32.totalorder %s17, 1
      %p35 = por %p33, %p34
      %p37 = scmp.ne.s32.totalorder %s22, %s36
      %p38 = scmp.eq.s32.totalorder %s17, 0
      %p39 = por %p37, %p38
      %s40 = ssub.s32 %s11, %s18
      %p41 = scmp.eq.s32.totalorder %s40, 0
      %s43 = sadd.s32 %s42, 1
      %s44 = scalar_select %p41, %s42, %s43
      %p47 = pneg %p41
      %p48 = scmp.eq.s32.totalorder %s11, 1
      %p49 = por %p47, %p48
      %p50 = scmp.ne.s32.totalorder %s42, %s45
      %p51 = scmp.eq.s32.totalorder %s11, 0
      %p52 = por %p50, %p51
      %p53 = scmp.ne.s32.totalorder %s42, %s45
      %p54 = scmp.eq.s32.totalorder %s16, 1
      %p55 = por %p53, %p54
      %p56 = scmp.ne.s32.totalorder %s45, %s46
      %p57 = scmp.eq.s32.totalorder %s16, 0
      %p58 = por %p56, %p57
      %p59 = scmp.ne.s32.totalorder %s45, %s46
      %p60 = scmp.eq.s32.totalorder %s17, 1
      %p61 = por %p59, %p60
      %p63 = scmp.ne.s32.totalorder %s46, %s62
      %p64 = scmp.eq.s32.totalorder %s17, 0
      %p65 = por %p63, %p64
      %s67 = sadd.s32 %s66, 1
      %p70 = scmp.eq.s32.totalorder %s11, 1
      %p71 = scmp.ne.s32.totalorder %s66, %s68
      %p72 = scmp.eq.s32.totalorder %s11, 0
      %p73 = por %p71, %p72
      %p74 = scmp.ne.s32.totalorder %s66, %s68
      %p75 = scmp.eq.s32.totalorder %s16, 1
      %p76 = por %p74, %p75
      %p77 = scmp.ne.s32.totalorder %s68, %s69
      %p78 = scmp.eq.s32.totalorder %s16, 0
      %p79 = por %p77, %p78
      %p80 = scmp.ne.s32.totalorder %s68, %s69
      %p81 = scmp.eq.s32.totalorder %s17, 1
      %p82 = por %p80, %p81
      %p84 = scmp.ne.s32.totalorder %s69, %s83
      %p85 = scmp.eq.s32.totalorder %s17, 0
      %p86 = por %p84, %p85
      %s87 = ssub.s32 %s11, %s18
      %p88 = scmp.eq.s32.totalorder %s87, 0
      %s90 = sadd.s32 %s89, 1
      %s91 = scalar_select %p88, %s89, %s90
      %p94 = pneg %p88
      %p95 = scmp.eq.s32.totalorder %s11, 1
      %p96 = por %p94, %p95
      %p97 = scmp.ne.s32.totalorder %s89, %s92
      %p98 = scmp.eq.s32.totalorder %s11, 0
      %p99 = por %p97, %p98
      %p100 = scmp.ne.s32.totalorder %s89, %s92
      %p101 = scmp.eq.s32.totalorder %s16, 1
      %p102 = por %p100, %p101
      %p103 = scmp.ne.s32.totalorder %s92, %s93
      %p104 = scmp.eq.s32.totalorder %s16, 0
      %p105 = por %p103, %p104
      %p106 = scmp.ne.s32.totalorder %s92, %s93
      %p107 = scmp.eq.s32.totalorder %s17, 1
      %p108 = por %p106, %p107
      %p110 = scmp.ne.s32.totalorder %s93, %s109
      %p111 = scmp.eq.s32.totalorder %s17, 0
      %p112 = por %p110, %p111
      %s113 = ssub.s32 %s11, %s18
      %p114 = scmp.eq.s32.totalorder %s113, 0
      %s116 = sadd.s32 %s115, 1
      %s117 = scalar_select %p114, %s115, %s116
      %p120 = pneg %p114
      %p121 = scmp.eq.s32.totalorder %s11, 1
      %p122 = por %p120, %p121
      %p123 = scmp.ne.s32.totalorder %s115, %s118
      %p124 = scmp.eq.s32.totalorder %s11, 0
      %p125 = por %p123, %p124
      %p126 = scmp.ne.s32.totalorder %s115, %s118
      %p127 = scmp.eq.s32.totalorder %s16, 1
      %p128 = por %p126, %p127
      %p129 = scmp.ne.s32.totalorder %s118, %s119
      %p130 = scmp.eq.s32.totalorder %s16, 0
      %p131 = por %p129, %p130
      %p132 = scmp.ne.s32.totalorder %s118, %s119
      %p133 = scmp.eq.s32.totalorder %s17, 1
      %p134 = por %p132, %p133
      %p136 = scmp.ne.s32.totalorder %s119, %s135
      %p137 = scmp.eq.s32.totalorder %s17, 0
      %p138 = por %p136, %p137
      %p139 = scmp.le.s32.totalorder 1, %s11
      %p140 = scmp.lt.s32.totalorder %s11, 3
      %p141 = pnand %p139, %p140
      %p142 = pneg %p141
      // Predicated region
      $region9: #{compositional_val_forward.3} parent=5 // pred_check
        _
      $region10: #{compositional_val_forward.3} parent=5 // pred_check_branch
        %144 = sbr.rel (%p141) target = $region12
      $region11: #{compositional_val_forward.3} parent=5 // pred_region
        %s145 = ssub.s32 %s11, 1
        // Predicated region
        $region13: #{compositional_val_forward.3} parent=11 // pred_check
          %p146 = pneg %p32
        $region14: #{compositional_val_forward.3} parent=11 // pred_check_branch
          %148 = sbr.rel (%p146) target = $region16
        $region15: #{compositional_val_forward.3} parent=11 // pred_region
          _
        $region16: #{compositional_val_forward.3} parent=11 // pred_fallthru
          _
        // Predicated region
        $region17: #{compositional_val_forward.3} parent=11 // pred_check
          %p149 = pneg %p79
        $region18: #{compositional_val_forward.3} parent=11 // pred_check_branch
          %151 = sbr.rel (%p149) target = $region20
        $region19: #{compositional_val_forward.3} parent=11 // pred_region
          _
        $region20: #{compositional_val_forward.3} parent=11 // pred_fallthru
          _
      $region12: #{compositional_val_forward.3} parent=5 // pred_fallthru
        _
      %p152 = scmp.lt.s32.totalorder %s11, 2
      // Predicated region
      $region21: #{compositional_val_forward.3} parent=5 // pred_check
        %p153 = pneg %p152
      $region22: #{compositional_val_forward.3} parent=5 // pred_check_branch
        %155 = sbr.rel (%p153) target = $region24
      $region23: #{compositional_val_forward.3} parent=5 // pred_region
        // Predicated region
        $region25: #{compositional_val_forward.3} parent=23 // pred_check
          %p156 = pneg %p52
        $region26: #{compositional_val_forward.3} parent=23 // pred_check_branch
          %158 = sbr.rel (%p156) target = $region28
        $region27: #{compositional_val_forward.3} parent=23 // pred_region
          %p159 = scmp.lt.s32.totalorder %s11, 1
          %s160 = scalar_select %p159, %s11, 1
          %s161 = smul.addr %s160, 8
          %s162 = scalar_lea.vmem %s1, %s161
        $region28: #{compositional_val_forward.3} parent=23 // pred_fallthru
          _
      $region24: #{compositional_val_forward.3} parent=5 // pred_fallthru
        _
      %p163 = scmp.le.s32.totalorder 1, %s11
      %p164 = scmp.lt.s32.totalorder %s11, 3
      %p165 = pnand %p163, %p164
      %p166 = pneg %p165
      // Predicated region
      $region29: #{compositional_val_forward.3} parent=5 // pred_check
        _
      $region30: #{compositional_val_forward.3} parent=5 // pred_check_branch
        %168 = sbr.rel (%p165) target = $region32
      $region31: #{compositional_val_forward.3} parent=5 // pred_region
        %s169 = ssub.s32 %s11, 1
        %p170 = pneg %p32
        %p171 = pneg %p29
        %p172 = scmp.lt.s32.totalorder %s16, 1
        %s173 = scalar_select %p172, %s16, 1
        %s174 = smul.addr %s173, 8
        %s175 = scalar_lea.vmem %s1, %s174
        %p176 = pneg %p58
        %p177 = pneg %p55
        %p178 = pneg %p79
        %p179 = pneg %p76
        %p180 = pneg %p105
        %p181 = pneg %p102
        %s182 = sand.u32 %s92, 1
        %s183 = sand.u32 %s92, 1
        %s184 = smul.addr %s183, 16
        %s185 = scalar_lea.vmem [#allocation2], %s184
        %p186 = pneg %p131
        %p187 = pneg %p128
        %s188 = sand.u32 %s118, 1
        %s189 = sand.u32 %s118, 1
        %s190 = smul.addr %s189, 16
        %s191 = scalar_lea.vmem [#allocation3], %s190
        %p192 = scmp.lt.s32.totalorder %s16, 1
        %s193 = scalar_select %p192, %s16, 1
        %s194 = smul.addr %s193, 8
        %s195 = scalar_lea.vmem %s1, %s194
        %v196 = vld [vmem:[%s195] sm:$0xff]
        %v197 = vld [vmem:[%s2] sm:$0x1]
        %v198 = vld [vmem:[%s0] sm:$0xff]
        %v199 = vld [vmem:[%s0 + $0x8] sm:$0xff]
        %v200 = vld [vmem:[%s0 + $0x10] sm:$0xff]
        %v201 = vld [vmem:[%s0 + $0x18] sm:$0xff]
        %v202 = vld [vmem:[%s0 + $0x20] sm:$0xff]
        %v203 = vld [vmem:[%s0 + $0x28] sm:$0xff]
        %v204 = vld [vmem:[%s0 + $0x30] sm:$0xff]
        %v205 = vld [vmem:[%s0 + $0x38] sm:$0xff]
        %vm206 = vcmask 523264
        %v208 = vsel %vm206, %v196, 0
        %210 = vmatpush.msra.mxu0 0.0
        %211 = vmatpush.msra.mxu0 0.0
        %212 = vmatpush.msra.mxu0 0.0
        %213 = vmatpush.msra.mxu0 0.0
        %214 = vmatpush.msra.mxu0 0.0
        %215 = vmatpush.msra.mxu0 0.0
        %216 = vmatpush.msra.mxu0 0.0
        %217 = vmatpush.msra.mxu0 0.0
        %218 = vmatpush.msra.mxu0 %v205
        %219 = vmatpush.msra.mxu0 %v204
        %220 = vmatpush.msra.mxu0 %v203
        %221 = vmatpush.msra.mxu0 %v202
        %222 = vmatpush.msra.mxu0 %v201
        %223 = vmatpush.msra.mxu0 %v200
        %224 = vmatpush.msra.mxu0 %v199
        %225 = vmatpush.msra.mxu0 %v198
        %226 = vmatmul.f32.gmra.mxu0 %v208
        %v227 = vpop.f32.mrf.mxu0
        %v228 = vadd.f32 0.0, %v227
        %229 = vdwg.mxu0
        %v230 = vmax.f32 %v228, 0.0
        %v232 = vperm.slane %v197, 0
        %v234 = vmul.f32 %v230, %v232
        %vm235 = vcmask 261120
        %v236 = vsel %vm235, %v234, 0.0
        %237 = vadd.xlane.f32.xlu0 %v236
        %v238 = vpop.xlane.xlu0 %237
        %vm239 = vcmask 7168
        %240 = vst.msk [vmem:[%s185] sm:$0xff] %vm239, %v238
        %v241 = vmul.f32 %v230, %v230
        %v242 = vsel %vm235, %v241, 0.0
        %243 = vadd.xlane.f32.xlu0 %v242
        %v244 = vpop.xlane.xlu0 %243
        %v245 = vadd.f32 %v244, 1e-12
        %v246 = vrsqrt.pop %v245
        %v247 = vmul.f32 %v246, %v245
        %v248 = vmul.f32 %v247, %v246
        %v249 = vmul.f32 0.5, %v248
        %v250 = vsub.f32 1.5, %v249
        %v251 = vmul.f32 %v246, %v250
        %vm252 = vweird.f32 %v245
        %vm253 = vweird.f32 %v246
        %vm254 = vmor %vm252, %vm253
        %v255 = vsel %vm254, %v246, %v251
        %v256 = vmul.f32 %v230, %v255
        %257 = vst.msk [vmem:[%s191] sm:$0xff] %vm235, %v256
        %s258 = scalar_lea.vmem %s0, 64
        %v259 = vld [vmem:[%s258] sm:$0xff]
        %v260 = vld [vmem:[%s258 + $0x8] sm:$0xff]
        %v261 = vld [vmem:[%s258 + $0x10] sm:$0xff]
        %v262 = vld [vmem:[%s258 + $0x18] sm:$0xff]
        %v263 = vld [vmem:[%s258 + $0x20] sm:$0xff]
        %v264 = vld [vmem:[%s258 + $0x28] sm:$0xff]
        %v265 = vld [vmem:[%s258 + $0x30] sm:$0xff]
        %v266 = vld [vmem:[%s258 + $0x38] sm:$0xff]
        %267 = vmatpush.msra.mxu0 0.0
        %268 = vmatpush.msra.mxu0 0.0
        %269 = vmatpush.msra.mxu0 0.0
        %270 = vmatpush.msra.mxu0 0.0
        %271 = vmatpush.msra.mxu0 0.0
        %272 = vmatpush.msra.mxu0 0.0
        %273 = vmatpush.msra.mxu0 0.0
        %274 = vmatpush.msra.mxu0 0.0
        %275 = vmatpush.msra.mxu0 %v266
        %276 = vmatpush.msra.mxu0 %v265
        %277 = vmatpush.msra.mxu0 %v264
        %278 = vmatpush.msra.mxu0 %v263
        %279 = vmatpush.msra.mxu0 %v262
        %280 = vmatpush.msra.mxu0 %v261
        %281 = vmatpush.msra.mxu0 %v260
        %282 = vmatpush.msra.mxu0 %v259
        %283 = vmatmul.f32.gmra.mxu0 %v208
        %v284 = vpop.f32.mrf.mxu0
        %v285 = vadd.f32 0.0, %v284
        %286 = vdwg.mxu0
        %v287 = vmax.f32 %v285, 0.0
        %v288 = vmul.f32 %v287, %v232
        %v289 = vsel %vm235, %v288, 0.0
        %290 = vadd.xlane.f32.xlu0 %v289
        %v291 = vpop.xlane.xlu0 %290
        %s292 = scalar_lea.vmem %s185, 8 [#allocation2]
        %293 = vst.msk [vmem:[%s292] sm:$0xff] %vm239, %v291
        %v294 = vmul.f32 %v287, %v287
        %v295 = vsel %vm235, %v294, 0.0
        %296 = vadd.xlane.f32.xlu0 %v295
        %v297 = vpop.xlane.xlu0 %296
        %v298 = vadd.f32 %v297, 1e-12
        %v299 = vrsqrt.pop %v298
        %v300 = vmul.f32 %v299, %v298
        %v301 = vmul.f32 %v300, %v299
        %v302 = vmul.f32 0.5, %v301
        %v303 = vsub.f32 1.5, %v302
        %v304 = vmul.f32 %v299, %v303
        %vm305 = vweird.f32 %v298
        %vm306 = vweird.f32 %v299
        %vm307 = vmor %vm305, %vm306
        %v308 = vsel %vm307, %v299, %v304
        %v309 = vmul.f32 %v287, %v308
        %s310 = scalar_lea.vmem %s191, 8 [#allocation3]
        %311 = vst.msk [vmem:[%s310] sm:$0xff] %vm235, %v309
        %s312 = sand.u32 %s92, 1
        %s313 = sand.u32 %s92, 1
        %s314 = smul.addr %s313, 16
        %s315 = scalar_lea.vmem [#allocation2], %s314
        %s316 = sand.u32 %s118, 1
        %s317 = sand.u32 %s118, 1
        %s318 = smul.addr %s317, 16
        %s319 = scalar_lea.vmem [#allocation3], %s318
        // Predicated region
        $region33: #{compositional_val_forward.3} parent=31 // pred_check
          %p320 = pneg %p102
        $region34: #{compositional_val_forward.3} parent=31 // pred_check_branch
          %322 = sbr.rel (%p320) target = $region36
        $region35: #{compositional_val_forward.3} parent=31 // pred_region
          %s323 = smul.addr %s16, 8
          %s324 = scalar_lea.vmem %s3, %s323
          // Predicated region
          $region37: #{compositional_val_forward.3} parent=35 // pred_check
            _
          $region38: #{compositional_val_forward.3} parent=35 // pred_check_branch
            %326 = sbr.rel (0) target = $region40
          $region39: #{compositional_val_forward.3} parent=35 // pred_region
            // Predicated region
            $region41: #{compositional_val_forward.3} parent=39 // pred_check
              _
            $region42: #{compositional_val_forward.3} parent=39 // pred_check_branch
              %328 = sbr.rel (0) target = $region44
            $region43: #{compositional_val_forward.3} parent=39 // pred_region
              // Predicated region
              $region56: #{compositional_val_forward.3} parent=43 // pred_check
                _
              $region57: #{compositional_val_forward.3} parent=43 // pred_check_branch
                %346 = sbr.rel (0) target = $region59
              $region58: #{compositional_val_forward.3} parent=43 // pred_region
                loop: start=0, step=1, limit=1
                $region60: #{compositional_val_forward.3} parent=58 // loop_pre_header
                  _
                $region61: #{compositional_val_forward.3} parent=58 // loop_header
                  %s348 = sphi 0, %s352
                  %p349 = scmp.ge.s32.totalorder %s348, 1
                  %s353 = sphi %s315, %s315
                  %s354 = sphi %s324, %s324
                $region62: #{compositional_val_forward.3} parent=58 // loop_header_branch
                  %351 = sbr.rel (%p349) target = $region66
                $region63: #{compositional_val_forward.3} parent=58 // loop_body
                  %v355 = vld [vmem:[%s353] sm:$0xff]
                  %356 = vst [vmem:[%s354] sm:$0xff] %v355
                  %v357 = vld [vmem:[%s353 + $0x8] sm:$0xff]
                  %358 = vst [vmem:[%s354 + $0x10] sm:$0xff] %v357
                $region64: #{compositional_val_forward.3} parent=58 // loop_footer
                  %s352 = sadd.s32 1, %s348
                $region65: #{compositional_val_forward.3} parent=58 // loop_footer_branch
                  %347 = sbr.rel target = $region61
                $region66: #{compositional_val_forward.3} parent=58 // loop_exit
                  _
              $region59: #{compositional_val_forward.3} parent=43 // pred_fallthru
                _
              // Predicated region
              $region67: #{compositional_val_forward.3} parent=43 // pred_check
                _
              $region68: #{compositional_val_forward.3} parent=43 // pred_check_branch
                %360 = sbr.rel target = $region70
              $region69: #{compositional_val_forward.3} parent=43 // pred_region
                _
              $region70: #{compositional_val_forward.3} parent=43 // pred_fallthru
                _
            $region44: #{compositional_val_forward.3} parent=39 // pred_fallthru
              _
            // Predicated region
            $region45: #{compositional_val_forward.3} parent=39 // pred_check
              _
            $region46: #{compositional_val_forward.3} parent=39 // pred_check_branch
              %330 = sbr.rel target = $region48
            $region47: #{compositional_val_forward.3} parent=39 // pred_region
              %s332 = ssub.s32 256, 1
              loop: start=0, step=1, limit=1
              $region49: #{compositional_val_forward.3} parent=47 // loop_pre_header
                _
              $region50: #{compositional_val_forward.3} parent=47 // loop_header
                %s334 = sphi 0, %s338
                %p335 = scmp.ge.s32.totalorder %s334, 1
                %s339 = sphi %s315, %s315
                %s340 = sphi %s324, %s324
              $region51: #{compositional_val_forward.3} parent=47 // loop_header_branch
                %337 = sbr.rel (%p335) target = $region55
              $region52: #{compositional_val_forward.3} parent=47 // loop_body
                %v341 = vld [vmem:[%s339] sm:%s332]
                %342 = vst [vmem:[%s340] sm:%s332] %v341
                %v343 = vld [vmem:[%s339 + $0x8] sm:%s332]
                %344 = vst [vmem:[%s340 + $0x10] sm:%s332] %v343
              $region53: #{compositional_val_forward.3} parent=47 // loop_footer
                %s338 = sadd.s32 1, %s334
              $region54: #{compositional_val_forward.3} parent=47 // loop_footer_branch
                %333 = sbr.rel target = $region50
              $region55: #{compositional_val_forward.3} parent=47 // loop_exit
                _
            $region48: #{compositional_val_forward.3} parent=39 // pred_fallthru
              _
          $region40: #{compositional_val_forward.3} parent=35 // pred_fallthru
            _
          %361 = vnop
        $region36: #{compositional_val_forward.3} parent=31 // pred_fallthru
          _
        // Predicated region
        $region71: #{compositional_val_forward.3} parent=31 // pred_check
          %p362 = pneg %p128
        $region72: #{compositional_val_forward.3} parent=31 // pred_check_branch
          %364 = sbr.rel (%p362) target = $region74
        $region73: #{compositional_val_forward.3} parent=31 // pred_region
          %s365 = smul.addr %s16, 8
          %s366 = scalar_lea.vmem %s4, %s365
          // Predicated region
          $region75: #{compositional_val_forward.3} parent=73 // pred_check
            _
          $region76: #{compositional_val_forward.3} parent=73 // pred_check_branch
            %368 = sbr.rel (0) target = $region78
          $region77: #{compositional_val_forward.3} parent=73 // pred_region
            // Predicated region
            $region79: #{compositional_val_forward.3} parent=77 // pred_check
              _
            $region80: #{compositional_val_forward.3} parent=77 // pred_check_branch
              %370 = sbr.rel (0) target = $region82
            $region81: #{compositional_val_forward.3} parent=77 // pred_region
              // Predicated region
              $region94: #{compositional_val_forward.3} parent=81 // pred_check
                _
              $region95: #{compositional_val_forward.3} parent=81 // pred_check_branch
                %388 = sbr.rel (0) target = $region97
              $region96: #{compositional_val_forward.3} parent=81 // pred_region
                loop: start=0, step=1, limit=1
                $region98: #{compositional_val_forward.3} parent=96 // loop_pre_header
                  _
                $region99: #{compositional_val_forward.3} parent=96 // loop_header
                  %s390 = sphi 0, %s394
                  %p391 = scmp.ge.s32.totalorder %s390, 1
                  %s395 = sphi %s319, %s319
                  %s396 = sphi %s366, %s366
                $region100: #{compositional_val_forward.3} parent=96 // loop_header_branch
                  %393 = sbr.rel (%p391) target = $region104
                $region101: #{compositional_val_forward.3} parent=96 // loop_body
                  %v397 = vld [vmem:[%s395] sm:$0xff]
                  %398 = vst [vmem:[%s396] sm:$0xff] %v397
                  %v399 = vld [vmem:[%s395 + $0x8] sm:$0xff]
                  %400 = vst [vmem:[%s396 + $0x10] sm:$0xff] %v399
                $region102: #{compositional_val_forward.3} parent=96 // loop_footer
                  %s394 = sadd.s32 1, %s390
                $region103: #{compositional_val_forward.3} parent=96 // loop_footer_branch
                  %389 = sbr.rel target = $region99
                $region104: #{compositional_val_forward.3} parent=96 // loop_exit
                  _
              $region97: #{compositional_val_forward.3} parent=81 // pred_fallthru
                _
              // Predicated region
              $region105: #{compositional_val_forward.3} parent=81 // pred_check
                _
              $region106: #{compositional_val_forward.3} parent=81 // pred_check_branch
                %402 = sbr.rel target = $region108
              $region107: #{compositional_val_forward.3} parent=81 // pred_region
                _
              $region108: #{compositional_val_forward.3} parent=81 // pred_fallthru
                _
            $region82: #{compositional_val_forward.3} parent=77 // pred_fallthru
              _
            // Predicated region
            $region83: #{compositional_val_forward.3} parent=77 // pred_check
              _
            $region84: #{compositional_val_forward.3} parent=77 // pred_check_branch
              %372 = sbr.rel target = $region86
            $region85: #{compositional_val_forward.3} parent=77 // pred_region
              %s374 = ssub.s32 256, 1
              loop: start=0, step=1, limit=1
              $region87: #{compositional_val_forward.3} parent=85 // loop_pre_header
                _
              $region88: #{compositional_val_forward.3} parent=85 // loop_header
                %s376 = sphi 0, %s380
                %p377 = scmp.ge.s32.totalorder %s376, 1
                %s381 = sphi %s319, %s319
                %s382 = sphi %s366, %s366
              $region89: #{compositional_val_forward.3} parent=85 // loop_header_branch
                %379 = sbr.rel (%p377) target = $region93
              $region90: #{compositional_val_forward.3} parent=85 // loop_body
                %v383 = vld [vmem:[%s381] sm:%s374]
                %384 = vst [vmem:[%s382] sm:%s374] %v383
                %v385 = vld [vmem:[%s381 + $0x8] sm:%s374]
                %386 = vst [vmem:[%s382 + $0x10] sm:%s374] %v385
              $region91: #{compositional_val_forward.3} parent=85 // loop_footer
                %s380 = sadd.s32 1, %s376
              $region92: #{compositional_val_forward.3} parent=85 // loop_footer_branch
                %375 = sbr.rel target = $region88
              $region93: #{compositional_val_forward.3} parent=85 // loop_exit
                _
            $region86: #{compositional_val_forward.3} parent=77 // pred_fallthru
              _
          $region78: #{compositional_val_forward.3} parent=73 // pred_fallthru
            _
          %403 = vnop
        $region74: #{compositional_val_forward.3} parent=31 // pred_fallthru
          _
      $region32: #{compositional_val_forward.3} parent=5 // pred_fallthru
        _
      %p404 = scmp.le.s32.totalorder 2, %s11
      // Predicated region
      $region109: #{compositional_val_forward.3} parent=5 // pred_check
        %p405 = pneg %p404
      $region110: #{compositional_val_forward.3} parent=5 // pred_check_branch
        %407 = sbr.rel (%p405) target = $region112
      $region111: #{compositional_val_forward.3} parent=5 // pred_region
        %s408 = ssub.s32 %s11, 2
        // Predicated region
        $region113: #{compositional_val_forward.3} parent=111 // pred_check
          %p409 = pneg %p108
        $region114: #{compositional_val_forward.3} parent=111 // pred_check_branch
          %411 = sbr.rel (%p409) target = $region116
        $region115: #{compositional_val_forward.3} parent=111 // pred_region
          %s412 = sand.u32 %s93, 1
          %s413 = sand.u32 %s93, 1
          %s414 = smul.addr %s413, 16
          %s415 = scalar_lea.vmem [#allocation2], %s414
        $region116: #{compositional_val_forward.3} parent=111 // pred_fallthru
          _
        // Predicated region
        $region117: #{compositional_val_forward.3} parent=111 // pred_check
          %p416 = pneg %p134
        $region118: #{compositional_val_forward.3} parent=111 // pred_check_branch
          %418 = sbr.rel (%p416) target = $region120
        $region119: #{compositional_val_forward.3} parent=111 // pred_region
          %s419 = sand.u32 %s119, 1
          %s420 = sand.u32 %s119, 1
          %s421 = smul.addr %s420, 16
          %s422 = scalar_lea.vmem [#allocation3], %s421
        $region120: #{compositional_val_forward.3} parent=111 // pred_fallthru
          _
      $region112: #{compositional_val_forward.3} parent=5 // pred_fallthru
        _
    $region6: #{compositional_val_forward.3} parent=1 // loop_footer
      %s15 = sadd.s32 1, %s11
    $region7: #{compositional_val_forward.3} parent=1 // loop_footer_branch
      %10 = sbr.rel target = $region3
    $region8: #{compositional_val_forward.3} parent=1 // loop_exit
      _

// kernel: compositional_val_forward.2
$region0: #{compositional_val_forward.2}
  #allocation0 [shape = 'u32[]', space=smem, size = 0x4, offset = 0x4, fixed_abs, tag = 'smem constant byte address 0x4 - core index']
  #allocation1 [shape = 'u32[72,128]{1,0:T(1,128)}', space=vmem, size = 0x9000, scoped, tag = 'internal scratch']
  %s0 = inlined_call_operand.vmem [shape: bf16[2,1024], index: 0, kind: input, shape index: {}]
  %s1 = inlined_call_operand.vmem [shape: bf16[1024,2048], index: 1, kind: input, shape index: {}]
  %s2 = inlined_call_operand.vmem [shape: f32[2,2048], index: 2, kind: output, shape index: {}]
  %s3 = sld [smem:[#allocation0]]
  $region18: #{compositional_val_forward.2} parent=0
    _
  %s5 = ssub.s32 1, %s3
  %s6 = scalar_select 0, %s5, %s3
  // Predicated region
  $region2: #{compositional_val_forward.2} parent=0 // pred_check
    _
  $region3: #{compositional_val_forward.2} parent=0 // pred_check_branch
    %8 = sbr.rel (0) target = $region5
  $region4: #{compositional_val_forward.2} parent=0 // pred_region
    _
  $region5: #{compositional_val_forward.2} parent=0 // pred_fallthru
    _
  // Predicated region
  $region6: #{compositional_val_forward.2} parent=0 // pred_check
    _
  $region7: #{compositional_val_forward.2} parent=0 // pred_check_branch
    %10 = sbr.rel (0) target = $region9
  $region8: #{compositional_val_forward.2} parent=0 // pred_region
    _
  $region9: #{compositional_val_forward.2} parent=0 // pred_fallthru
    _
  %v11 = vld [vmem:[%s0] sm:$0xff]
  %v12 = vld [vmem:[%s1] sm:$0xff]
  %v13 = vld [vmem:[%s1 + $0x8] sm:$0xff]
  %v14 = vld [vmem:[%s1 + $0x10] sm:$0xff]
  %v15 = vld [vmem:[%s1 + $0x18] sm:$0xff]
  %v16 = vld [vmem:[%s1 + $0x20] sm:$0xff]
  %v17 = vld [vmem:[%s1 + $0x28] sm:$0xff]
  %v18 = vld [vmem:[%s1 + $0x30] sm:$0xff]
  %v19 = vld [vmem:[%s1 + $0x38] sm:$0xff]
  %v20 = vld [vmem:[%s1 + $0x40] sm:$0xff]
  %v21 = vld [vmem:[%s1 + $0x48] sm:$0xff]
  %v22 = vld [vmem:[%s1 + $0x50] sm:$0xff]
  %v23 = vld [vmem:[%s1 + $0x58] sm:$0xff]
  %v24 = vld [vmem:[%s1 + $0x60] sm:$0xff]
  %v25 = vld [vmem:[%s1 + $0x68] sm:$0xff]
  %v26 = vld [vmem:[%s1 + $0x70] sm:$0xff]
  %v27 = vld [vmem:[%s1 + $0x78] sm:$0xff]
  %v28 = vld [vmem:[%s1 + $0x80] sm:$0xff]
  %v29 = vld [vmem:[%s1 + $0x88] sm:$0xff]
  %v30 = vld [vmem:[%s1 + $0x90] sm:$0xff]
  %v31 = vld [vmem:[%s1 + $0x98] sm:$0xff]
  %v32 = vld [vmem:[%s1 + $0xa0] sm:$0xff]
  %v33 = vld [vmem:[%s1 + $0xa8] sm:$0xff]
  %v34 = vld [vmem:[%s1 + $0xb0] sm:$0xff]
  %v35 = vld [vmem:[%s1 + $0xb8] sm:$0xff]
  %v36 = vld [vmem:[%s1 + $0xc0] sm:$0xff]
  %v37 = vld [vmem:[%s1 + $0xc8] sm:$0xff]
  %v38 = vld [vmem:[%s1 + $0xd0] sm:$0xff]
  %v39 = vld [vmem:[%s1 + $0xd8] sm:$0xff]
  %v40 = vld [vmem:[%s1 + $0xe0] sm:$0xff]
  %v41 = vld [vmem:[%s1 + $0xe8] sm:$0xff]
  %v42 = vld [vmem:[%s1 + $0xf0] sm:$0xff]
  %v43 = vld [vmem:[%s1 + $0xf8] sm:$0xff]
  %v44 = vld [vmem:[%s1 + $0x100] sm:$0xff]
  %v45 = vld [vmem:[%s1 + $0x108] sm:$0xff]
  %v46 = vld [vmem:[%s1 + $0x110] sm:$0xff]
  %v47 = vld [vmem:[%s1 + $0x118] sm:$0xff]
  %v48 = vld [vmem:[%s1 + $0x120] sm:$0xff]
  %v49 = vld [vmem:[%s1 + $0x128] sm:$0xff]
  %v50 = vld [vmem:[%s1 + $0x130] sm:$0xff]
  %v51 = vld [vmem:[%s1 + $0x138] sm:$0xff]
  %v52 = vld [vmem:[%s1 + $0x140] sm:$0xff]
  %v53 = vld [vmem:[%s1 + $0x148] sm:$0xff]
  %v54 = vld [vmem:[%s1 + $0x150] sm:$0xff]
  %v55 = vld [vmem:[%s1 + $0x158] sm:$0xff]
  %v56 = vld [vmem:[%s1 + $0x160] sm:$0xff]
  %v57 = vld [vmem:[%s1 + $0x168] sm:$0xff]
  %v58 = vld [vmem:[%s1 + $0x170] sm:$0xff]
  %v59 = vld [vmem:[%s1 + $0x178] sm:$0xff]
  %v60 = vld [vmem:[%s1 + $0x180] sm:$0xff]
  %v61 = vld [vmem:[%s1 + $0x188] sm:$0xff]
  %v62 = vld [vmem:[%s1 + $0x190] sm:$0xff]
  %v63 = vld [vmem:[%s1 + $0x198] sm:$0xff]
  %v64 = vld [vmem:[%s1 + $0x1a0] sm:$0xff]
  %v65 = vld [vmem:[%s1 + $0x1a8] sm:$0xff]
  %v66 = vld [vmem:[%s1 + $0x1b0] sm:$0xff]
  %v67 = vld [vmem:[%s1 + $0x1b8] sm:$0xff]
  %v68 = vld [vmem:[%s1 + $0x1c0] sm:$0xff]
  %v69 = vld [vmem:[%s1 + $0x1c8] sm:$0xff]
  %v70 = vld [vmem:[%s1 + $0x1d0] sm:$0xff]
  %v71 = vld [vmem:[%s1 + $0x1d8] sm:$0xff]
  %v72 = vld [vmem:[%s1 + $0x1e0] sm:$0xff]
  %v73 = vld [vmem:[%s1 + $0x1e8] sm:$0xff]
  %v74 = vld [vmem:[%s1 + $0x1f0] sm:$0xff]
  %v75 = vld [vmem:[%s1 + $0x1f8] sm:$0xff]
  %v76 = vld [vmem:[%s1 + $0x200] sm:$0xff]
  %v77 = vld [vmem:[%s1 + $0x208] sm:$0xff]
  %v78 = vld [vmem:[%s1 + $0x210] sm:$0xff]
  %v79 = vld [vmem:[%s1 + $0x218] sm:$0xff]
  %v80 = vld [vmem:[%s1 + $0x220] sm:$0xff]
  %v81 = vld [vmem:[%s1 + $0x228] sm:$0xff]
  %v82 = vld [vmem:[%s1 + $0x230] sm:$0xff]
  %v83 = vld [vmem:[%s1 + $0x238] sm:$0xff]
  %v84 = vld [vmem:[%s1 + $0x240] sm:$0xff]
  %v85 = vld [vmem:[%s1 + $0x248] sm:$0xff]
  %v86 = vld [vmem:[%s1 + $0x250] sm:$0xff]
  %v87 = vld [vmem:[%s1 + $0x258] sm:$0xff]
  %v88 = vld [vmem:[%s1 + $0x260] sm:$0xff]
  %v89 = vld [vmem:[%s1 + $0x268] sm:$0xff]
  %v90 = vld [vmem:[%s1 + $0x270] sm:$0xff]
  %v91 = vld [vmem:[%s1 + $0x278] sm:$0xff]
  %v92 = vld [vmem:[%s1 + $0x280] sm:$0xff]
  %v93 = vld [vmem:[%s1 + $0x288] sm:$0xff]
  %v94 = vld [vmem:[%s1 + $0x290] sm:$0xff]
  %v95 = vld [vmem:[%s1 + $0x298] sm:$0xff]
  %v96 = vld [vmem:[%s1 + $0x2a0] sm:$0xff]
  %v97 = vld [vmem:[%s1 + $0x2a8] sm:$0xff]
  %v98 = vld [vmem:[%s1 + $0x2b0] sm:$0xff]
  %v99 = vld [vmem:[%s1 + $0x2b8] sm:$0xff]
  %v100 = vld [vmem:[%s1 + $0x2c0] sm:$0xff]
  %v101 = vld [vmem:[%s1 + $0x2c8] sm:$0xff]
  %v102 = vld [vmem:[%s1 + $0x2d0] sm:$0xff]
  %v103 = vld [vmem:[%s1 + $0x2d8] sm:$0xff]
  %v104 = vld [vmem:[%s1 + $0x2e0] sm:$0xff]
  %v105 = vld [vmem:[%s1 + $0x2e8] sm:$0xff]
  %v106 = vld [vmem:[%s1 + $0x2f0] sm:$0xff]
  %v107 = vld [vmem:[%s1 + $0x2f8] sm:$0xff]
  %v108 = vld [vmem:[%s1 + $0x300] sm:$0xff]
  %v109 = vld [vmem:[%s1 + $0x308] sm:$0xff]
  %v110 = vld [vmem:[%s1 + $0x310] sm:$0xff]
  %v111 = vld [vmem:[%s1 + $0x318] sm:$0xff]
  %v112 = vld [vmem:[%s1 + $0x320] sm:$0xff]
  %v113 = vld [vmem:[%s1 + $0x328] sm:$0xff]
  %v114 = vld [vmem:[%s1 + $0x330] sm:$0xff]
  %v115 = vld [vmem:[%s1 + $0x338] sm:$0xff]
  %v116 = vld [vmem:[%s1 + $0x340] sm:$0xff]
  %v117 = vld [vmem:[%s1 + $0x348] sm:$0xff]
  %v118 = vld [vmem:[%s1 + $0x350] sm:$0xff]
  %v119 = vld [vmem:[%s1 + $0x358] sm:$0xff]
  %v120 = vld [vmem:[%s1 + $0x360] sm:$0xff]
  %v121 = vld [vmem:[%s1 + $0x368] sm:$0xff]
  %v122 = vld [vmem:[%s1 + $0x370] sm:$0xff]
  %v123 = vld [vmem:[%s1 + $0x378] sm:$0xff]
  %v124 = vld [vmem:[%s1 + $0x380] sm:$0xff]
  %v125 = vld [vmem:[%s1 + $0x388] sm:$0xff]
  %v126 = vld [vmem:[%s1 + $0x390] sm:$0xff]
  %v127 = vld [vmem:[%s1 + $0x398] sm:$0xff]
  %v128 = vld [vmem:[%s1 + $0x3a0] sm:$0xff]
  %v129 = vld [vmem:[%s1 + $0x3a8] sm:$0xff]
  %v130 = vld [vmem:[%s1 + $0x3b0] sm:$0xff]
  %v131 = vld [vmem:[%s1 + $0x3b8] sm:$0xff]
  %v132 = vld [vmem:[%s1 + $0x3c0] sm:$0xff]
  %v133 = vld [vmem:[%s1 + $0x3c8] sm:$0xff]
  %v134 = vld [vmem:[%s1 + $0x3d0] sm:$0xff]
  %v135 = vld [vmem:[%s1 + $0x3d8] sm:$0xff]
  %v136 = vld [vmem:[%s1 + $0x3e0] sm:$0xff]
  %v137 = vld [vmem:[%s1 + $0x3e8] sm:$0xff]
  %v138 = vld [vmem:[%s1 + $0x3f0] sm:$0xff]
  %v139 = vld [vmem:[%s1 + $0x3f8] sm:$0xff]
  %v140 = vld [vmem:[%s1 + $0x400] sm:$0xff]
  %v141 = vld [vmem:[%s1 + $0x408] sm:$0xff]
  %v142 = vld [vmem:[%s1 + $0x410] sm:$0xff]
  %v143 = vld [vmem:[%s1 + $0x418] sm:$0xff]
  %v144 = vld [vmem:[%s1 + $0x420] sm:$0xff]
  %v145 = vld [vmem:[%s1 + $0x428] sm:$0xff]
  %v146 = vld [vmem:[%s1 + $0x430] sm:$0xff]
  %v147 = vld [vmem:[%s1 + $0x438] sm:$0xff]
  %v148 = vld [vmem:[%s1 + $0x440] sm:$0xff]
  %v149 = vld [vmem:[%s1 + $0x448] sm:$0xff]
  %v150 = vld [vmem:[%s1 + $0x450] sm:$0xff]
  %v151 = vld [vmem:[%s1 + $0x458] sm:$0xff]
  %v152 = vld [vmem:[%s1 + $0x460] sm:$0xff]
  %v153 = vld [vmem:[%s1 + $0x468] sm:$0xff]
  %v154 = vld [vmem:[%s1 + $0x470] sm:$0xff]
  %v155 = vld [vmem:[%s1 + $0x478] sm:$0xff]
  %v156 = vld [vmem:[%s1 + $0x480] sm:$0xff]
  %v157 = vld [vmem:[%s1 + $0x488] sm:$0xff]
  %v158 = vld [vmem:[%s1 + $0x490] sm:$0xff]
  %v159 = vld [vmem:[%s1 + $0x498] sm:$0xff]
  %v160 = vld [vmem:[%s1 + $0x4a0] sm:$0xff]
  %v161 = vld [vmem:[%s1 + $0x4a8] sm:$0xff]
  %v162 = vld [vmem:[%s1 + $0x4b0] sm:$0xff]
  %v163 = vld [vmem:[%s1 + $0x4b8] sm:$0xff]
  %v164 = vld [vmem:[%s1 + $0x4c0] sm:$0xff]
  %v165 = vld [vmem:[%s1 + $0x4c8] sm:$0xff]
  %v166 = vld [vmem:[%s1 + $0x4d0] sm:$0xff]
  %v167 = vld [vmem:[%s1 + $0x4d8] sm:$0xff]
  %v168 = vld [vmem:[%s1 + $0x4e0] sm:$0xff]
  %v169 = vld [vmem:[%s1 + $0x4e8] sm:$0xff]
  %v170 = vld [vmem:[%s1 + $0x4f0] sm:$0xff]
  %v171 = vld [vmem:[%s1 + $0x4f8] sm:$0xff]
  %v172 = vld [vmem:[%s1 + $0x500] sm:$0xff]
  %v173 = vld [vmem:[%s1 + $0x508] sm:$0xff]
  %v174 = vld [vmem:[%s1 + $0x510] sm:$0xff]
  %v175 = vld [vmem:[%s1 + $0x518] sm:$0xff]
  %v176 = vld [vmem:[%s1 + $0x520] sm:$0xff]
  %v177 = vld [vmem:[%s1 + $0x528] sm:$0xff]
  %v178 = vld [vmem:[%s1 + $0x530] sm:$0xff]
  %v179 = vld [vmem:[%s1 + $0x538] sm:$0xff]
  %v180 = vld [vmem:[%s1 + $0x540] sm:$0xff]
  %v181 = vld [vmem:[%s1 + $0x548] sm:$0xff]
  %v182 = vld [vmem:[%s1 + $0x550] sm:$0xff]
  %v183 = vld [vmem:[%s1 + $0x558] sm:$0xff]
  %v184 = vld [vmem:[%s1 + $0x560] sm:$0xff]
  %v185 = vld [vmem:[%s1 + $0x568] sm:$0xff]
  %v186 = vld [vmem:[%s1 + $0x570] sm:$0xff]
  %v187 = vld [vmem:[%s1 + $0x578] sm:$0xff]
  %v188 = vld [vmem:[%s1 + $0x580] sm:$0xff]
  %v189 = vld [vmem:[%s1 + $0x588] sm:$0xff]
  %v190 = vld [vmem:[%s1 + $0x590] sm:$0xff]
  %v191 = vld [vmem:[%s1 + $0x598] sm:$0xff]
  %v192 = vld [vmem:[%s1 + $0x5a0] sm:$0xff]
  %v193 = vld [vmem:[%s1 + $0x5a8] sm:$0xff]
  %v194 = vld [vmem:[%s1 + $0x5b0] sm:$0xff]
  %v195 = vld [vmem:[%s1 + $0x5b8] sm:$0xff]
  %v196 = vld [vmem:[%s1 + $0x5c0] sm:$0xff]
  %v197 = vld [vmem:[%s1 + $0x5c8] sm:$0xff]
  %v198 = vld [vmem:[%s1 + $0x5d0] sm:$0xff]
  %v199 = vld [vmem:[%s1 + $0x5d8] sm:$0xff]
  %v200 = vld [vmem:[%s1 + $0x5e0] sm:$0xff]
  %v201 = vld [vmem:[%s1 + $0x5e8] sm:$0xff]
  %v202 = vld [vmem:[%s1 + $0x5f0] sm:$0xff]
  %v203 = vld [vmem:[%s1 + $0x5f8] sm:$0xff]
  %v204 = vld [vmem:[%s1 + $0x600] sm:$0xff]
  %v205 = vld [vmem:[%s1 + $0x608] sm:$0xff]
  %v206 = vld [vmem:[%s1 + $0x610] sm:$0xff]
  %v207 = vld [vmem:[%s1 + $0x618] sm:$0xff]
  %v208 = vld [vmem:[%s1 + $0x620] sm:$0xff]
  %v209 = vld [vmem:[%s1 + $0x628] sm:$0xff]
  %v210 = vld [vmem:[%s1 + $0x630] sm:$0xff]
  %v211 = vld [vmem:[%s1 + $0x638] sm:$0xff]
  %v212 = vld [vmem:[%s1 + $0x640] sm:$0xff]
  %v213 = vld [vmem:[%s1 + $0x648] sm:$0xff]
  %v214 = vld [vmem:[%s1 + $0x650] sm:$0xff]
  %v215 = vld [vmem:[%s1 + $0x658] sm:$0xff]
  %v216 = vld [vmem:[%s1 + $0x660] sm:$0xff]
  %v217 = vld [vmem:[%s1 + $0x668] sm:$0xff]
  %v218 = vld [vmem:[%s1 + $0x670] sm:$0xff]
  %v219 = vld [vmem:[%s1 + $0x678] sm:$0xff]
  %v220 = vld [vmem:[%s1 + $0x680] sm:$0xff]
  %v221 = vld [vmem:[%s1 + $0x688] sm:$0xff]
  %v222 = vld [vmem:[%s1 + $0x690] sm:$0xff]
  %v223 = vld [vmem:[%s1 + $0x698] sm:$0xff]
  %v224 = vld [vmem:[%s1 + $0x6a0] sm:$0xff]
  %v225 = vld [vmem:[%s1 + $0x6a8] sm:$0xff]
  %v226 = vld [vmem:[%s1 + $0x6b0] sm:$0xff]
  %v227 = vld [vmem:[%s1 + $0x6b8] sm:$0xff]
  %v228 = vld [vmem:[%s1 + $0x6c0] sm:$0xff]
  %v229 = vld [vmem:[%s1 + $0x6c8] sm:$0xff]
  %v230 = vld [vmem:[%s1 + $0x6d0] sm:$0xff]
  %v231 = vld [vmem:[%s1 + $0x6d8] sm:$0xff]
  %v232 = vld [vmem:[%s1 + $0x6e0] sm:$0xff]
  %v233 = vld [vmem:[%s1 + $0x6e8] sm:$0xff]
  %v234 = vld [vmem:[%s1 + $0x6f0] sm:$0xff]
  %v235 = vld [vmem:[%s1 + $0x6f8] sm:$0xff]
  %v236 = vld [vmem:[%s1 + $0x700] sm:$0xff]
  %v237 = vld [vmem:[%s1 + $0x708] sm:$0xff]
  %v238 = vld [vmem:[%s1 + $0x710] sm:$0xff]
  %v239 = vld [vmem:[%s1 + $0x718] sm:$0xff]
  %v240 = vld [vmem:[%s1 + $0x720] sm:$0xff]
  %v241 = vld [vmem:[%s1 + $0x728] sm:$0xff]
  %v242 = vld [vmem:[%s1 + $0x730] sm:$0xff]
  %v243 = vld [vmem:[%s1 + $0x738] sm:$0xff]
  %v244 = vld [vmem:[%s1 + $0x740] sm:$0xff]
  %v245 = vld [vmem:[%s1 + $0x748] sm:$0xff]
  %v246 = vld [vmem:[%s1 + $0x750] sm:$0xff]
  %v247 = vld [vmem:[%s1 + $0x758] sm:$0xff]
  %v248 = vld [vmem:[%s1 + $0x760] sm:$0xff]
  %v249 = vld [vmem:[%s1 + $0x768] sm:$0xff]
  %v250 = vld [vmem:[%s1 + $0x770] sm:$0xff]
  %v251 = vld [vmem:[%s1 + $0x778] sm:$0xff]
  %v252 = vld [vmem:[%s1 + $0x780] sm:$0xff]
  %v253 = vld [vmem:[%s1 + $0x788] sm:$0xff]
  %v254 = vld [vmem:[%s1 + $0x790] sm:$0xff]
  %v255 = vld [vmem:[%s1 + $0x798] sm:$0xff]
  %v256 = vld [vmem:[%s1 + $0x7a0] sm:$0xff]
  %v257 = vld [vmem:[%s1 + $0x7a8] sm:$0xff]
  %v258 = vld [vmem:[%s1 + $0x7b0] sm:$0xff]
  %v259 = vld [vmem:[%s1 + $0x7b8] sm:$0xff]
  %v260 = vld [vmem:[%s1 + $0x7c0] sm:$0xff]
  %v261 = vld [vmem:[%s1 + $0x7c8] sm:$0xff]
  %v262 = vld [vmem:[%s1 + $0x7d0] sm:$0xff]
  %v263 = vld [vmem:[%s1 + $0x7d8] sm:$0xff]
  %v264 = vld [vmem:[%s1 + $0x7e0] sm:$0xff]
  %v265 = vld [vmem:[%s1 + $0x7e8] sm:$0xff]
  %v266 = vld [vmem:[%s1 + $0x7f0] sm:$0xff]
  %v267 = vld [vmem:[%s1 + $0x7f8] sm:$0xff]
  %v268 = vld [vmem:[%s1 + $0x800] sm:$0xff]
  %v269 = vld [vmem:[%s1 + $0x808] sm:$0xff]
  %v270 = vld [vmem:[%s1 + $0x810] sm:$0xff]
  %v271 = vld [vmem:[%s1 + $0x818] sm:$0xff]
  %v272 = vld [vmem:[%s1 + $0x820] sm:$0xff]
  %v273 = vld [vmem:[%s1 + $0x828] sm:$0xff]
  %v274 = vld [vmem:[%s1 + $0x830] sm:$0xff]
  %v275 = vld [vmem:[%s1 + $0x838] sm:$0xff]
  %v276 = vld [vmem:[%s1 + $0x840] sm:$0xff]
  %v277 = vld [vmem:[%s1 + $0x848] sm:$0xff]
  %v278 = vld [vmem:[%s1 + $0x850] sm:$0xff]
  %v279 = vld [vmem:[%s1 + $0x858] sm:$0xff]
  %v280 = vld [vmem:[%s1 + $0x860] sm:$0xff]
  %v281 = vld [vmem:[%s1 + $0x868] sm:$0xff]
  %v282 = vld [vmem:[%s1 + $0x870] sm:$0xff]
  %v283 = vld [vmem:[%s1 + $0x878] sm:$0xff]
  %v284 = vld [vmem:[%s1 + $0x880] sm:$0xff]
  %v285 = vld [vmem:[%s1 + $0x888] sm:$0xff]
  %v286 = vld [vmem:[%s1 + $0x890] sm:$0xff]
  %v287 = vld [vmem:[%s1 + $0x898] sm:$0xff]
  %v288 = vld [vmem:[%s1 + $0x8a0] sm:$0xff]
  %v289 = vld [vmem:[%s1 + $0x8a8] sm:$0xff]
  %v290 = vld [vmem:[%s1 + $0x8b0] sm:$0xff]
  %v291 = vld [vmem:[%s1 + $0x8b8] sm:$0xff]
  %v292 = vld [vmem:[%s1 + $0x8c0] sm:$0xff]
  %v293 = vld [vmem:[%s1 + $0x8c8] sm:$0xff]
  %v294 = vld [vmem:[%s1 + $0x8d0] sm:$0xff]
  %v295 = vld [vmem:[%s1 + $0x8d8] sm:$0xff]
  %v296 = vld [vmem:[%s1 + $0x8e0] sm:$0xff]
  %v297 = vld [vmem:[%s1 + $0x8e8] sm:$0xff]
  %v298 = vld [vmem:[%s1 + $0x8f0] sm:$0xff]
  %v299 = vld [vmem:[%s1 + $0x8f8] sm:$0xff]
  %v300 = vld [vmem:[%s1 + $0x900] sm:$0xff]
  %v301 = vld [vmem:[%s1 + $0x908] sm:$0xff]
  %v302 = vld [vmem:[%s1 + $0x910] sm:$0xff]
  %v303 = vld [vmem:[%s1 + $0x918] sm:$0xff]
  %v304 = vld [vmem:[%s1 + $0x920] sm:$0xff]
  %v305 = vld [vmem:[%s1 + $0x928] sm:$0xff]
  %v306 = vld [vmem:[%s1 + $0x930] sm:$0xff]
  %v307 = vld [vmem:[%s1 + $0x938] sm:$0xff]
  %v308 = vld [vmem:[%s1 + $0x940] sm:$0xff]
  %v309 = vld [vmem:[%s1 + $0x948] sm:$0xff]
  %v310 = vld [vmem:[%s1 + $0x950] sm:$0xff]
  %v311 = vld [vmem:[%s1 + $0x958] sm:$0xff]
  %v312 = vld [vmem:[%s1 + $0x960] sm:$0xff]
  %v313 = vld [vmem:[%s1 + $0x968] sm:$0xff]
  %v314 = vld [vmem:[%s1 + $0x970] sm:$0xff]
  %v315 = vld [vmem:[%s1 + $0x978] sm:$0xff]
  %v316 = vld [vmem:[%s1 + $0x980] sm:$0xff]
  %v317 = vld [vmem:[%s1 + $0x988] sm:$0xff]
  %v318 = vld [vmem:[%s1 + $0x990] sm:$0xff]
  %v319 = vld [vmem:[%s1 + $0x998] sm:$0xff]
  %v320 = vld [vmem:[%s1 + $0x9a0] sm:$0xff]
  %v321 = vld [vmem:[%s1 + $0x9a8] sm:$0xff]
  %v322 = vld [vmem:[%s1 + $0x9b0] sm:$0xff]
  %v323 = vld [vmem:[%s1 + $0x9b8] sm:$0xff]
  %v324 = vld [vmem:[%s1 + $0x9c0] sm:$0xff]
  %v325 = vld [vmem:[%s1 + $0x9c8] sm:$0xff]
  %v326 = vld [vmem:[%s1 + $0x9d0] sm:$0xff]
  %v327 = vld [vmem:[%s1 + $0x9d8] sm:$0xff]
  %v328 = vld [vmem:[%s1 + $0x9e0] sm:$0xff]
  %v329 = vld [vmem:[%s1 + $0x9e8] sm:$0xff]
  %v330 = vld [vmem:[%s1 + $0x9f0] sm:$0xff]
  %v331 = vld [vmem:[%s1 + $0x9f8] sm:$0xff]
  %v332 = vld [vmem:[%s1 + $0xa00] sm:$0xff]
  %v333 = vld [vmem:[%s1 + $0xa08] sm:$0xff]
  %v334 = vld [vmem:[%s1 + $0xa10] sm:$0xff]
  %v335 = vld [vmem:[%s1 + $0xa18] sm:$0xff]
  %v336 = vld [vmem:[%s1 + $0xa20] sm:$0xff]
  %v337 = vld [vmem:[%s1 + $0xa28] sm:$0xff]
  %v338 = vld [vmem:[%s1 + $0xa30] sm:$0xff]
  %v339 = vld [vmem:[%s1 + $0xa38] sm:$0xff]
  %v340 = vld [vmem:[%s1 + $0xa40] sm:$0xff]
  %v341 = vld [vmem:[%s1 + $0xa48] sm:$0xff]
  %v342 = vld [vmem:[%s1 + $0xa50] sm:$0xff]
  %v343 = vld [vmem:[%s1 + $0xa58] sm:$0xff]
  %v344 = vld [vmem:[%s1 + $0xa60] sm:$0xff]
  %v345 = vld [vmem:[%s1 + $0xa68] sm:$0xff]
  %v346 = vld [vmem:[%s1 + $0xa70] sm:$0xff]
  %v347 = vld [vmem:[%s1 + $0xa78] sm:$0xff]
  %v348 = vld [vmem:[%s1 + $0xa80] sm:$0xff]
  %v349 = vld [vmem:[%s1 + $0xa88] sm:$0xff]
  %v350 = vld [vmem:[%s1 + $0xa90] sm:$0xff]
  %v351 = vld [vmem:[%s1 + $0xa98] sm:$0xff]
  %v352 = vld [vmem:[%s1 + $0xaa0] sm:$0xff]
  %v353 = vld [vmem:[%s1 + $0xaa8] sm:$0xff]
  %v354 = vld [vmem:[%s1 + $0xab0] sm:$0xff]
  %v355 = vld [vmem:[%s1 + $0xab8] sm:$0xff]
  %v356 = vld [vmem:[%s1 + $0xac0] sm:$0xff]
  %v357 = vld [vmem:[%s1 + $0xac8] sm:$0xff]
  %v358 = vld [vmem:[%s1 + $0xad0] sm:$0xff]
  %v359 = vld [vmem:[%s1 + $0xad8] sm:$0xff]
  %v360 = vld [vmem:[%s1 + $0xae0] sm:$0xff]
  %v361 = vld [vmem:[%s1 + $0xae8] sm:$0xff]
  %v362 = vld [vmem:[%s1 + $0xaf0] sm:$0xff]
  %v363 = vld [vmem:[%s1 + $0xaf8] sm:$0xff]
  %v364 = vld [vmem:[%s1 + $0xb00] sm:$0xff]
  %v365 = vld [vmem:[%s1 + $0xb08] sm:$0xff]
  %v366 = vld [vmem:[%s1 + $0xb10] sm:$0xff]
  %v367 = vld [vmem:[%s1 + $0xb18] sm:$0xff]
  %v368 = vld [vmem:[%s1 + $0xb20] sm:$0xff]
  %v369 = vld [vmem:[%s1 + $0xb28] sm:$0xff]
  %v370 = vld [vmem:[%s1 + $0xb30] sm:$0xff]
  %v371 = vld [vmem:[%s1 + $0xb38] sm:$0xff]
  %v372 = vld [vmem:[%s1 + $0xb40] sm:$0xff]
  %v373 = vld [vmem:[%s1 + $0xb48] sm:$0xff]
  %v374 = vld [vmem:[%s1 + $0xb50] sm:$0xff]
  %v375 = vld [vmem:[%s1 + $0xb58] sm:$0xff]
  %v376 = vld [vmem:[%s1 + $0xb60] sm:$0xff]
  %v377 = vld [vmem:[%s1 + $0xb68] sm:$0xff]
  %v378 = vld [vmem:[%s1 + $0xb70] sm:$0xff]
  %v379 = vld [vmem:[%s1 + $0xb78] sm:$0xff]
  %v380 = vld [vmem:[%s1 + $0xb80] sm:$0xff]
  %v381 = vld [vmem:[%s1 + $0xb88] sm:$0xff]
  %v382 = vld [vmem:[%s1 + $0xb90] sm:$0xff]
  %v383 = vld [vmem:[%s1 + $0xb98] sm:$0xff]
  %v384 = vld [vmem:[%s1 + $0xba0] sm:$0xff]
  %v385 = vld [vmem:[%s1 + $0xba8] sm:$0xff]
  %v386 = vld [vmem:[%s1 + $0xbb0] sm:$0xff]
  %v387 = vld [vmem:[%s1 + $0xbb8] sm:$0xff]
  %v388 = vld [vmem:[%s1 + $0xbc0] sm:$0xff]
  %v389 = vld [vmem:[%s1 + $0xbc8] sm:$0xff]
  %v390 = vld [vmem:[%s1 + $0xbd0] sm:$0xff]
  %v391 = vld [vmem:[%s1 + $0xbd8] sm:$0xff]
  %v392 = vld [vmem:[%s1 + $0xbe0] sm:$0xff]
  %v393 = vld [vmem:[%s1 + $0xbe8] sm:$0xff]
  %v394 = vld [vmem:[%s1 + $0xbf0] sm:$0xff]
  %v395 = vld [vmem:[%s1 + $0xbf8] sm:$0xff]
  %v396 = vld [vmem:[%s1 + $0xc00] sm:$0xff]
  %v397 = vld [vmem:[%s1 + $0xc08] sm:$0xff]
  %v398 = vld [vmem:[%s1 + $0xc10] sm:$0xff]
  %v399 = vld [vmem:[%s1 + $0xc18] sm:$0xff]
  %v400 = vld [vmem:[%s1 + $0xc20] sm:$0xff]
  %v401 = vld [vmem:[%s1 + $0xc28] sm:$0xff]
  %v402 = vld [vmem:[%s1 + $0xc30] sm:$0xff]
  %v403 = vld [vmem:[%s1 + $0xc38] sm:$0xff]
  %v404 = vld [vmem:[%s1 + $0xc40] sm:$0xff]
  %v405 = vld [vmem:[%s1 + $0xc48] sm:$0xff]
  %v406 = vld [vmem:[%s1 + $0xc50] sm:$0xff]
  %v407 = vld [vmem:[%s1 + $0xc58] sm:$0xff]
  %v408 = vld [vmem:[%s1 + $0xc60] sm:$0xff]
  %v409 = vld [vmem:[%s1 + $0xc68] sm:$0xff]
  %v410 = vld [vmem:[%s1 + $0xc70] sm:$0xff]
  %v411 = vld [vmem:[%s1 + $0xc78] sm:$0xff]
  %v412 = vld [vmem:[%s1 + $0xc80] sm:$0xff]
  %v413 = vld [vmem:[%s1 + $0xc88] sm:$0xff]
  %v414 = vld [vmem:[%s1 + $0xc90] sm:$0xff]
  %v415 = vld [vmem:[%s1 + $0xc98] sm:$0xff]
  %v416 = vld [vmem:[%s1 + $0xca0] sm:$0xff]
  %v417 = vld [vmem:[%s1 + $0xca8] sm:$0xff]
  %v418 = vld [vmem:[%s1 + $0xcb0] sm:$0xff]
  %v419 = vld [vmem:[%s1 + $0xcb8] sm:$0xff]
  %v420 = vld [vmem:[%s1 + $0xcc0] sm:$0xff]
  %v421 = vld [vmem:[%s1 + $0xcc8] sm:$0xff]
  %v422 = vld [vmem:[%s1 + $0xcd0] sm:$0xff]
  %v423 = vld [vmem:[%s1 + $0xcd8] sm:$0xff]
  %v424 = vld [vmem:[%s1 + $0xce0] sm:$0xff]
  %v425 = vld [vmem:[%s1 + $0xce8] sm:$0xff]
  %v426 = vld [vmem:[%s1 + $0xcf0] sm:$0xff]
  %v427 = vld [vmem:[%s1 + $0xcf8] sm:$0xff]
  %v428 = vld [vmem:[%s1 + $0xd00] sm:$0xff]
  %v429 = vld [vmem:[%s1 + $0xd08] sm:$0xff]
  %v430 = vld [vmem:[%s1 + $0xd10] sm:$0xff]
  %v431 = vld [vmem:[%s1 + $0xd18] sm:$0xff]
  %v432 = vld [vmem:[%s1 + $0xd20] sm:$0xff]
  %v433 = vld [vmem:[%s1 + $0xd28] sm:$0xff]
  %v434 = vld [vmem:[%s1 + $0xd30] sm:$0xff]
  %v435 = vld [vmem:[%s1 + $0xd38] sm:$0xff]
  %v436 = vld [vmem:[%s1 + $0xd40] sm:$0xff]
  %v437 = vld [vmem:[%s1 + $0xd48] sm:$0xff]
  %v438 = vld [vmem:[%s1 + $0xd50] sm:$0xff]
  %v439 = vld [vmem:[%s1 + $0xd58] sm:$0xff]
  %v440 = vld [vmem:[%s1 + $0xd60] sm:$0xff]
  %v441 = vld [vmem:[%s1 + $0xd68] sm:$0xff]
  %v442 = vld [vmem:[%s1 + $0xd70] sm:$0xff]
  %v443 = vld [vmem:[%s1 + $0xd78] sm:$0xff]
  %v444 = vld [vmem:[%s1 + $0xd80] sm:$0xff]
  %v445 = vld [vmem:[%s1 + $0xd88] sm:$0xff]
  %v446 = vld [vmem:[%s1 + $0xd90] sm:$0xff]
  %v447 = vld [vmem:[%s1 + $0xd98] sm:$0xff]
  %v448 = vld [vmem:[%s1 + $0xda0] sm:$0xff]
  %v449 = vld [vmem:[%s1 + $0xda8] sm:$0xff]
  %v450 = vld [vmem:[%s1 + $0xdb0] sm:$0xff]
  %v451 = vld [vmem:[%s1 + $0xdb8] sm:$0xff]
  %v452 = vld [vmem:[%s1 + $0xdc0] sm:$0xff]
  %v453 = vld [vmem:[%s1 + $0xdc8] sm:$0xff]
  %v454 = vld [vmem:[%s1 + $0xdd0] sm:$0xff]
  %v455 = vld [vmem:[%s1 + $0xdd8] sm:$0xff]
  %v456 = vld [vmem:[%s1 + $0xde0] sm:$0xff]
  %v457 = vld [vmem:[%s1 + $0xde8] sm:$0xff]
  %v458 = vld [vmem:[%s1 + $0xdf0] sm:$0xff]
  %v459 = vld [vmem:[%s1 + $0xdf8] sm:$0xff]
  %v460 = vld [vmem:[%s1 + $0xe00] sm:$0xff]
  %v461 = vld [vmem:[%s1 + $0xe08] sm:$0xff]
  %v462 = vld [vmem:[%s1 + $0xe10] sm:$0xff]
  %v463 = vld [vmem:[%s1 + $0xe18] sm:$0xff]
  %v464 = vld [vmem:[%s1 + $0xe20] sm:$0xff]
  %v465 = vld [vmem:[%s1 + $0xe28] sm:$0xff]
  %v466 = vld [vmem:[%s1 + $0xe30] sm:$0xff]
  %v467 = vld [vmem:[%s1 + $0xe38] sm:$0xff]
  %v468 = vld [vmem:[%s1 + $0xe40] sm:$0xff]
  %v469 = vld [vmem:[%s1 + $0xe48] sm:$0xff]
  %v470 = vld [vmem:[%s1 + $0xe50] sm:$0xff]
  %v471 = vld [vmem:[%s1 + $0xe58] sm:$0xff]
  %v472 = vld [vmem:[%s1 + $0xe60] sm:$0xff]
  %v473 = vld [vmem:[%s1 + $0xe68] sm:$0xff]
  %v474 = vld [vmem:[%s1 + $0xe70] sm:$0xff]
  %v475 = vld [vmem:[%s1 + $0xe78] sm:$0xff]
  %v476 = vld [vmem:[%s1 + $0xe80] sm:$0xff]
  %v477 = vld [vmem:[%s1 + $0xe88] sm:$0xff]
  %v478 = vld [vmem:[%s1 + $0xe90] sm:$0xff]
  %v479 = vld [vmem:[%s1 + $0xe98] sm:$0xff]
  %v480 = vld [vmem:[%s1 + $0xea0] sm:$0xff]
  %v481 = vld [vmem:[%s1 + $0xea8] sm:$0xff]
  %v482 = vld [vmem:[%s1 + $0xeb0] sm:$0xff]
  %v483 = vld [vmem:[%s1 + $0xeb8] sm:$0xff]
  %v484 = vld [vmem:[%s1 + $0xec0] sm:$0xff]
  %v485 = vld [vmem:[%s1 + $0xec8] sm:$0xff]
  %v486 = vld [vmem:[%s1 + $0xed0] sm:$0xff]
  %v487 = vld [vmem:[%s1 + $0xed8] sm:$0xff]
  %v488 = vld [vmem:[%s1 + $0xee0] sm:$0xff]
  %v489 = vld [vmem:[%s1 + $0xee8] sm:$0xff]
  %v490 = vld [vmem:[%s1 + $0xef0] sm:$0xff]
  %v491 = vld [vmem:[%s1 + $0xef8] sm:$0xff]
  %v492 = vld [vmem:[%s1 + $0xf00] sm:$0xff]
  %v493 = vld [vmem:[%s1 + $0xf08] sm:$0xff]
  %v494 = vld [vmem:[%s1 + $0xf10] sm:$0xff]
  %v495 = vld [vmem:[%s1 + $0xf18] sm:$0xff]
  %v496 = vld [vmem:[%s1 + $0xf20] sm:$0xff]
  %v497 = vld [vmem:[%s1 + $0xf28] sm:$0xff]
  %v498 = vld [vmem:[%s1 + $0xf30] sm:$0xff]
  %v499 = vld [vmem:[%s1 + $0xf38] sm:$0xff]
  %v500 = vld [vmem:[%s1 + $0xf40] sm:$0xff]
  %v501 = vld [vmem:[%s1 + $0xf48] sm:$0xff]
  %v502 = vld [vmem:[%s1 + $0xf50] sm:$0xff]
  %v503 = vld [vmem:[%s1 + $0xf58] sm:$0xff]
  %v504 = vld [vmem:[%s1 + $0xf60] sm:$0xff]
  %v505 = vld [vmem:[%s1 + $0xf68] sm:$0xff]
  %v506 = vld [vmem:[%s1 + $0xf70] sm:$0xff]
  %v507 = vld [vmem:[%s1 + $0xf78] sm:$0xff]
  %v508 = vld [vmem:[%s1 + $0xf80] sm:$0xff]
  %v509 = vld [vmem:[%s1 + $0xf88] sm:$0xff]
  %v510 = vld [vmem:[%s1 + $0xf90] sm:$0xff]
  %v511 = vld [vmem:[%s1 + $0xf98] sm:$0xff]
  %v512 = vld [vmem:[%s1 + $0xfa0] sm:$0xff]
  %v513 = vld [vmem:[%s1 + $0xfa8] sm:$0xff]
  %v514 = vld [vmem:[%s1 + $0xfb0] sm:$0xff]
  %v515 = vld [vmem:[%s1 + $0xfb8] sm:$0xff]
  %v516 = vld [vmem:[%s1 + $0xfc0] sm:$0xff]
  %v517 = vld [vmem:[%s1 + $0xfc8] sm:$0xff]
  %v518 = vld [vmem:[%s1 + $0xfd0] sm:$0xff]
  %v519 = vld [vmem:[%s1 + $0xfd8] sm:$0xff]
  %v520 = vld [vmem:[%s1 + $0xfe0] sm:$0xff]
  %v521 = vld [vmem:[%s1 + $0xfe8] sm:$0xff]
  %v522 = vld [vmem:[%s1 + $0xff0] sm:$0xff]
  %v523 = vld [vmem:[%s1 + $0xff8] sm:$0xff]
  %v524 = vld [vmem:[%s1 + $0x1000] sm:$0xff]
  %v525 = vld [vmem:[%s1 + $0x1008] sm:$0xff]
  %v526 = vld [vmem:[%s1 + $0x1010] sm:$0xff]
  %v527 = vld [vmem:[%s1 + $0x1018] sm:$0xff]
  %v528 = vld [vmem:[%s1 + $0x1020] sm:$0xff]
  %v529 = vld [vmem:[%s1 + $0x1028] sm:$0xff]
  %v530 = vld [vmem:[%s1 + $0x1030] sm:$0xff]
  %v531 = vld [vmem:[%s1 + $0x1038] sm:$0xff]
  %v532 = vld [vmem:[%s1 + $0x1040] sm:$0xff]
  %v533 = vld [vmem:[%s1 + $0x1048] sm:$0xff]
  %v534 = vld [vmem:[%s1 + $0x1050] sm:$0xff]
  %v535 = vld [vmem:[%s1 + $0x1058] sm:$0xff]
  %v536 = vld [vmem:[%s1 + $0x1060] sm:$0xff]
  %v537 = vld [vmem:[%s1 + $0x1068] sm:$0xff]
  %v538 = vld [vmem:[%s1 + $0x1070] sm:$0xff]
  %v539 = vld [vmem:[%s1 + $0x1078] sm:$0xff]
  %v540 = vld [vmem:[%s1 + $0x1080] sm:$0xff]
  %v541 = vld [vmem:[%s1 + $0x1088] sm:$0xff]
  %v542 = vld [vmem:[%s1 + $0x1090] sm:$0xff]
  %v543 = vld [vmem:[%s1 + $0x1098] sm:$0xff]
  %v544 = vld [vmem:[%s1 + $0x10a0] sm:$0xff]
  %v545 = vld [vmem:[%s1 + $0x10a8] sm:$0xff]
  %v546 = vld [vmem:[%s1 + $0x10b0] sm:$0xff]
  %v547 = vld [vmem:[%s1 + $0x10b8] sm:$0xff]
  %v548 = vld [vmem:[%s1 + $0x10c0] sm:$0xff]
  %v549 = vld [vmem:[%s1 + $0x10c8] sm:$0xff]
  %v550 = vld [vmem:[%s1 + $0x10d0] sm:$0xff]
  %v551 = vld [vmem:[%s1 + $0x10d8] sm:$0xff]
  %v552 = vld [vmem:[%s1 + $0x10e0] sm:$0xff]
  %v553 = vld [vmem:[%s1 + $0x10e8] sm:$0xff]
  %v554 = vld [vmem:[%s1 + $0x10f0] sm:$0xff]
  %v555 = vld [vmem:[%s1 + $0x10f8] sm:$0xff]
  %v556 = vld [vmem:[%s1 + $0x1100] sm:$0xff]
  %v557 = vld [vmem:[%s1 + $0x1108] sm:$0xff]
  %v558 = vld [vmem:[%s1 + $0x1110] sm:$0xff]
  %v559 = vld [vmem:[%s1 + $0x1118] sm:$0xff]
  %v560 = vld [vmem:[%s1 + $0x1120] sm:$0xff]
  %v561 = vld [vmem:[%s1 + $0x1128] sm:$0xff]
  %v562 = vld [vmem:[%s1 + $0x1130] sm:$0xff]
  %v563 = vld [vmem:[%s1 + $0x1138] sm:$0xff]
  %v564 = vld [vmem:[%s1 + $0x1140] sm:$0xff]
  %v565 = vld [vmem:[%s1 + $0x1148] sm:$0xff]
  %v566 = vld [vmem:[%s1 + $0x1150] sm:$0xff]
  %v567 = vld [vmem:[%s1 + $0x1158] sm:$0xff]
  %v568 = vld [vmem:[%s1 + $0x1160] sm:$0xff]
  %v569 = vld [vmem:[%s1 + $0x1168] sm:$0xff]
  %v570 = vld [vmem:[%s1 + $0x1170] sm:$0xff]
  %v571 = vld [vmem:[%s1 + $0x1178] sm:$0xff]
  %v572 = vld [vmem:[%s1 + $0x1180] sm:$0xff]
  %v573 = vld [vmem:[%s1 + $0x1188] sm:$0xff]
  %v574 = vld [vmem:[%s1 + $0x1190] sm:$0xff]
  %v575 = vld [vmem:[%s1 + $0x1198] sm:$0xff]
  %v576 = vld [vmem:[%s1 + $0x11a0] sm:$0xff]
  %v577 = vld [vmem:[%s1 + $0x11a8] sm:$0xff]
  %v578 = vld [vmem:[%s1 + $0x11b0] sm:$0xff]
  %v579 = vld [vmem:[%s1 + $0x11b8] sm:$0xff]
  %v580 = vld [vmem:[%s1 + $0x11c0] sm:$0xff]
  %v581 = vld [vmem:[%s1 + $0x11c8] sm:$0xff]
  %v582 = vld [vmem:[%s1 + $0x11d0] sm:$0xff]
  %v583 = vld [vmem:[%s1 + $0x11d8] sm:$0xff]
  %v584 = vld [vmem:[%s1 + $0x11e0] sm:$0xff]
  %v585 = vld [vmem:[%s1 + $0x11e8] sm:$0xff]
  %v586 = vld [vmem:[%s1 + $0x11f0] sm:$0xff]
  %v587 = vld [vmem:[%s1 + $0x11f8] sm:$0xff]
  %v588 = vld [vmem:[%s1 + $0x1200] sm:$0xff]
  %v589 = vld [vmem:[%s1 + $0x1208] sm:$0xff]
  %v590 = vld [vmem:[%s1 + $0x1210] sm:$0xff]
  %v591 = vld [vmem:[%s1 + $0x1218] sm:$0xff]
  %v592 = vld [vmem:[%s1 + $0x1220] sm:$0xff]
  %v593 = vld [vmem:[%s1 + $0x1228] sm:$0xff]
  %v594 = vld [vmem:[%s1 + $0x1230] sm:$0xff]
  %v595 = vld [vmem:[%s1 + $0x1238] sm:$0xff]
  %v596 = vld [vmem:[%s1 + $0x1240] sm:$0xff]
  %v597 = vld [vmem:[%s1 + $0x1248] sm:$0xff]
  %v598 = vld [vmem:[%s1 + $0x1250] sm:$0xff]
  %v599 = vld [vmem:[%s1 + $0x1258] sm:$0xff]
  %v600 = vld [vmem:[%s1 + $0x1260] sm:$0xff]
  %v601 = vld [vmem:[%s1 + $0x1268] sm:$0xff]
  %v602 = vld [vmem:[%s1 + $0x1270] sm:$0xff]
  %v603 = vld [vmem:[%s1 + $0x1278] sm:$0xff]
  %v604 = vld [vmem:[%s1 + $0x1280] sm:$0xff]
  %v605 = vld [vmem:[%s1 + $0x1288] sm:$0xff]
  %v606 = vld [vmem:[%s1 + $0x1290] sm:$0xff]
  %v607 = vld [vmem:[%s1 + $0x1298] sm:$0xff]
  %v608 = vld [vmem:[%s1 + $0x12a0] sm:$0xff]
  %v609 = vld [vmem:[%s1 + $0x12a8] sm:$0xff]
  %v610 = vld [vmem:[%s1 + $0x12b0] sm:$0xff]
  %v611 = vld [vmem:[%s1 + $0x12b8] sm:$0xff]
  %v612 = vld [vmem:[%s1 + $0x12c0] sm:$0xff]
  %v613 = vld [vmem:[%s1 + $0x12c8] sm:$0xff]
  %v614 = vld [vmem:[%s1 + $0x12d0] sm:$0xff]
  %v615 = vld [vmem:[%s1 + $0x12d8] sm:$0xff]
  %v616 = vld [vmem:[%s1 + $0x12e0] sm:$0xff]
  %v617 = vld [vmem:[%s1 + $0x12e8] sm:$0xff]
  %v618 = vld [vmem:[%s1 + $0x12f0] sm:$0xff]
  %v619 = vld [vmem:[%s1 + $0x12f8] sm:$0xff]
  %v620 = vld [vmem:[%s1 + $0x1300] sm:$0xff]
  %v621 = vld [vmem:[%s1 + $0x1308] sm:$0xff]
  %v622 = vld [vmem:[%s1 + $0x1310] sm:$0xff]
  %v623 = vld [vmem:[%s1 + $0x1318] sm:$0xff]
  %v624 = vld [vmem:[%s1 + $0x1320] sm:$0xff]
  %v625 = vld [vmem:[%s1 + $0x1328] sm:$0xff]
  %v626 = vld [vmem:[%s1 + $0x1330] sm:$0xff]
  %v627 = vld [vmem:[%s1 + $0x1338] sm:$0xff]
  %v628 = vld [vmem:[%s1 + $0x1340] sm:$0xff]
  %v629 = vld [vmem:[%s1 + $0x1348] sm:$0xff]
  %v630 = vld [vmem:[%s1 + $0x1350] sm:$0xff]
  %v631 = vld [vmem:[%s1 + $0x1358] sm:$0xff]
  %v632 = vld [vmem:[%s1 + $0x1360] sm:$0xff]
  %v633 = vld [vmem:[%s1 + $0x1368] sm:$0xff]
  %v634 = vld [vmem:[%s1 + $0x1370] sm:$0xff]
  %v635 = vld [vmem:[%s1 + $0x1378] sm:$0xff]
  %v636 = vld [vmem:[%s1 + $0x1380] sm:$0xff]
  %v637 = vld [vmem:[%s1 + $0x1388] sm:$0xff]
  %v638 = vld [vmem:[%s1 + $0x1390] sm:$0xff]
  %v639 = vld [vmem:[%s1 + $0x1398] sm:$0xff]
  %v640 = vld [vmem:[%s1 + $0x13a0] sm:$0xff]
  %v641 = vld [vmem:[%s1 + $0x13a8] sm:$0xff]
  %v642 = vld [vmem:[%s1 + $0x13b0] sm:$0xff]
  %v643 = vld [vmem:[%s1 + $0x13b8] sm:$0xff]
  %v644 = vld [vmem:[%s1 + $0x13c0] sm:$0xff]
  %v645 = vld [vmem:[%s1 + $0x13c8] sm:$0xff]
  %v646 = vld [vmem:[%s1 + $0x13d0] sm:$0xff]
  %v647 = vld [vmem:[%s1 + $0x13d8] sm:$0xff]
  %v648 = vld [vmem:[%s1 + $0x13e0] sm:$0xff]
  %v649 = vld [vmem:[%s1 + $0x13e8] sm:$0xff]
  %v650 = vld [vmem:[%s1 + $0x13f0] sm:$0xff]
  %v651 = vld [vmem:[%s1 + $0x13f8] sm:$0xff]
  %v652 = vld [vmem:[%s1 + $0x1400] sm:$0xff]
  %v653 = vld [vmem:[%s1 + $0x1408] sm:$0xff]
  %v654 = vld [vmem:[%s1 + $0x1410] sm:$0xff]
  %v655 = vld [vmem:[%s1 + $0x1418] sm:$0xff]
  %v656 = vld [vmem:[%s1 + $0x1420] sm:$0xff]
  %v657 = vld [vmem:[%s1 + $0x1428] sm:$0xff]
  %v658 = vld [vmem:[%s1 + $0x1430] sm:$0xff]
  %v659 = vld [vmem:[%s1 + $0x1438] sm:$0xff]
  %v660 = vld [vmem:[%s1 + $0x1440] sm:$0xff]
  %v661 = vld [vmem:[%s1 + $0x1448] sm:$0xff]
  %v662 = vld [vmem:[%s1 + $0x1450] sm:$0xff]
  %v663 = vld [vmem:[%s1 + $0x1458] sm:$0xff]
  %v664 = vld [vmem:[%s1 + $0x1460] sm:$0xff]
  %v665 = vld [vmem:[%s1 + $0x1468] sm:$0xff]
  %v666 = vld [vmem:[%s1 + $0x1470] sm:$0xff]
  %v667 = vld [vmem:[%s1 + $0x1478] sm:$0xff]
  %v668 = vld [vmem:[%s1 + $0x1480] sm:$0xff]
  %v669 = vld [vmem:[%s1 + $0x1488] sm:$0xff]
  %v670 = vld [vmem:[%s1 + $0x1490] sm:$0xff]
  %v671 = vld [vmem:[%s1 + $0x1498] sm:$0xff]
  %v672 = vld [vmem:[%s1 + $0x14a0] sm:$0xff]
  %v673 = vld [vmem:[%s1 + $0x14a8] sm:$0xff]
  %v674 = vld [vmem:[%s1 + $0x14b0] sm:$0xff]
  %v675 = vld [vmem:[%s1 + $0x14b8] sm:$0xff]
  %v676 = vld [vmem:[%s1 + $0x14c0] sm:$0xff]
  %v677 = vld [vmem:[%s1 + $0x14c8] sm:$0xff]
  %v678 = vld [vmem:[%s1 + $0x14d0] sm:$0xff]
  %v679 = vld [vmem:[%s1 + $0x14d8] sm:$0xff]
  %v680 = vld [vmem:[%s1 + $0x14e0] sm:$0xff]
  %v681 = vld [vmem:[%s1 + $0x14e8] sm:$0xff]
  %v682 = vld [vmem:[%s1 + $0x14f0] sm:$0xff]
  %v683 = vld [vmem:[%s1 + $0x14f8] sm:$0xff]
  %v684 = vld [vmem:[%s1 + $0x1500] sm:$0xff]
  %v685 = vld [vmem:[%s1 + $0x1508] sm:$0xff]
  %v686 = vld [vmem:[%s1 + $0x1510] sm:$0xff]
  %v687 = vld [vmem:[%s1 + $0x1518] sm:$0xff]
  %v688 = vld [vmem:[%s1 + $0x1520] sm:$0xff]
  %v689 = vld [vmem:[%s1 + $0x1528] sm:$0xff]
  %v690 = vld [vmem:[%s1 + $0x1530] sm:$0xff]
  %v691 = vld [vmem:[%s1 + $0x1538] sm:$0xff]
  %v692 = vld [vmem:[%s1 + $0x1540] sm:$0xff]
  %v693 = vld [vmem:[%s1 + $0x1548] sm:$0xff]
  %v694 = vld [vmem:[%s1 + $0x1550] sm:$0xff]
  %v695 = vld [vmem:[%s1 + $0x1558] sm:$0xff]
  %v696 = vld [vmem:[%s1 + $0x1560] sm:$0xff]
  %v697 = vld [vmem:[%s1 + $0x1568] sm:$0xff]
  %v698 = vld [vmem:[%s1 + $0x1570] sm:$0xff]
  %v699 = vld [vmem:[%s1 + $0x1578] sm:$0xff]
  %v700 = vld [vmem:[%s1 + $0x1580] sm:$0xff]
  %v701 = vld [vmem:[%s1 + $0x1588] sm:$0xff]
  %v702 = vld [vmem:[%s1 + $0x1590] sm:$0xff]
  %v703 = vld [vmem:[%s1 + $0x1598] sm:$0xff]
  %v704 = vld [vmem:[%s1 + $0x15a0] sm:$0xff]
  %v705 = vld [vmem:[%s1 + $0x15a8] sm:$0xff]
  %v706 = vld [vmem:[%s1 + $0x15b0] sm:$0xff]
  %v707 = vld [vmem:[%s1 + $0x15b8] sm:$0xff]
  %v708 = vld [vmem:[%s1 + $0x15c0] sm:$0xff]
  %v709 = vld [vmem:[%s1 + $0x15c8] sm:$0xff]
  %v710 = vld [vmem:[%s1 + $0x15d0] sm:$0xff]
  %v711 = vld [vmem:[%s1 + $0x15d8] sm:$0xff]
  %v712 = vld [vmem:[%s1 + $0x15e0] sm:$0xff]
  %v713 = vld [vmem:[%s1 + $0x15e8] sm:$0xff]
  %v714 = vld [vmem:[%s1 + $0x15f0] sm:$0xff]
  %v715 = vld [vmem:[%s1 + $0x15f8] sm:$0xff]
  %v716 = vld [vmem:[%s1 + $0x1600] sm:$0xff]
  %v717 = vld [vmem:[%s1 + $0x1608] sm:$0xff]
  %v718 = vld [vmem:[%s1 + $0x1610] sm:$0xff]
  %v719 = vld [vmem:[%s1 + $0x1618] sm:$0xff]
  %v720 = vld [vmem:[%s1 + $0x1620] sm:$0xff]
  %v721 = vld [vmem:[%s1 + $0x1628] sm:$0xff]
  %v722 = vld [vmem:[%s1 + $0x1630] sm:$0xff]
  %v723 = vld [vmem:[%s1 + $0x1638] sm:$0xff]
  %v724 = vld [vmem:[%s1 + $0x1640] sm:$0xff]
  %v725 = vld [vmem:[%s1 + $0x1648] sm:$0xff]
  %v726 = vld [vmem:[%s1 + $0x1650] sm:$0xff]
  %v727 = vld [vmem:[%s1 + $0x1658] sm:$0xff]
  %v728 = vld [vmem:[%s1 + $0x1660] sm:$0xff]
  %v729 = vld [vmem:[%s1 + $0x1668] sm:$0xff]
  %v730 = vld [vmem:[%s1 + $0x1670] sm:$0xff]
  %v731 = vld [vmem:[%s1 + $0x1678] sm:$0xff]
  %v732 = vld [vmem:[%s1 + $0x1680] sm:$0xff]
  %v733 = vld [vmem:[%s1 + $0x1688] sm:$0xff]
  %v734 = vld [vmem:[%s1 + $0x1690] sm:$0xff]
  %v735 = vld [vmem:[%s1 + $0x1698] sm:$0xff]
  %v736 = vld [vmem:[%s1 + $0x16a0] sm:$0xff]
  %v737 = vld [vmem:[%s1 + $0x16a8] sm:$0xff]
  %v738 = vld [vmem:[%s1 + $0x16b0] sm:$0xff]
  %v739 = vld [vmem:[%s1 + $0x16b8] sm:$0xff]
  %v740 = vld [vmem:[%s1 + $0x16c0] sm:$0xff]
  %v741 = vld [vmem:[%s1 + $0x16c8] sm:$0xff]
  %v742 = vld [vmem:[%s1 + $0x16d0] sm:$0xff]
  %v743 = vld [vmem:[%s1 + $0x16d8] sm:$0xff]
  %v744 = vld [vmem:[%s1 + $0x16e0] sm:$0xff]
  %v745 = vld [vmem:[%s1 + $0x16e8] sm:$0xff]
  %v746 = vld [vmem:[%s1 + $0x16f0] sm:$0xff]
  %v747 = vld [vmem:[%s1 + $0x16f8] sm:$0xff]
  %v748 = vld [vmem:[%s1 + $0x1700] sm:$0xff]
  %v749 = vld [vmem:[%s1 + $0x1708] sm:$0xff]
  %v750 = vld [vmem:[%s1 + $0x1710] sm:$0xff]
  %v751 = vld [vmem:[%s1 + $0x1718] sm:$0xff]
  %v752 = vld [vmem:[%s1 + $0x1720] sm:$0xff]
  %v753 = vld [vmem:[%s1 + $0x1728] sm:$0xff]
  %v754 = vld [vmem:[%s1 + $0x1730] sm:$0xff]
  %v755 = vld [vmem:[%s1 + $0x1738] sm:$0xff]
  %v756 = vld [vmem:[%s1 + $0x1740] sm:$0xff]
  %v757 = vld [vmem:[%s1 + $0x1748] sm:$0xff]
  %v758 = vld [vmem:[%s1 + $0x1750] sm:$0xff]
  %v759 = vld [vmem:[%s1 + $0x1758] sm:$0xff]
  %v760 = vld [vmem:[%s1 + $0x1760] sm:$0xff]
  %v761 = vld [vmem:[%s1 + $0x1768] sm:$0xff]
  %v762 = vld [vmem:[%s1 + $0x1770] sm:$0xff]
  %v763 = vld [vmem:[%s1 + $0x1778] sm:$0xff]
  %v764 = vld [vmem:[%s1 + $0x1780] sm:$0xff]
  %v765 = vld [vmem:[%s1 + $0x1788] sm:$0xff]
  %v766 = vld [vmem:[%s1 + $0x1790] sm:$0xff]
  %v767 = vld [vmem:[%s1 + $0x1798] sm:$0xff]
  %v768 = vld [vmem:[%s1 + $0x17a0] sm:$0xff]
  %v769 = vld [vmem:[%s1 + $0x17a8] sm:$0xff]
  %v770 = vld [vmem:[%s1 + $0x17b0] sm:$0xff]
  %v771 = vld [vmem:[%s1 + $0x17b8] sm:$0xff]
  %v772 = vld [vmem:[%s1 + $0x17c0] sm:$0xff]
  %v773 = vld [vmem:[%s1 + $0x17c8] sm:$0xff]
  %v774 = vld [vmem:[%s1 + $0x17d0] sm:$0xff]
  %v775 = vld [vmem:[%s1 + $0x17d8] sm:$0xff]
  %v776 = vld [vmem:[%s1 + $0x17e0] sm:$0xff]
  %v777 = vld [vmem:[%s1 + $0x17e8] sm:$0xff]
  %v778 = vld [vmem:[%s1 + $0x17f0] sm:$0xff]
  %v779 = vld [vmem:[%s1 + $0x17f8] sm:$0xff]
  %v780 = vld [vmem:[%s1 + $0x1800] sm:$0xff]
  %v781 = vld [vmem:[%s1 + $0x1808] sm:$0xff]
  %v782 = vld [vmem:[%s1 + $0x1810] sm:$0xff]
  %v783 = vld [vmem:[%s1 + $0x1818] sm:$0xff]
  %v784 = vld [vmem:[%s1 + $0x1820] sm:$0xff]
  %v785 = vld [vmem:[%s1 + $0x1828] sm:$0xff]
  %v786 = vld [vmem:[%s1 + $0x1830] sm:$0xff]
  %v787 = vld [vmem:[%s1 + $0x1838] sm:$0xff]
  %v788 = vld [vmem:[%s1 + $0x1840] sm:$0xff]
  %v789 = vld [vmem:[%s1 + $0x1848] sm:$0xff]
  %v790 = vld [vmem:[%s1 + $0x1850] sm:$0xff]
  %v791 = vld [vmem:[%s1 + $0x1858] sm:$0xff]
  %v792 = vld [vmem:[%s1 + $0x1860] sm:$0xff]
  %v793 = vld [vmem:[%s1 + $0x1868] sm:$0xff]
  %v794 = vld [vmem:[%s1 + $0x1870] sm:$0xff]
  %v795 = vld [vmem:[%s1 + $0x1878] sm:$0xff]
  %v796 = vld [vmem:[%s1 + $0x1880] sm:$0xff]
  %v797 = vld [vmem:[%s1 + $0x1888] sm:$0xff]
  %v798 = vld [vmem:[%s1 + $0x1890] sm:$0xff]
  %v799 = vld [vmem:[%s1 + $0x1898] sm:$0xff]
  %v800 = vld [vmem:[%s1 + $0x18a0] sm:$0xff]
  %v801 = vld [vmem:[%s1 + $0x18a8] sm:$0xff]
  %v802 = vld [vmem:[%s1 + $0x18b0] sm:$0xff]
  %v803 = vld [vmem:[%s1 + $0x18b8] sm:$0xff]
  %v804 = vld [vmem:[%s1 + $0x18c0] sm:$0xff]
  %v805 = vld [vmem:[%s1 + $0x18c8] sm:$0xff]
  %v806 = vld [vmem:[%s1 + $0x18d0] sm:$0xff]
  %v807 = vld [vmem:[%s1 + $0x18d8] sm:$0xff]
  %v808 = vld [vmem:[%s1 + $0x18e0] sm:$0xff]
  %v809 = vld [vmem:[%s1 + $0x18e8] sm:$0xff]
  %v810 = vld [vmem:[%s1 + $0x18f0] sm:$0xff]
  %v811 = vld [vmem:[%s1 + $0x18f8] sm:$0xff]
  %v812 = vld [vmem:[%s1 + $0x1900] sm:$0xff]
  %v813 = vld [vmem:[%s1 + $0x1908] sm:$0xff]
  %v814 = vld [vmem:[%s1 + $0x1910] sm:$0xff]
  %v815 = vld [vmem:[%s1 + $0x1918] sm:$0xff]
  %v816 = vld [vmem:[%s1 + $0x1920] sm:$0xff]
  %v817 = vld [vmem:[%s1 + $0x1928] sm:$0xff]
  %v818 = vld [vmem:[%s1 + $0x1930] sm:$0xff]
  %v819 = vld [vmem:[%s1 + $0x1938] sm:$0xff]
  %v820 = vld [vmem:[%s1 + $0x1940] sm:$0xff]
  %v821 = vld [vmem:[%s1 + $0x1948] sm:$0xff]
  %v822 = vld [vmem:[%s1 + $0x1950] sm:$0xff]
  %v823 = vld [vmem:[%s1 + $0x1958] sm:$0xff]
  %v824 = vld [vmem:[%s1 + $0x1960] sm:$0xff]
  %v825 = vld [vmem:[%s1 + $0x1968] sm:$0xff]
  %v826 = vld [vmem:[%s1 + $0x1970] sm:$0xff]
  %v827 = vld [vmem:[%s1 + $0x1978] sm:$0xff]
  %v828 = vld [vmem:[%s1 + $0x1980] sm:$0xff]
  %v829 = vld [vmem:[%s1 + $0x1988] sm:$0xff]
  %v830 = vld [vmem:[%s1 + $0x1990] sm:$0xff]
  %v831 = vld [vmem:[%s1 + $0x1998] sm:$0xff]
  %v832 = vld [vmem:[%s1 + $0x19a0] sm:$0xff]
  %v833 = vld [vmem:[%s1 + $0x19a8] sm:$0xff]
  %v834 = vld [vmem:[%s1 + $0x19b0] sm:$0xff]
  %v835 = vld [vmem:[%s1 + $0x19b8] sm:$0xff]
  %v836 = vld [vmem:[%s1 + $0x19c0] sm:$0xff]
  %v837 = vld [vmem:[%s1 + $0x19c8] sm:$0xff]
  %v838 = vld [vmem:[%s1 + $0x19d0] sm:$0xff]
  %v839 = vld [vmem:[%s1 + $0x19d8] sm:$0xff]
  %v840 = vld [vmem:[%s1 + $0x19e0] sm:$0xff]
  %v841 = vld [vmem:[%s1 + $0x19e8] sm:$0xff]
  %v842 = vld [vmem:[%s1 + $0x19f0] sm:$0xff]
  %v843 = vld [vmem:[%s1 + $0x19f8] sm:$0xff]
  %v844 = vld [vmem:[%s1 + $0x1a00] sm:$0xff]
  %v845 = vld [vmem:[%s1 + $0x1a08] sm:$0xff]
  %v846 = vld [vmem:[%s1 + $0x1a10] sm:$0xff]
  %v847 = vld [vmem:[%s1 + $0x1a18] sm:$0xff]
  %v848 = vld [vmem:[%s1 + $0x1a20] sm:$0xff]
  %v849 = vld [vmem:[%s1 + $0x1a28] sm:$0xff]
  %v850 = vld [vmem:[%s1 + $0x1a30] sm:$0xff]
  %v851 = vld [vmem:[%s1 + $0x1a38] sm:$0xff]
  %v852 = vld [vmem:[%s1 + $0x1a40] sm:$0xff]
  %v853 = vld [vmem:[%s1 + $0x1a48] sm:$0xff]
  %v854 = vld [vmem:[%s1 + $0x1a50] sm:$0xff]
  %v855 = vld [vmem:[%s1 + $0x1a58] sm:$0xff]
  %v856 = vld [vmem:[%s1 + $0x1a60] sm:$0xff]
  %v857 = vld [vmem:[%s1 + $0x1a68] sm:$0xff]
  %v858 = vld [vmem:[%s1 + $0x1a70] sm:$0xff]
  %v859 = vld [vmem:[%s1 + $0x1a78] sm:$0xff]
  %v860 = vld [vmem:[%s1 + $0x1a80] sm:$0xff]
  %v861 = vld [vmem:[%s1 + $0x1a88] sm:$0xff]
  %v862 = vld [vmem:[%s1 + $0x1a90] sm:$0xff]
  %v863 = vld [vmem:[%s1 + $0x1a98] sm:$0xff]
  %v864 = vld [vmem:[%s1 + $0x1aa0] sm:$0xff]
  %v865 = vld [vmem:[%s1 + $0x1aa8] sm:$0xff]
  %v866 = vld [vmem:[%s1 + $0x1ab0] sm:$0xff]
  %v867 = vld [vmem:[%s1 + $0x1ab8] sm:$0xff]
  %v868 = vld [vmem:[%s1 + $0x1ac0] sm:$0xff]
  %v869 = vld [vmem:[%s1 + $0x1ac8] sm:$0xff]
  %v870 = vld [vmem:[%s1 + $0x1ad0] sm:$0xff]
  %v871 = vld [vmem:[%s1 + $0x1ad8] sm:$0xff]
  %v872 = vld [vmem:[%s1 + $0x1ae0] sm:$0xff]
  %v873 = vld [vmem:[%s1 + $0x1ae8] sm:$0xff]
  %v874 = vld [vmem:[%s1 + $0x1af0] sm:$0xff]
  %v875 = vld [vmem:[%s1 + $0x1af8] sm:$0xff]
  %v876 = vld [vmem:[%s1 + $0x1b00] sm:$0xff]
  %v877 = vld [vmem:[%s1 + $0x1b08] sm:$0xff]
  %v878 = vld [vmem:[%s1 + $0x1b10] sm:$0xff]
  %v879 = vld [vmem:[%s1 + $0x1b18] sm:$0xff]
  %v880 = vld [vmem:[%s1 + $0x1b20] sm:$0xff]
  %v881 = vld [vmem:[%s1 + $0x1b28] sm:$0xff]
  %v882 = vld [vmem:[%s1 + $0x1b30] sm:$0xff]
  %v883 = vld [vmem:[%s1 + $0x1b38] sm:$0xff]
  %v884 = vld [vmem:[%s1 + $0x1b40] sm:$0xff]
  %v885 = vld [vmem:[%s1 + $0x1b48] sm:$0xff]
  %v886 = vld [vmem:[%s1 + $0x1b50] sm:$0xff]
  %v887 = vld [vmem:[%s1 + $0x1b58] sm:$0xff]
  %v888 = vld [vmem:[%s1 + $0x1b60] sm:$0xff]
  %v889 = vld [vmem:[%s1 + $0x1b68] sm:$0xff]
  %v890 = vld [vmem:[%s1 + $0x1b70] sm:$0xff]
  %v891 = vld [vmem:[%s1 + $0x1b78] sm:$0xff]
  %v892 = vld [vmem:[%s1 + $0x1b80] sm:$0xff]
  %v893 = vld [vmem:[%s1 + $0x1b88] sm:$0xff]
  %v894 = vld [vmem:[%s1 + $0x1b90] sm:$0xff]
  %v895 = vld [vmem:[%s1 + $0x1b98] sm:$0xff]
  %v896 = vld [vmem:[%s1 + $0x1ba0] sm:$0xff]
  %v897 = vld [vmem:[%s1 + $0x1ba8] sm:$0xff]
  %v898 = vld [vmem:[%s1 + $0x1bb0] sm:$0xff]
  %v899 = vld [vmem:[%s1 + $0x1bb8] sm:$0xff]
  %v900 = vld [vmem:[%s1 + $0x1bc0] sm:$0xff]
  %v901 = vld [vmem:[%s1 + $0x1bc8] sm:$0xff]
  %v902 = vld [vmem:[%s1 + $0x1bd0] sm:$0xff]
  %v903 = vld [vmem:[%s1 + $0x1bd8] sm:$0xff]
  %v904 = vld [vmem:[%s1 + $0x1be0] sm:$0xff]
  %v905 = vld [vmem:[%s1 + $0x1be8] sm:$0xff]
  %v906 = vld [vmem:[%s1 + $0x1bf0] sm:$0xff]
  %v907 = vld [vmem:[%s1 + $0x1bf8] sm:$0xff]
  %v908 = vld [vmem:[%s1 + $0x1c00] sm:$0xff]
  %v909 = vld [vmem:[%s1 + $0x1c08] sm:$0xff]
  %v910 = vld [vmem:[%s1 + $0x1c10] sm:$0xff]
  %v911 = vld [vmem:[%s1 + $0x1c18] sm:$0xff]
  %v912 = vld [vmem:[%s1 + $0x1c20] sm:$0xff]
  %v913 = vld [vmem:[%s1 + $0x1c28] sm:$0xff]
  %v914 = vld [vmem:[%s1 + $0x1c30] sm:$0xff]
  %v915 = vld [vmem:[%s1 + $0x1c38] sm:$0xff]
  %v916 = vld [vmem:[%s1 + $0x1c40] sm:$0xff]
  %v917 = vld [vmem:[%s1 + $0x1c48] sm:$0xff]
  %v918 = vld [vmem:[%s1 + $0x1c50] sm:$0xff]
  %v919 = vld [vmem:[%s1 + $0x1c58] sm:$0xff]
  %v920 = vld [vmem:[%s1 + $0x1c60] sm:$0xff]
  %v921 = vld [vmem:[%s1 + $0x1c68] sm:$0xff]
  %v922 = vld [vmem:[%s1 + $0x1c70] sm:$0xff]
  %v923 = vld [vmem:[%s1 + $0x1c78] sm:$0xff]
  %v924 = vld [vmem:[%s1 + $0x1c80] sm:$0xff]
  %v925 = vld [vmem:[%s1 + $0x1c88] sm:$0xff]
  %v926 = vld [vmem:[%s1 + $0x1c90] sm:$0xff]
  %v927 = vld [vmem:[%s1 + $0x1c98] sm:$0xff]
  %v928 = vld [vmem:[%s1 + $0x1ca0] sm:$0xff]
  %v929 = vld [vmem:[%s1 + $0x1ca8] sm:$0xff]
  %v930 = vld [vmem:[%s1 + $0x1cb0] sm:$0xff]
  %v931 = vld [vmem:[%s1 + $0x1cb8] sm:$0xff]
  %v932 = vld [vmem:[%s1 + $0x1cc0] sm:$0xff]
  %v933 = vld [vmem:[%s1 + $0x1cc8] sm:$0xff]
  %v934 = vld [vmem:[%s1 + $0x1cd0] sm:$0xff]
  %v935 = vld [vmem:[%s1 + $0x1cd8] sm:$0xff]
  %v936 = vld [vmem:[%s1 + $0x1ce0] sm:$0xff]
  %v937 = vld [vmem:[%s1 + $0x1ce8] sm:$0xff]
  %v938 = vld [vmem:[%s1 + $0x1cf0] sm:$0xff]
  %v939 = vld [vmem:[%s1 + $0x1cf8] sm:$0xff]
  %v940 = vld [vmem:[%s1 + $0x1d00] sm:$0xff]
  %v941 = vld [vmem:[%s1 + $0x1d08] sm:$0xff]
  %v942 = vld [vmem:[%s1 + $0x1d10] sm:$0xff]
  %v943 = vld [vmem:[%s1 + $0x1d18] sm:$0xff]
  %v944 = vld [vmem:[%s1 + $0x1d20] sm:$0xff]
  %v945 = vld [vmem:[%s1 + $0x1d28] sm:$0xff]
  %v946 = vld [vmem:[%s1 + $0x1d30] sm:$0xff]
  %v947 = vld [vmem:[%s1 + $0x1d38] sm:$0xff]
  %v948 = vld [vmem:[%s1 + $0x1d40] sm:$0xff]
  %v949 = vld [vmem:[%s1 + $0x1d48] sm:$0xff]
  %v950 = vld [vmem:[%s1 + $0x1d50] sm:$0xff]
  %v951 = vld [vmem:[%s1 + $0x1d58] sm:$0xff]
  %v952 = vld [vmem:[%s1 + $0x1d60] sm:$0xff]
  %v953 = vld [vmem:[%s1 + $0x1d68] sm:$0xff]
  %v954 = vld [vmem:[%s1 + $0x1d70] sm:$0xff]
  %v955 = vld [vmem:[%s1 + $0x1d78] sm:$0xff]
  %v956 = vld [vmem:[%s1 + $0x1d80] sm:$0xff]
  %v957 = vld [vmem:[%s1 + $0x1d88] sm:$0xff]
  %v958 = vld [vmem:[%s1 + $0x1d90] sm:$0xff]
  %v959 = vld [vmem:[%s1 + $0x1d98] sm:$0xff]
  %v960 = vld [vmem:[%s1 + $0x1da0] sm:$0xff]
  %v961 = vld [vmem:[%s1 + $0x1da8] sm:$0xff]
  %v962 = vld [vmem:[%s1 + $0x1db0] sm:$0xff]
  %v963 = vld [vmem:[%s1 + $0x1db8] sm:$0xff]
  %v964 = vld [vmem:[%s1 + $0x1dc0] sm:$0xff]
  %v965 = vld [vmem:[%s1 + $0x1dc8] sm:$0xff]
  %v966 = vld [vmem:[%s1 + $0x1dd0] sm:$0xff]
  %v967 = vld [vmem:[%s1 + $0x1dd8] sm:$0xff]
  %v968 = vld [vmem:[%s1 + $0x1de0] sm:$0xff]
  %v969 = vld [vmem:[%s1 + $0x1de8] sm:$0xff]
  %v970 = vld [vmem:[%s1 + $0x1df0] sm:$0xff]
  %v971 = vld [vmem:[%s1 + $0x1df8] sm:$0xff]
  %v972 = vld [vmem:[%s1 + $0x1e00] sm:$0xff]
  %v973 = vld [vmem:[%s1 + $0x1e08] sm:$0xff]
  %v974 = vld [vmem:[%s1 + $0x1e10] sm:$0xff]
  %v975 = vld [vmem:[%s1 + $0x1e18] sm:$0xff]
  %v976 = vld [vmem:[%s1 + $0x1e20] sm:$0xff]
  %v977 = vld [vmem:[%s1 + $0x1e28] sm:$0xff]
  %v978 = vld [vmem:[%s1 + $0x1e30] sm:$0xff]
  %v979 = vld [vmem:[%s1 + $0x1e38] sm:$0xff]
  %v980 = vld [vmem:[%s1 + $0x1e40] sm:$0xff]
  %v981 = vld [vmem:[%s1 + $0x1e48] sm:$0xff]
  %v982 = vld [vmem:[%s1 + $0x1e50] sm:$0xff]
  %v983 = vld [vmem:[%s1 + $0x1e58] sm:$0xff]
  %v984 = vld [vmem:[%s1 + $0x1e60] sm:$0xff]
  %v985 = vld [vmem:[%s1 + $0x1e68] sm:$0xff]
  %v986 = vld [vmem:[%s1 + $0x1e70] sm:$0xff]
  %v987 = vld [vmem:[%s1 + $0x1e78] sm:$0xff]
  %v988 = vld [vmem:[%s1 + $0x1e80] sm:$0xff]
  %v989 = vld [vmem:[%s1 + $0x1e88] sm:$0xff]
  %v990 = vld [vmem:[%s1 + $0x1e90] sm:$0xff]
  %v991 = vld [vmem:[%s1 + $0x1e98] sm:$0xff]
  %v992 = vld [vmem:[%s1 + $0x1ea0] sm:$0xff]
  %v993 = vld [vmem:[%s1 + $0x1ea8] sm:$0xff]
  %v994 = vld [vmem:[%s1 + $0x1eb0] sm:$0xff]
  %v995 = vld [vmem:[%s1 + $0x1eb8] sm:$0xff]
  %v996 = vld [vmem:[%s1 + $0x1ec0] sm:$0xff]
  %v997 = vld [vmem:[%s1 + $0x1ec8] sm:$0xff]
  %v998 = vld [vmem:[%s1 + $0x1ed0] sm:$0xff]
  %v999 = vld [vmem:[%s1 + $0x1ed8] sm:$0xff]
  %v1000 = vld [vmem:[%s1 + $0x1ee0] sm:$0xff]
  %v1001 = vld [vmem:[%s1 + $0x1ee8] sm:$0xff]
  %v1002 = vld [vmem:[%s1 + $0x1ef0] sm:$0xff]
  %v1003 = vld [vmem:[%s1 + $0x1ef8] sm:$0xff]
  %v1004 = vld [vmem:[%s1 + $0x1f00] sm:$0xff]
  %v1005 = vld [vmem:[%s1 + $0x1f08] sm:$0xff]
  %v1006 = vld [vmem:[%s1 + $0x1f10] sm:$0xff]
  %v1007 = vld [vmem:[%s1 + $0x1f18] sm:$0xff]
  %v1008 = vld [vmem:[%s1 + $0x1f20] sm:$0xff]
  %v1009 = vld [vmem:[%s1 + $0x1f28] sm:$0xff]
  %v1010 = vld [vmem:[%s1 + $0x1f30] sm:$0xff]
  %v1011 = vld [vmem:[%s1 + $0x1f38] sm:$0xff]
  %v1012 = vld [vmem:[%s1 + $0x1f40] sm:$0xff]
  %v1013 = vld [vmem:[%s1 + $0x1f48] sm:$0xff]
  %v1014 = vld [vmem:[%s1 + $0x1f50] sm:$0xff]
  %v1015 = vld [vmem:[%s1 + $0x1f58] sm:$0xff]
  %v1016 = vld [vmem:[%s1 + $0x1f60] sm:$0xff]
  %v1017 = vld [vmem:[%s1 + $0x1f68] sm:$0xff]
  %v1018 = vld [vmem:[%s1 + $0x1f70] sm:$0xff]
  %v1019 = vld [vmem:[%s1 + $0x1f78] sm:$0xff]
  %v1020 = vld [vmem:[%s1 + $0x1f80] sm:$0xff]
  %v1021 = vld [vmem:[%s1 + $0x1f88] sm:$0xff]
  %v1022 = vld [vmem:[%s1 + $0x1f90] sm:$0xff]
  %v1023 = vld [vmem:[%s1 + $0x1f98] sm:$0xff]
  %v1024 = vld [vmem:[%s1 + $0x1fa0] sm:$0xff]
  %v1025 = vld [vmem:[%s1 + $0x1fa8] sm:$0xff]
  %v1026 = vld [vmem:[%s1 + $0x1fb0] sm:$0xff]
  %v1027 = vld [vmem:[%s1 + $0x1fb8] sm:$0xff]
  %v1028 = vld [vmem:[%s1 + $0x1fc0] sm:$0xff]
  %v1029 = vld [vmem:[%s1 + $0x1fc8] sm:$0xff]
  %v1030 = vld [vmem:[%s1 + $0x1fd0] sm:$0xff]
  %v1031 = vld [vmem:[%s1 + $0x1fd8] sm:$0xff]
  %v1032 = vld [vmem:[%s1 + $0x1fe0] sm:$0xff]
  %v1033 = vld [vmem:[%s1 + $0x1fe8] sm:$0xff]
  %v1034 = vld [vmem:[%s1 + $0x1ff0] sm:$0xff]
  %v1035 = vld [vmem:[%s1 + $0x1ff8] sm:$0xff]
  %1037 = vst [vmem:[#allocation1] ss:$9 sm:$0xff] %v11
  %v1038 = vld [vmem:[#allocation1] sm:$0xff]
  %v1039 = vld [vmem:[#allocation1 + $0x9] sm:$0xff]
  %v1040 = vld [vmem:[#allocation1 + $0x12] sm:$0xff]
  %v1041 = vld [vmem:[#allocation1 + $0x1b] sm:$0xff]
  %v1042 = vld [vmem:[#allocation1 + $0x24] sm:$0xff]
  %v1043 = vld [vmem:[#allocation1 + $0x2d] sm:$0xff]
  %v1044 = vld [vmem:[#allocation1 + $0x36] sm:$0xff]
  %v1045 = vld [vmem:[#allocation1 + $0x3f] sm:$0xff]
  %v2078 = vunpack.c.l.b16 %v12
  %v2079 = vunpack.c.h.b16 %v12
  %v2080 = vunpack.c.l.b16 %v13
  %v2081 = vunpack.c.h.b16 %v13
  %v2082 = vunpack.c.l.b16 %v14
  %v2083 = vunpack.c.h.b16 %v14
  %v2084 = vunpack.c.l.b16 %v15
  %v2085 = vunpack.c.h.b16 %v15
  %v2086 = vunpack.c.l.b16 %v16
  %v2087 = vunpack.c.h.b16 %v16
  %v2088 = vunpack.c.l.b16 %v17
  %v2089 = vunpack.c.h.b16 %v17
  %v2090 = vunpack.c.l.b16 %v18
  %v2091 = vunpack.c.h.b16 %v18
  %v2092 = vunpack.c.l.b16 %v19
  %v2093 = vunpack.c.h.b16 %v19
  %v2094 = vunpack.c.l.b16 %v20
  %v2095 = vunpack.c.h.b16 %v20
  %v2096 = vunpack.c.l.b16 %v21
  %v2097 = vunpack.c.h.b16 %v21
  %v2098 = vunpack.c.l.b16 %v22
  %v2099 = vunpack.c.h.b16 %v22
  %v2100 = vunpack.c.l.b16 %v23
  %v2101 = vunpack.c.h.b16 %v23
  %v2102 = vunpack.c.l.b16 %v24
  %v2103 = vunpack.c.h.b16 %v24
  %v2104 = vunpack.c.l.b16 %v25
  %v2105 = vunpack.c.h.b16 %v25
  %v2106 = vunpack.c.l.b16 %v26
  %v2107 = vunpack.c.h.b16 %v26
  %v2108 = vunpack.c.l.b16 %v27
  %v2109 = vunpack.c.h.b16 %v27
  %v2110 = vunpack.c.l.b16 %v28
  %v2111 = vunpack.c.h.b16 %v28
  %v2112 = vunpack.c.l.b16 %v29
  %v2113 = vunpack.c.h.b16 %v29
  %v2114 = vunpack.c.l.b16 %v30
  %v2115 = vunpack.c.h.b16 %v30
  %v2116 = vunpack.c.l.b16 %v31
  %v2117 = vunpack.c.h.b16 %v31
  %v2118 = vunpack.c.l.b16 %v32
  %v2119 = vunpack.c.h.b16 %v32
  %v2120 = vunpack.c.l.b16 %v33
  %v2121 = vunpack.c.h.b16 %v33
  %v2122 = vunpack.c.l.b16 %v34
  %v2123 = vunpack.c.h.b16 %v34
  %v2124 = vunpack.c.l.b16 %v35
  %v2125 = vunpack.c.h.b16 %v35
  %v2126 = vunpack.c.l.b16 %v36
  %v2127 = vunpack.c.h.b16 %v36
  %v2128 = vunpack.c.l.b16 %v37
  %v2129 = vunpack.c.h.b16 %v37
  %v2130 = vunpack.c.l.b16 %v38
  %v2131 = vunpack.c.h.b16 %v38
  %v2132 = vunpack.c.l.b16 %v39
  %v2133 = vunpack.c.h.b16 %v39
  %v2134 = vunpack.c.l.b16 %v40
  %v2135 = vunpack.c.h.b16 %v40
  %v2136 = vunpack.c.l.b16 %v41
  %v2137 = vunpack.c.h.b16 %v41
  %v2138 = vunpack.c.l.b16 %v42
  %v2139 = vunpack.c.h.b16 %v42
  %v2140 = vunpack.c.l.b16 %v43
  %v2141 = vunpack.c.h.b16 %v43
  %v2142 = vunpack.c.l.b16 %v44
  %v2143 = vunpack.c.h.b16 %v44
  %v2144 = vunpack.c.l.b16 %v45
  %v2145 = vunpack.c.h.b16 %v45
  %v2146 = vunpack.c.l.b16 %v46
  %v2147 = vunpack.c.h.b16 %v46
  %v2148 = vunpack.c.l.b16 %v47
  %v2149 = vunpack.c.h.b16 %v47
  %v2150 = vunpack.c.l.b16 %v48
  %v2151 = vunpack.c.h.b16 %v48
  %v2152 = vunpack.c.l.b16 %v49
  %v2153 = vunpack.c.h.b16 %v49
  %v2154 = vunpack.c.l.b16 %v50
  %v2155 = vunpack.c.h.b16 %v50
  %v2156 = vunpack.c.l.b16 %v51
  %v2157 = vunpack.c.h.b16 %v51
  %v2158 = vunpack.c.l.b16 %v52
  %v2159 = vunpack.c.h.b16 %v52
  %v2160 = vunpack.c.l.b16 %v53
  %v2161 = vunpack.c.h.b16 %v53
  %v2162 = vunpack.c.l.b16 %v54
  %v2163 = vunpack.c.h.b16 %v54
  %v2164 = vunpack.c.l.b16 %v55
  %v2165 = vunpack.c.h.b16 %v55
  %v2166 = vunpack.c.l.b16 %v56
  %v2167 = vunpack.c.h.b16 %v56
  %v2168 = vunpack.c.l.b16 %v57
  %v2169 = vunpack.c.h.b16 %v57
  %v2170 = vunpack.c.l.b16 %v58
  %v2171 = vunpack.c.h.b16 %v58
  %v2172 = vunpack.c.l.b16 %v59
  %v2173 = vunpack.c.h.b16 %v59
  %v2174 = vunpack.c.l.b16 %v60
  %v2175 = vunpack.c.h.b16 %v60
  %v2176 = vunpack.c.l.b16 %v61
  %v2177 = vunpack.c.h.b16 %v61
  %v2178 = vunpack.c.l.b16 %v62
  %v2179 = vunpack.c.h.b16 %v62
  %v2180 = vunpack.c.l.b16 %v63
  %v2181 = vunpack.c.h.b16 %v63
  %v2182 = vunpack.c.l.b16 %v64
  %v2183 = vunpack.c.h.b16 %v64
  %v2184 = vunpack.c.l.b16 %v65
  %v2185 = vunpack.c.h.b16 %v65
  %v2186 = vunpack.c.l.b16 %v66
  %v2187 = vunpack.c.h.b16 %v66
  %v2188 = vunpack.c.l.b16 %v67
  %v2189 = vunpack.c.h.b16 %v67
  %v2190 = vunpack.c.l.b16 %v68
  %v2191 = vunpack.c.h.b16 %v68
  %v2192 = vunpack.c.l.b16 %v69
  %v2193 = vunpack.c.h.b16 %v69
  %v2194 = vunpack.c.l.b16 %v70
  %v2195 = vunpack.c.h.b16 %v70
  %v2196 = vunpack.c.l.b16 %v71
  %v2197 = vunpack.c.h.b16 %v71
  %v2198 = vunpack.c.l.b16 %v72
  %v2199 = vunpack.c.h.b16 %v72
  %v2200 = vunpack.c.l.b16 %v73
  %v2201 = vunpack.c.h.b16 %v73
  %v2202 = vunpack.c.l.b16 %v74
  %v2203 = vunpack.c.h.b16 %v74
  %v2204 = vunpack.c.l.b16 %v75
  %v2205 = vunpack.c.h.b16 %v75
  %v2206 = vunpack.c.l.b16 %v76
  %v2207 = vunpack.c.h.b16 %v76
  %v2208 = vunpack.c.l.b16 %v77
  %v2209 = vunpack.c.h.b16 %v77
  %v2210 = vunpack.c.l.b16 %v78
  %v2211 = vunpack.c.h.b16 %v78
  %v2212 = vunpack.c.l.b16 %v79
  %v2213 = vunpack.c.h.b16 %v79
  %v2214 = vunpack.c.l.b16 %v80
  %v2215 = vunpack.c.h.b16 %v80
  %v2216 = vunpack.c.l.b16 %v81
  %v2217 = vunpack.c.h.b16 %v81
  %v2218 = vunpack.c.l.b16 %v82
  %v2219 = vunpack.c.h.b16 %v82
  %v2220 = vunpack.c.l.b16 %v83
  %v2221 = vunpack.c.h.b16 %v83
  %v2222 = vunpack.c.l.b16 %v84
  %v2223 = vunpack.c.h.b16 %v84
  %v2224 = vunpack.c.l.b16 %v85
  %v2225 = vunpack.c.h.b16 %v85
  %v2226 = vunpack.c.l.b16 %v86
  %v2227 = vunpack.c.h.b16 %v86
  %v2228 = vunpack.c.l.b16 %v87
  %v2229 = vunpack.c.h.b16 %v87
  %v2230 = vunpack.c.l.b16 %v88
  %v2231 = vunpack.c.h.b16 %v88
  %v2232 = vunpack.c.l.b16 %v89
  %v2233 = vunpack.c.h.b16 %v89
  %v2234 = vunpack.c.l.b16 %v90
  %v2235 = vunpack.c.h.b16 %v90
  %v2236 = vunpack.c.l.b16 %v91
  %v2237 = vunpack.c.h.b16 %v91
  %v2238 = vunpack.c.l.b16 %v92
  %v2239 = vunpack.c.h.b16 %v92
  %v2240 = vunpack.c.l.b16 %v93
  %v2241 = vunpack.c.h.b16 %v93
  %v2242 = vunpack.c.l.b16 %v94
  %v2243 = vunpack.c.h.b16 %v94
  %v2244 = vunpack.c.l.b16 %v95
  %v2245 = vunpack.c.h.b16 %v95
  %v2246 = vunpack.c.l.b16 %v96
  %v2247 = vunpack.c.h.b16 %v96
  %v2248 = vunpack.c.l.b16 %v97
  %v2249 = vunpack.c.h.b16 %v97
  %v2250 = vunpack.c.l.b16 %v98
  %v2251 = vunpack.c.h.b16 %v98
  %v2252 = vunpack.c.l.b16 %v99
  %v2253 = vunpack.c.h.b16 %v99
  %v2254 = vunpack.c.l.b16 %v100
  %v2255 = vunpack.c.h.b16 %v100
  %v2256 = vunpack.c.l.b16 %v101
  %v2257 = vunpack.c.h.b16 %v101
  %v2258 = vunpack.c.l.b16 %v102
  %v2259 = vunpack.c.h.b16 %v102
  %v2260 = vunpack.c.l.b16 %v103
  %v2261 = vunpack.c.h.b16 %v103
  %v2262 = vunpack.c.l.b16 %v104
  %v2263 = vunpack.c.h.b16 %v104
  %v2264 = vunpack.c.l.b16 %v105
  %v2265 = vunpack.c.h.b16 %v105
  %v2266 = vunpack.c.l.b16 %v106
  %v2267 = vunpack.c.h.b16 %v106
  %v2268 = vunpack.c.l.b16 %v107
  %v2269 = vunpack.c.h.b16 %v107
  %v2270 = vunpack.c.l.b16 %v108
  %v2271 = vunpack.c.h.b16 %v108
  %v2272 = vunpack.c.l.b16 %v109
  %v2273 = vunpack.c.h.b16 %v109
  %v2274 = vunpack.c.l.b16 %v110
  %v2275 = vunpack.c.h.b16 %v110
  %v2276 = vunpack.c.l.b16 %v111
  %v2277 = vunpack.c.h.b16 %v111
  %v2278 = vunpack.c.l.b16 %v112
  %v2279 = vunpack.c.h.b16 %v112
  %v2280 = vunpack.c.l.b16 %v113
  %v2281 = vunpack.c.h.b16 %v113
  %v2282 = vunpack.c.l.b16 %v114
  %v2283 = vunpack.c.h.b16 %v114
  %v2284 = vunpack.c.l.b16 %v115
  %v2285 = vunpack.c.h.b16 %v115
  %v2286 = vunpack.c.l.b16 %v116
  %v2287 = vunpack.c.h.b16 %v116
  %v2288 = vunpack.c.l.b16 %v117
  %v2289 = vunpack.c.h.b16 %v117
  %v2290 = vunpack.c.l.b16 %v118
  %v2291 = vunpack.c.h.b16 %v118
  %v2292 = vunpack.c.l.b16 %v119
  %v2293 = vunpack.c.h.b16 %v119
  %v2294 = vunpack.c.l.b16 %v120
  %v2295 = vunpack.c.h.b16 %v120
  %v2296 = vunpack.c.l.b16 %v121
  %v2297 = vunpack.c.h.b16 %v121
  %v2298 = vunpack.c.l.b16 %v122
  %v2299 = vunpack.c.h.b16 %v122
  %v2300 = vunpack.c.l.b16 %v123
  %v2301 = vunpack.c.h.b16 %v123
  %v2302 = vunpack.c.l.b16 %v124
  %v2303 = vunpack.c.h.b16 %v124
  %v2304 = vunpack.c.l.b16 %v125
  %v2305 = vunpack.c.h.b16 %v125
  %v2306 = vunpack.c.l.b16 %v126
  %v2307 = vunpack.c.h.b16 %v126
  %v2308 = vunpack.c.l.b16 %v127
  %v2309 = vunpack.c.h.b16 %v127
  %v2310 = vunpack.c.l.b16 %v128
  %v2311 = vunpack.c.h.b16 %v128
  %v2312 = vunpack.c.l.b16 %v129
  %v2313 = vunpack.c.h.b16 %v129
  %v2314 = vunpack.c.l.b16 %v130
  %v2315 = vunpack.c.h.b16 %v130
  %v2316 = vunpack.c.l.b16 %v131
  %v2317 = vunpack.c.h.b16 %v131
  %v2318 = vunpack.c.l.b16 %v132
  %v2319 = vunpack.c.h.b16 %v132
  %v2320 = vunpack.c.l.b16 %v133
  %v2321 = vunpack.c.h.b16 %v133
  %v2322 = vunpack.c.l.b16 %v134
  %v2323 = vunpack.c.h.b16 %v134
  %v2324 = vunpack.c.l.b16 %v135
  %v2325 = vunpack.c.h.b16 %v135
  %v2326 = vunpack.c.l.b16 %v136
  %v2327 = vunpack.c.h.b16 %v136
  %v2328 = vunpack.c.l.b16 %v137
  %v2329 = vunpack.c.h.b16 %v137
  %v2330 = vunpack.c.l.b16 %v138
  %v2331 = vunpack.c.h.b16 %v138
  %v2332 = vunpack.c.l.b16 %v139
  %v2333 = vunpack.c.h.b16 %v139
  %v2334 = vunpack.c.l.b16 %v140
  %v2335 = vunpack.c.h.b16 %v140
  %v2336 = vunpack.c.l.b16 %v141
  %v2337 = vunpack.c.h.b16 %v141
  %v2338 = vunpack.c.l.b16 %v142
  %v2339 = vunpack.c.h.b16 %v142
  %v2340 = vunpack.c.l.b16 %v143
  %v2341 = vunpack.c.h.b16 %v143
  %v2342 = vunpack.c.l.b16 %v144
  %v2343 = vunpack.c.h.b16 %v144
  %v2344 = vunpack.c.l.b16 %v145
  %v2345 = vunpack.c.h.b16 %v145
  %v2346 = vunpack.c.l.b16 %v146
  %v2347 = vunpack.c.h.b16 %v146
  %v2348 = vunpack.c.l.b16 %v147
  %v2349 = vunpack.c.h.b16 %v147
  %v2350 = vunpack.c.l.b16 %v148
  %v2351 = vunpack.c.h.b16 %v148
  %v2352 = vunpack.c.l.b16 %v149
  %v2353 = vunpack.c.h.b16 %v149
  %v2354 = vunpack.c.l.b16 %v150
  %v2355 = vunpack.c.h.b16 %v150
  %v2356 = vunpack.c.l.b16 %v151
  %v2357 = vunpack.c.h.b16 %v151
  %v2358 = vunpack.c.l.b16 %v152
  %v2359 = vunpack.c.h.b16 %v152
  %v2360 = vunpack.c.l.b16 %v153
  %v2361 = vunpack.c.h.b16 %v153
  %v2362 = vunpack.c.l.b16 %v154
  %v2363 = vunpack.c.h.b16 %v154
  %v2364 = vunpack.c.l.b16 %v155
  %v2365 = vunpack.c.h.b16 %v155
  %v2366 = vunpack.c.l.b16 %v156
  %v2367 = vunpack.c.h.b16 %v156
  %v2368 = vunpack.c.l.b16 %v157
  %v2369 = vunpack.c.h.b16 %v157
  %v2370 = vunpack.c.l.b16 %v158
  %v2371 = vunpack.c.h.b16 %v158
  %v2372 = vunpack.c.l.b16 %v159
  %v2373 = vunpack.c.h.b16 %v159
  %v2374 = vunpack.c.l.b16 %v160
  %v2375 = vunpack.c.h.b16 %v160
  %v2376 = vunpack.c.l.b16 %v161
  %v2377 = vunpack.c.h.b16 %v161
  %v2378 = vunpack.c.l.b16 %v162
  %v2379 = vunpack.c.h.b16 %v162
  %v2380 = vunpack.c.l.b16 %v163
  %v2381 = vunpack.c.h.b16 %v163
  %v2382 = vunpack.c.l.b16 %v164
  %v2383 = vunpack.c.h.b16 %v164
  %v2384 = vunpack.c.l.b16 %v165
  %v2385 = vunpack.c.h.b16 %v165
  %v2386 = vunpack.c.l.b16 %v166
  %v2387 = vunpack.c.h.b16 %v166
  %v2388 = vunpack.c.l.b16 %v167
  %v2389 = vunpack.c.h.b16 %v167
  %v2390 = vunpack.c.l.b16 %v168
  %v2391 = vunpack.c.h.b16 %v168
  %v2392 = vunpack.c.l.b16 %v169
  %v2393 = vunpack.c.h.b16 %v169
  %v2394 = vunpack.c.l.b16 %v170
  %v2395 = vunpack.c.h.b16 %v170
  %v2396 = vunpack.c.l.b16 %v171
  %v2397 = vunpack.c.h.b16 %v171
  %v2398 = vunpack.c.l.b16 %v172
  %v2399 = vunpack.c.h.b16 %v172
  %v2400 = vunpack.c.l.b16 %v173
  %v2401 = vunpack.c.h.b16 %v173
  %v2402 = vunpack.c.l.b16 %v174
  %v2403 = vunpack.c.h.b16 %v174
  %v2404 = vunpack.c.l.b16 %v175
  %v2405 = vunpack.c.h.b16 %v175
  %v2406 = vunpack.c.l.b16 %v176
  %v2407 = vunpack.c.h.b16 %v176
  %v2408 = vunpack.c.l.b16 %v177
  %v2409 = vunpack.c.h.b16 %v177
  %v2410 = vunpack.c.l.b16 %v178
  %v2411 = vunpack.c.h.b16 %v178
  %v2412 = vunpack.c.l.b16 %v179
  %v2413 = vunpack.c.h.b16 %v179
  %v2414 = vunpack.c.l.b16 %v180
  %v2415 = vunpack.c.h.b16 %v180
  %v2416 = vunpack.c.l.b16 %v181
  %v2417 = vunpack.c.h.b16 %v181
  %v2418 = vunpack.c.l.b16 %v182
  %v2419 = vunpack.c.h.b16 %v182
  %v2420 = vunpack.c.l.b16 %v183
  %v2421 = vunpack.c.h.b16 %v183
  %v2422 = vunpack.c.l.b16 %v184
  %v2423 = vunpack.c.h.b16 %v184
  %v2424 = vunpack.c.l.b16 %v185
  %v2425 = vunpack.c.h.b16 %v185
  %v2426 = vunpack.c.l.b16 %v186
  %v2427 = vunpack.c.h.b16 %v186
  %v2428 = vunpack.c.l.b16 %v187
  %v2429 = vunpack.c.h.b16 %v187
  %v2430 = vunpack.c.l.b16 %v188
  %v2431 = vunpack.c.h.b16 %v188
  %v2432 = vunpack.c.l.b16 %v189
  %v2433 = vunpack.c.h.b16 %v189
  %v2434 = vunpack.c.l.b16 %v190
  %v2435 = vunpack.c.h.b16 %v190
  %v2436 = vunpack.c.l.b16 %v191
  %v2437 = vunpack.c.h.b16 %v191
  %v2438 = vunpack.c.l.b16 %v192
  %v2439 = vunpack.c.h.b16 %v192
  %v2440 = vunpack.c.l.b16 %v193
  %v2441 = vunpack.c.h.b16 %v193
  %v2442 = vunpack.c.l.b16 %v194
  %v2443 = vunpack.c.h.b16 %v194
  %v2444 = vunpack.c.l.b16 %v195
  %v2445 = vunpack.c.h.b16 %v195
  %v2446 = vunpack.c.l.b16 %v196
  %v2447 = vunpack.c.h.b16 %v196
  %v2448 = vunpack.c.l.b16 %v197
  %v2449 = vunpack.c.h.b16 %v197
  %v2450 = vunpack.c.l.b16 %v198
  %v2451 = vunpack.c.h.b16 %v198
  %v2452 = vunpack.c.l.b16 %v199
  %v2453 = vunpack.c.h.b16 %v199
  %v2454 = vunpack.c.l.b16 %v200
  %v2455 = vunpack.c.h.b16 %v200
  %v2456 = vunpack.c.l.b16 %v201
  %v2457 = vunpack.c.h.b16 %v201
  %v2458 = vunpack.c.l.b16 %v202
  %v2459 = vunpack.c.h.b16 %v202
  %v2460 = vunpack.c.l.b16 %v203
  %v2461 = vunpack.c.h.b16 %v203
  %v2462 = vunpack.c.l.b16 %v204
  %v2463 = vunpack.c.h.b16 %v204
  %v2464 = vunpack.c.l.b16 %v205
  %v2465 = vunpack.c.h.b16 %v205
  %v2466 = vunpack.c.l.b16 %v206
  %v2467 = vunpack.c.h.b16 %v206
  %v2468 = vunpack.c.l.b16 %v207
  %v2469 = vunpack.c.h.b16 %v207
  %v2470 = vunpack.c.l.b16 %v208
  %v2471 = vunpack.c.h.b16 %v208
  %v2472 = vunpack.c.l.b16 %v209
  %v2473 = vunpack.c.h.b16 %v209
  %v2474 = vunpack.c.l.b16 %v210
  %v2475 = vunpack.c.h.b16 %v210
  %v2476 = vunpack.c.l.b16 %v211
  %v2477 = vunpack.c.h.b16 %v211
  %v2478 = vunpack.c.l.b16 %v212
  %v2479 = vunpack.c.h.b16 %v212
  %v2480 = vunpack.c.l.b16 %v213
  %v2481 = vunpack.c.h.b16 %v213
  %v2482 = vunpack.c.l.b16 %v214
  %v2483 = vunpack.c.h.b16 %v214
  %v2484 = vunpack.c.l.b16 %v215
  %v2485 = vunpack.c.h.b16 %v215
  %v2486 = vunpack.c.l.b16 %v216
  %v2487 = vunpack.c.h.b16 %v216
  %v2488 = vunpack.c.l.b16 %v217
  %v2489 = vunpack.c.h.b16 %v217
  %v2490 = vunpack.c.l.b16 %v218
  %v2491 = vunpack.c.h.b16 %v218
  %v2492 = vunpack.c.l.b16 %v219
  %v2493 = vunpack.c.h.b16 %v219
  %v2494 = vunpack.c.l.b16 %v220
  %v2495 = vunpack.c.h.b16 %v220
  %v2496 = vunpack.c.l.b16 %v221
  %v2497 = vunpack.c.h.b16 %v221
  %v2498 = vunpack.c.l.b16 %v222
  %v2499 = vunpack.c.h.b16 %v222
  %v2500 = vunpack.c.l.b16 %v223
  %v2501 = vunpack.c.h.b16 %v223
  %v2502 = vunpack.c.l.b16 %v224
  %v2503 = vunpack.c.h.b16 %v224
  %v2504 = vunpack.c.l.b16 %v225
  %v2505 = vunpack.c.h.b16 %v225
  %v2506 = vunpack.c.l.b16 %v226
  %v2507 = vunpack.c.h.b16 %v226
  %v2508 = vunpack.c.l.b16 %v227
  %v2509 = vunpack.c.h.b16 %v227
  %v2510 = vunpack.c.l.b16 %v228
  %v2511 = vunpack.c.h.b16 %v228
  %v2512 = vunpack.c.l.b16 %v229
  %v2513 = vunpack.c.h.b16 %v229
  %v2514 = vunpack.c.l.b16 %v230
  %v2515 = vunpack.c.h.b16 %v230
  %v2516 = vunpack.c.l.b16 %v231
  %v2517 = vunpack.c.h.b16 %v231
  %v2518 = vunpack.c.l.b16 %v232
  %v2519 = vunpack.c.h.b16 %v232
  %v2520 = vunpack.c.l.b16 %v233
  %v2521 = vunpack.c.h.b16 %v233
  %v2522 = vunpack.c.l.b16 %v234
  %v2523 = vunpack.c.h.b16 %v234
  %v2524 = vunpack.c.l.b16 %v235
  %v2525 = vunpack.c.h.b16 %v235
  %v2526 = vunpack.c.l.b16 %v236
  %v2527 = vunpack.c.h.b16 %v236
  %v2528 = vunpack.c.l.b16 %v237
  %v2529 = vunpack.c.h.b16 %v237
  %v2530 = vunpack.c.l.b16 %v238
  %v2531 = vunpack.c.h.b16 %v238
  %v2532 = vunpack.c.l.b16 %v239
  %v2533 = vunpack.c.h.b16 %v239
  %v2534 = vunpack.c.l.b16 %v240
  %v2535 = vunpack.c.h.b16 %v240
  %v2536 = vunpack.c.l.b16 %v241
  %v2537 = vunpack.c.h.b16 %v241
  %v2538 = vunpack.c.l.b16 %v242
  %v2539 = vunpack.c.h.b16 %v242
  %v2540 = vunpack.c.l.b16 %v243
  %v2541 = vunpack.c.h.b16 %v243
  %v2542 = vunpack.c.l.b16 %v244
  %v2543 = vunpack.c.h.b16 %v244
  %v2544 = vunpack.c.l.b16 %v245
  %v2545 = vunpack.c.h.b16 %v245
  %v2546 = vunpack.c.l.b16 %v246
  %v2547 = vunpack.c.h.b16 %v246
  %v2548 = vunpack.c.l.b16 %v247
  %v2549 = vunpack.c.h.b16 %v247
  %v2550 = vunpack.c.l.b16 %v248
  %v2551 = vunpack.c.h.b16 %v248
  %v2552 = vunpack.c.l.b16 %v249
  %v2553 = vunpack.c.h.b16 %v249
  %v2554 = vunpack.c.l.b16 %v250
  %v2555 = vunpack.c.h.b16 %v250
  %v2556 = vunpack.c.l.b16 %v251
  %v2557 = vunpack.c.h.b16 %v251
  %v2558 = vunpack.c.l.b16 %v252
  %v2559 = vunpack.c.h.b16 %v252
  %v2560 = vunpack.c.l.b16 %v253
  %v2561 = vunpack.c.h.b16 %v253
  %v2562 = vunpack.c.l.b16 %v254
  %v2563 = vunpack.c.h.b16 %v254
  %v2564 = vunpack.c.l.b16 %v255
  %v2565 = vunpack.c.h.b16 %v255
  %v2566 = vunpack.c.l.b16 %v256
  %v2567 = vunpack.c.h.b16 %v256
  %v2568 = vunpack.c.l.b16 %v257
  %v2569 = vunpack.c.h.b16 %v257
  %v2570 = vunpack.c.l.b16 %v258
  %v2571 = vunpack.c.h.b16 %v258
  %v2572 = vunpack.c.l.b16 %v259
  %v2573 = vunpack.c.h.b16 %v259
  %v2574 = vunpack.c.l.b16 %v260
  %v2575 = vunpack.c.h.b16 %v260
  %v2576 = vunpack.c.l.b16 %v261
  %v2577 = vunpack.c.h.b16 %v261
  %v2578 = vunpack.c.l.b16 %v262
  %v2579 = vunpack.c.h.b16 %v262
  %v2580 = vunpack.c.l.b16 %v263
  %v2581 = vunpack.c.h.b16 %v263
  %v2582 = vunpack.c.l.b16 %v264
  %v2583 = vunpack.c.h.b16 %v264
  %v2584 = vunpack.c.l.b16 %v265
  %v2585 = vunpack.c.h.b16 %v265
  %v2586 = vunpack.c.l.b16 %v266
  %v2587 = vunpack.c.h.b16 %v266
  %v2588 = vunpack.c.l.b16 %v267
  %v2589 = vunpack.c.h.b16 %v267
  %v2590 = vunpack.c.l.b16 %v268
  %v2591 = vunpack.c.h.b16 %v268
  %v2592 = vunpack.c.l.b16 %v269
  %v2593 = vunpack.c.h.b16 %v269
  %v2594 = vunpack.c.l.b16 %v270
  %v2595 = vunpack.c.h.b16 %v270
  %v2596 = vunpack.c.l.b16 %v271
  %v2597 = vunpack.c.h.b16 %v271
  %v2598 = vunpack.c.l.b16 %v272
  %v2599 = vunpack.c.h.b16 %v272
  %v2600 = vunpack.c.l.b16 %v273
  %v2601 = vunpack.c.h.b16 %v273
  %v2602 = vunpack.c.l.b16 %v274
  %v2603 = vunpack.c.h.b16 %v274
  %v2604 = vunpack.c.l.b16 %v275
  %v2605 = vunpack.c.h.b16 %v275
  %v2606 = vunpack.c.l.b16 %v276
  %v2607 = vunpack.c.h.b16 %v276
  %v2608 = vunpack.c.l.b16 %v277
  %v2609 = vunpack.c.h.b16 %v277
  %v2610 = vunpack.c.l.b16 %v278
  %v2611 = vunpack.c.h.b16 %v278
  %v2612 = vunpack.c.l.b16 %v279
  %v2613 = vunpack.c.h.b16 %v279
  %v2614 = vunpack.c.l.b16 %v280
  %v2615 = vunpack.c.h.b16 %v280
  %v2616 = vunpack.c.l.b16 %v281
  %v2617 = vunpack.c.h.b16 %v281
  %v2618 = vunpack.c.l.b16 %v282
  %v2619 = vunpack.c.h.b16 %v282
  %v2620 = vunpack.c.l.b16 %v283
  %v2621 = vunpack.c.h.b16 %v283
  %v2622 = vunpack.c.l.b16 %v284
  %v2623 = vunpack.c.h.b16 %v284
  %v2624 = vunpack.c.l.b16 %v285
  %v2625 = vunpack.c.h.b16 %v285
  %v2626 = vunpack.c.l.b16 %v286
  %v2627 = vunpack.c.h.b16 %v286
  %v2628 = vunpack.c.l.b16 %v287
  %v2629 = vunpack.c.h.b16 %v287
  %v2630 = vunpack.c.l.b16 %v288
  %v2631 = vunpack.c.h.b16 %v288
  %v2632 = vunpack.c.l.b16 %v289
  %v2633 = vunpack.c.h.b16 %v289
  %v2634 = vunpack.c.l.b16 %v290
  %v2635 = vunpack.c.h.b16 %v290
  %v2636 = vunpack.c.l.b16 %v291
  %v2637 = vunpack.c.h.b16 %v291
  %v2638 = vunpack.c.l.b16 %v292
  %v2639 = vunpack.c.h.b16 %v292
  %v2640 = vunpack.c.l.b16 %v293
  %v2641 = vunpack.c.h.b16 %v293
  %v2642 = vunpack.c.l.b16 %v294
  %v2643 = vunpack.c.h.b16 %v294
  %v2644 = vunpack.c.l.b16 %v295
  %v2645 = vunpack.c.h.b16 %v295
  %v2646 = vunpack.c.l.b16 %v296
  %v2647 = vunpack.c.h.b16 %v296
  %v2648 = vunpack.c.l.b16 %v297
  %v2649 = vunpack.c.h.b16 %v297
  %v2650 = vunpack.c.l.b16 %v298
  %v2651 = vunpack.c.h.b16 %v298
  %v2652 = vunpack.c.l.b16 %v299
  %v2653 = vunpack.c.h.b16 %v299
  %v2654 = vunpack.c.l.b16 %v300
  %v2655 = vunpack.c.h.b16 %v300
  %v2656 = vunpack.c.l.b16 %v301
  %v2657 = vunpack.c.h.b16 %v301
  %v2658 = vunpack.c.l.b16 %v302
  %v2659 = vunpack.c.h.b16 %v302
  %v2660 = vunpack.c.l.b16 %v303
  %v2661 = vunpack.c.h.b16 %v303
  %v2662 = vunpack.c.l.b16 %v304
  %v2663 = vunpack.c.h.b16 %v304
  %v2664 = vunpack.c.l.b16 %v305
  %v2665 = vunpack.c.h.b16 %v305
  %v2666 = vunpack.c.l.b16 %v306
  %v2667 = vunpack.c.h.b16 %v306
  %v2668 = vunpack.c.l.b16 %v307
  %v2669 = vunpack.c.h.b16 %v307
  %v2670 = vunpack.c.l.b16 %v308
  %v2671 = vunpack.c.h.b16 %v308
  %v2672 = vunpack.c.l.b16 %v309
  %v2673 = vunpack.c.h.b16 %v309
  %v2674 = vunpack.c.l.b16 %v310
  %v2675 = vunpack.c.h.b16 %v310
  %v2676 = vunpack.c.l.b16 %v311
  %v2677 = vunpack.c.h.b16 %v311
  %v2678 = vunpack.c.l.b16 %v312
  %v2679 = vunpack.c.h.b16 %v312
  %v2680 = vunpack.c.l.b16 %v313
  %v2681 = vunpack.c.h.b16 %v313
  %v2682 = vunpack.c.l.b16 %v314
  %v2683 = vunpack.c.h.b16 %v314
  %v2684 = vunpack.c.l.b16 %v315
  %v2685 = vunpack.c.h.b16 %v315
  %v2686 = vunpack.c.l.b16 %v316
  %v2687 = vunpack.c.h.b16 %v316
  %v2688 = vunpack.c.l.b16 %v317
  %v2689 = vunpack.c.h.b16 %v317
  %v2690 = vunpack.c.l.b16 %v318
  %v2691 = vunpack.c.h.b16 %v318
  %v2692 = vunpack.c.l.b16 %v319
  %v2693 = vunpack.c.h.b16 %v319
  %v2694 = vunpack.c.l.b16 %v320
  %v2695 = vunpack.c.h.b16 %v320
  %v2696 = vunpack.c.l.b16 %v321
  %v2697 = vunpack.c.h.b16 %v321
  %v2698 = vunpack.c.l.b16 %v322
  %v2699 = vunpack.c.h.b16 %v322
  %v2700 = vunpack.c.l.b16 %v323
  %v2701 = vunpack.c.h.b16 %v323
  %v2702 = vunpack.c.l.b16 %v324
  %v2703 = vunpack.c.h.b16 %v324
  %v2704 = vunpack.c.l.b16 %v325
  %v2705 = vunpack.c.h.b16 %v325
  %v2706 = vunpack.c.l.b16 %v326
  %v2707 = vunpack.c.h.b16 %v326
  %v2708 = vunpack.c.l.b16 %v327
  %v2709 = vunpack.c.h.b16 %v327
  %v2710 = vunpack.c.l.b16 %v328
  %v2711 = vunpack.c.h.b16 %v328
  %v2712 = vunpack.c.l.b16 %v329
  %v2713 = vunpack.c.h.b16 %v329
  %v2714 = vunpack.c.l.b16 %v330
  %v2715 = vunpack.c.h.b16 %v330
  %v2716 = vunpack.c.l.b16 %v331
  %v2717 = vunpack.c.h.b16 %v331
  %v2718 = vunpack.c.l.b16 %v332
  %v2719 = vunpack.c.h.b16 %v332
  %v2720 = vunpack.c.l.b16 %v333
  %v2721 = vunpack.c.h.b16 %v333
  %v2722 = vunpack.c.l.b16 %v334
  %v2723 = vunpack.c.h.b16 %v334
  %v2724 = vunpack.c.l.b16 %v335
  %v2725 = vunpack.c.h.b16 %v335
  %v2726 = vunpack.c.l.b16 %v336
  %v2727 = vunpack.c.h.b16 %v336
  %v2728 = vunpack.c.l.b16 %v337
  %v2729 = vunpack.c.h.b16 %v337
  %v2730 = vunpack.c.l.b16 %v338
  %v2731 = vunpack.c.h.b16 %v338
  %v2732 = vunpack.c.l.b16 %v339
  %v2733 = vunpack.c.h.b16 %v339
  %v2734 = vunpack.c.l.b16 %v340
  %v2735 = vunpack.c.h.b16 %v340
  %v2736 = vunpack.c.l.b16 %v341
  %v2737 = vunpack.c.h.b16 %v341
  %v2738 = vunpack.c.l.b16 %v342
  %v2739 = vunpack.c.h.b16 %v342
  %v2740 = vunpack.c.l.b16 %v343
  %v2741 = vunpack.c.h.b16 %v343
  %v2742 = vunpack.c.l.b16 %v344
  %v2743 = vunpack.c.h.b16 %v344
  %v2744 = vunpack.c.l.b16 %v345
  %v2745 = vunpack.c.h.b16 %v345
  %v2746 = vunpack.c.l.b16 %v346
  %v2747 = vunpack.c.h.b16 %v346
  %v2748 = vunpack.c.l.b16 %v347
  %v2749 = vunpack.c.h.b16 %v347
  %v2750 = vunpack.c.l.b16 %v348
  %v2751 = vunpack.c.h.b16 %v348
  %v2752 = vunpack.c.l.b16 %v349
  %v2753 = vunpack.c.h.b16 %v349
  %v2754 = vunpack.c.l.b16 %v350
  %v2755 = vunpack.c.h.b16 %v350
  %v2756 = vunpack.c.l.b16 %v351
  %v2757 = vunpack.c.h.b16 %v351
  %v2758 = vunpack.c.l.b16 %v352
  %v2759 = vunpack.c.h.b16 %v352
  %v2760 = vunpack.c.l.b16 %v353
  %v2761 = vunpack.c.h.b16 %v353
  %v2762 = vunpack.c.l.b16 %v354
  %v2763 = vunpack.c.h.b16 %v354
  %v2764 = vunpack.c.l.b16 %v355
  %v2765 = vunpack.c.h.b16 %v355
  %v2766 = vunpack.c.l.b16 %v356
  %v2767 = vunpack.c.h.b16 %v356
  %v2768 = vunpack.c.l.b16 %v357
  %v2769 = vunpack.c.h.b16 %v357
  %v2770 = vunpack.c.l.b16 %v358
  %v2771 = vunpack.c.h.b16 %v358
  %v2772 = vunpack.c.l.b16 %v359
  %v2773 = vunpack.c.h.b16 %v359
  %v2774 = vunpack.c.l.b16 %v360
  %v2775 = vunpack.c.h.b16 %v360
  %v2776 = vunpack.c.l.b16 %v361
  %v2777 = vunpack.c.h.b16 %v361
  %v2778 = vunpack.c.l.b16 %v362
  %v2779 = vunpack.c.h.b16 %v362
  %v2780 = vunpack.c.l.b16 %v363
  %v2781 = vunpack.c.h.b16 %v363
  %v2782 = vunpack.c.l.b16 %v364
  %v2783 = vunpack.c.h.b16 %v364
  %v2784 = vunpack.c.l.b16 %v365
  %v2785 = vunpack.c.h.b16 %v365
  %v2786 = vunpack.c.l.b16 %v366
  %v2787 = vunpack.c.h.b16 %v366
  %v2788 = vunpack.c.l.b16 %v367
  %v2789 = vunpack.c.h.b16 %v367
  %v2790 = vunpack.c.l.b16 %v368
  %v2791 = vunpack.c.h.b16 %v368
  %v2792 = vunpack.c.l.b16 %v369
  %v2793 = vunpack.c.h.b16 %v369
  %v2794 = vunpack.c.l.b16 %v370
  %v2795 = vunpack.c.h.b16 %v370
  %v2796 = vunpack.c.l.b16 %v371
  %v2797 = vunpack.c.h.b16 %v371
  %v2798 = vunpack.c.l.b16 %v372
  %v2799 = vunpack.c.h.b16 %v372
  %v2800 = vunpack.c.l.b16 %v373
  %v2801 = vunpack.c.h.b16 %v373
  %v2802 = vunpack.c.l.b16 %v374
  %v2803 = vunpack.c.h.b16 %v374
  %v2804 = vunpack.c.l.b16 %v375
  %v2805 = vunpack.c.h.b16 %v375
  %v2806 = vunpack.c.l.b16 %v376
  %v2807 = vunpack.c.h.b16 %v376
  %v2808 = vunpack.c.l.b16 %v377
  %v2809 = vunpack.c.h.b16 %v377
  %v2810 = vunpack.c.l.b16 %v378
  %v2811 = vunpack.c.h.b16 %v378
  %v2812 = vunpack.c.l.b16 %v379
  %v2813 = vunpack.c.h.b16 %v379
  %v2814 = vunpack.c.l.b16 %v380
  %v2815 = vunpack.c.h.b16 %v380
  %v2816 = vunpack.c.l.b16 %v381
  %v2817 = vunpack.c.h.b16 %v381
  %v2818 = vunpack.c.l.b16 %v382
  %v2819 = vunpack.c.h.b16 %v382
  %v2820 = vunpack.c.l.b16 %v383
  %v2821 = vunpack.c.h.b16 %v383
  %v2822 = vunpack.c.l.b16 %v384
  %v2823 = vunpack.c.h.b16 %v384
  %v2824 = vunpack.c.l.b16 %v385
  %v2825 = vunpack.c.h.b16 %v385
  %v2826 = vunpack.c.l.b16 %v386
  %v2827 = vunpack.c.h.b16 %v386
  %v2828 = vunpack.c.l.b16 %v387
  %v2829 = vunpack.c.h.b16 %v387
  %v2830 = vunpack.c.l.b16 %v388
  %v2831 = vunpack.c.h.b16 %v388
  %v2832 = vunpack.c.l.b16 %v389
  %v2833 = vunpack.c.h.b16 %v389
  %v2834 = vunpack.c.l.b16 %v390
  %v2835 = vunpack.c.h.b16 %v390
  %v2836 = vunpack.c.l.b16 %v391
  %v2837 = vunpack.c.h.b16 %v391
  %v2838 = vunpack.c.l.b16 %v392
  %v2839 = vunpack.c.h.b16 %v392
  %v2840 = vunpack.c.l.b16 %v393
  %v2841 = vunpack.c.h.b16 %v393
  %v2842 = vunpack.c.l.b16 %v394
  %v2843 = vunpack.c.h.b16 %v394
  %v2844 = vunpack.c.l.b16 %v395
  %v2845 = vunpack.c.h.b16 %v395
  %v2846 = vunpack.c.l.b16 %v396
  %v2847 = vunpack.c.h.b16 %v396
  %v2848 = vunpack.c.l.b16 %v397
  %v2849 = vunpack.c.h.b16 %v397
  %v2850 = vunpack.c.l.b16 %v398
  %v2851 = vunpack.c.h.b16 %v398
  %v2852 = vunpack.c.l.b16 %v399
  %v2853 = vunpack.c.h.b16 %v399
  %v2854 = vunpack.c.l.b16 %v400
  %v2855 = vunpack.c.h.b16 %v400
  %v2856 = vunpack.c.l.b16 %v401
  %v2857 = vunpack.c.h.b16 %v401
  %v2858 = vunpack.c.l.b16 %v402
  %v2859 = vunpack.c.h.b16 %v402
  %v2860 = vunpack.c.l.b16 %v403
  %v2861 = vunpack.c.h.b16 %v403
  %v2862 = vunpack.c.l.b16 %v404
  %v2863 = vunpack.c.h.b16 %v404
  %v2864 = vunpack.c.l.b16 %v405
  %v2865 = vunpack.c.h.b16 %v405
  %v2866 = vunpack.c.l.b16 %v406
  %v2867 = vunpack.c.h.b16 %v406
  %v2868 = vunpack.c.l.b16 %v407
  %v2869 = vunpack.c.h.b16 %v407
  %v2870 = vunpack.c.l.b16 %v408
  %v2871 = vunpack.c.h.b16 %v408
  %v2872 = vunpack.c.l.b16 %v409
  %v2873 = vunpack.c.h.b16 %v409
  %v2874 = vunpack.c.l.b16 %v410
  %v2875 = vunpack.c.h.b16 %v410
  %v2876 = vunpack.c.l.b16 %v411
  %v2877 = vunpack.c.h.b16 %v411
  %v2878 = vunpack.c.l.b16 %v412
  %v2879 = vunpack.c.h.b16 %v412
  %v2880 = vunpack.c.l.b16 %v413
  %v2881 = vunpack.c.h.b16 %v413
  %v2882 = vunpack.c.l.b16 %v414
  %v2883 = vunpack.c.h.b16 %v414
  %v2884 = vunpack.c.l.b16 %v415
  %v2885 = vunpack.c.h.b16 %v415
  %v2886 = vunpack.c.l.b16 %v416
  %v2887 = vunpack.c.h.b16 %v416
  %v2888 = vunpack.c.l.b16 %v417
  %v2889 = vunpack.c.h.b16 %v417
  %v2890 = vunpack.c.l.b16 %v418
  %v2891 = vunpack.c.h.b16 %v418
  %v2892 = vunpack.c.l.b16 %v419
  %v2893 = vunpack.c.h.b16 %v419
  %v2894 = vunpack.c.l.b16 %v420
  %v2895 = vunpack.c.h.b16 %v420
  %v2896 = vunpack.c.l.b16 %v421
  %v2897 = vunpack.c.h.b16 %v421
  %v2898 = vunpack.c.l.b16 %v422
  %v2899 = vunpack.c.h.b16 %v422
  %v2900 = vunpack.c.l.b16 %v423
  %v2901 = vunpack.c.h.b16 %v423
  %v2902 = vunpack.c.l.b16 %v424
  %v2903 = vunpack.c.h.b16 %v424
  %v2904 = vunpack.c.l.b16 %v425
  %v2905 = vunpack.c.h.b16 %v425
  %v2906 = vunpack.c.l.b16 %v426
  %v2907 = vunpack.c.h.b16 %v426
  %v2908 = vunpack.c.l.b16 %v427
  %v2909 = vunpack.c.h.b16 %v427
  %v2910 = vunpack.c.l.b16 %v428
  %v2911 = vunpack.c.h.b16 %v428
  %v2912 = vunpack.c.l.b16 %v429
  %v2913 = vunpack.c.h.b16 %v429
  %v2914 = vunpack.c.l.b16 %v430
  %v2915 = vunpack.c.h.b16 %v430
  %v2916 = vunpack.c.l.b16 %v431
  %v2917 = vunpack.c.h.b16 %v431
  %v2918 = vunpack.c.l.b16 %v432
  %v2919 = vunpack.c.h.b16 %v432
  %v2920 = vunpack.c.l.b16 %v433
  %v2921 = vunpack.c.h.b16 %v433
  %v2922 = vunpack.c.l.b16 %v434
  %v2923 = vunpack.c.h.b16 %v434
  %v2924 = vunpack.c.l.b16 %v435
  %v2925 = vunpack.c.h.b16 %v435
  %v2926 = vunpack.c.l.b16 %v436
  %v2927 = vunpack.c.h.b16 %v436
  %v2928 = vunpack.c.l.b16 %v437
  %v2929 = vunpack.c.h.b16 %v437
  %v2930 = vunpack.c.l.b16 %v438
  %v2931 = vunpack.c.h.b16 %v438
  %v2932 = vunpack.c.l.b16 %v439
  %v2933 = vunpack.c.h.b16 %v439
  %v2934 = vunpack.c.l.b16 %v440
  %v2935 = vunpack.c.h.b16 %v440
  %v2936 = vunpack.c.l.b16 %v441
  %v2937 = vunpack.c.h.b16 %v441
  %v2938 = vunpack.c.l.b16 %v442
  %v2939 = vunpack.c.h.b16 %v442
  %v2940 = vunpack.c.l.b16 %v443
  %v2941 = vunpack.c.h.b16 %v443
  %v2942 = vunpack.c.l.b16 %v444
  %v2943 = vunpack.c.h.b16 %v444
  %v2944 = vunpack.c.l.b16 %v445
  %v2945 = vunpack.c.h.b16 %v445
  %v2946 = vunpack.c.l.b16 %v446
  %v2947 = vunpack.c.h.b16 %v446
  %v2948 = vunpack.c.l.b16 %v447
  %v2949 = vunpack.c.h.b16 %v447
  %v2950 = vunpack.c.l.b16 %v448
  %v2951 = vunpack.c.h.b16 %v448
  %v2952 = vunpack.c.l.b16 %v449
  %v2953 = vunpack.c.h.b16 %v449
  %v2954 = vunpack.c.l.b16 %v450
  %v2955 = vunpack.c.h.b16 %v450
  %v2956 = vunpack.c.l.b16 %v451
  %v2957 = vunpack.c.h.b16 %v451
  %v2958 = vunpack.c.l.b16 %v452
  %v2959 = vunpack.c.h.b16 %v452
  %v2960 = vunpack.c.l.b16 %v453
  %v2961 = vunpack.c.h.b16 %v453
  %v2962 = vunpack.c.l.b16 %v454
  %v2963 = vunpack.c.h.b16 %v454
  %v2964 = vunpack.c.l.b16 %v455
  %v2965 = vunpack.c.h.b16 %v455
  %v2966 = vunpack.c.l.b16 %v456
  %v2967 = vunpack.c.h.b16 %v456
  %v2968 = vunpack.c.l.b16 %v457
  %v2969 = vunpack.c.h.b16 %v457
  %v2970 = vunpack.c.l.b16 %v458
  %v2971 = vunpack.c.h.b16 %v458
  %v2972 = vunpack.c.l.b16 %v459
  %v2973 = vunpack.c.h.b16 %v459
  %v2974 = vunpack.c.l.b16 %v460
  %v2975 = vunpack.c.h.b16 %v460
  %v2976 = vunpack.c.l.b16 %v461
  %v2977 = vunpack.c.h.b16 %v461
  %v2978 = vunpack.c.l.b16 %v462
  %v2979 = vunpack.c.h.b16 %v462
  %v2980 = vunpack.c.l.b16 %v463
  %v2981 = vunpack.c.h.b16 %v463
  %v2982 = vunpack.c.l.b16 %v464
  %v2983 = vunpack.c.h.b16 %v464
  %v2984 = vunpack.c.l.b16 %v465
  %v2985 = vunpack.c.h.b16 %v465
  %v2986 = vunpack.c.l.b16 %v466
  %v2987 = vunpack.c.h.b16 %v466
  %v2988 = vunpack.c.l.b16 %v467
  %v2989 = vunpack.c.h.b16 %v467
  %v2990 = vunpack.c.l.b16 %v468
  %v2991 = vunpack.c.h.b16 %v468
  %v2992 = vunpack.c.l.b16 %v469
  %v2993 = vunpack.c.h.b16 %v469
  %v2994 = vunpack.c.l.b16 %v470
  %v2995 = vunpack.c.h.b16 %v470
  %v2996 = vunpack.c.l.b16 %v471
  %v2997 = vunpack.c.h.b16 %v471
  %v2998 = vunpack.c.l.b16 %v472
  %v2999 = vunpack.c.h.b16 %v472
  %v3000 = vunpack.c.l.b16 %v473
  %v3001 = vunpack.c.h.b16 %v473
  %v3002 = vunpack.c.l.b16 %v474
  %v3003 = vunpack.c.h.b16 %v474
  %v3004 = vunpack.c.l.b16 %v475
  %v3005 = vunpack.c.h.b16 %v475
  %v3006 = vunpack.c.l.b16 %v476
  %v3007 = vunpack.c.h.b16 %v476
  %v3008 = vunpack.c.l.b16 %v477
  %v3009 = vunpack.c.h.b16 %v477
  %v3010 = vunpack.c.l.b16 %v478
  %v3011 = vunpack.c.h.b16 %v478
  %v3012 = vunpack.c.l.b16 %v479
  %v3013 = vunpack.c.h.b16 %v479
  %v3014 = vunpack.c.l.b16 %v480
  %v3015 = vunpack.c.h.b16 %v480
  %v3016 = vunpack.c.l.b16 %v481
  %v3017 = vunpack.c.h.b16 %v481
  %v3018 = vunpack.c.l.b16 %v482
  %v3019 = vunpack.c.h.b16 %v482
  %v3020 = vunpack.c.l.b16 %v483
  %v3021 = vunpack.c.h.b16 %v483
  %v3022 = vunpack.c.l.b16 %v484
  %v3023 = vunpack.c.h.b16 %v484
  %v3024 = vunpack.c.l.b16 %v485
  %v3025 = vunpack.c.h.b16 %v485
  %v3026 = vunpack.c.l.b16 %v486
  %v3027 = vunpack.c.h.b16 %v486
  %v3028 = vunpack.c.l.b16 %v487
  %v3029 = vunpack.c.h.b16 %v487
  %v3030 = vunpack.c.l.b16 %v488
  %v3031 = vunpack.c.h.b16 %v488
  %v3032 = vunpack.c.l.b16 %v489
  %v3033 = vunpack.c.h.b16 %v489
  %v3034 = vunpack.c.l.b16 %v490
  %v3035 = vunpack.c.h.b16 %v490
  %v3036 = vunpack.c.l.b16 %v491
  %v3037 = vunpack.c.h.b16 %v491
  %v3038 = vunpack.c.l.b16 %v492
  %v3039 = vunpack.c.h.b16 %v492
  %v3040 = vunpack.c.l.b16 %v493
  %v3041 = vunpack.c.h.b16 %v493
  %v3042 = vunpack.c.l.b16 %v494
  %v3043 = vunpack.c.h.b16 %v494
  %v3044 = vunpack.c.l.b16 %v495
  %v3045 = vunpack.c.h.b16 %v495
  %v3046 = vunpack.c.l.b16 %v496
  %v3047 = vunpack.c.h.b16 %v496
  %v3048 = vunpack.c.l.b16 %v497
  %v3049 = vunpack.c.h.b16 %v497
  %v3050 = vunpack.c.l.b16 %v498
  %v3051 = vunpack.c.h.b16 %v498
  %v3052 = vunpack.c.l.b16 %v499
  %v3053 = vunpack.c.h.b16 %v499
  %v3054 = vunpack.c.l.b16 %v500
  %v3055 = vunpack.c.h.b16 %v500
  %v3056 = vunpack.c.l.b16 %v501
  %v3057 = vunpack.c.h.b16 %v501
  %v3058 = vunpack.c.l.b16 %v502
  %v3059 = vunpack.c.h.b16 %v502
  %v3060 = vunpack.c.l.b16 %v503
  %v3061 = vunpack.c.h.b16 %v503
  %v3062 = vunpack.c.l.b16 %v504
  %v3063 = vunpack.c.h.b16 %v504
  %v3064 = vunpack.c.l.b16 %v505
  %v3065 = vunpack.c.h.b16 %v505
  %v3066 = vunpack.c.l.b16 %v506
  %v3067 = vunpack.c.h.b16 %v506
  %v3068 = vunpack.c.l.b16 %v507
  %v3069 = vunpack.c.h.b16 %v507
  %v3070 = vunpack.c.l.b16 %v508
  %v3071 = vunpack.c.h.b16 %v508
  %v3072 = vunpack.c.l.b16 %v509
  %v3073 = vunpack.c.h.b16 %v509
  %v3074 = vunpack.c.l.b16 %v510
  %v3075 = vunpack.c.h.b16 %v510
  %v3076 = vunpack.c.l.b16 %v511
  %v3077 = vunpack.c.h.b16 %v511
  %v3078 = vunpack.c.l.b16 %v512
  %v3079 = vunpack.c.h.b16 %v512
  %v3080 = vunpack.c.l.b16 %v513
  %v3081 = vunpack.c.h.b16 %v513
  %v3082 = vunpack.c.l.b16 %v514
  %v3083 = vunpack.c.h.b16 %v514
  %v3084 = vunpack.c.l.b16 %v515
  %v3085 = vunpack.c.h.b16 %v515
  %v3086 = vunpack.c.l.b16 %v516
  %v3087 = vunpack.c.h.b16 %v516
  %v3088 = vunpack.c.l.b16 %v517
  %v3089 = vunpack.c.h.b16 %v517
  %v3090 = vunpack.c.l.b16 %v518
  %v3091 = vunpack.c.h.b16 %v518
  %v3092 = vunpack.c.l.b16 %v519
  %v3093 = vunpack.c.h.b16 %v519
  %v3094 = vunpack.c.l.b16 %v520
  %v3095 = vunpack.c.h.b16 %v520
  %v3096 = vunpack.c.l.b16 %v521
  %v3097 = vunpack.c.h.b16 %v521
  %v3098 = vunpack.c.l.b16 %v522
  %v3099 = vunpack.c.h.b16 %v522
  %v3100 = vunpack.c.l.b16 %v523
  %v3101 = vunpack.c.h.b16 %v523
  %v3102 = vunpack.c.l.b16 %v524
  %v3103 = vunpack.c.h.b16 %v524
  %v3104 = vunpack.c.l.b16 %v525
  %v3105 = vunpack.c.h.b16 %v525
  %v3106 = vunpack.c.l.b16 %v526
  %v3107 = vunpack.c.h.b16 %v526
  %v3108 = vunpack.c.l.b16 %v527
  %v3109 = vunpack.c.h.b16 %v527
  %v3110 = vunpack.c.l.b16 %v528
  %v3111 = vunpack.c.h.b16 %v528
  %v3112 = vunpack.c.l.b16 %v529
  %v3113 = vunpack.c.h.b16 %v529
  %v3114 = vunpack.c.l.b16 %v530
  %v3115 = vunpack.c.h.b16 %v530
  %v3116 = vunpack.c.l.b16 %v531
  %v3117 = vunpack.c.h.b16 %v531
  %v3118 = vunpack.c.l.b16 %v532
  %v3119 = vunpack.c.h.b16 %v532
  %v3120 = vunpack.c.l.b16 %v533
  %v3121 = vunpack.c.h.b16 %v533
  %v3122 = vunpack.c.l.b16 %v534
  %v3123 = vunpack.c.h.b16 %v534
  %v3124 = vunpack.c.l.b16 %v535
  %v3125 = vunpack.c.h.b16 %v535
  %v3126 = vunpack.c.l.b16 %v536
  %v3127 = vunpack.c.h.b16 %v536
  %v3128 = vunpack.c.l.b16 %v537
  %v3129 = vunpack.c.h.b16 %v537
  %v3130 = vunpack.c.l.b16 %v538
  %v3131 = vunpack.c.h.b16 %v538
  %v3132 = vunpack.c.l.b16 %v539
  %v3133 = vunpack.c.h.b16 %v539
  %v3134 = vunpack.c.l.b16 %v540
  %v3135 = vunpack.c.h.b16 %v540
  %v3136 = vunpack.c.l.b16 %v541
  %v3137 = vunpack.c.h.b16 %v541
  %v3138 = vunpack.c.l.b16 %v542
  %v3139 = vunpack.c.h.b16 %v542
  %v3140 = vunpack.c.l.b16 %v543
  %v3141 = vunpack.c.h.b16 %v543
  %v3142 = vunpack.c.l.b16 %v544
  %v3143 = vunpack.c.h.b16 %v544
  %v3144 = vunpack.c.l.b16 %v545
  %v3145 = vunpack.c.h.b16 %v545
  %v3146 = vunpack.c.l.b16 %v546
  %v3147 = vunpack.c.h.b16 %v546
  %v3148 = vunpack.c.l.b16 %v547
  %v3149 = vunpack.c.h.b16 %v547
  %v3150 = vunpack.c.l.b16 %v548
  %v3151 = vunpack.c.h.b16 %v548
  %v3152 = vunpack.c.l.b16 %v549
  %v3153 = vunpack.c.h.b16 %v549
  %v3154 = vunpack.c.l.b16 %v550
  %v3155 = vunpack.c.h.b16 %v550
  %v3156 = vunpack.c.l.b16 %v551
  %v3157 = vunpack.c.h.b16 %v551
  %v3158 = vunpack.c.l.b16 %v552
  %v3159 = vunpack.c.h.b16 %v552
  %v3160 = vunpack.c.l.b16 %v553
  %v3161 = vunpack.c.h.b16 %v553
  %v3162 = vunpack.c.l.b16 %v554
  %v3163 = vunpack.c.h.b16 %v554
  %v3164 = vunpack.c.l.b16 %v555
  %v3165 = vunpack.c.h.b16 %v555
  %v3166 = vunpack.c.l.b16 %v556
  %v3167 = vunpack.c.h.b16 %v556
  %v3168 = vunpack.c.l.b16 %v557
  %v3169 = vunpack.c.h.b16 %v557
  %v3170 = vunpack.c.l.b16 %v558
  %v3171 = vunpack.c.h.b16 %v558
  %v3172 = vunpack.c.l.b16 %v559
  %v3173 = vunpack.c.h.b16 %v559
  %v3174 = vunpack.c.l.b16 %v560
  %v3175 = vunpack.c.h.b16 %v560
  %v3176 = vunpack.c.l.b16 %v561
  %v3177 = vunpack.c.h.b16 %v561
  %v3178 = vunpack.c.l.b16 %v562
  %v3179 = vunpack.c.h.b16 %v562
  %v3180 = vunpack.c.l.b16 %v563
  %v3181 = vunpack.c.h.b16 %v563
  %v3182 = vunpack.c.l.b16 %v564
  %v3183 = vunpack.c.h.b16 %v564
  %v3184 = vunpack.c.l.b16 %v565
  %v3185 = vunpack.c.h.b16 %v565
  %v3186 = vunpack.c.l.b16 %v566
  %v3187 = vunpack.c.h.b16 %v566
  %v3188 = vunpack.c.l.b16 %v567
  %v3189 = vunpack.c.h.b16 %v567
  %v3190 = vunpack.c.l.b16 %v568
  %v3191 = vunpack.c.h.b16 %v568
  %v3192 = vunpack.c.l.b16 %v569
  %v3193 = vunpack.c.h.b16 %v569
  %v3194 = vunpack.c.l.b16 %v570
  %v3195 = vunpack.c.h.b16 %v570
  %v3196 = vunpack.c.l.b16 %v571
  %v3197 = vunpack.c.h.b16 %v571
  %v3198 = vunpack.c.l.b16 %v572
  %v3199 = vunpack.c.h.b16 %v572
  %v3200 = vunpack.c.l.b16 %v573
  %v3201 = vunpack.c.h.b16 %v573
  %v3202 = vunpack.c.l.b16 %v574
  %v3203 = vunpack.c.h.b16 %v574
  %v3204 = vunpack.c.l.b16 %v575
  %v3205 = vunpack.c.h.b16 %v575
  %v3206 = vunpack.c.l.b16 %v576
  %v3207 = vunpack.c.h.b16 %v576
  %v3208 = vunpack.c.l.b16 %v577
  %v3209 = vunpack.c.h.b16 %v577
  %v3210 = vunpack.c.l.b16 %v578
  %v3211 = vunpack.c.h.b16 %v578
  %v3212 = vunpack.c.l.b16 %v579
  %v3213 = vunpack.c.h.b16 %v579
  %v3214 = vunpack.c.l.b16 %v580
  %v3215 = vunpack.c.h.b16 %v580
  %v3216 = vunpack.c.l.b16 %v581
  %v3217 = vunpack.c.h.b16 %v581
  %v3218 = vunpack.c.l.b16 %v582
  %v3219 = vunpack.c.h.b16 %v582
  %v3220 = vunpack.c.l.b16 %v583
  %v3221 = vunpack.c.h.b16 %v583
  %v3222 = vunpack.c.l.b16 %v584
  %v3223 = vunpack.c.h.b16 %v584
  %v3224 = vunpack.c.l.b16 %v585
  %v3225 = vunpack.c.h.b16 %v585
  %v3226 = vunpack.c.l.b16 %v586
  %v3227 = vunpack.c.h.b16 %v586
  %v3228 = vunpack.c.l.b16 %v587
  %v3229 = vunpack.c.h.b16 %v587
  %v3230 = vunpack.c.l.b16 %v588
  %v3231 = vunpack.c.h.b16 %v588
  %v3232 = vunpack.c.l.b16 %v589
  %v3233 = vunpack.c.h.b16 %v589
  %v3234 = vunpack.c.l.b16 %v590
  %v3235 = vunpack.c.h.b16 %v590
  %v3236 = vunpack.c.l.b16 %v591
  %v3237 = vunpack.c.h.b16 %v591
  %v3238 = vunpack.c.l.b16 %v592
  %v3239 = vunpack.c.h.b16 %v592
  %v3240 = vunpack.c.l.b16 %v593
  %v3241 = vunpack.c.h.b16 %v593
  %v3242 = vunpack.c.l.b16 %v594
  %v3243 = vunpack.c.h.b16 %v594
  %v3244 = vunpack.c.l.b16 %v595
  %v3245 = vunpack.c.h.b16 %v595
  %v3246 = vunpack.c.l.b16 %v596
  %v3247 = vunpack.c.h.b16 %v596
  %v3248 = vunpack.c.l.b16 %v597
  %v3249 = vunpack.c.h.b16 %v597
  %v3250 = vunpack.c.l.b16 %v598
  %v3251 = vunpack.c.h.b16 %v598
  %v3252 = vunpack.c.l.b16 %v599
  %v3253 = vunpack.c.h.b16 %v599
  %v3254 = vunpack.c.l.b16 %v600
  %v3255 = vunpack.c.h.b16 %v600
  %v3256 = vunpack.c.l.b16 %v601
  %v3257 = vunpack.c.h.b16 %v601
  %v3258 = vunpack.c.l.b16 %v602
  %v3259 = vunpack.c.h.b16 %v602
  %v3260 = vunpack.c.l.b16 %v603
  %v3261 = vunpack.c.h.b16 %v603
  %v3262 = vunpack.c.l.b16 %v604
  %v3263 = vunpack.c.h.b16 %v604
  %v3264 = vunpack.c.l.b16 %v605
  %v3265 = vunpack.c.h.b16 %v605
  %v3266 = vunpack.c.l.b16 %v606
  %v3267 = vunpack.c.h.b16 %v606
  %v3268 = vunpack.c.l.b16 %v607
  %v3269 = vunpack.c.h.b16 %v607
  %v3270 = vunpack.c.l.b16 %v608
  %v3271 = vunpack.c.h.b16 %v608
  %v3272 = vunpack.c.l.b16 %v609
  %v3273 = vunpack.c.h.b16 %v609
  %v3274 = vunpack.c.l.b16 %v610
  %v3275 = vunpack.c.h.b16 %v610
  %v3276 = vunpack.c.l.b16 %v611
  %v3277 = vunpack.c.h.b16 %v611
  %v3278 = vunpack.c.l.b16 %v612
  %v3279 = vunpack.c.h.b16 %v612
  %v3280 = vunpack.c.l.b16 %v613
  %v3281 = vunpack.c.h.b16 %v613
  %v3282 = vunpack.c.l.b16 %v614
  %v3283 = vunpack.c.h.b16 %v614
  %v3284 = vunpack.c.l.b16 %v615
  %v3285 = vunpack.c.h.b16 %v615
  %v3286 = vunpack.c.l.b16 %v616
  %v3287 = vunpack.c.h.b16 %v616
  %v3288 = vunpack.c.l.b16 %v617
  %v3289 = vunpack.c.h.b16 %v617
  %v3290 = vunpack.c.l.b16 %v618
  %v3291 = vunpack.c.h.b16 %v618
  %v3292 = vunpack.c.l.b16 %v619
  %v3293 = vunpack.c.h.b16 %v619
  %v3294 = vunpack.c.l.b16 %v620
  %v3295 = vunpack.c.h.b16 %v620
  %v3296 = vunpack.c.l.b16 %v621
  %v3297 = vunpack.c.h.b16 %v621
  %v3298 = vunpack.c.l.b16 %v622
  %v3299 = vunpack.c.h.b16 %v622
  %v3300 = vunpack.c.l.b16 %v623
  %v3301 = vunpack.c.h.b16 %v623
  %v3302 = vunpack.c.l.b16 %v624
  %v3303 = vunpack.c.h.b16 %v624
  %v3304 = vunpack.c.l.b16 %v625
  %v3305 = vunpack.c.h.b16 %v625
  %v3306 = vunpack.c.l.b16 %v626
  %v3307 = vunpack.c.h.b16 %v626
  %v3308 = vunpack.c.l.b16 %v627
  %v3309 = vunpack.c.h.b16 %v627
  %v3310 = vunpack.c.l.b16 %v628
  %v3311 = vunpack.c.h.b16 %v628
  %v3312 = vunpack.c.l.b16 %v629
  %v3313 = vunpack.c.h.b16 %v629
  %v3314 = vunpack.c.l.b16 %v630
  %v3315 = vunpack.c.h.b16 %v630
  %v3316 = vunpack.c.l.b16 %v631
  %v3317 = vunpack.c.h.b16 %v631
  %v3318 = vunpack.c.l.b16 %v632
  %v3319 = vunpack.c.h.b16 %v632
  %v3320 = vunpack.c.l.b16 %v633
  %v3321 = vunpack.c.h.b16 %v633
  %v3322 = vunpack.c.l.b16 %v634
  %v3323 = vunpack.c.h.b16 %v634
  %v3324 = vunpack.c.l.b16 %v635
  %v3325 = vunpack.c.h.b16 %v635
  %v3326 = vunpack.c.l.b16 %v636
  %v3327 = vunpack.c.h.b16 %v636
  %v3328 = vunpack.c.l.b16 %v637
  %v3329 = vunpack.c.h.b16 %v637
  %v3330 = vunpack.c.l.b16 %v638
  %v3331 = vunpack.c.h.b16 %v638
  %v3332 = vunpack.c.l.b16 %v639
  %v3333 = vunpack.c.h.b16 %v639
  %v3334 = vunpack.c.l.b16 %v640
  %v3335 = vunpack.c.h.b16 %v640
  %v3336 = vunpack.c.l.b16 %v641
  %v3337 = vunpack.c.h.b16 %v641
  %v3338 = vunpack.c.l.b16 %v642
  %v3339 = vunpack.c.h.b16 %v642
  %v3340 = vunpack.c.l.b16 %v643
  %v3341 = vunpack.c.h.b16 %v643
  %v3342 = vunpack.c.l.b16 %v644
  %v3343 = vunpack.c.h.b16 %v644
  %v3344 = vunpack.c.l.b16 %v645
  %v3345 = vunpack.c.h.b16 %v645
  %v3346 = vunpack.c.l.b16 %v646
  %v3347 = vunpack.c.h.b16 %v646
  %v3348 = vunpack.c.l.b16 %v647
  %v3349 = vunpack.c.h.b16 %v647
  %v3350 = vunpack.c.l.b16 %v648
  %v3351 = vunpack.c.h.b16 %v648
  %v3352 = vunpack.c.l.b16 %v649
  %v3353 = vunpack.c.h.b16 %v649
  %v3354 = vunpack.c.l.b16 %v650
  %v3355 = vunpack.c.h.b16 %v650
  %v3356 = vunpack.c.l.b16 %v651
  %v3357 = vunpack.c.h.b16 %v651
  %v3358 = vunpack.c.l.b16 %v652
  %v3359 = vunpack.c.h.b16 %v652
  %v3360 = vunpack.c.l.b16 %v653
  %v3361 = vunpack.c.h.b16 %v653
  %v3362 = vunpack.c.l.b16 %v654
  %v3363 = vunpack.c.h.b16 %v654
  %v3364 = vunpack.c.l.b16 %v655
  %v3365 = vunpack.c.h.b16 %v655
  %v3366 = vunpack.c.l.b16 %v656
  %v3367 = vunpack.c.h.b16 %v656
  %v3368 = vunpack.c.l.b16 %v657
  %v3369 = vunpack.c.h.b16 %v657
  %v3370 = vunpack.c.l.b16 %v658
  %v3371 = vunpack.c.h.b16 %v658
  %v3372 = vunpack.c.l.b16 %v659
  %v3373 = vunpack.c.h.b16 %v659
  %v3374 = vunpack.c.l.b16 %v660
  %v3375 = vunpack.c.h.b16 %v660
  %v3376 = vunpack.c.l.b16 %v661
  %v3377 = vunpack.c.h.b16 %v661
  %v3378 = vunpack.c.l.b16 %v662
  %v3379 = vunpack.c.h.b16 %v662
  %v3380 = vunpack.c.l.b16 %v663
  %v3381 = vunpack.c.h.b16 %v663
  %v3382 = vunpack.c.l.b16 %v664
  %v3383 = vunpack.c.h.b16 %v664
  %v3384 = vunpack.c.l.b16 %v665
  %v3385 = vunpack.c.h.b16 %v665
  %v3386 = vunpack.c.l.b16 %v666
  %v3387 = vunpack.c.h.b16 %v666
  %v3388 = vunpack.c.l.b16 %v667
  %v3389 = vunpack.c.h.b16 %v667
  %v3390 = vunpack.c.l.b16 %v668
  %v3391 = vunpack.c.h.b16 %v668
  %v3392 = vunpack.c.l.b16 %v669
  %v3393 = vunpack.c.h.b16 %v669
  %v3394 = vunpack.c.l.b16 %v670
  %v3395 = vunpack.c.h.b16 %v670
  %v3396 = vunpack.c.l.b16 %v671
  %v3397 = vunpack.c.h.b16 %v671
  %v3398 = vunpack.c.l.b16 %v672
  %v3399 = vunpack.c.h.b16 %v672
  %v3400 = vunpack.c.l.b16 %v673
  %v3401 = vunpack.c.h.b16 %v673
  %v3402 = vunpack.c.l.b16 %v674
  %v3403 = vunpack.c.h.b16 %v674
  %v3404 = vunpack.c.l.b16 %v675
  %v3405 = vunpack.c.h.b16 %v675
  %v3406 = vunpack.c.l.b16 %v676
  %v3407 = vunpack.c.h.b16 %v676
  %v3408 = vunpack.c.l.b16 %v677
  %v3409 = vunpack.c.h.b16 %v677
  %v3410 = vunpack.c.l.b16 %v678
  %v3411 = vunpack.c.h.b16 %v678
  %v3412 = vunpack.c.l.b16 %v679
  %v3413 = vunpack.c.h.b16 %v679
  %v3414 = vunpack.c.l.b16 %v680
  %v3415 = vunpack.c.h.b16 %v680
  %v3416 = vunpack.c.l.b16 %v681
  %v3417 = vunpack.c.h.b16 %v681
  %v3418 = vunpack.c.l.b16 %v682
  %v3419 = vunpack.c.h.b16 %v682
  %v3420 = vunpack.c.l.b16 %v683
  %v3421 = vunpack.c.h.b16 %v683
  %v3422 = vunpack.c.l.b16 %v684
  %v3423 = vunpack.c.h.b16 %v684
  %v3424 = vunpack.c.l.b16 %v685
  %v3425 = vunpack.c.h.b16 %v685
  %v3426 = vunpack.c.l.b16 %v686
  %v3427 = vunpack.c.h.b16 %v686
  %v3428 = vunpack.c.l.b16 %v687
  %v3429 = vunpack.c.h.b16 %v687
  %v3430 = vunpack.c.l.b16 %v688
  %v3431 = vunpack.c.h.b16 %v688
  %v3432 = vunpack.c.l.b16 %v689
  %v3433 = vunpack.c.h.b16 %v689
  %v3434 = vunpack.c.l.b16 %v690
  %v3435 = vunpack.c.h.b16 %v690
  %v3436 = vunpack.c.l.b16 %v691
  %v3437 = vunpack.c.h.b16 %v691
  %v3438 = vunpack.c.l.b16 %v692
  %v3439 = vunpack.c.h.b16 %v692
  %v3440 = vunpack.c.l.b16 %v693
  %v3441 = vunpack.c.h.b16 %v693
  %v3442 = vunpack.c.l.b16 %v694
  %v3443 = vunpack.c.h.b16 %v694
  %v3444 = vunpack.c.l.b16 %v695
  %v3445 = vunpack.c.h.b16 %v695
  %v3446 = vunpack.c.l.b16 %v696
  %v3447 = vunpack.c.h.b16 %v696
  %v3448 = vunpack.c.l.b16 %v697
  %v3449 = vunpack.c.h.b16 %v697
  %v3450 = vunpack.c.l.b16 %v698
  %v3451 = vunpack.c.h.b16 %v698
  %v3452 = vunpack.c.l.b16 %v699
  %v3453 = vunpack.c.h.b16 %v699
  %v3454 = vunpack.c.l.b16 %v700
  %v3455 = vunpack.c.h.b16 %v700
  %v3456 = vunpack.c.l.b16 %v701
  %v3457 = vunpack.c.h.b16 %v701
  %v3458 = vunpack.c.l.b16 %v702
  %v3459 = vunpack.c.h.b16 %v702
  %v3460 = vunpack.c.l.b16 %v703
  %v3461 = vunpack.c.h.b16 %v703
  %v3462 = vunpack.c.l.b16 %v704
  %v3463 = vunpack.c.h.b16 %v704
  %v3464 = vunpack.c.l.b16 %v705
  %v3465 = vunpack.c.h.b16 %v705
  %v3466 = vunpack.c.l.b16 %v706
  %v3467 = vunpack.c.h.b16 %v706
  %v3468 = vunpack.c.l.b16 %v707
  %v3469 = vunpack.c.h.b16 %v707
  %v3470 = vunpack.c.l.b16 %v708
  %v3471 = vunpack.c.h.b16 %v708
  %v3472 = vunpack.c.l.b16 %v709
  %v3473 = vunpack.c.h.b16 %v709
  %v3474 = vunpack.c.l.b16 %v710
  %v3475 = vunpack.c.h.b16 %v710
  %v3476 = vunpack.c.l.b16 %v711
  %v3477 = vunpack.c.h.b16 %v711
  %v3478 = vunpack.c.l.b16 %v712
  %v3479 = vunpack.c.h.b16 %v712
  %v3480 = vunpack.c.l.b16 %v713
  %v3481 = vunpack.c.h.b16 %v713
  %v3482 = vunpack.c.l.b16 %v714
  %v3483 = vunpack.c.h.b16 %v714
  %v3484 = vunpack.c.l.b16 %v715
  %v3485 = vunpack.c.h.b16 %v715
  %v3486 = vunpack.c.l.b16 %v716
  %v3487 = vunpack.c.h.b16 %v716
  %v3488 = vunpack.c.l.b16 %v717
  %v3489 = vunpack.c.h.b16 %v717
  %v3490 = vunpack.c.l.b16 %v718
  %v3491 = vunpack.c.h.b16 %v718
  %v3492 = vunpack.c.l.b16 %v719
  %v3493 = vunpack.c.h.b16 %v719
  %v3494 = vunpack.c.l.b16 %v720
  %v3495 = vunpack.c.h.b16 %v720
  %v3496 = vunpack.c.l.b16 %v721
  %v3497 = vunpack.c.h.b16 %v721
  %v3498 = vunpack.c.l.b16 %v722
  %v3499 = vunpack.c.h.b16 %v722
  %v3500 = vunpack.c.l.b16 %v723
  %v3501 = vunpack.c.h.b16 %v723
  %v3502 = vunpack.c.l.b16 %v724
  %v3503 = vunpack.c.h.b16 %v724
  %v3504 = vunpack.c.l.b16 %v725
  %v3505 = vunpack.c.h.b16 %v725
  %v3506 = vunpack.c.l.b16 %v726
  %v3507 = vunpack.c.h.b16 %v726
  %v3508 = vunpack.c.l.b16 %v727
  %v3509 = vunpack.c.h.b16 %v727
  %v3510 = vunpack.c.l.b16 %v728
  %v3511 = vunpack.c.h.b16 %v728
  %v3512 = vunpack.c.l.b16 %v729
  %v3513 = vunpack.c.h.b16 %v729
  %v3514 = vunpack.c.l.b16 %v730
  %v3515 = vunpack.c.h.b16 %v730
  %v3516 = vunpack.c.l.b16 %v731
  %v3517 = vunpack.c.h.b16 %v731
  %v3518 = vunpack.c.l.b16 %v732
  %v3519 = vunpack.c.h.b16 %v732
  %v3520 = vunpack.c.l.b16 %v733
  %v3521 = vunpack.c.h.b16 %v733
  %v3522 = vunpack.c.l.b16 %v734
  %v3523 = vunpack.c.h.b16 %v734
  %v3524 = vunpack.c.l.b16 %v735
  %v3525 = vunpack.c.h.b16 %v735
  %v3526 = vunpack.c.l.b16 %v736
  %v3527 = vunpack.c.h.b16 %v736
  %v3528 = vunpack.c.l.b16 %v737
  %v3529 = vunpack.c.h.b16 %v737
  %v3530 = vunpack.c.l.b16 %v738
  %v3531 = vunpack.c.h.b16 %v738
  %v3532 = vunpack.c.l.b16 %v739
  %v3533 = vunpack.c.h.b16 %v739
  %v3534 = vunpack.c.l.b16 %v740
  %v3535 = vunpack.c.h.b16 %v740
  %v3536 = vunpack.c.l.b16 %v741
  %v3537 = vunpack.c.h.b16 %v741
  %v3538 = vunpack.c.l.b16 %v742
  %v3539 = vunpack.c.h.b16 %v742
  %v3540 = vunpack.c.l.b16 %v743
  %v3541 = vunpack.c.h.b16 %v743
  %v3542 = vunpack.c.l.b16 %v744
  %v3543 = vunpack.c.h.b16 %v744
  %v3544 = vunpack.c.l.b16 %v745
  %v3545 = vunpack.c.h.b16 %v745
  %v3546 = vunpack.c.l.b16 %v746
  %v3547 = vunpack.c.h.b16 %v746
  %v3548 = vunpack.c.l.b16 %v747
  %v3549 = vunpack.c.h.b16 %v747
  %v3550 = vunpack.c.l.b16 %v748
  %v3551 = vunpack.c.h.b16 %v748
  %v3552 = vunpack.c.l.b16 %v749
  %v3553 = vunpack.c.h.b16 %v749
  %v3554 = vunpack.c.l.b16 %v750
  %v3555 = vunpack.c.h.b16 %v750
  %v3556 = vunpack.c.l.b16 %v751
  %v3557 = vunpack.c.h.b16 %v751
  %v3558 = vunpack.c.l.b16 %v752
  %v3559 = vunpack.c.h.b16 %v752
  %v3560 = vunpack.c.l.b16 %v753
  %v3561 = vunpack.c.h.b16 %v753
  %v3562 = vunpack.c.l.b16 %v754
  %v3563 = vunpack.c.h.b16 %v754
  %v3564 = vunpack.c.l.b16 %v755
  %v3565 = vunpack.c.h.b16 %v755
  %v3566 = vunpack.c.l.b16 %v756
  %v3567 = vunpack.c.h.b16 %v756
  %v3568 = vunpack.c.l.b16 %v757
  %v3569 = vunpack.c.h.b16 %v757
  %v3570 = vunpack.c.l.b16 %v758
  %v3571 = vunpack.c.h.b16 %v758
  %v3572 = vunpack.c.l.b16 %v759
  %v3573 = vunpack.c.h.b16 %v759
  %v3574 = vunpack.c.l.b16 %v760
  %v3575 = vunpack.c.h.b16 %v760
  %v3576 = vunpack.c.l.b16 %v761
  %v3577 = vunpack.c.h.b16 %v761
  %v3578 = vunpack.c.l.b16 %v762
  %v3579 = vunpack.c.h.b16 %v762
  %v3580 = vunpack.c.l.b16 %v763
  %v3581 = vunpack.c.h.b16 %v763
  %v3582 = vunpack.c.l.b16 %v764
  %v3583 = vunpack.c.h.b16 %v764
  %v3584 = vunpack.c.l.b16 %v765
  %v3585 = vunpack.c.h.b16 %v765
  %v3586 = vunpack.c.l.b16 %v766
  %v3587 = vunpack.c.h.b16 %v766
  %v3588 = vunpack.c.l.b16 %v767
  %v3589 = vunpack.c.h.b16 %v767
  %v3590 = vunpack.c.l.b16 %v768
  %v3591 = vunpack.c.h.b16 %v768
  %v3592 = vunpack.c.l.b16 %v769
  %v3593 = vunpack.c.h.b16 %v769
  %v3594 = vunpack.c.l.b16 %v770
  %v3595 = vunpack.c.h.b16 %v770
  %v3596 = vunpack.c.l.b16 %v771
  %v3597 = vunpack.c.h.b16 %v771
  %v3598 = vunpack.c.l.b16 %v772
  %v3599 = vunpack.c.h.b16 %v772
  %v3600 = vunpack.c.l.b16 %v773
  %v3601 = vunpack.c.h.b16 %v773
  %v3602 = vunpack.c.l.b16 %v774
  %v3603 = vunpack.c.h.b16 %v774
  %v3604 = vunpack.c.l.b16 %v775
  %v3605 = vunpack.c.h.b16 %v775
  %v3606 = vunpack.c.l.b16 %v776
  %v3607 = vunpack.c.h.b16 %v776
  %v3608 = vunpack.c.l.b16 %v777
  %v3609 = vunpack.c.h.b16 %v777
  %v3610 = vunpack.c.l.b16 %v778
  %v3611 = vunpack.c.h.b16 %v778
  %v3612 = vunpack.c.l.b16 %v779
  %v3613 = vunpack.c.h.b16 %v779
  %v3614 = vunpack.c.l.b16 %v780
  %v3615 = vunpack.c.h.b16 %v780
  %v3616 = vunpack.c.l.b16 %v781
  %v3617 = vunpack.c.h.b16 %v781
  %v3618 = vunpack.c.l.b16 %v782
  %v3619 = vunpack.c.h.b16 %v782
  %v3620 = vunpack.c.l.b16 %v783
  %v3621 = vunpack.c.h.b16 %v783
  %v3622 = vunpack.c.l.b16 %v784
  %v3623 = vunpack.c.h.b16 %v784
  %v3624 = vunpack.c.l.b16 %v785
  %v3625 = vunpack.c.h.b16 %v785
  %v3626 = vunpack.c.l.b16 %v786
  %v3627 = vunpack.c.h.b16 %v786
  %v3628 = vunpack.c.l.b16 %v787
  %v3629 = vunpack.c.h.b16 %v787
  %v3630 = vunpack.c.l.b16 %v788
  %v3631 = vunpack.c.h.b16 %v788
  %v3632 = vunpack.c.l.b16 %v789
  %v3633 = vunpack.c.h.b16 %v789
  %v3634 = vunpack.c.l.b16 %v790
  %v3635 = vunpack.c.h.b16 %v790
  %v3636 = vunpack.c.l.b16 %v791
  %v3637 = vunpack.c.h.b16 %v791
  %v3638 = vunpack.c.l.b16 %v792
  %v3639 = vunpack.c.h.b16 %v792
  %v3640 = vunpack.c.l.b16 %v793
  %v3641 = vunpack.c.h.b16 %v793
  %v3642 = vunpack.c.l.b16 %v794
  %v3643 = vunpack.c.h.b16 %v794
  %v3644 = vunpack.c.l.b16 %v795
  %v3645 = vunpack.c.h.b16 %v795
  %v3646 = vunpack.c.l.b16 %v796
  %v3647 = vunpack.c.h.b16 %v796
  %v3648 = vunpack.c.l.b16 %v797
  %v3649 = vunpack.c.h.b16 %v797
  %v3650 = vunpack.c.l.b16 %v798
  %v3651 = vunpack.c.h.b16 %v798
  %v3652 = vunpack.c.l.b16 %v799
  %v3653 = vunpack.c.h.b16 %v799
  %v3654 = vunpack.c.l.b16 %v800
  %v3655 = vunpack.c.h.b16 %v800
  %v3656 = vunpack.c.l.b16 %v801
  %v3657 = vunpack.c.h.b16 %v801
  %v3658 = vunpack.c.l.b16 %v802
  %v3659 = vunpack.c.h.b16 %v802
  %v3660 = vunpack.c.l.b16 %v803
  %v3661 = vunpack.c.h.b16 %v803
  %v3662 = vunpack.c.l.b16 %v804
  %v3663 = vunpack.c.h.b16 %v804
  %v3664 = vunpack.c.l.b16 %v805
  %v3665 = vunpack.c.h.b16 %v805
  %v3666 = vunpack.c.l.b16 %v806
  %v3667 = vunpack.c.h.b16 %v806
  %v3668 = vunpack.c.l.b16 %v807
  %v3669 = vunpack.c.h.b16 %v807
  %v3670 = vunpack.c.l.b16 %v808
  %v3671 = vunpack.c.h.b16 %v808
  %v3672 = vunpack.c.l.b16 %v809
  %v3673 = vunpack.c.h.b16 %v809
  %v3674 = vunpack.c.l.b16 %v810
  %v3675 = vunpack.c.h.b16 %v810
  %v3676 = vunpack.c.l.b16 %v811
  %v3677 = vunpack.c.h.b16 %v811
  %v3678 = vunpack.c.l.b16 %v812
  %v3679 = vunpack.c.h.b16 %v812
  %v3680 = vunpack.c.l.b16 %v813
  %v3681 = vunpack.c.h.b16 %v813
  %v3682 = vunpack.c.l.b16 %v814
  %v3683 = vunpack.c.h.b16 %v814
  %v3684 = vunpack.c.l.b16 %v815
  %v3685 = vunpack.c.h.b16 %v815
  %v3686 = vunpack.c.l.b16 %v816
  %v3687 = vunpack.c.h.b16 %v816
  %v3688 = vunpack.c.l.b16 %v817
  %v3689 = vunpack.c.h.b16 %v817
  %v3690 = vunpack.c.l.b16 %v818
  %v3691 = vunpack.c.h.b16 %v818
  %v3692 = vunpack.c.l.b16 %v819
  %v3693 = vunpack.c.h.b16 %v819
  %v3694 = vunpack.c.l.b16 %v820
  %v3695 = vunpack.c.h.b16 %v820
  %v3696 = vunpack.c.l.b16 %v821
  %v3697 = vunpack.c.h.b16 %v821
  %v3698 = vunpack.c.l.b16 %v822
  %v3699 = vunpack.c.h.b16 %v822
  %v3700 = vunpack.c.l.b16 %v823
  %v3701 = vunpack.c.h.b16 %v823
  %v3702 = vunpack.c.l.b16 %v824
  %v3703 = vunpack.c.h.b16 %v824
  %v3704 = vunpack.c.l.b16 %v825
  %v3705 = vunpack.c.h.b16 %v825
  %v3706 = vunpack.c.l.b16 %v826
  %v3707 = vunpack.c.h.b16 %v826
  %v3708 = vunpack.c.l.b16 %v827
  %v3709 = vunpack.c.h.b16 %v827
  %v3710 = vunpack.c.l.b16 %v828
  %v3711 = vunpack.c.h.b16 %v828
  %v3712 = vunpack.c.l.b16 %v829
  %v3713 = vunpack.c.h.b16 %v829
  %v3714 = vunpack.c.l.b16 %v830
  %v3715 = vunpack.c.h.b16 %v830
  %v3716 = vunpack.c.l.b16 %v831
  %v3717 = vunpack.c.h.b16 %v831
  %v3718 = vunpack.c.l.b16 %v832
  %v3719 = vunpack.c.h.b16 %v832
  %v3720 = vunpack.c.l.b16 %v833
  %v3721 = vunpack.c.h.b16 %v833
  %v3722 = vunpack.c.l.b16 %v834
  %v3723 = vunpack.c.h.b16 %v834
  %v3724 = vunpack.c.l.b16 %v835
  %v3725 = vunpack.c.h.b16 %v835
  %v3726 = vunpack.c.l.b16 %v836
  %v3727 = vunpack.c.h.b16 %v836
  %v3728 = vunpack.c.l.b16 %v837
  %v3729 = vunpack.c.h.b16 %v837
  %v3730 = vunpack.c.l.b16 %v838
  %v3731 = vunpack.c.h.b16 %v838
  %v3732 = vunpack.c.l.b16 %v839
  %v3733 = vunpack.c.h.b16 %v839
  %v3734 = vunpack.c.l.b16 %v840
  %v3735 = vunpack.c.h.b16 %v840
  %v3736 = vunpack.c.l.b16 %v841
  %v3737 = vunpack.c.h.b16 %v841
  %v3738 = vunpack.c.l.b16 %v842
  %v3739 = vunpack.c.h.b16 %v842
  %v3740 = vunpack.c.l.b16 %v843
  %v3741 = vunpack.c.h.b16 %v843
  %v3742 = vunpack.c.l.b16 %v844
  %v3743 = vunpack.c.h.b16 %v844
  %v3744 = vunpack.c.l.b16 %v845
  %v3745 = vunpack.c.h.b16 %v845
  %v3746 = vunpack.c.l.b16 %v846
  %v3747 = vunpack.c.h.b16 %v846
  %v3748 = vunpack.c.l.b16 %v847
  %v3749 = vunpack.c.h.b16 %v847
  %v3750 = vunpack.c.l.b16 %v848
  %v3751 = vunpack.c.h.b16 %v848
  %v3752 = vunpack.c.l.b16 %v849
  %v3753 = vunpack.c.h.b16 %v849
  %v3754 = vunpack.c.l.b16 %v850
  %v3755 = vunpack.c.h.b16 %v850
  %v3756 = vunpack.c.l.b16 %v851
  %v3757 = vunpack.c.h.b16 %v851
  %v3758 = vunpack.c.l.b16 %v852
  %v3759 = vunpack.c.h.b16 %v852
  %v3760 = vunpack.c.l.b16 %v853
  %v3761 = vunpack.c.h.b16 %v853
  %v3762 = vunpack.c.l.b16 %v854
  %v3763 = vunpack.c.h.b16 %v854
  %v3764 = vunpack.c.l.b16 %v855
  %v3765 = vunpack.c.h.b16 %v855
  %v3766 = vunpack.c.l.b16 %v856
  %v3767 = vunpack.c.h.b16 %v856
  %v3768 = vunpack.c.l.b16 %v857
  %v3769 = vunpack.c.h.b16 %v857
  %v3770 = vunpack.c.l.b16 %v858
  %v3771 = vunpack.c.h.b16 %v858
  %v3772 = vunpack.c.l.b16 %v859
  %v3773 = vunpack.c.h.b16 %v859
  %v3774 = vunpack.c.l.b16 %v860
  %v3775 = vunpack.c.h.b16 %v860
  %v3776 = vunpack.c.l.b16 %v861
  %v3777 = vunpack.c.h.b16 %v861
  %v3778 = vunpack.c.l.b16 %v862
  %v3779 = vunpack.c.h.b16 %v862
  %v3780 = vunpack.c.l.b16 %v863
  %v3781 = vunpack.c.h.b16 %v863
  %v3782 = vunpack.c.l.b16 %v864
  %v3783 = vunpack.c.h.b16 %v864
  %v3784 = vunpack.c.l.b16 %v865
  %v3785 = vunpack.c.h.b16 %v865
  %v3786 = vunpack.c.l.b16 %v866
  %v3787 = vunpack.c.h.b16 %v866
  %v3788 = vunpack.c.l.b16 %v867
  %v3789 = vunpack.c.h.b16 %v867
  %v3790 = vunpack.c.l.b16 %v868
  %v3791 = vunpack.c.h.b16 %v868
  %v3792 = vunpack.c.l.b16 %v869
  %v3793 = vunpack.c.h.b16 %v869
  %v3794 = vunpack.c.l.b16 %v870
  %v3795 = vunpack.c.h.b16 %v870
  %v3796 = vunpack.c.l.b16 %v871
  %v3797 = vunpack.c.h.b16 %v871
  %v3798 = vunpack.c.l.b16 %v872
  %v3799 = vunpack.c.h.b16 %v872
  %v3800 = vunpack.c.l.b16 %v873
  %v3801 = vunpack.c.h.b16 %v873
  %v3802 = vunpack.c.l.b16 %v874
  %v3803 = vunpack.c.h.b16 %v874
  %v3804 = vunpack.c.l.b16 %v875
  %v3805 = vunpack.c.h.b16 %v875
  %v3806 = vunpack.c.l.b16 %v876
  %v3807 = vunpack.c.h.b16 %v876
  %v3808 = vunpack.c.l.b16 %v877
  %v3809 = vunpack.c.h.b16 %v877
  %v3810 = vunpack.c.l.b16 %v878
  %v3811 = vunpack.c.h.b16 %v878
  %v3812 = vunpack.c.l.b16 %v879
  %v3813 = vunpack.c.h.b16 %v879
  %v3814 = vunpack.c.l.b16 %v880
  %v3815 = vunpack.c.h.b16 %v880
  %v3816 = vunpack.c.l.b16 %v881
  %v3817 = vunpack.c.h.b16 %v881
  %v3818 = vunpack.c.l.b16 %v882
  %v3819 = vunpack.c.h.b16 %v882
  %v3820 = vunpack.c.l.b16 %v883
  %v3821 = vunpack.c.h.b16 %v883
  %v3822 = vunpack.c.l.b16 %v884
  %v3823 = vunpack.c.h.b16 %v884
  %v3824 = vunpack.c.l.b16 %v885
  %v3825 = vunpack.c.h.b16 %v885
  %v3826 = vunpack.c.l.b16 %v886
  %v3827 = vunpack.c.h.b16 %v886
  %v3828 = vunpack.c.l.b16 %v887
  %v3829 = vunpack.c.h.b16 %v887
  %v3830 = vunpack.c.l.b16 %v888
  %v3831 = vunpack.c.h.b16 %v888
  %v3832 = vunpack.c.l.b16 %v889
  %v3833 = vunpack.c.h.b16 %v889
  %v3834 = vunpack.c.l.b16 %v890
  %v3835 = vunpack.c.h.b16 %v890
  %v3836 = vunpack.c.l.b16 %v891
  %v3837 = vunpack.c.h.b16 %v891
  %v3838 = vunpack.c.l.b16 %v892
  %v3839 = vunpack.c.h.b16 %v892
  %v3840 = vunpack.c.l.b16 %v893
  %v3841 = vunpack.c.h.b16 %v893
  %v3842 = vunpack.c.l.b16 %v894
  %v3843 = vunpack.c.h.b16 %v894
  %v3844 = vunpack.c.l.b16 %v895
  %v3845 = vunpack.c.h.b16 %v895
  %v3846 = vunpack.c.l.b16 %v896
  %v3847 = vunpack.c.h.b16 %v896
  %v3848 = vunpack.c.l.b16 %v897
  %v3849 = vunpack.c.h.b16 %v897
  %v3850 = vunpack.c.l.b16 %v898
  %v3851 = vunpack.c.h.b16 %v898
  %v3852 = vunpack.c.l.b16 %v899
  %v3853 = vunpack.c.h.b16 %v899
  %v3854 = vunpack.c.l.b16 %v900
  %v3855 = vunpack.c.h.b16 %v900
  %v3856 = vunpack.c.l.b16 %v901
  %v3857 = vunpack.c.h.b16 %v901
  %v3858 = vunpack.c.l.b16 %v902
  %v3859 = vunpack.c.h.b16 %v902
  %v3860 = vunpack.c.l.b16 %v903
  %v3861 = vunpack.c.h.b16 %v903
  %v3862 = vunpack.c.l.b16 %v904
  %v3863 = vunpack.c.h.b16 %v904
  %v3864 = vunpack.c.l.b16 %v905
  %v3865 = vunpack.c.h.b16 %v905
  %v3866 = vunpack.c.l.b16 %v906
  %v3867 = vunpack.c.h.b16 %v906
  %v3868 = vunpack.c.l.b16 %v907
  %v3869 = vunpack.c.h.b16 %v907
  %v3870 = vunpack.c.l.b16 %v908
  %v3871 = vunpack.c.h.b16 %v908
  %v3872 = vunpack.c.l.b16 %v909
  %v3873 = vunpack.c.h.b16 %v909
  %v3874 = vunpack.c.l.b16 %v910
  %v3875 = vunpack.c.h.b16 %v910
  %v3876 = vunpack.c.l.b16 %v911
  %v3877 = vunpack.c.h.b16 %v911
  %v3878 = vunpack.c.l.b16 %v912
  %v3879 = vunpack.c.h.b16 %v912
  %v3880 = vunpack.c.l.b16 %v913
  %v3881 = vunpack.c.h.b16 %v913
  %v3882 = vunpack.c.l.b16 %v914
  %v3883 = vunpack.c.h.b16 %v914
  %v3884 = vunpack.c.l.b16 %v915
  %v3885 = vunpack.c.h.b16 %v915
  %v3886 = vunpack.c.l.b16 %v916
  %v3887 = vunpack.c.h.b16 %v916
  %v3888 = vunpack.c.l.b16 %v917
  %v3889 = vunpack.c.h.b16 %v917
  %v3890 = vunpack.c.l.b16 %v918
  %v3891 = vunpack.c.h.b16 %v918
  %v3892 = vunpack.c.l.b16 %v919
  %v3893 = vunpack.c.h.b16 %v919
  %v3894 = vunpack.c.l.b16 %v920
  %v3895 = vunpack.c.h.b16 %v920
  %v3896 = vunpack.c.l.b16 %v921
  %v3897 = vunpack.c.h.b16 %v921
  %v3898 = vunpack.c.l.b16 %v922
  %v3899 = vunpack.c.h.b16 %v922
  %v3900 = vunpack.c.l.b16 %v923
  %v3901 = vunpack.c.h.b16 %v923
  %v3902 = vunpack.c.l.b16 %v924
  %v3903 = vunpack.c.h.b16 %v924
  %v3904 = vunpack.c.l.b16 %v925
  %v3905 = vunpack.c.h.b16 %v925
  %v3906 = vunpack.c.l.b16 %v926
  %v3907 = vunpack.c.h.b16 %v926
  %v3908 = vunpack.c.l.b16 %v927
  %v3909 = vunpack.c.h.b16 %v927
  %v3910 = vunpack.c.l.b16 %v928
  %v3911 = vunpack.c.h.b16 %v928
  %v3912 = vunpack.c.l.b16 %v929
  %v3913 = vunpack.c.h.b16 %v929
  %v3914 = vunpack.c.l.b16 %v930
  %v3915 = vunpack.c.h.b16 %v930
  %v3916 = vunpack.c.l.b16 %v931
  %v3917 = vunpack.c.h.b16 %v931
  %v3918 = vunpack.c.l.b16 %v932
  %v3919 = vunpack.c.h.b16 %v932
  %v3920 = vunpack.c.l.b16 %v933
  %v3921 = vunpack.c.h.b16 %v933
  %v3922 = vunpack.c.l.b16 %v934
  %v3923 = vunpack.c.h.b16 %v934
  %v3924 = vunpack.c.l.b16 %v935
  %v3925 = vunpack.c.h.b16 %v935
  %v3926 = vunpack.c.l.b16 %v936
  %v3927 = vunpack.c.h.b16 %v936
  %v3928 = vunpack.c.l.b16 %v937
  %v3929 = vunpack.c.h.b16 %v937
  %v3930 = vunpack.c.l.b16 %v938
  %v3931 = vunpack.c.h.b16 %v938
  %v3932 = vunpack.c.l.b16 %v939
  %v3933 = vunpack.c.h.b16 %v939
  %v3934 = vunpack.c.l.b16 %v940
  %v3935 = vunpack.c.h.b16 %v940
  %v3936 = vunpack.c.l.b16 %v941
  %v3937 = vunpack.c.h.b16 %v941
  %v3938 = vunpack.c.l.b16 %v942
  %v3939 = vunpack.c.h.b16 %v942
  %v3940 = vunpack.c.l.b16 %v943
  %v3941 = vunpack.c.h.b16 %v943
  %v3942 = vunpack.c.l.b16 %v944
  %v3943 = vunpack.c.h.b16 %v944
  %v3944 = vunpack.c.l.b16 %v945
  %v3945 = vunpack.c.h.b16 %v945
  %v3946 = vunpack.c.l.b16 %v946
  %v3947 = vunpack.c.h.b16 %v946
  %v3948 = vunpack.c.l.b16 %v947
  %v3949 = vunpack.c.h.b16 %v947
  %v3950 = vunpack.c.l.b16 %v948
  %v3951 = vunpack.c.h.b16 %v948
  %v3952 = vunpack.c.l.b16 %v949
  %v3953 = vunpack.c.h.b16 %v949
  %v3954 = vunpack.c.l.b16 %v950
  %v3955 = vunpack.c.h.b16 %v950
  %v3956 = vunpack.c.l.b16 %v951
  %v3957 = vunpack.c.h.b16 %v951
  %v3958 = vunpack.c.l.b16 %v952
  %v3959 = vunpack.c.h.b16 %v952
  %v3960 = vunpack.c.l.b16 %v953
  %v3961 = vunpack.c.h.b16 %v953
  %v3962 = vunpack.c.l.b16 %v954
  %v3963 = vunpack.c.h.b16 %v954
  %v3964 = vunpack.c.l.b16 %v955
  %v3965 = vunpack.c.h.b16 %v955
  %v3966 = vunpack.c.l.b16 %v956
  %v3967 = vunpack.c.h.b16 %v956
  %v3968 = vunpack.c.l.b16 %v957
  %v3969 = vunpack.c.h.b16 %v957
  %v3970 = vunpack.c.l.b16 %v958
  %v3971 = vunpack.c.h.b16 %v958
  %v3972 = vunpack.c.l.b16 %v959
  %v3973 = vunpack.c.h.b16 %v959
  %v3974 = vunpack.c.l.b16 %v960
  %v3975 = vunpack.c.h.b16 %v960
  %v3976 = vunpack.c.l.b16 %v961
  %v3977 = vunpack.c.h.b16 %v961
  %v3978 = vunpack.c.l.b16 %v962
  %v3979 = vunpack.c.h.b16 %v962
  %v3980 = vunpack.c.l.b16 %v963
  %v3981 = vunpack.c.h.b16 %v963
  %v3982 = vunpack.c.l.b16 %v964
  %v3983 = vunpack.c.h.b16 %v964
  %v3984 = vunpack.c.l.b16 %v965
  %v3985 = vunpack.c.h.b16 %v965
  %v3986 = vunpack.c.l.b16 %v966
  %v3987 = vunpack.c.h.b16 %v966
  %v3988 = vunpack.c.l.b16 %v967
  %v3989 = vunpack.c.h.b16 %v967
  %v3990 = vunpack.c.l.b16 %v968
  %v3991 = vunpack.c.h.b16 %v968
  %v3992 = vunpack.c.l.b16 %v969
  %v3993 = vunpack.c.h.b16 %v969
  %v3994 = vunpack.c.l.b16 %v970
  %v3995 = vunpack.c.h.b16 %v970
  %v3996 = vunpack.c.l.b16 %v971
  %v3997 = vunpack.c.h.b16 %v971
  %v3998 = vunpack.c.l.b16 %v972
  %v3999 = vunpack.c.h.b16 %v972
  %v4000 = vunpack.c.l.b16 %v973
  %v4001 = vunpack.c.h.b16 %v973
  %v4002 = vunpack.c.l.b16 %v974
  %v4003 = vunpack.c.h.b16 %v974
  %v4004 = vunpack.c.l.b16 %v975
  %v4005 = vunpack.c.h.b16 %v975
  %v4006 = vunpack.c.l.b16 %v976
  %v4007 = vunpack.c.h.b16 %v976
  %v4008 = vunpack.c.l.b16 %v977
  %v4009 = vunpack.c.h.b16 %v977
  %v4010 = vunpack.c.l.b16 %v978
  %v4011 = vunpack.c.h.b16 %v978
  %v4012 = vunpack.c.l.b16 %v979
  %v4013 = vunpack.c.h.b16 %v979
  %v4014 = vunpack.c.l.b16 %v980
  %v4015 = vunpack.c.h.b16 %v980
  %v4016 = vunpack.c.l.b16 %v981
  %v4017 = vunpack.c.h.b16 %v981
  %v4018 = vunpack.c.l.b16 %v982
  %v4019 = vunpack.c.h.b16 %v982
  %v4020 = vunpack.c.l.b16 %v983
  %v4021 = vunpack.c.h.b16 %v983
  %v4022 = vunpack.c.l.b16 %v984
  %v4023 = vunpack.c.h.b16 %v984
  %v4024 = vunpack.c.l.b16 %v985
  %v4025 = vunpack.c.h.b16 %v985
  %v4026 = vunpack.c.l.b16 %v986
  %v4027 = vunpack.c.h.b16 %v986
  %v4028 = vunpack.c.l.b16 %v987
  %v4029 = vunpack.c.h.b16 %v987
  %v4030 = vunpack.c.l.b16 %v988
  %v4031 = vunpack.c.h.b16 %v988
  %v4032 = vunpack.c.l.b16 %v989
  %v4033 = vunpack.c.h.b16 %v989
  %v4034 = vunpack.c.l.b16 %v990
  %v4035 = vunpack.c.h.b16 %v990
  %v4036 = vunpack.c.l.b16 %v991
  %v4037 = vunpack.c.h.b16 %v991
  %v4038 = vunpack.c.l.b16 %v992
  %v4039 = vunpack.c.h.b16 %v992
  %v4040 = vunpack.c.l.b16 %v993
  %v4041 = vunpack.c.h.b16 %v993
  %v4042 = vunpack.c.l.b16 %v994
  %v4043 = vunpack.c.h.b16 %v994
  %v4044 = vunpack.c.l.b16 %v995
  %v4045 = vunpack.c.h.b16 %v995
  %v4046 = vunpack.c.l.b16 %v996
  %v4047 = vunpack.c.h.b16 %v996
  %v4048 = vunpack.c.l.b16 %v997
  %v4049 = vunpack.c.h.b16 %v997
  %v4050 = vunpack.c.l.b16 %v998
  %v4051 = vunpack.c.h.b16 %v998
  %v4052 = vunpack.c.l.b16 %v999
  %v4053 = vunpack.c.h.b16 %v999
  %v4054 = vunpack.c.l.b16 %v1000
  %v4055 = vunpack.c.h.b16 %v1000
  %v4056 = vunpack.c.l.b16 %v1001
  %v4057 = vunpack.c.h.b16 %v1001
  %v4058 = vunpack.c.l.b16 %v1002
  %v4059 = vunpack.c.h.b16 %v1002
  %v4060 = vunpack.c.l.b16 %v1003
  %v4061 = vunpack.c.h.b16 %v1003
  %v4062 = vunpack.c.l.b16 %v1004
  %v4063 = vunpack.c.h.b16 %v1004
  %v4064 = vunpack.c.l.b16 %v1005
  %v4065 = vunpack.c.h.b16 %v1005
  %v4066 = vunpack.c.l.b16 %v1006
  %v4067 = vunpack.c.h.b16 %v1006
  %v4068 = vunpack.c.l.b16 %v1007
  %v4069 = vunpack.c.h.b16 %v1007
  %v4070 = vunpack.c.l.b16 %v1008
  %v4071 = vunpack.c.h.b16 %v1008
  %v4072 = vunpack.c.l.b16 %v1009
  %v4073 = vunpack.c.h.b16 %v1009
  %v4074 = vunpack.c.l.b16 %v1010
  %v4075 = vunpack.c.h.b16 %v1010
  %v4076 = vunpack.c.l.b16 %v1011
  %v4077 = vunpack.c.h.b16 %v1011
  %v4078 = vunpack.c.l.b16 %v1012
  %v4079 = vunpack.c.h.b16 %v1012
  %v4080 = vunpack.c.l.b16 %v1013
  %v4081 = vunpack.c.h.b16 %v1013
  %v4082 = vunpack.c.l.b16 %v1014
  %v4083 = vunpack.c.h.b16 %v1014
  %v4084 = vunpack.c.l.b16 %v1015
  %v4085 = vunpack.c.h.b16 %v1015
  %v4086 = vunpack.c.l.b16 %v1016
  %v4087 = vunpack.c.h.b16 %v1016
  %v4088 = vunpack.c.l.b16 %v1017
  %v4089 = vunpack.c.h.b16 %v1017
  %v4090 = vunpack.c.l.b16 %v1018
  %v4091 = vunpack.c.h.b16 %v1018
  %v4092 = vunpack.c.l.b16 %v1019
  %v4093 = vunpack.c.h.b16 %v1019
  %v4094 = vunpack.c.l.b16 %v1020
  %v4095 = vunpack.c.h.b16 %v1020
  %v4096 = vunpack.c.l.b16 %v1021
  %v4097 = vunpack.c.h.b16 %v1021
  %v4098 = vunpack.c.l.b16 %v1022
  %v4099 = vunpack.c.h.b16 %v1022
  %v4100 = vunpack.c.l.b16 %v1023
  %v4101 = vunpack.c.h.b16 %v1023
  %v4102 = vunpack.c.l.b16 %v1024
  %v4103 = vunpack.c.h.b16 %v1024
  %v4104 = vunpack.c.l.b16 %v1025
  %v4105 = vunpack.c.h.b16 %v1025
  %v4106 = vunpack.c.l.b16 %v1026
  %v4107 = vunpack.c.h.b16 %v1026
  %v4108 = vunpack.c.l.b16 %v1027
  %v4109 = vunpack.c.h.b16 %v1027
  %v4110 = vunpack.c.l.b16 %v1028
  %v4111 = vunpack.c.h.b16 %v1028
  %v4112 = vunpack.c.l.b16 %v1029
  %v4113 = vunpack.c.h.b16 %v1029
  %v4114 = vunpack.c.l.b16 %v1030
  %v4115 = vunpack.c.h.b16 %v1030
  %v4116 = vunpack.c.l.b16 %v1031
  %v4117 = vunpack.c.h.b16 %v1031
  %v4118 = vunpack.c.l.b16 %v1032
  %v4119 = vunpack.c.h.b16 %v1032
  %v4120 = vunpack.c.l.b16 %v1033
  %v4121 = vunpack.c.h.b16 %v1033
  %v4122 = vunpack.c.l.b16 %v1034
  %v4123 = vunpack.c.h.b16 %v1034
  %v4124 = vunpack.c.l.b16 %v1035
  %v4125 = vunpack.c.h.b16 %v1035
  %v4126 = vpack.c.b16 %v2094, %v2078
  %v4127 = vpack.c.b16 %v2095, %v2079
  %v4128 = vpack.c.b16 %v2096, %v2080
  %v4129 = vpack.c.b16 %v2097, %v2081
  %v4130 = vpack.c.b16 %v2098, %v2082
  %v4131 = vpack.c.b16 %v2099, %v2083
  %v4132 = vpack.c.b16 %v2100, %v2084
  %v4133 = vpack.c.b16 %v2101, %v2085
  %v4134 = vpack.c.b16 %v2102, %v2086
  %v4135 = vpack.c.b16 %v2103, %v2087
  %v4136 = vpack.c.b16 %v2104, %v2088
  %v4137 = vpack.c.b16 %v2105, %v2089
  %v4138 = vpack.c.b16 %v2106, %v2090
  %v4139 = vpack.c.b16 %v2107, %v2091
  %v4140 = vpack.c.b16 %v2108, %v2092
  %v4141 = vpack.c.b16 %v2109, %v2093
  %v4142 = vpack.c.b16 %v2126, %v2110
  %v4143 = vpack.c.b16 %v2127, %v2111
  %v4144 = vpack.c.b16 %v2128, %v2112
  %v4145 = vpack.c.b16 %v2129, %v2113
  %v4146 = vpack.c.b16 %v2130, %v2114
  %v4147 = vpack.c.b16 %v2131, %v2115
  %v4148 = vpack.c.b16 %v2132, %v2116
  %v4149 = vpack.c.b16 %v2133, %v2117
  %v4150 = vpack.c.b16 %v2134, %v2118
  %v4151 = vpack.c.b16 %v2135, %v2119
  %v4152 = vpack.c.b16 %v2136, %v2120
  %v4153 = vpack.c.b16 %v2137, %v2121
  %v4154 = vpack.c.b16 %v2138, %v2122
  %v4155 = vpack.c.b16 %v2139, %v2123
  %v4156 = vpack.c.b16 %v2140, %v2124
  %v4157 = vpack.c.b16 %v2141, %v2125
  %v4158 = vpack.c.b16 %v2158, %v2142
  %v4159 = vpack.c.b16 %v2159, %v2143
  %v4160 = vpack.c.b16 %v2160, %v2144
  %v4161 = vpack.c.b16 %v2161, %v2145
  %v4162 = vpack.c.b16 %v2162, %v2146
  %v4163 = vpack.c.b16 %v2163, %v2147
  %v4164 = vpack.c.b16 %v2164, %v2148
  %v4165 = vpack.c.b16 %v2165, %v2149
  %v4166 = vpack.c.b16 %v2166, %v2150
  %v4167 = vpack.c.b16 %v2167, %v2151
  %v4168 = vpack.c.b16 %v2168, %v2152
  %v4169 = vpack.c.b16 %v2169, %v2153
  %v4170 = vpack.c.b16 %v2170, %v2154
  %v4171 = vpack.c.b16 %v2171, %v2155
  %v4172 = vpack.c.b16 %v2172, %v2156
  %v4173 = vpack.c.b16 %v2173, %v2157
  %v4174 = vpack.c.b16 %v2190, %v2174
  %v4175 = vpack.c.b16 %v2191, %v2175
  %v4176 = vpack.c.b16 %v2192, %v2176
  %v4177 = vpack.c.b16 %v2193, %v2177
  %v4178 = vpack.c.b16 %v2194, %v2178
  %v4179 = vpack.c.b16 %v2195, %v2179
  %v4180 = vpack.c.b16 %v2196, %v2180
  %v4181 = vpack.c.b16 %v2197, %v2181
  %v4182 = vpack.c.b16 %v2198, %v2182
  %v4183 = vpack.c.b16 %v2199, %v2183
  %v4184 = vpack.c.b16 %v2200, %v2184
  %v4185 = vpack.c.b16 %v2201, %v2185
  %v4186 = vpack.c.b16 %v2202, %v2186
  %v4187 = vpack.c.b16 %v2203, %v2187
  %v4188 = vpack.c.b16 %v2204, %v2188
  %v4189 = vpack.c.b16 %v2205, %v2189
  %v4190 = vpack.c.b16 %v2222, %v2206
  %v4191 = vpack.c.b16 %v2223, %v2207
  %v4192 = vpack.c.b16 %v2224, %v2208
  %v4193 = vpack.c.b16 %v2225, %v2209
  %v4194 = vpack.c.b16 %v2226, %v2210
  %v4195 = vpack.c.b16 %v2227, %v2211
  %v4196 = vpack.c.b16 %v2228, %v2212
  %v4197 = vpack.c.b16 %v2229, %v2213
  %v4198 = vpack.c.b16 %v2230, %v2214
  %v4199 = vpack.c.b16 %v2231, %v2215
  %v4200 = vpack.c.b16 %v2232, %v2216
  %v4201 = vpack.c.b16 %v2233, %v2217
  %v4202 = vpack.c.b16 %v2234, %v2218
  %v4203 = vpack.c.b16 %v2235, %v2219
  %v4204 = vpack.c.b16 %v2236, %v2220
  %v4205 = vpack.c.b16 %v2237, %v2221
  %v4206 = vpack.c.b16 %v2254, %v2238
  %v4207 = vpack.c.b16 %v2255, %v2239
  %v4208 = vpack.c.b16 %v2256, %v2240
  %v4209 = vpack.c.b16 %v2257, %v2241
  %v4210 = vpack.c.b16 %v2258, %v2242
  %v4211 = vpack.c.b16 %v2259, %v2243
  %v4212 = vpack.c.b16 %v2260, %v2244
  %v4213 = vpack.c.b16 %v2261, %v2245
  %v4214 = vpack.c.b16 %v2262, %v2246
  %v4215 = vpack.c.b16 %v2263, %v2247
  %v4216 = vpack.c.b16 %v2264, %v2248
  %v4217 = vpack.c.b16 %v2265, %v2249
  %v4218 = vpack.c.b16 %v2266, %v2250
  %v4219 = vpack.c.b16 %v2267, %v2251
  %v4220 = vpack.c.b16 %v2268, %v2252
  %v4221 = vpack.c.b16 %v2269, %v2253
  %v4222 = vpack.c.b16 %v2286, %v2270
  %v4223 = vpack.c.b16 %v2287, %v2271
  %v4224 = vpack.c.b16 %v2288, %v2272
  %v4225 = vpack.c.b16 %v2289, %v2273
  %v4226 = vpack.c.b16 %v2290, %v2274
  %v4227 = vpack.c.b16 %v2291, %v2275
  %v4228 = vpack.c.b16 %v2292, %v2276
  %v4229 = vpack.c.b16 %v2293, %v2277
  %v4230 = vpack.c.b16 %v2294, %v2278
  %v4231 = vpack.c.b16 %v2295, %v2279
  %v4232 = vpack.c.b16 %v2296, %v2280
  %v4233 = vpack.c.b16 %v2297, %v2281
  %v4234 = vpack.c.b16 %v2298, %v2282
  %v4235 = vpack.c.b16 %v2299, %v2283
  %v4236 = vpack.c.b16 %v2300, %v2284
  %v4237 = vpack.c.b16 %v2301, %v2285
  %v4238 = vpack.c.b16 %v2318, %v2302
  %v4239 = vpack.c.b16 %v2319, %v2303
  %v4240 = vpack.c.b16 %v2320, %v2304
  %v4241 = vpack.c.b16 %v2321, %v2305
  %v4242 = vpack.c.b16 %v2322, %v2306
  %v4243 = vpack.c.b16 %v2323, %v2307
  %v4244 = vpack.c.b16 %v2324, %v2308
  %v4245 = vpack.c.b16 %v2325, %v2309
  %v4246 = vpack.c.b16 %v2326, %v2310
  %v4247 = vpack.c.b16 %v2327, %v2311
  %v4248 = vpack.c.b16 %v2328, %v2312
  %v4249 = vpack.c.b16 %v2329, %v2313
  %v4250 = vpack.c.b16 %v2330, %v2314
  %v4251 = vpack.c.b16 %v2331, %v2315
  %v4252 = vpack.c.b16 %v2332, %v2316
  %v4253 = vpack.c.b16 %v2333, %v2317
  %v4254 = vpack.c.b16 %v2350, %v2334
  %v4255 = vpack.c.b16 %v2351, %v2335
  %v4256 = vpack.c.b16 %v2352, %v2336
  %v4257 = vpack.c.b16 %v2353, %v2337
  %v4258 = vpack.c.b16 %v2354, %v2338
  %v4259 = vpack.c.b16 %v2355, %v2339
  %v4260 = vpack.c.b16 %v2356, %v2340
  %v4261 = vpack.c.b16 %v2357, %v2341
  %v4262 = vpack.c.b16 %v2358, %v2342
  %v4263 = vpack.c.b16 %v2359, %v2343
  %v4264 = vpack.c.b16 %v2360, %v2344
  %v4265 = vpack.c.b16 %v2361, %v2345
  %v4266 = vpack.c.b16 %v2362, %v2346
  %v4267 = vpack.c.b16 %v2363, %v2347
  %v4268 = vpack.c.b16 %v2364, %v2348
  %v4269 = vpack.c.b16 %v2365, %v2349
  %v4270 = vpack.c.b16 %v2382, %v2366
  %v4271 = vpack.c.b16 %v2383, %v2367
  %v4272 = vpack.c.b16 %v2384, %v2368
  %v4273 = vpack.c.b16 %v2385, %v2369
  %v4274 = vpack.c.b16 %v2386, %v2370
  %v4275 = vpack.c.b16 %v2387, %v2371
  %v4276 = vpack.c.b16 %v2388, %v2372
  %v4277 = vpack.c.b16 %v2389, %v2373
  %v4278 = vpack.c.b16 %v2390, %v2374
  %v4279 = vpack.c.b16 %v2391, %v2375
  %v4280 = vpack.c.b16 %v2392, %v2376
  %v4281 = vpack.c.b16 %v2393, %v2377
  %v4282 = vpack.c.b16 %v2394, %v2378
  %v4283 = vpack.c.b16 %v2395, %v2379
  %v4284 = vpack.c.b16 %v2396, %v2380
  %v4285 = vpack.c.b16 %v2397, %v2381
  %v4286 = vpack.c.b16 %v2414, %v2398
  %v4287 = vpack.c.b16 %v2415, %v2399
  %v4288 = vpack.c.b16 %v2416, %v2400
  %v4289 = vpack.c.b16 %v2417, %v2401
  %v4290 = vpack.c.b16 %v2418, %v2402
  %v4291 = vpack.c.b16 %v2419, %v2403
  %v4292 = vpack.c.b16 %v2420, %v2404
  %v4293 = vpack.c.b16 %v2421, %v2405
  %v4294 = vpack.c.b16 %v2422, %v2406
  %v4295 = vpack.c.b16 %v2423, %v2407
  %v4296 = vpack.c.b16 %v2424, %v2408
  %v4297 = vpack.c.b16 %v2425, %v2409
  %v4298 = vpack.c.b16 %v2426, %v2410
  %v4299 = vpack.c.b16 %v2427, %v2411
  %v4300 = vpack.c.b16 %v2428, %v2412
  %v4301 = vpack.c.b16 %v2429, %v2413
  %v4302 = vpack.c.b16 %v2446, %v2430
  %v4303 = vpack.c.b16 %v2447, %v2431
  %v4304 = vpack.c.b16 %v2448, %v2432
  %v4305 = vpack.c.b16 %v2449, %v2433
  %v4306 = vpack.c.b16 %v2450, %v2434
  %v4307 = vpack.c.b16 %v2451, %v2435
  %v4308 = vpack.c.b16 %v2452, %v2436
  %v4309 = vpack.c.b16 %v2453, %v2437
  %v4310 = vpack.c.b16 %v2454, %v2438
  %v4311 = vpack.c.b16 %v2455, %v2439
  %v4312 = vpack.c.b16 %v2456, %v2440
  %v4313 = vpack.c.b16 %v2457, %v2441
  %v4314 = vpack.c.b16 %v2458, %v2442
  %v4315 = vpack.c.b16 %v2459, %v2443
  %v4316 = vpack.c.b16 %v2460, %v2444
  %v4317 = vpack.c.b16 %v2461, %v2445
  %v4318 = vpack.c.b16 %v2478, %v2462
  %v4319 = vpack.c.b16 %v2479, %v2463
  %v4320 = vpack.c.b16 %v2480, %v2464
  %v4321 = vpack.c.b16 %v2481, %v2465
  %v4322 = vpack.c.b16 %v2482, %v2466
  %v4323 = vpack.c.b16 %v2483, %v2467
  %v4324 = vpack.c.b16 %v2484, %v2468
  %v4325 = vpack.c.b16 %v2485, %v2469
  %v4326 = vpack.c.b16 %v2486, %v2470
  %v4327 = vpack.c.b16 %v2487, %v2471
  %v4328 = vpack.c.b16 %v2488, %v2472
  %v4329 = vpack.c.b16 %v2489, %v2473
  %v4330 = vpack.c.b16 %v2490, %v2474
  %v4331 = vpack.c.b16 %v2491, %v2475
  %v4332 = vpack.c.b16 %v2492, %v2476
  %v4333 = vpack.c.b16 %v2493, %v2477
  %v4334 = vpack.c.b16 %v2510, %v2494
  %v4335 = vpack.c.b16 %v2511, %v2495
  %v4336 = vpack.c.b16 %v2512, %v2496
  %v4337 = vpack.c.b16 %v2513, %v2497
  %v4338 = vpack.c.b16 %v2514, %v2498
  %v4339 = vpack.c.b16 %v2515, %v2499
  %v4340 = vpack.c.b16 %v2516, %v2500
  %v4341 = vpack.c.b16 %v2517, %v2501
  %v4342 = vpack.c.b16 %v2518, %v2502
  %v4343 = vpack.c.b16 %v2519, %v2503
  %v4344 = vpack.c.b16 %v2520, %v2504
  %v4345 = vpack.c.b16 %v2521, %v2505
  %v4346 = vpack.c.b16 %v2522, %v2506
  %v4347 = vpack.c.b16 %v2523, %v2507
  %v4348 = vpack.c.b16 %v2524, %v2508
  %v4349 = vpack.c.b16 %v2525, %v2509
  %v4350 = vpack.c.b16 %v2542, %v2526
  %v4351 = vpack.c.b16 %v2543, %v2527
  %v4352 = vpack.c.b16 %v2544, %v2528
  %v4353 = vpack.c.b16 %v2545, %v2529
  %v4354 = vpack.c.b16 %v2546, %v2530
  %v4355 = vpack.c.b16 %v2547, %v2531
  %v4356 = vpack.c.b16 %v2548, %v2532
  %v4357 = vpack.c.b16 %v2549, %v2533
  %v4358 = vpack.c.b16 %v2550, %v2534
  %v4359 = vpack.c.b16 %v2551, %v2535
  %v4360 = vpack.c.b16 %v2552, %v2536
  %v4361 = vpack.c.b16 %v2553, %v2537
  %v4362 = vpack.c.b16 %v2554, %v2538
  %v4363 = vpack.c.b16 %v2555, %v2539
  %v4364 = vpack.c.b16 %v2556, %v2540
  %v4365 = vpack.c.b16 %v2557, %v2541
  %v4366 = vpack.c.b16 %v2574, %v2558
  %v4367 = vpack.c.b16 %v2575, %v2559
  %v4368 = vpack.c.b16 %v2576, %v2560
  %v4369 = vpack.c.b16 %v2577, %v2561
  %v4370 = vpack.c.b16 %v2578, %v2562
  %v4371 = vpack.c.b16 %v2579, %v2563
  %v4372 = vpack.c.b16 %v2580, %v2564
  %v4373 = vpack.c.b16 %v2581, %v2565
  %v4374 = vpack.c.b16 %v2582, %v2566
  %v4375 = vpack.c.b16 %v2583, %v2567
  %v4376 = vpack.c.b16 %v2584, %v2568
  %v4377 = vpack.c.b16 %v2585, %v2569
  %v4378 = vpack.c.b16 %v2586, %v2570
  %v4379 = vpack.c.b16 %v2587, %v2571
  %v4380 = vpack.c.b16 %v2588, %v2572
  %v4381 = vpack.c.b16 %v2589, %v2573
  %v4382 = vpack.c.b16 %v2606, %v2590
  %v4383 = vpack.c.b16 %v2607, %v2591
  %v4384 = vpack.c.b16 %v2608, %v2592
  %v4385 = vpack.c.b16 %v2609, %v2593
  %v4386 = vpack.c.b16 %v2610, %v2594
  %v4387 = vpack.c.b16 %v2611, %v2595
  %v4388 = vpack.c.b16 %v2612, %v2596
  %v4389 = vpack.c.b16 %v2613, %v2597
  %v4390 = vpack.c.b16 %v2614, %v2598
  %v4391 = vpack.c.b16 %v2615, %v2599
  %v4392 = vpack.c.b16 %v2616, %v2600
  %v4393 = vpack.c.b16 %v2617, %v2601
  %v4394 = vpack.c.b16 %v2618, %v2602
  %v4395 = vpack.c.b16 %v2619, %v2603
  %v4396 = vpack.c.b16 %v2620, %v2604
  %v4397 = vpack.c.b16 %v2621, %v2605
  %v4398 = vpack.c.b16 %v2638, %v2622
  %v4399 = vpack.c.b16 %v2639, %v2623
  %v4400 = vpack.c.b16 %v2640, %v2624
  %v4401 = vpack.c.b16 %v2641, %v2625
  %v4402 = vpack.c.b16 %v2642, %v2626
  %v4403 = vpack.c.b16 %v2643, %v2627
  %v4404 = vpack.c.b16 %v2644, %v2628
  %v4405 = vpack.c.b16 %v2645, %v2629
  %v4406 = vpack.c.b16 %v2646, %v2630
  %v4407 = vpack.c.b16 %v2647, %v2631
  %v4408 = vpack.c.b16 %v2648, %v2632
  %v4409 = vpack.c.b16 %v2649, %v2633
  %v4410 = vpack.c.b16 %v2650, %v2634
  %v4411 = vpack.c.b16 %v2651, %v2635
  %v4412 = vpack.c.b16 %v2652, %v2636
  %v4413 = vpack.c.b16 %v2653, %v2637
  %v4414 = vpack.c.b16 %v2670, %v2654
  %v4415 = vpack.c.b16 %v2671, %v2655
  %v4416 = vpack.c.b16 %v2672, %v2656
  %v4417 = vpack.c.b16 %v2673, %v2657
  %v4418 = vpack.c.b16 %v2674, %v2658
  %v4419 = vpack.c.b16 %v2675, %v2659
  %v4420 = vpack.c.b16 %v2676, %v2660
  %v4421 = vpack.c.b16 %v2677, %v2661
  %v4422 = vpack.c.b16 %v2678, %v2662
  %v4423 = vpack.c.b16 %v2679, %v2663
  %v4424 = vpack.c.b16 %v2680, %v2664
  %v4425 = vpack.c.b16 %v2681, %v2665
  %v4426 = vpack.c.b16 %v2682, %v2666
  %v4427 = vpack.c.b16 %v2683, %v2667
  %v4428 = vpack.c.b16 %v2684, %v2668
  %v4429 = vpack.c.b16 %v2685, %v2669
  %v4430 = vpack.c.b16 %v2702, %v2686
  %v4431 = vpack.c.b16 %v2703, %v2687
  %v4432 = vpack.c.b16 %v2704, %v2688
  %v4433 = vpack.c.b16 %v2705, %v2689
  %v4434 = vpack.c.b16 %v2706, %v2690
  %v4435 = vpack.c.b16 %v2707, %v2691
  %v4436 = vpack.c.b16 %v2708, %v2692
  %v4437 = vpack.c.b16 %v2709, %v2693
  %v4438 = vpack.c.b16 %v2710, %v2694
  %v4439 = vpack.c.b16 %v2711, %v2695
  %v4440 = vpack.c.b16 %v2712, %v2696
  %v4441 = vpack.c.b16 %v2713, %v2697
  %v4442 = vpack.c.b16 %v2714, %v2698
  %v4443 = vpack.c.b16 %v2715, %v2699
  %v4444 = vpack.c.b16 %v2716, %v2700
  %v4445 = vpack.c.b16 %v2717, %v2701
  %v4446 = vpack.c.b16 %v2734, %v2718
  %v4447 = vpack.c.b16 %v2735, %v2719
  %v4448 = vpack.c.b16 %v2736, %v2720
  %v4449 = vpack.c.b16 %v2737, %v2721
  %v4450 = vpack.c.b16 %v2738, %v2722
  %v4451 = vpack.c.b16 %v2739, %v2723
  %v4452 = vpack.c.b16 %v2740, %v2724
  %v4453 = vpack.c.b16 %v2741, %v2725
  %v4454 = vpack.c.b16 %v2742, %v2726
  %v4455 = vpack.c.b16 %v2743, %v2727
  %v4456 = vpack.c.b16 %v2744, %v2728
  %v4457 = vpack.c.b16 %v2745, %v2729
  %v4458 = vpack.c.b16 %v2746, %v2730
  %v4459 = vpack.c.b16 %v2747, %v2731
  %v4460 = vpack.c.b16 %v2748, %v2732
  %v4461 = vpack.c.b16 %v2749, %v2733
  %v4462 = vpack.c.b16 %v2766, %v2750
  %v4463 = vpack.c.b16 %v2767, %v2751
  %v4464 = vpack.c.b16 %v2768, %v2752
  %v4465 = vpack.c.b16 %v2769, %v2753
  %v4466 = vpack.c.b16 %v2770, %v2754
  %v4467 = vpack.c.b16 %v2771, %v2755
  %v4468 = vpack.c.b16 %v2772, %v2756
  %v4469 = vpack.c.b16 %v2773, %v2757
  %v4470 = vpack.c.b16 %v2774, %v2758
  %v4471 = vpack.c.b16 %v2775, %v2759
  %v4472 = vpack.c.b16 %v2776, %v2760
  %v4473 = vpack.c.b16 %v2777, %v2761
  %v4474 = vpack.c.b16 %v2778, %v2762
  %v4475 = vpack.c.b16 %v2779, %v2763
  %v4476 = vpack.c.b16 %v2780, %v2764
  %v4477 = vpack.c.b16 %v2781, %v2765
  %v4478 = vpack.c.b16 %v2798, %v2782
  %v4479 = vpack.c.b16 %v2799, %v2783
  %v4480 = vpack.c.b16 %v2800, %v2784
  %v4481 = vpack.c.b16 %v2801, %v2785
  %v4482 = vpack.c.b16 %v2802, %v2786
  %v4483 = vpack.c.b16 %v2803, %v2787
  %v4484 = vpack.c.b16 %v2804, %v2788
  %v4485 = vpack.c.b16 %v2805, %v2789
  %v4486 = vpack.c.b16 %v2806, %v2790
  %v4487 = vpack.c.b16 %v2807, %v2791
  %v4488 = vpack.c.b16 %v2808, %v2792
  %v4489 = vpack.c.b16 %v2809, %v2793
  %v4490 = vpack.c.b16 %v2810, %v2794
  %v4491 = vpack.c.b16 %v2811, %v2795
  %v4492 = vpack.c.b16 %v2812, %v2796
  %v4493 = vpack.c.b16 %v2813, %v2797
  %v4494 = vpack.c.b16 %v2830, %v2814
  %v4495 = vpack.c.b16 %v2831, %v2815
  %v4496 = vpack.c.b16 %v2832, %v2816
  %v4497 = vpack.c.b16 %v2833, %v2817
  %v4498 = vpack.c.b16 %v2834, %v2818
  %v4499 = vpack.c.b16 %v2835, %v2819
  %v4500 = vpack.c.b16 %v2836, %v2820
  %v4501 = vpack.c.b16 %v2837, %v2821
  %v4502 = vpack.c.b16 %v2838, %v2822
  %v4503 = vpack.c.b16 %v2839, %v2823
  %v4504 = vpack.c.b16 %v2840, %v2824
  %v4505 = vpack.c.b16 %v2841, %v2825
  %v4506 = vpack.c.b16 %v2842, %v2826
  %v4507 = vpack.c.b16 %v2843, %v2827
  %v4508 = vpack.c.b16 %v2844, %v2828
  %v4509 = vpack.c.b16 %v2845, %v2829
  %v4510 = vpack.c.b16 %v2862, %v2846
  %v4511 = vpack.c.b16 %v2863, %v2847
  %v4512 = vpack.c.b16 %v2864, %v2848
  %v4513 = vpack.c.b16 %v2865, %v2849
  %v4514 = vpack.c.b16 %v2866, %v2850
  %v4515 = vpack.c.b16 %v2867, %v2851
  %v4516 = vpack.c.b16 %v2868, %v2852
  %v4517 = vpack.c.b16 %v2869, %v2853
  %v4518 = vpack.c.b16 %v2870, %v2854
  %v4519 = vpack.c.b16 %v2871, %v2855
  %v4520 = vpack.c.b16 %v2872, %v2856
  %v4521 = vpack.c.b16 %v2873, %v2857
  %v4522 = vpack.c.b16 %v2874, %v2858
  %v4523 = vpack.c.b16 %v2875, %v2859
  %v4524 = vpack.c.b16 %v2876, %v2860
  %v4525 = vpack.c.b16 %v2877, %v2861
  %v4526 = vpack.c.b16 %v2894, %v2878
  %v4527 = vpack.c.b16 %v2895, %v2879
  %v4528 = vpack.c.b16 %v2896, %v2880
  %v4529 = vpack.c.b16 %v2897, %v2881
  %v4530 = vpack.c.b16 %v2898, %v2882
  %v4531 = vpack.c.b16 %v2899, %v2883
  %v4532 = vpack.c.b16 %v2900, %v2884
  %v4533 = vpack.c.b16 %v2901, %v2885
  %v4534 = vpack.c.b16 %v2902, %v2886
  %v4535 = vpack.c.b16 %v2903, %v2887
  %v4536 = vpack.c.b16 %v2904, %v2888
  %v4537 = vpack.c.b16 %v2905, %v2889
  %v4538 = vpack.c.b16 %v2906, %v2890
  %v4539 = vpack.c.b16 %v2907, %v2891
  %v4540 = vpack.c.b16 %v2908, %v2892
  %v4541 = vpack.c.b16 %v2909, %v2893
  %v4542 = vpack.c.b16 %v2926, %v2910
  %v4543 = vpack.c.b16 %v2927, %v2911
  %v4544 = vpack.c.b16 %v2928, %v2912
  %v4545 = vpack.c.b16 %v2929, %v2913
  %v4546 = vpack.c.b16 %v2930, %v2914
  %v4547 = vpack.c.b16 %v2931, %v2915
  %v4548 = vpack.c.b16 %v2932, %v2916
  %v4549 = vpack.c.b16 %v2933, %v2917
  %v4550 = vpack.c.b16 %v2934, %v2918
  %v4551 = vpack.c.b16 %v2935, %v2919
  %v4552 = vpack.c.b16 %v2936, %v2920
  %v4553 = vpack.c.b16 %v2937, %v2921
  %v4554 = vpack.c.b16 %v2938, %v2922
  %v4555 = vpack.c.b16 %v2939, %v2923
  %v4556 = vpack.c.b16 %v2940, %v2924
  %v4557 = vpack.c.b16 %v2941, %v2925
  %v4558 = vpack.c.b16 %v2958, %v2942
  %v4559 = vpack.c.b16 %v2959, %v2943
  %v4560 = vpack.c.b16 %v2960, %v2944
  %v4561 = vpack.c.b16 %v2961, %v2945
  %v4562 = vpack.c.b16 %v2962, %v2946
  %v4563 = vpack.c.b16 %v2963, %v2947
  %v4564 = vpack.c.b16 %v2964, %v2948
  %v4565 = vpack.c.b16 %v2965, %v2949
  %v4566 = vpack.c.b16 %v2966, %v2950
  %v4567 = vpack.c.b16 %v2967, %v2951
  %v4568 = vpack.c.b16 %v2968, %v2952
  %v4569 = vpack.c.b16 %v2969, %v2953
  %v4570 = vpack.c.b16 %v2970, %v2954
  %v4571 = vpack.c.b16 %v2971, %v2955
  %v4572 = vpack.c.b16 %v2972, %v2956
  %v4573 = vpack.c.b16 %v2973, %v2957
  %v4574 = vpack.c.b16 %v2990, %v2974
  %v4575 = vpack.c.b16 %v2991, %v2975
  %v4576 = vpack.c.b16 %v2992, %v2976
  %v4577 = vpack.c.b16 %v2993, %v2977
  %v4578 = vpack.c.b16 %v2994, %v2978
  %v4579 = vpack.c.b16 %v2995, %v2979
  %v4580 = vpack.c.b16 %v2996, %v2980
  %v4581 = vpack.c.b16 %v2997, %v2981
  %v4582 = vpack.c.b16 %v2998, %v2982
  %v4583 = vpack.c.b16 %v2999, %v2983
  %v4584 = vpack.c.b16 %v3000, %v2984
  %v4585 = vpack.c.b16 %v3001, %v2985
  %v4586 = vpack.c.b16 %v3002, %v2986
  %v4587 = vpack.c.b16 %v3003, %v2987
  %v4588 = vpack.c.b16 %v3004, %v2988
  %v4589 = vpack.c.b16 %v3005, %v2989
  %v4590 = vpack.c.b16 %v3022, %v3006
  %v4591 = vpack.c.b16 %v3023, %v3007
  %v4592 = vpack.c.b16 %v3024, %v3008
  %v4593 = vpack.c.b16 %v3025, %v3009
  %v4594 = vpack.c.b16 %v3026, %v3010
  %v4595 = vpack.c.b16 %v3027, %v3011
  %v4596 = vpack.c.b16 %v3028, %v3012
  %v4597 = vpack.c.b16 %v3029, %v3013
  %v4598 = vpack.c.b16 %v3030, %v3014
  %v4599 = vpack.c.b16 %v3031, %v3015
  %v4600 = vpack.c.b16 %v3032, %v3016
  %v4601 = vpack.c.b16 %v3033, %v3017
  %v4602 = vpack.c.b16 %v3034, %v3018
  %v4603 = vpack.c.b16 %v3035, %v3019
  %v4604 = vpack.c.b16 %v3036, %v3020
  %v4605 = vpack.c.b16 %v3037, %v3021
  %v4606 = vpack.c.b16 %v3054, %v3038
  %v4607 = vpack.c.b16 %v3055, %v3039
  %v4608 = vpack.c.b16 %v3056, %v3040
  %v4609 = vpack.c.b16 %v3057, %v3041
  %v4610 = vpack.c.b16 %v3058, %v3042
  %v4611 = vpack.c.b16 %v3059, %v3043
  %v4612 = vpack.c.b16 %v3060, %v3044
  %v4613 = vpack.c.b16 %v3061, %v3045
  %v4614 = vpack.c.b16 %v3062, %v3046
  %v4615 = vpack.c.b16 %v3063, %v3047
  %v4616 = vpack.c.b16 %v3064, %v3048
  %v4617 = vpack.c.b16 %v3065, %v3049
  %v4618 = vpack.c.b16 %v3066, %v3050
  %v4619 = vpack.c.b16 %v3067, %v3051
  %v4620 = vpack.c.b16 %v3068, %v3052
  %v4621 = vpack.c.b16 %v3069, %v3053
  %v4622 = vpack.c.b16 %v3086, %v3070
  %v4623 = vpack.c.b16 %v3087, %v3071
  %v4624 = vpack.c.b16 %v3088, %v3072
  %v4625 = vpack.c.b16 %v3089, %v3073
  %v4626 = vpack.c.b16 %v3090, %v3074
  %v4627 = vpack.c.b16 %v3091, %v3075
  %v4628 = vpack.c.b16 %v3092, %v3076
  %v4629 = vpack.c.b16 %v3093, %v3077
  %v4630 = vpack.c.b16 %v3094, %v3078
  %v4631 = vpack.c.b16 %v3095, %v3079
  %v4632 = vpack.c.b16 %v3096, %v3080
  %v4633 = vpack.c.b16 %v3097, %v3081
  %v4634 = vpack.c.b16 %v3098, %v3082
  %v4635 = vpack.c.b16 %v3099, %v3083
  %v4636 = vpack.c.b16 %v3100, %v3084
  %v4637 = vpack.c.b16 %v3101, %v3085
  %v4638 = vpack.c.b16 %v3118, %v3102
  %v4639 = vpack.c.b16 %v3119, %v3103
  %v4640 = vpack.c.b16 %v3120, %v3104
  %v4641 = vpack.c.b16 %v3121, %v3105
  %v4642 = vpack.c.b16 %v3122, %v3106
  %v4643 = vpack.c.b16 %v3123, %v3107
  %v4644 = vpack.c.b16 %v3124, %v3108
  %v4645 = vpack.c.b16 %v3125, %v3109
  %v4646 = vpack.c.b16 %v3126, %v3110
  %v4647 = vpack.c.b16 %v3127, %v3111
  %v4648 = vpack.c.b16 %v3128, %v3112
  %v4649 = vpack.c.b16 %v3129, %v3113
  %v4650 = vpack.c.b16 %v3130, %v3114
  %v4651 = vpack.c.b16 %v3131, %v3115
  %v4652 = vpack.c.b16 %v3132, %v3116
  %v4653 = vpack.c.b16 %v3133, %v3117
  %v4654 = vpack.c.b16 %v3150, %v3134
  %v4655 = vpack.c.b16 %v3151, %v3135
  %v4656 = vpack.c.b16 %v3152, %v3136
  %v4657 = vpack.c.b16 %v3153, %v3137
  %v4658 = vpack.c.b16 %v3154, %v3138
  %v4659 = vpack.c.b16 %v3155, %v3139
  %v4660 = vpack.c.b16 %v3156, %v3140
  %v4661 = vpack.c.b16 %v3157, %v3141
  %v4662 = vpack.c.b16 %v3158, %v3142
  %v4663 = vpack.c.b16 %v3159, %v3143
  %v4664 = vpack.c.b16 %v3160, %v3144
  %v4665 = vpack.c.b16 %v3161, %v3145
  %v4666 = vpack.c.b16 %v3162, %v3146
  %v4667 = vpack.c.b16 %v3163, %v3147
  %v4668 = vpack.c.b16 %v3164, %v3148
  %v4669 = vpack.c.b16 %v3165, %v3149
  %v4670 = vpack.c.b16 %v3182, %v3166
  %v4671 = vpack.c.b16 %v3183, %v3167
  %v4672 = vpack.c.b16 %v3184, %v3168
  %v4673 = vpack.c.b16 %v3185, %v3169
  %v4674 = vpack.c.b16 %v3186, %v3170
  %v4675 = vpack.c.b16 %v3187, %v3171
  %v4676 = vpack.c.b16 %v3188, %v3172
  %v4677 = vpack.c.b16 %v3189, %v3173
  %v4678 = vpack.c.b16 %v3190, %v3174
  %v4679 = vpack.c.b16 %v3191, %v3175
  %v4680 = vpack.c.b16 %v3192, %v3176
  %v4681 = vpack.c.b16 %v3193, %v3177
  %v4682 = vpack.c.b16 %v3194, %v3178
  %v4683 = vpack.c.b16 %v3195, %v3179
  %v4684 = vpack.c.b16 %v3196, %v3180
  %v4685 = vpack.c.b16 %v3197, %v3181
  %v4686 = vpack.c.b16 %v3214, %v3198
  %v4687 = vpack.c.b16 %v3215, %v3199
  %v4688 = vpack.c.b16 %v3216, %v3200
  %v4689 = vpack.c.b16 %v3217, %v3201
  %v4690 = vpack.c.b16 %v3218, %v3202
  %v4691 = vpack.c.b16 %v3219, %v3203
  %v4692 = vpack.c.b16 %v3220, %v3204
  %v4693 = vpack.c.b16 %v3221, %v3205
  %v4694 = vpack.c.b16 %v3222, %v3206
  %v4695 = vpack.c.b16 %v3223, %v3207
  %v4696 = vpack.c.b16 %v3224, %v3208
  %v4697 = vpack.c.b16 %v3225, %v3209
  %v4698 = vpack.c.b16 %v3226, %v3210
  %v4699 = vpack.c.b16 %v3227, %v3211
  %v4700 = vpack.c.b16 %v3228, %v3212
  %v4701 = vpack.c.b16 %v3229, %v3213
  %v4702 = vpack.c.b16 %v3246, %v3230
  %v4703 = vpack.c.b16 %v3247, %v3231
  %v4704 = vpack.c.b16 %v3248, %v3232
  %v4705 = vpack.c.b16 %v3249, %v3233
  %v4706 = vpack.c.b16 %v3250, %v3234
  %v4707 = vpack.c.b16 %v3251, %v3235
  %v4708 = vpack.c.b16 %v3252, %v3236
  %v4709 = vpack.c.b16 %v3253, %v3237
  %v4710 = vpack.c.b16 %v3254, %v3238
  %v4711 = vpack.c.b16 %v3255, %v3239
  %v4712 = vpack.c.b16 %v3256, %v3240
  %v4713 = vpack.c.b16 %v3257, %v3241
  %v4714 = vpack.c.b16 %v3258, %v3242
  %v4715 = vpack.c.b16 %v3259, %v3243
  %v4716 = vpack.c.b16 %v3260, %v3244
  %v4717 = vpack.c.b16 %v3261, %v3245
  %v4718 = vpack.c.b16 %v3278, %v3262
  %v4719 = vpack.c.b16 %v3279, %v3263
  %v4720 = vpack.c.b16 %v3280, %v3264
  %v4721 = vpack.c.b16 %v3281, %v3265
  %v4722 = vpack.c.b16 %v3282, %v3266
  %v4723 = vpack.c.b16 %v3283, %v3267
  %v4724 = vpack.c.b16 %v3284, %v3268
  %v4725 = vpack.c.b16 %v3285, %v3269
  %v4726 = vpack.c.b16 %v3286, %v3270
  %v4727 = vpack.c.b16 %v3287, %v3271
  %v4728 = vpack.c.b16 %v3288, %v3272
  %v4729 = vpack.c.b16 %v3289, %v3273
  %v4730 = vpack.c.b16 %v3290, %v3274
  %v4731 = vpack.c.b16 %v3291, %v3275
  %v4732 = vpack.c.b16 %v3292, %v3276
  %v4733 = vpack.c.b16 %v3293, %v3277
  %v4734 = vpack.c.b16 %v3310, %v3294
  %v4735 = vpack.c.b16 %v3311, %v3295
  %v4736 = vpack.c.b16 %v3312, %v3296
  %v4737 = vpack.c.b16 %v3313, %v3297
  %v4738 = vpack.c.b16 %v3314, %v3298
  %v4739 = vpack.c.b16 %v3315, %v3299
  %v4740 = vpack.c.b16 %v3316, %v3300
  %v4741 = vpack.c.b16 %v3317, %v3301
  %v4742 = vpack.c.b16 %v3318, %v3302
  %v4743 = vpack.c.b16 %v3319, %v3303
  %v4744 = vpack.c.b16 %v3320, %v3304
  %v4745 = vpack.c.b16 %v3321, %v3305
  %v4746 = vpack.c.b16 %v3322, %v3306
  %v4747 = vpack.c.b16 %v3323, %v3307
  %v4748 = vpack.c.b16 %v3324, %v3308
  %v4749 = vpack.c.b16 %v3325, %v3309
  %v4750 = vpack.c.b16 %v3342, %v3326
  %v4751 = vpack.c.b16 %v3343, %v3327
  %v4752 = vpack.c.b16 %v3344, %v3328
  %v4753 = vpack.c.b16 %v3345, %v3329
  %v4754 = vpack.c.b16 %v3346, %v3330
  %v4755 = vpack.c.b16 %v3347, %v3331
  %v4756 = vpack.c.b16 %v3348, %v3332
  %v4757 = vpack.c.b16 %v3349, %v3333
  %v4758 = vpack.c.b16 %v3350, %v3334
  %v4759 = vpack.c.b16 %v3351, %v3335
  %v4760 = vpack.c.b16 %v3352, %v3336
  %v4761 = vpack.c.b16 %v3353, %v3337
  %v4762 = vpack.c.b16 %v3354, %v3338
  %v4763 = vpack.c.b16 %v3355, %v3339
  %v4764 = vpack.c.b16 %v3356, %v3340
  %v4765 = vpack.c.b16 %v3357, %v3341
  %v4766 = vpack.c.b16 %v3374, %v3358
  %v4767 = vpack.c.b16 %v3375, %v3359
  %v4768 = vpack.c.b16 %v3376, %v3360
  %v4769 = vpack.c.b16 %v3377, %v3361
  %v4770 = vpack.c.b16 %v3378, %v3362
  %v4771 = vpack.c.b16 %v3379, %v3363
  %v4772 = vpack.c.b16 %v3380, %v3364
  %v4773 = vpack.c.b16 %v3381, %v3365
  %v4774 = vpack.c.b16 %v3382, %v3366
  %v4775 = vpack.c.b16 %v3383, %v3367
  %v4776 = vpack.c.b16 %v3384, %v3368
  %v4777 = vpack.c.b16 %v3385, %v3369
  %v4778 = vpack.c.b16 %v3386, %v3370
  %v4779 = vpack.c.b16 %v3387, %v3371
  %v4780 = vpack.c.b16 %v3388, %v3372
  %v4781 = vpack.c.b16 %v3389, %v3373
  %v4782 = vpack.c.b16 %v3406, %v3390
  %v4783 = vpack.c.b16 %v3407, %v3391
  %v4784 = vpack.c.b16 %v3408, %v3392
  %v4785 = vpack.c.b16 %v3409, %v3393
  %v4786 = vpack.c.b16 %v3410, %v3394
  %v4787 = vpack.c.b16 %v3411, %v3395
  %v4788 = vpack.c.b16 %v3412, %v3396
  %v4789 = vpack.c.b16 %v3413, %v3397
  %v4790 = vpack.c.b16 %v3414, %v3398
  %v4791 = vpack.c.b16 %v3415, %v3399
  %v4792 = vpack.c.b16 %v3416, %v3400
  %v4793 = vpack.c.b16 %v3417, %v3401
  %v4794 = vpack.c.b16 %v3418, %v3402
  %v4795 = vpack.c.b16 %v3419, %v3403
  %v4796 = vpack.c.b16 %v3420, %v3404
  %v4797 = vpack.c.b16 %v3421, %v3405
  %v4798 = vpack.c.b16 %v3438, %v3422
  %v4799 = vpack.c.b16 %v3439, %v3423
  %v4800 = vpack.c.b16 %v3440, %v3424
  %v4801 = vpack.c.b16 %v3441, %v3425
  %v4802 = vpack.c.b16 %v3442, %v3426
  %v4803 = vpack.c.b16 %v3443, %v3427
  %v4804 = vpack.c.b16 %v3444, %v3428
  %v4805 = vpack.c.b16 %v3445, %v3429
  %v4806 = vpack.c.b16 %v3446, %v3430
  %v4807 = vpack.c.b16 %v3447, %v3431
  %v4808 = vpack.c.b16 %v3448, %v3432
  %v4809 = vpack.c.b16 %v3449, %v3433
  %v4810 = vpack.c.b16 %v3450, %v3434
  %v4811 = vpack.c.b16 %v3451, %v3435
  %v4812 = vpack.c.b16 %v3452, %v3436
  %v4813 = vpack.c.b16 %v3453, %v3437
  %v4814 = vpack.c.b16 %v3470, %v3454
  %v4815 = vpack.c.b16 %v3471, %v3455
  %v4816 = vpack.c.b16 %v3472, %v3456
  %v4817 = vpack.c.b16 %v3473, %v3457
  %v4818 = vpack.c.b16 %v3474, %v3458
  %v4819 = vpack.c.b16 %v3475, %v3459
  %v4820 = vpack.c.b16 %v3476, %v3460
  %v4821 = vpack.c.b16 %v3477, %v3461
  %v4822 = vpack.c.b16 %v3478, %v3462
  %v4823 = vpack.c.b16 %v3479, %v3463
  %v4824 = vpack.c.b16 %v3480, %v3464
  %v4825 = vpack.c.b16 %v3481, %v3465
  %v4826 = vpack.c.b16 %v3482, %v3466
  %v4827 = vpack.c.b16 %v3483, %v3467
  %v4828 = vpack.c.b16 %v3484, %v3468
  %v4829 = vpack.c.b16 %v3485, %v3469
  %v4830 = vpack.c.b16 %v3502, %v3486
  %v4831 = vpack.c.b16 %v3503, %v3487
  %v4832 = vpack.c.b16 %v3504, %v3488
  %v4833 = vpack.c.b16 %v3505, %v3489
  %v4834 = vpack.c.b16 %v3506, %v3490
  %v4835 = vpack.c.b16 %v3507, %v3491
  %v4836 = vpack.c.b16 %v3508, %v3492
  %v4837 = vpack.c.b16 %v3509, %v3493
  %v4838 = vpack.c.b16 %v3510, %v3494
  %v4839 = vpack.c.b16 %v3511, %v3495
  %v4840 = vpack.c.b16 %v3512, %v3496
  %v4841 = vpack.c.b16 %v3513, %v3497
  %v4842 = vpack.c.b16 %v3514, %v3498
  %v4843 = vpack.c.b16 %v3515, %v3499
  %v4844 = vpack.c.b16 %v3516, %v3500
  %v4845 = vpack.c.b16 %v3517, %v3501
  %v4846 = vpack.c.b16 %v3534, %v3518
  %v4847 = vpack.c.b16 %v3535, %v3519
  %v4848 = vpack.c.b16 %v3536, %v3520
  %v4849 = vpack.c.b16 %v3537, %v3521
  %v4850 = vpack.c.b16 %v3538, %v3522
  %v4851 = vpack.c.b16 %v3539, %v3523
  %v4852 = vpack.c.b16 %v3540, %v3524
  %v4853 = vpack.c.b16 %v3541, %v3525
  %v4854 = vpack.c.b16 %v3542, %v3526
  %v4855 = vpack.c.b16 %v3543, %v3527
  %v4856 = vpack.c.b16 %v3544, %v3528
  %v4857 = vpack.c.b16 %v3545, %v3529
  %v4858 = vpack.c.b16 %v3546, %v3530
  %v4859 = vpack.c.b16 %v3547, %v3531
  %v4860 = vpack.c.b16 %v3548, %v3532
  %v4861 = vpack.c.b16 %v3549, %v3533
  %v4862 = vpack.c.b16 %v3566, %v3550
  %v4863 = vpack.c.b16 %v3567, %v3551
  %v4864 = vpack.c.b16 %v3568, %v3552
  %v4865 = vpack.c.b16 %v3569, %v3553
  %v4866 = vpack.c.b16 %v3570, %v3554
  %v4867 = vpack.c.b16 %v3571, %v3555
  %v4868 = vpack.c.b16 %v3572, %v3556
  %v4869 = vpack.c.b16 %v3573, %v3557
  %v4870 = vpack.c.b16 %v3574, %v3558
  %v4871 = vpack.c.b16 %v3575, %v3559
  %v4872 = vpack.c.b16 %v3576, %v3560
  %v4873 = vpack.c.b16 %v3577, %v3561
  %v4874 = vpack.c.b16 %v3578, %v3562
  %v4875 = vpack.c.b16 %v3579, %v3563
  %v4876 = vpack.c.b16 %v3580, %v3564
  %v4877 = vpack.c.b16 %v3581, %v3565
  %v4878 = vpack.c.b16 %v3598, %v3582
  %v4879 = vpack.c.b16 %v3599, %v3583
  %v4880 = vpack.c.b16 %v3600, %v3584
  %v4881 = vpack.c.b16 %v3601, %v3585
  %v4882 = vpack.c.b16 %v3602, %v3586
  %v4883 = vpack.c.b16 %v3603, %v3587
  %v4884 = vpack.c.b16 %v3604, %v3588
  %v4885 = vpack.c.b16 %v3605, %v3589
  %v4886 = vpack.c.b16 %v3606, %v3590
  %v4887 = vpack.c.b16 %v3607, %v3591
  %v4888 = vpack.c.b16 %v3608, %v3592
  %v4889 = vpack.c.b16 %v3609, %v3593
  %v4890 = vpack.c.b16 %v3610, %v3594
  %v4891 = vpack.c.b16 %v3611, %v3595
  %v4892 = vpack.c.b16 %v3612, %v3596
  %v4893 = vpack.c.b16 %v3613, %v3597
  %v4894 = vpack.c.b16 %v3630, %v3614
  %v4895 = vpack.c.b16 %v3631, %v3615
  %v4896 = vpack.c.b16 %v3632, %v3616
  %v4897 = vpack.c.b16 %v3633, %v3617
  %v4898 = vpack.c.b16 %v3634, %v3618
  %v4899 = vpack.c.b16 %v3635, %v3619
  %v4900 = vpack.c.b16 %v3636, %v3620
  %v4901 = vpack.c.b16 %v3637, %v3621
  %v4902 = vpack.c.b16 %v3638, %v3622
  %v4903 = vpack.c.b16 %v3639, %v3623
  %v4904 = vpack.c.b16 %v3640, %v3624
  %v4905 = vpack.c.b16 %v3641, %v3625
  %v4906 = vpack.c.b16 %v3642, %v3626
  %v4907 = vpack.c.b16 %v3643, %v3627
  %v4908 = vpack.c.b16 %v3644, %v3628
  %v4909 = vpack.c.b16 %v3645, %v3629
  %v4910 = vpack.c.b16 %v3662, %v3646
  %v4911 = vpack.c.b16 %v3663, %v3647
  %v4912 = vpack.c.b16 %v3664, %v3648
  %v4913 = vpack.c.b16 %v3665, %v3649
  %v4914 = vpack.c.b16 %v3666, %v3650
  %v4915 = vpack.c.b16 %v3667, %v3651
  %v4916 = vpack.c.b16 %v3668, %v3652
  %v4917 = vpack.c.b16 %v3669, %v3653
  %v4918 = vpack.c.b16 %v3670, %v3654
  %v4919 = vpack.c.b16 %v3671, %v3655
  %v4920 = vpack.c.b16 %v3672, %v3656
  %v4921 = vpack.c.b16 %v3673, %v3657
  %v4922 = vpack.c.b16 %v3674, %v3658
  %v4923 = vpack.c.b16 %v3675, %v3659
  %v4924 = vpack.c.b16 %v3676, %v3660
  %v4925 = vpack.c.b16 %v3677, %v3661
  %v4926 = vpack.c.b16 %v3694, %v3678
  %v4927 = vpack.c.b16 %v3695, %v3679
  %v4928 = vpack.c.b16 %v3696, %v3680
  %v4929 = vpack.c.b16 %v3697, %v3681
  %v4930 = vpack.c.b16 %v3698, %v3682
  %v4931 = vpack.c.b16 %v3699, %v3683
  %v4932 = vpack.c.b16 %v3700, %v3684
  %v4933 = vpack.c.b16 %v3701, %v3685
  %v4934 = vpack.c.b16 %v3702, %v3686
  %v4935 = vpack.c.b16 %v3703, %v3687
  %v4936 = vpack.c.b16 %v3704, %v3688
  %v4937 = vpack.c.b16 %v3705, %v3689
  %v4938 = vpack.c.b16 %v3706, %v3690
  %v4939 = vpack.c.b16 %v3707, %v3691
  %v4940 = vpack.c.b16 %v3708, %v3692
  %v4941 = vpack.c.b16 %v3709, %v3693
  %v4942 = vpack.c.b16 %v3726, %v3710
  %v4943 = vpack.c.b16 %v3727, %v3711
  %v4944 = vpack.c.b16 %v3728, %v3712
  %v4945 = vpack.c.b16 %v3729, %v3713
  %v4946 = vpack.c.b16 %v3730, %v3714
  %v4947 = vpack.c.b16 %v3731, %v3715
  %v4948 = vpack.c.b16 %v3732, %v3716
  %v4949 = vpack.c.b16 %v3733, %v3717
  %v4950 = vpack.c.b16 %v3734, %v3718
  %v4951 = vpack.c.b16 %v3735, %v3719
  %v4952 = vpack.c.b16 %v3736, %v3720
  %v4953 = vpack.c.b16 %v3737, %v3721
  %v4954 = vpack.c.b16 %v3738, %v3722
  %v4955 = vpack.c.b16 %v3739, %v3723
  %v4956 = vpack.c.b16 %v3740, %v3724
  %v4957 = vpack.c.b16 %v3741, %v3725
  %v4958 = vpack.c.b16 %v3758, %v3742
  %v4959 = vpack.c.b16 %v3759, %v3743
  %v4960 = vpack.c.b16 %v3760, %v3744
  %v4961 = vpack.c.b16 %v3761, %v3745
  %v4962 = vpack.c.b16 %v3762, %v3746
  %v4963 = vpack.c.b16 %v3763, %v3747
  %v4964 = vpack.c.b16 %v3764, %v3748
  %v4965 = vpack.c.b16 %v3765, %v3749
  %v4966 = vpack.c.b16 %v3766, %v3750
  %v4967 = vpack.c.b16 %v3767, %v3751
  %v4968 = vpack.c.b16 %v3768, %v3752
  %v4969 = vpack.c.b16 %v3769, %v3753
  %v4970 = vpack.c.b16 %v3770, %v3754
  %v4971 = vpack.c.b16 %v3771, %v3755
  %v4972 = vpack.c.b16 %v3772, %v3756
  %v4973 = vpack.c.b16 %v3773, %v3757
  %v4974 = vpack.c.b16 %v3790, %v3774
  %v4975 = vpack.c.b16 %v3791, %v3775
  %v4976 = vpack.c.b16 %v3792, %v3776
  %v4977 = vpack.c.b16 %v3793, %v3777
  %v4978 = vpack.c.b16 %v3794, %v3778
  %v4979 = vpack.c.b16 %v3795, %v3779
  %v4980 = vpack.c.b16 %v3796, %v3780
  %v4981 = vpack.c.b16 %v3797, %v3781
  %v4982 = vpack.c.b16 %v3798, %v3782
  %v4983 = vpack.c.b16 %v3799, %v3783
  %v4984 = vpack.c.b16 %v3800, %v3784
  %v4985 = vpack.c.b16 %v3801, %v3785
  %v4986 = vpack.c.b16 %v3802, %v3786
  %v4987 = vpack.c.b16 %v3803, %v3787
  %v4988 = vpack.c.b16 %v3804, %v3788
  %v4989 = vpack.c.b16 %v3805, %v3789
  %v4990 = vpack.c.b16 %v3822, %v3806
  %v4991 = vpack.c.b16 %v3823, %v3807
  %v4992 = vpack.c.b16 %v3824, %v3808
  %v4993 = vpack.c.b16 %v3825, %v3809
  %v4994 = vpack.c.b16 %v3826, %v3810
  %v4995 = vpack.c.b16 %v3827, %v3811
  %v4996 = vpack.c.b16 %v3828, %v3812
  %v4997 = vpack.c.b16 %v3829, %v3813
  %v4998 = vpack.c.b16 %v3830, %v3814
  %v4999 = vpack.c.b16 %v3831, %v3815
  %v5000 = vpack.c.b16 %v3832, %v3816
  %v5001 = vpack.c.b16 %v3833, %v3817
  %v5002 = vpack.c.b16 %v3834, %v3818
  %v5003 = vpack.c.b16 %v3835, %v3819
  %v5004 = vpack.c.b16 %v3836, %v3820
  %v5005 = vpack.c.b16 %v3837, %v3821
  %v5006 = vpack.c.b16 %v3854, %v3838
  %v5007 = vpack.c.b16 %v3855, %v3839
  %v5008 = vpack.c.b16 %v3856, %v3840
  %v5009 = vpack.c.b16 %v3857, %v3841
  %v5010 = vpack.c.b16 %v3858, %v3842
  %v5011 = vpack.c.b16 %v3859, %v3843
  %v5012 = vpack.c.b16 %v3860, %v3844
  %v5013 = vpack.c.b16 %v3861, %v3845
  %v5014 = vpack.c.b16 %v3862, %v3846
  %v5015 = vpack.c.b16 %v3863, %v3847
  %v5016 = vpack.c.b16 %v3864, %v3848
  %v5017 = vpack.c.b16 %v3865, %v3849
  %v5018 = vpack.c.b16 %v3866, %v3850
  %v5019 = vpack.c.b16 %v3867, %v3851
  %v5020 = vpack.c.b16 %v3868, %v3852
  %v5021 = vpack.c.b16 %v3869, %v3853
  %v5022 = vpack.c.b16 %v3886, %v3870
  %v5023 = vpack.c.b16 %v3887, %v3871
  %v5024 = vpack.c.b16 %v3888, %v3872
  %v5025 = vpack.c.b16 %v3889, %v3873
  %v5026 = vpack.c.b16 %v3890, %v3874
  %v5027 = vpack.c.b16 %v3891, %v3875
  %v5028 = vpack.c.b16 %v3892, %v3876
  %v5029 = vpack.c.b16 %v3893, %v3877
  %v5030 = vpack.c.b16 %v3894, %v3878
  %v5031 = vpack.c.b16 %v3895, %v3879
  %v5032 = vpack.c.b16 %v3896, %v3880
  %v5033 = vpack.c.b16 %v3897, %v3881
  %v5034 = vpack.c.b16 %v3898, %v3882
  %v5035 = vpack.c.b16 %v3899, %v3883
  %v5036 = vpack.c.b16 %v3900, %v3884
  %v5037 = vpack.c.b16 %v3901, %v3885
  %v5038 = vpack.c.b16 %v3918, %v3902
  %v5039 = vpack.c.b16 %v3919, %v3903
  %v5040 = vpack.c.b16 %v3920, %v3904
  %v5041 = vpack.c.b16 %v3921, %v3905
  %v5042 = vpack.c.b16 %v3922, %v3906
  %v5043 = vpack.c.b16 %v3923, %v3907
  %v5044 = vpack.c.b16 %v3924, %v3908
  %v5045 = vpack.c.b16 %v3925, %v3909
  %v5046 = vpack.c.b16 %v3926, %v3910
  %v5047 = vpack.c.b16 %v3927, %v3911
  %v5048 = vpack.c.b16 %v3928, %v3912
  %v5049 = vpack.c.b16 %v3929, %v3913
  %v5050 = vpack.c.b16 %v3930, %v3914
  %v5051 = vpack.c.b16 %v3931, %v3915
  %v5052 = vpack.c.b16 %v3932, %v3916
  %v5053 = vpack.c.b16 %v3933, %v3917
  %v5054 = vpack.c.b16 %v3950, %v3934
  %v5055 = vpack.c.b16 %v3951, %v3935
  %v5056 = vpack.c.b16 %v3952, %v3936
  %v5057 = vpack.c.b16 %v3953, %v3937
  %v5058 = vpack.c.b16 %v3954, %v3938
  %v5059 = vpack.c.b16 %v3955, %v3939
  %v5060 = vpack.c.b16 %v3956, %v3940
  %v5061 = vpack.c.b16 %v3957, %v3941
  %v5062 = vpack.c.b16 %v3958, %v3942
  %v5063 = vpack.c.b16 %v3959, %v3943
  %v5064 = vpack.c.b16 %v3960, %v3944
  %v5065 = vpack.c.b16 %v3961, %v3945
  %v5066 = vpack.c.b16 %v3962, %v3946
  %v5067 = vpack.c.b16 %v3963, %v3947
  %v5068 = vpack.c.b16 %v3964, %v3948
  %v5069 = vpack.c.b16 %v3965, %v3949
  %v5070 = vpack.c.b16 %v3982, %v3966
  %v5071 = vpack.c.b16 %v3983, %v3967
  %v5072 = vpack.c.b16 %v3984, %v3968
  %v5073 = vpack.c.b16 %v3985, %v3969
  %v5074 = vpack.c.b16 %v3986, %v3970
  %v5075 = vpack.c.b16 %v3987, %v3971
  %v5076 = vpack.c.b16 %v3988, %v3972
  %v5077 = vpack.c.b16 %v3989, %v3973
  %v5078 = vpack.c.b16 %v3990, %v3974
  %v5079 = vpack.c.b16 %v3991, %v3975
  %v5080 = vpack.c.b16 %v3992, %v3976
  %v5081 = vpack.c.b16 %v3993, %v3977
  %v5082 = vpack.c.b16 %v3994, %v3978
  %v5083 = vpack.c.b16 %v3995, %v3979
  %v5084 = vpack.c.b16 %v3996, %v3980
  %v5085 = vpack.c.b16 %v3997, %v3981
  %v5086 = vpack.c.b16 %v4014, %v3998
  %v5087 = vpack.c.b16 %v4015, %v3999
  %v5088 = vpack.c.b16 %v4016, %v4000
  %v5089 = vpack.c.b16 %v4017, %v4001
  %v5090 = vpack.c.b16 %v4018, %v4002
  %v5091 = vpack.c.b16 %v4019, %v4003
  %v5092 = vpack.c.b16 %v4020, %v4004
  %v5093 = vpack.c.b16 %v4021, %v4005
  %v5094 = vpack.c.b16 %v4022, %v4006
  %v5095 = vpack.c.b16 %v4023, %v4007
  %v5096 = vpack.c.b16 %v4024, %v4008
  %v5097 = vpack.c.b16 %v4025, %v4009
  %v5098 = vpack.c.b16 %v4026, %v4010
  %v5099 = vpack.c.b16 %v4027, %v4011
  %v5100 = vpack.c.b16 %v4028, %v4012
  %v5101 = vpack.c.b16 %v4029, %v4013
  %v5102 = vpack.c.b16 %v4046, %v4030
  %v5103 = vpack.c.b16 %v4047, %v4031
  %v5104 = vpack.c.b16 %v4048, %v4032
  %v5105 = vpack.c.b16 %v4049, %v4033
  %v5106 = vpack.c.b16 %v4050, %v4034
  %v5107 = vpack.c.b16 %v4051, %v4035
  %v5108 = vpack.c.b16 %v4052, %v4036
  %v5109 = vpack.c.b16 %v4053, %v4037
  %v5110 = vpack.c.b16 %v4054, %v4038
  %v5111 = vpack.c.b16 %v4055, %v4039
  %v5112 = vpack.c.b16 %v4056, %v4040
  %v5113 = vpack.c.b16 %v4057, %v4041
  %v5114 = vpack.c.b16 %v4058, %v4042
  %v5115 = vpack.c.b16 %v4059, %v4043
  %v5116 = vpack.c.b16 %v4060, %v4044
  %v5117 = vpack.c.b16 %v4061, %v4045
  %v5118 = vpack.c.b16 %v4078, %v4062
  %v5119 = vpack.c.b16 %v4079, %v4063
  %v5120 = vpack.c.b16 %v4080, %v4064
  %v5121 = vpack.c.b16 %v4081, %v4065
  %v5122 = vpack.c.b16 %v4082, %v4066
  %v5123 = vpack.c.b16 %v4083, %v4067
  %v5124 = vpack.c.b16 %v4084, %v4068
  %v5125 = vpack.c.b16 %v4085, %v4069
  %v5126 = vpack.c.b16 %v4086, %v4070
  %v5127 = vpack.c.b16 %v4087, %v4071
  %v5128 = vpack.c.b16 %v4088, %v4072
  %v5129 = vpack.c.b16 %v4089, %v4073
  %v5130 = vpack.c.b16 %v4090, %v4074
  %v5131 = vpack.c.b16 %v4091, %v4075
  %v5132 = vpack.c.b16 %v4092, %v4076
  %v5133 = vpack.c.b16 %v4093, %v4077
  %v5134 = vpack.c.b16 %v4110, %v4094
  %v5135 = vpack.c.b16 %v4111, %v4095
  %v5136 = vpack.c.b16 %v4112, %v4096
  %v5137 = vpack.c.b16 %v4113, %v4097
  %v5138 = vpack.c.b16 %v4114, %v4098
  %v5139 = vpack.c.b16 %v4115, %v4099
  %v5140 = vpack.c.b16 %v4116, %v4100
  %v5141 = vpack.c.b16 %v4117, %v4101
  %v5142 = vpack.c.b16 %v4118, %v4102
  %v5143 = vpack.c.b16 %v4119, %v4103
  %v5144 = vpack.c.b16 %v4120, %v4104
  %v5145 = vpack.c.b16 %v4121, %v4105
  %v5146 = vpack.c.b16 %v4122, %v4106
  %v5147 = vpack.c.b16 %v4123, %v4107
  %v5148 = vpack.c.b16 %v4124, %v4108
  %v5149 = vpack.c.b16 %v4125, %v4109
  %6174 = vmatpush.bf16.msra.mxu0 %v4238
  %6175 = vmatpush.bf16.msra.mxu0 %v4222
  %6176 = vmatpush.bf16.msra.mxu0 %v4206
  %6177 = vmatpush.bf16.msra.mxu0 %v4190
  %6178 = vmatpush.bf16.msra.mxu0 %v4174
  %6179 = vmatpush.bf16.msra.mxu0 %v4158
  %6180 = vmatpush.bf16.msra.mxu0 %v4142
  %6181 = vmatpush.bf16.msra.mxu0 %v4126
  %6182 = vmatmul.bf16.gmra.mxu0 %v1038
  %v6183 = vpop.f32.mrf.mxu0
  %v6184 = vadd.f32 0.0, %v6183
  %v6185 = vpop.f32.mrf.mxu0
  %6186 = vdwg.mxu0
  %6187 = vmatpush.bf16.msra.mxu0 %v4366
  %6188 = vmatpush.bf16.msra.mxu0 %v4350
  %6189 = vmatpush.bf16.msra.mxu0 %v4334
  %6190 = vmatpush.bf16.msra.mxu0 %v4318
  %6191 = vmatpush.bf16.msra.mxu0 %v4302
  %6192 = vmatpush.bf16.msra.mxu0 %v4286
  %6193 = vmatpush.bf16.msra.mxu0 %v4270
  %6194 = vmatpush.bf16.msra.mxu0 %v4254
  %6195 = vmatmul.bf16.gmra.mxu0 %v1039
  %v6196 = vpop.f32.mrf.mxu0
  %v6197 = vadd.f32 %v6184, %v6196
  %v6198 = vpop.f32.mrf.mxu0
  %6199 = vdwg.mxu0
  %6200 = vmatpush.bf16.msra.mxu0 %v4494
  %6201 = vmatpush.bf16.msra.mxu0 %v4478
  %6202 = vmatpush.bf16.msra.mxu0 %v4462
  %6203 = vmatpush.bf16.msra.mxu0 %v4446
  %6204 = vmatpush.bf16.msra.mxu0 %v4430
  %6205 = vmatpush.bf16.msra.mxu0 %v4414
  %6206 = vmatpush.bf16.msra.mxu0 %v4398
  %6207 = vmatpush.bf16.msra.mxu0 %v4382
  %6208 = vmatmul.bf16.gmra.mxu0 %v1040
  %v6209 = vpop.f32.mrf.mxu0
  %v6210 = vadd.f32 %v6197, %v6209
  %v6211 = vpop.f32.mrf.mxu0
  %6212 = vdwg.mxu0
  %6213 = vmatpush.bf16.msra.mxu0 %v4622
  %6214 = vmatpush.bf16.msra.mxu0 %v4606
  %6215 = vmatpush.bf16.msra.mxu0 %v4590
  %6216 = vmatpush.bf16.msra.mxu0 %v4574
  %6217 = vmatpush.bf16.msra.mxu0 %v4558
  %6218 = vmatpush.bf16.msra.mxu0 %v4542
  %6219 = vmatpush.bf16.msra.mxu0 %v4526
  %6220 = vmatpush.bf16.msra.mxu0 %v4510
  %6221 = vmatmul.bf16.gmra.mxu0 %v1041
  %v6222 = vpop.f32.mrf.mxu0
  %v6223 = vadd.f32 %v6210, %v6222
  %v6224 = vpop.f32.mrf.mxu0
  %6225 = vdwg.mxu0
  %6226 = vmatpush.bf16.msra.mxu0 %v4750
  %6227 = vmatpush.bf16.msra.mxu0 %v4734
  %6228 = vmatpush.bf16.msra.mxu0 %v4718
  %6229 = vmatpush.bf16.msra.mxu0 %v4702
  %6230 = vmatpush.bf16.msra.mxu0 %v4686
  %6231 = vmatpush.bf16.msra.mxu0 %v4670
  %6232 = vmatpush.bf16.msra.mxu0 %v4654
  %6233 = vmatpush.bf16.msra.mxu0 %v4638
  %6234 = vmatmul.bf16.gmra.mxu0 %v1042
  %v6235 = vpop.f32.mrf.mxu0
  %v6236 = vadd.f32 %v6223, %v6235
  %v6237 = vpop.f32.mrf.mxu0
  %6238 = vdwg.mxu0
  %6239 = vmatpush.bf16.msra.mxu0 %v4878
  %6240 = vmatpush.bf16.msra.mxu0 %v4862
  %6241 = vmatpush.bf16.msra.mxu0 %v4846
  %6242 = vmatpush.bf16.msra.mxu0 %v4830
  %6243 = vmatpush.bf16.msra.mxu0 %v4814
  %6244 = vmatpush.bf16.msra.mxu0 %v4798
  %6245 = vmatpush.bf16.msra.mxu0 %v4782
  %6246 = vmatpush.bf16.msra.mxu0 %v4766
  %6247 = vmatmul.bf16.gmra.mxu0 %v1043
  %v6248 = vpop.f32.mrf.mxu0
  %v6249 = vadd.f32 %v6236, %v6248
  %v6250 = vpop.f32.mrf.mxu0
  %6251 = vdwg.mxu0
  %6252 = vmatpush.bf16.msra.mxu0 %v5006
  %6253 = vmatpush.bf16.msra.mxu0 %v4990
  %6254 = vmatpush.bf16.msra.mxu0 %v4974
  %6255 = vmatpush.bf16.msra.mxu0 %v4958
  %6256 = vmatpush.bf16.msra.mxu0 %v4942
  %6257 = vmatpush.bf16.msra.mxu0 %v4926
  %6258 = vmatpush.bf16.msra.mxu0 %v4910
  %6259 = vmatpush.bf16.msra.mxu0 %v4894
  %6260 = vmatmul.bf16.gmra.mxu0 %v1044
  %v6261 = vpop.f32.mrf.mxu0
  %v6262 = vadd.f32 %v6249, %v6261
  %v6263 = vpop.f32.mrf.mxu0
  %6264 = vdwg.mxu0
  %6265 = vmatpush.bf16.msra.mxu0 %v5134
  %6266 = vmatpush.bf16.msra.mxu0 %v5118
  %6267 = vmatpush.bf16.msra.mxu0 %v5102
  %6268 = vmatpush.bf16.msra.mxu0 %v5086
  %6269 = vmatpush.bf16.msra.mxu0 %v5070
  %6270 = vmatpush.bf16.msra.mxu0 %v5054
  %6271 = vmatpush.bf16.msra.mxu0 %v5038
  %6272 = vmatpush.bf16.msra.mxu0 %v5022
  %6273 = vmatmul.bf16.gmra.mxu0 %v1045
  %v6274 = vpop.f32.mrf.mxu0
  %v6275 = vadd.f32 %v6262, %v6274
  %v6276 = vpop.f32.mrf.mxu0
  %6277 = vdwg.mxu0
  %6278 = vmatpush.bf16.msra.mxu0 %v4239
  %6279 = vmatpush.bf16.msra.mxu0 %v4223
  %6280 = vmatpush.bf16.msra.mxu0 %v4207
  %6281 = vmatpush.bf16.msra.mxu0 %v4191
  %6282 = vmatpush.bf16.msra.mxu0 %v4175
  %6283 = vmatpush.bf16.msra.mxu0 %v4159
  %6284 = vmatpush.bf16.msra.mxu0 %v4143
  %6285 = vmatpush.bf16.msra.mxu0 %v4127
  %6286 = vmatmul.bf16.gmra.mxu0 %v1038
  %v6287 = vpop.f32.mrf.mxu0
  %v6288 = vadd.f32 0.0, %v6287
  %v6289 = vpop.f32.mrf.mxu0
  %6290 = vdwg.mxu0
  %6291 = vmatpush.bf16.msra.mxu0 %v4367
  %6292 = vmatpush.bf16.msra.mxu0 %v4351
  %6293 = vmatpush.bf16.msra.mxu0 %v4335
  %6294 = vmatpush.bf16.msra.mxu0 %v4319
  %6295 = vmatpush.bf16.msra.mxu0 %v4303
  %6296 = vmatpush.bf16.msra.mxu0 %v4287
  %6297 = vmatpush.bf16.msra.mxu0 %v4271
  %6298 = vmatpush.bf16.msra.mxu0 %v4255
  %6299 = vmatmul.bf16.gmra.mxu0 %v1039
  %v6300 = vpop.f32.mrf.mxu0
  %v6301 = vadd.f32 %v6288, %v6300
  %v6302 = vpop.f32.mrf.mxu0
  %6303 = vdwg.mxu0
  %6304 = vmatpush.bf16.msra.mxu0 %v4495
  %6305 = vmatpush.bf16.msra.mxu0 %v4479
  %6306 = vmatpush.bf16.msra.mxu0 %v4463
  %6307 = vmatpush.bf16.msra.mxu0 %v4447
  %6308 = vmatpush.bf16.msra.mxu0 %v4431
  %6309 = vmatpush.bf16.msra.mxu0 %v4415
  %6310 = vmatpush.bf16.msra.mxu0 %v4399
  %6311 = vmatpush.bf16.msra.mxu0 %v4383
  %6312 = vmatmul.bf16.gmra.mxu0 %v1040
  %v6313 = vpop.f32.mrf.mxu0
  %v6314 = vadd.f32 %v6301, %v6313
  %v6315 = vpop.f32.mrf.mxu0
  %6316 = vdwg.mxu0
  %6317 = vmatpush.bf16.msra.mxu0 %v4623
  %6318 = vmatpush.bf16.msra.mxu0 %v4607
  %6319 = vmatpush.bf16.msra.mxu0 %v4591
  %6320 = vmatpush.bf16.msra.mxu0 %v4575
  %6321 = vmatpush.bf16.msra.mxu0 %v4559
  %6322 = vmatpush.bf16.msra.mxu0 %v4543
  %6323 = vmatpush.bf16.msra.mxu0 %v4527
  %6324 = vmatpush.bf16.msra.mxu0 %v4511
  %6325 = vmatmul.bf16.gmra.mxu0 %v1041
  %v6326 = vpop.f32.mrf.mxu0
  %v6327 = vadd.f32 %v6314, %v6326
  %v6328 = vpop.f32.mrf.mxu0
  %6329 = vdwg.mxu0
  %6330 = vmatpush.bf16.msra.mxu0 %v4751
  %6331 = vmatpush.bf16.msra.mxu0 %v4735
  %6332 = vmatpush.bf16.msra.mxu0 %v4719
  %6333 = vmatpush.bf16.msra.mxu0 %v4703
  %6334 = vmatpush.bf16.msra.mxu0 %v4687
  %6335 = vmatpush.bf16.msra.mxu0 %v4671
  %6336 = vmatpush.bf16.msra.mxu0 %v4655
  %6337 = vmatpush.bf16.msra.mxu0 %v4639
  %6338 = vmatmul.bf16.gmra.mxu0 %v1042
  %v6339 = vpop.f32.mrf.mxu0
  %v6340 = vadd.f32 %v6327, %v6339
  %v6341 = vpop.f32.mrf.mxu0
  %6342 = vdwg.mxu0
  %6343 = vmatpush.bf16.msra.mxu0 %v4879
  %6344 = vmatpush.bf16.msra.mxu0 %v4863
  %6345 = vmatpush.bf16.msra.mxu0 %v4847
  %6346 = vmatpush.bf16.msra.mxu0 %v4831
  %6347 = vmatpush.bf16.msra.mxu0 %v4815
  %6348 = vmatpush.bf16.msra.mxu0 %v4799
  %6349 = vmatpush.bf16.msra.mxu0 %v4783
  %6350 = vmatpush.bf16.msra.mxu0 %v4767
  %6351 = vmatmul.bf16.gmra.mxu0 %v1043
  %v6352 = vpop.f32.mrf.mxu0
  %v6353 = vadd.f32 %v6340, %v6352
  %v6354 = vpop.f32.mrf.mxu0
  %6355 = vdwg.mxu0
  %6356 = vmatpush.bf16.msra.mxu0 %v5007
  %6357 = vmatpush.bf16.msra.mxu0 %v4991
  %6358 = vmatpush.bf16.msra.mxu0 %v4975
  %6359 = vmatpush.bf16.msra.mxu0 %v4959
  %6360 = vmatpush.bf16.msra.mxu0 %v4943
  %6361 = vmatpush.bf16.msra.mxu0 %v4927
  %6362 = vmatpush.bf16.msra.mxu0 %v4911
  %6363 = vmatpush.bf16.msra.mxu0 %v4895
  %6364 = vmatmul.bf16.gmra.mxu0 %v1044
  %v6365 = vpop.f32.mrf.mxu0
  %v6366 = vadd.f32 %v6353, %v6365
  %v6367 = vpop.f32.mrf.mxu0
  %6368 = vdwg.mxu0
  %6369 = vmatpush.bf16.msra.mxu0 %v5135
  %6370 = vmatpush.bf16.msra.mxu0 %v5119
  %6371 = vmatpush.bf16.msra.mxu0 %v5103
  %6372 = vmatpush.bf16.msra.mxu0 %v5087
  %6373 = vmatpush.bf16.msra.mxu0 %v5071
  %6374 = vmatpush.bf16.msra.mxu0 %v5055
  %6375 = vmatpush.bf16.msra.mxu0 %v5039
  %6376 = vmatpush.bf16.msra.mxu0 %v5023
  %6377 = vmatmul.bf16.gmra.mxu0 %v1045
  %v6378 = vpop.f32.mrf.mxu0
  %v6379 = vadd.f32 %v6366, %v6378
  %v6380 = vpop.f32.mrf.mxu0
  %6381 = vdwg.mxu0
  %6382 = vmatpush.bf16.msra.mxu0 %v4240
  %6383 = vmatpush.bf16.msra.mxu0 %v4224
  %6384 = vmatpush.bf16.msra.mxu0 %v4208
  %6385 = vmatpush.bf16.msra.mxu0 %v4192
  %6386 = vmatpush.bf16.msra.mxu0 %v4176
  %6387 = vmatpush.bf16.msra.mxu0 %v4160
  %6388 = vmatpush.bf16.msra.mxu0 %v4144
  %6389 = vmatpush.bf16.msra.mxu0 %v4128
  %6390 = vmatmul.bf16.gmra.mxu0 %v1038
  %v6391 = vpop.f32.mrf.mxu0
  %v6392 = vadd.f32 0.0, %v6391
  %v6393 = vpop.f32.mrf.mxu0
  %6394 = vdwg.mxu0
  %6395 = vmatpush.bf16.msra.mxu0 %v4368
  %6396 = vmatpush.bf16.msra.mxu0 %v4352
  %6397 = vmatpush.bf16.msra.mxu0 %v4336
  %6398 = vmatpush.bf16.msra.mxu0 %v4320
  %6399 = vmatpush.bf16.msra.mxu0 %v4304
  %6400 = vmatpush.bf16.msra.mxu0 %v4288
  %6401 = vmatpush.bf16.msra.mxu0 %v4272
  %6402 = vmatpush.bf16.msra.mxu0 %v4256
  %6403 = vmatmul.bf16.gmra.mxu0 %v1039
  %v6404 = vpop.f32.mrf.mxu0
  %v6405 = vadd.f32 %v6392, %v6404
  %v6406 = vpop.f32.mrf.mxu0
  %6407 = vdwg.mxu0
  %6408 = vmatpush.bf16.msra.mxu0 %v4496
  %6409 = vmatpush.bf16.msra.mxu0 %v4480
  %6410 = vmatpush.bf16.msra.mxu0 %v4464
  %6411 = vmatpush.bf16.msra.mxu0 %v4448
  %6412 = vmatpush.bf16.msra.mxu0 %v4432
  %6413 = vmatpush.bf16.msra.mxu0 %v4416
  %6414 = vmatpush.bf16.msra.mxu0 %v4400
  %6415 = vmatpush.bf16.msra.mxu0 %v4384
  %6416 = vmatmul.bf16.gmra.mxu0 %v1040
  %v6417 = vpop.f32.mrf.mxu0
  %v6418 = vadd.f32 %v6405, %v6417
  %v6419 = vpop.f32.mrf.mxu0
  %6420 = vdwg.mxu0
  %6421 = vmatpush.bf16.msra.mxu0 %v4624
  %6422 = vmatpush.bf16.msra.mxu0 %v4608
  %6423 = vmatpush.bf16.msra.mxu0 %v4592
  %6424 = vmatpush.bf16.msra.mxu0 %v4576
  %6425 = vmatpush.bf16.msra.mxu0 %v4560
  %6426 = vmatpush.bf16.msra.mxu0 %v4544
  %6427 = vmatpush.bf16.msra.mxu0 %v4528
  %6428 = vmatpush.bf16.msra.mxu0 %v4512
  %6429 = vmatmul.bf16.gmra.mxu0 %v1041
  %v6430 = vpop.f32.mrf.mxu0
  %v6431 = vadd.f32 %v6418, %v6430
  %v6432 = vpop.f32.mrf.mxu0
  %6433 = vdwg.mxu0
  %6434 = vmatpush.bf16.msra.mxu0 %v4752
  %6435 = vmatpush.bf16.msra.mxu0 %v4736
  %6436 = vmatpush.bf16.msra.mxu0 %v4720
  %6437 = vmatpush.bf16.msra.mxu0 %v4704
  %6438 = vmatpush.bf16.msra.mxu0 %v4688
  %6439 = vmatpush.bf16.msra.mxu0 %v4672
  %6440 = vmatpush.bf16.msra.mxu0 %v4656
  %6441 = vmatpush.bf16.msra.mxu0 %v4640
  %6442 = vmatmul.bf16.gmra.mxu0 %v1042
  %v6443 = vpop.f32.mrf.mxu0
  %v6444 = vadd.f32 %v6431, %v6443
  %v6445 = vpop.f32.mrf.mxu0
  %6446 = vdwg.mxu0
  %6447 = vmatpush.bf16.msra.mxu0 %v4880
  %6448 = vmatpush.bf16.msra.mxu0 %v4864
  %6449 = vmatpush.bf16.msra.mxu0 %v4848
  %6450 = vmatpush.bf16.msra.mxu0 %v4832
  %6451 = vmatpush.bf16.msra.mxu0 %v4816
  %6452 = vmatpush.bf16.msra.mxu0 %v4800
  %6453 = vmatpush.bf16.msra.mxu0 %v4784
  %6454 = vmatpush.bf16.msra.mxu0 %v4768
  %6455 = vmatmul.bf16.gmra.mxu0 %v1043
  %v6456 = vpop.f32.mrf.mxu0
  %v6457 = vadd.f32 %v6444, %v6456
  %v6458 = vpop.f32.mrf.mxu0
  %6459 = vdwg.mxu0
  %6460 = vmatpush.bf16.msra.mxu0 %v5008
  %6461 = vmatpush.bf16.msra.mxu0 %v4992
  %6462 = vmatpush.bf16.msra.mxu0 %v4976
  %6463 = vmatpush.bf16.msra.mxu0 %v4960
  %6464 = vmatpush.bf16.msra.mxu0 %v4944
  %6465 = vmatpush.bf16.msra.mxu0 %v4928
  %6466 = vmatpush.bf16.msra.mxu0 %v4912
  %6467 = vmatpush.bf16.msra.mxu0 %v4896
  %6468 = vmatmul.bf16.gmra.mxu0 %v1044
  %v6469 = vpop.f32.mrf.mxu0
  %v6470 = vadd.f32 %v6457, %v6469
  %v6471 = vpop.f32.mrf.mxu0
  %6472 = vdwg.mxu0
  %6473 = vmatpush.bf16.msra.mxu0 %v5136
  %6474 = vmatpush.bf16.msra.mxu0 %v5120
  %6475 = vmatpush.bf16.msra.mxu0 %v5104
  %6476 = vmatpush.bf16.msra.mxu0 %v5088
  %6477 = vmatpush.bf16.msra.mxu0 %v5072
  %6478 = vmatpush.bf16.msra.mxu0 %v5056
  %6479 = vmatpush.bf16.msra.mxu0 %v5040
  %6480 = vmatpush.bf16.msra.mxu0 %v5024
  %6481 = vmatmul.bf16.gmra.mxu0 %v1045
  %v6482 = vpop.f32.mrf.mxu0
  %v6483 = vadd.f32 %v6470, %v6482
  %v6484 = vpop.f32.mrf.mxu0
  %6485 = vdwg.mxu0
  %6486 = vmatpush.bf16.msra.mxu0 %v4241
  %6487 = vmatpush.bf16.msra.mxu0 %v4225
  %6488 = vmatpush.bf16.msra.mxu0 %v4209
  %6489 = vmatpush.bf16.msra.mxu0 %v4193
  %6490 = vmatpush.bf16.msra.mxu0 %v4177
  %6491 = vmatpush.bf16.msra.mxu0 %v4161
  %6492 = vmatpush.bf16.msra.mxu0 %v4145
  %6493 = vmatpush.bf16.msra.mxu0 %v4129
  %6494 = vmatmul.bf16.gmra.mxu0 %v1038
  %v6495 = vpop.f32.mrf.mxu0
  %v6496 = vadd.f32 0.0, %v6495
  %v6497 = vpop.f32.mrf.mxu0
  %6498 = vdwg.mxu0
  %6499 = vmatpush.bf16.msra.mxu0 %v4369
  %6500 = vmatpush.bf16.msra.mxu0 %v4353
  %6501 = vmatpush.bf16.msra.mxu0 %v4337
  %6502 = vmatpush.bf16.msra.mxu0 %v4321
  %6503 = vmatpush.bf16.msra.mxu0 %v4305
  %6504 = vmatpush.bf16.msra.mxu0 %v4289
  %6505 = vmatpush.bf16.msra.mxu0 %v4273
  %6506 = vmatpush.bf16.msra.mxu0 %v4257
  %6507 = vmatmul.bf16.gmra.mxu0 %v1039
  %v6508 = vpop.f32.mrf.mxu0
  %v6509 = vadd.f32 %v6496, %v6508
  %v6510 = vpop.f32.mrf.mxu0
  %6511 = vdwg.mxu0
  %6512 = vmatpush.bf16.msra.mxu0 %v4497
  %6513 = vmatpush.bf16.msra.mxu0 %v4481
  %6514 = vmatpush.bf16.msra.mxu0 %v4465
  %6515 = vmatpush.bf16.msra.mxu0 %v4449
  %6516 = vmatpush.bf16.msra.mxu0 %v4433
  %6517 = vmatpush.bf16.msra.mxu0 %v4417
  %6518 = vmatpush.bf16.msra.mxu0 %v4401
  %6519 = vmatpush.bf16.msra.mxu0 %v4385
  %6520 = vmatmul.bf16.gmra.mxu0 %v1040
  %v6521 = vpop.f32.mrf.mxu0
  %v6522 = vadd.f32 %v6509, %v6521
  %v6523 = vpop.f32.mrf.mxu0
  %6524 = vdwg.mxu0
  %6525 = vmatpush.bf16.msra.mxu0 %v4625
  %6526 = vmatpush.bf16.msra.mxu0 %v4609
  %6527 = vmatpush.bf16.msra.mxu0 %v4593
  %6528 = vmatpush.bf16.msra.mxu0 %v4577
  %6529 = vmatpush.bf16.msra.mxu0 %v4561
  %6530 = vmatpush.bf16.msra.mxu0 %v4545
  %6531 = vmatpush.bf16.msra.mxu0 %v4529
  %6532 = vmatpush.bf16.msra.mxu0 %v4513
  %6533 = vmatmul.bf16.gmra.mxu0 %v1041
  %v6534 = vpop.f32.mrf.mxu0
  %v6535 = vadd.f32 %v6522, %v6534
  %v6536 = vpop.f32.mrf.mxu0
  %6537 = vdwg.mxu0
  %6538 = vmatpush.bf16.msra.mxu0 %v4753
  %6539 = vmatpush.bf16.msra.mxu0 %v4737
  %6540 = vmatpush.bf16.msra.mxu0 %v4721
  %6541 = vmatpush.bf16.msra.mxu0 %v4705
  %6542 = vmatpush.bf16.msra.mxu0 %v4689
  %6543 = vmatpush.bf16.msra.mxu0 %v4673
  %6544 = vmatpush.bf16.msra.mxu0 %v4657
  %6545 = vmatpush.bf16.msra.mxu0 %v4641
  %6546 = vmatmul.bf16.gmra.mxu0 %v1042
  %v6547 = vpop.f32.mrf.mxu0
  %v6548 = vadd.f32 %v6535, %v6547
  %v6549 = vpop.f32.mrf.mxu0
  %6550 = vdwg.mxu0
  %6551 = vmatpush.bf16.msra.mxu0 %v4881
  %6552 = vmatpush.bf16.msra.mxu0 %v4865
  %6553 = vmatpush.bf16.msra.mxu0 %v4849
  %6554 = vmatpush.bf16.msra.mxu0 %v4833
  %6555 = vmatpush.bf16.msra.mxu0 %v4817
  %6556 = vmatpush.bf16.msra.mxu0 %v4801
  %6557 = vmatpush.bf16.msra.mxu0 %v4785
  %6558 = vmatpush.bf16.msra.mxu0 %v4769
  %6559 = vmatmul.bf16.gmra.mxu0 %v1043
  %v6560 = vpop.f32.mrf.mxu0
  %v6561 = vadd.f32 %v6548, %v6560
  %v6562 = vpop.f32.mrf.mxu0
  %6563 = vdwg.mxu0
  %6564 = vmatpush.bf16.msra.mxu0 %v5009
  %6565 = vmatpush.bf16.msra.mxu0 %v4993
  %6566 = vmatpush.bf16.msra.mxu0 %v4977
  %6567 = vmatpush.bf16.msra.mxu0 %v4961
  %6568 = vmatpush.bf16.msra.mxu0 %v4945
  %6569 = vmatpush.bf16.msra.mxu0 %v4929
  %6570 = vmatpush.bf16.msra.mxu0 %v4913
  %6571 = vmatpush.bf16.msra.mxu0 %v4897
  %6572 = vmatmul.bf16.gmra.mxu0 %v1044
  %v6573 = vpop.f32.mrf.mxu0
  %v6574 = vadd.f32 %v6561, %v6573
  %v6575 = vpop.f32.mrf.mxu0
  %6576 = vdwg.mxu0
  %6577 = vmatpush.bf16.msra.mxu0 %v5137
  %6578 = vmatpush.bf16.msra.mxu0 %v5121
  %6579 = vmatpush.bf16.msra.mxu0 %v5105
  %6580 = vmatpush.bf16.msra.mxu0 %v5089
  %6581 = vmatpush.bf16.msra.mxu0 %v5073
  %6582 = vmatpush.bf16.msra.mxu0 %v5057
  %6583 = vmatpush.bf16.msra.mxu0 %v5041
  %6584 = vmatpush.bf16.msra.mxu0 %v5025
  %6585 = vmatmul.bf16.gmra.mxu0 %v1045
  %v6586 = vpop.f32.mrf.mxu0
  %v6587 = vadd.f32 %v6574, %v6586
  %v6588 = vpop.f32.mrf.mxu0
  %6589 = vdwg.mxu0
  %6590 = vmatpush.bf16.msra.mxu0 %v4242
  %6591 = vmatpush.bf16.msra.mxu0 %v4226
  %6592 = vmatpush.bf16.msra.mxu0 %v4210
  %6593 = vmatpush.bf16.msra.mxu0 %v4194
  %6594 = vmatpush.bf16.msra.mxu0 %v4178
  %6595 = vmatpush.bf16.msra.mxu0 %v4162
  %6596 = vmatpush.bf16.msra.mxu0 %v4146
  %6597 = vmatpush.bf16.msra.mxu0 %v4130
  %6598 = vmatmul.bf16.gmra.mxu0 %v1038
  %v6599 = vpop.f32.mrf.mxu0
  %v6600 = vadd.f32 0.0, %v6599
  %v6601 = vpop.f32.mrf.mxu0
  %6602 = vdwg.mxu0
  %6603 = vmatpush.bf16.msra.mxu0 %v4370
  %6604 = vmatpush.bf16.msra.mxu0 %v4354
  %6605 = vmatpush.bf16.msra.mxu0 %v4338
  %6606 = vmatpush.bf16.msra.mxu0 %v4322
  %6607 = vmatpush.bf16.msra.mxu0 %v4306
  %6608 = vmatpush.bf16.msra.mxu0 %v4290
  %6609 = vmatpush.bf16.msra.mxu0 %v4274
  %6610 = vmatpush.bf16.msra.mxu0 %v4258
  %6611 = vmatmul.bf16.gmra.mxu0 %v1039
  %v6612 = vpop.f32.mrf.mxu0
  %v6613 = vadd.f32 %v6600, %v6612
  %v6614 = vpop.f32.mrf.mxu0
  %6615 = vdwg.mxu0
  %6616 = vmatpush.bf16.msra.mxu0 %v4498
  %6617 = vmatpush.bf16.msra.mxu0 %v4482
  %6618 = vmatpush.bf16.msra.mxu0 %v4466
  %6619 = vmatpush.bf16.msra.mxu0 %v4450
  %6620 = vmatpush.bf16.msra.mxu0 %v4434
  %6621 = vmatpush.bf16.msra.mxu0 %v4418
  %6622 = vmatpush.bf16.msra.mxu0 %v4402
  %6623 = vmatpush.bf16.msra.mxu0 %v4386
  %6624 = vmatmul.bf16.gmra.mxu0 %v1040
  %v6625 = vpop.f32.mrf.mxu0
  %v6626 = vadd.f32 %v6613, %v6625
  %v6627 = vpop.f32.mrf.mxu0
  %6628 = vdwg.mxu0
  %6629 = vmatpush.bf16.msra.mxu0 %v4626
  %6630 = vmatpush.bf16.msra.mxu0 %v4610
  %6631 = vmatpush.bf16.msra.mxu0 %v4594
  %6632 = vmatpush.bf16.msra.mxu0 %v4578
  %6633 = vmatpush.bf16.msra.mxu0 %v4562
  %6634 = vmatpush.bf16.msra.mxu0 %v4546
  %6635 = vmatpush.bf16.msra.mxu0 %v4530
  %6636 = vmatpush.bf16.msra.mxu0 %v4514
  %6637 = vmatmul.bf16.gmra.mxu0 %v1041
  %v6638 = vpop.f32.mrf.mxu0
  %v6639 = vadd.f32 %v6626, %v6638
  %v6640 = vpop.f32.mrf.mxu0
  %6641 = vdwg.mxu0
  %6642 = vmatpush.bf16.msra.mxu0 %v4754
  %6643 = vmatpush.bf16.msra.mxu0 %v4738
  %6644 = vmatpush.bf16.msra.mxu0 %v4722
  %6645 = vmatpush.bf16.msra.mxu0 %v4706
  %6646 = vmatpush.bf16.msra.mxu0 %v4690
  %6647 = vmatpush.bf16.msra.mxu0 %v4674
  %6648 = vmatpush.bf16.msra.mxu0 %v4658
  %6649 = vmatpush.bf16.msra.mxu0 %v4642
  %6650 = vmatmul.bf16.gmra.mxu0 %v1042
  %v6651 = vpop.f32.mrf.mxu0
  %v6652 = vadd.f32 %v6639, %v6651
  %v6653 = vpop.f32.mrf.mxu0
  %6654 = vdwg.mxu0
  %6655 = vmatpush.bf16.msra.mxu0 %v4882
  %6656 = vmatpush.bf16.msra.mxu0 %v4866
  %6657 = vmatpush.bf16.msra.mxu0 %v4850
  %6658 = vmatpush.bf16.msra.mxu0 %v4834
  %6659 = vmatpush.bf16.msra.mxu0 %v4818
  %6660 = vmatpush.bf16.msra.mxu0 %v4802
  %6661 = vmatpush.bf16.msra.mxu0 %v4786
  %6662 = vmatpush.bf16.msra.mxu0 %v4770
  %6663 = vmatmul.bf16.gmra.mxu0 %v1043
  %v6664 = vpop.f32.mrf.mxu0
  %v6665 = vadd.f32 %v6652, %v6664
  %v6666 = vpop.f32.mrf.mxu0
  %6667 = vdwg.mxu0
  %6668 = vmatpush.bf16.msra.mxu0 %v5010
  %6669 = vmatpush.bf16.msra.mxu0 %v4994
  %6670 = vmatpush.bf16.msra.mxu0 %v4978
  %6671 = vmatpush.bf16.msra.mxu0 %v4962
  %6672 = vmatpush.bf16.msra.mxu0 %v4946
  %6673 = vmatpush.bf16.msra.mxu0 %v4930
  %6674 = vmatpush.bf16.msra.mxu0 %v4914
  %6675 = vmatpush.bf16.msra.mxu0 %v4898
  %6676 = vmatmul.bf16.gmra.mxu0 %v1044
  %v6677 = vpop.f32.mrf.mxu0
  %v6678 = vadd.f32 %v6665, %v6677
  %v6679 = vpop.f32.mrf.mxu0
  %6680 = vdwg.mxu0
  %6681 = vmatpush.bf16.msra.mxu0 %v5138
  %6682 = vmatpush.bf16.msra.mxu0 %v5122
  %6683 = vmatpush.bf16.msra.mxu0 %v5106
  %6684 = vmatpush.bf16.msra.mxu0 %v5090
  %6685 = vmatpush.bf16.msra.mxu0 %v5074
  %6686 = vmatpush.bf16.msra.mxu0 %v5058
  %6687 = vmatpush.bf16.msra.mxu0 %v5042
  %6688 = vmatpush.bf16.msra.mxu0 %v5026
  %6689 = vmatmul.bf16.gmra.mxu0 %v1045
  %v6690 = vpop.f32.mrf.mxu0
  %v6691 = vadd.f32 %v6678, %v6690
  %v6692 = vpop.f32.mrf.mxu0
  %6693 = vdwg.mxu0
  %6694 = vmatpush.bf16.msra.mxu0 %v4243
  %6695 = vmatpush.bf16.msra.mxu0 %v4227
  %6696 = vmatpush.bf16.msra.mxu0 %v4211
  %6697 = vmatpush.bf16.msra.mxu0 %v4195
  %6698 = vmatpush.bf16.msra.mxu0 %v4179
  %6699 = vmatpush.bf16.msra.mxu0 %v4163
  %6700 = vmatpush.bf16.msra.mxu0 %v4147
  %6701 = vmatpush.bf16.msra.mxu0 %v4131
  %6702 = vmatmul.bf16.gmra.mxu0 %v1038
  %v6703 = vpop.f32.mrf.mxu0
  %v6704 = vadd.f32 0.0, %v6703
  %v6705 = vpop.f32.mrf.mxu0
  %6706 = vdwg.mxu0
  %6707 = vmatpush.bf16.msra.mxu0 %v4371
  %6708 = vmatpush.bf16.msra.mxu0 %v4355
  %6709 = vmatpush.bf16.msra.mxu0 %v4339
  %6710 = vmatpush.bf16.msra.mxu0 %v4323
  %6711 = vmatpush.bf16.msra.mxu0 %v4307
  %6712 = vmatpush.bf16.msra.mxu0 %v4291
  %6713 = vmatpush.bf16.msra.mxu0 %v4275
  %6714 = vmatpush.bf16.msra.mxu0 %v4259
  %6715 = vmatmul.bf16.gmra.mxu0 %v1039
  %v6716 = vpop.f32.mrf.mxu0
  %v6717 = vadd.f32 %v6704, %v6716
  %v6718 = vpop.f32.mrf.mxu0
  %6719 = vdwg.mxu0
  %6720 = vmatpush.bf16.msra.mxu0 %v4499
  %6721 = vmatpush.bf16.msra.mxu0 %v4483
  %6722 = vmatpush.bf16.msra.mxu0 %v4467
  %6723 = vmatpush.bf16.msra.mxu0 %v4451
  %6724 = vmatpush.bf16.msra.mxu0 %v4435
  %6725 = vmatpush.bf16.msra.mxu0 %v4419
  %6726 = vmatpush.bf16.msra.mxu0 %v4403
  %6727 = vmatpush.bf16.msra.mxu0 %v4387
  %6728 = vmatmul.bf16.gmra.mxu0 %v1040
  %v6729 = vpop.f32.mrf.mxu0
  %v6730 = vadd.f32 %v6717, %v6729
  %v6731 = vpop.f32.mrf.mxu0
  %6732 = vdwg.mxu0
  %6733 = vmatpush.bf16.msra.mxu0 %v4627
  %6734 = vmatpush.bf16.msra.mxu0 %v4611
  %6735 = vmatpush.bf16.msra.mxu0 %v4595
  %6736 = vmatpush.bf16.msra.mxu0 %v4579
  %6737 = vmatpush.bf16.msra.mxu0 %v4563
  %6738 = vmatpush.bf16.msra.mxu0 %v4547
  %6739 = vmatpush.bf16.msra.mxu0 %v4531
  %6740 = vmatpush.bf16.msra.mxu0 %v4515
  %6741 = vmatmul.bf16.gmra.mxu0 %v1041
  %v6742 = vpop.f32.mrf.mxu0
  %v6743 = vadd.f32 %v6730, %v6742
  %v6744 = vpop.f32.mrf.mxu0
  %6745 = vdwg.mxu0
  %6746 = vmatpush.bf16.msra.mxu0 %v4755
  %6747 = vmatpush.bf16.msra.mxu0 %v4739
  %6748 = vmatpush.bf16.msra.mxu0 %v4723
  %6749 = vmatpush.bf16.msra.mxu0 %v4707
  %6750 = vmatpush.bf16.msra.mxu0 %v4691
  %6751 = vmatpush.bf16.msra.mxu0 %v4675
  %6752 = vmatpush.bf16.msra.mxu0 %v4659
  %6753 = vmatpush.bf16.msra.mxu0 %v4643
  %6754 = vmatmul.bf16.gmra.mxu0 %v1042
  %v6755 = vpop.f32.mrf.mxu0
  %v6756 = vadd.f32 %v6743, %v6755
  %v6757 = vpop.f32.mrf.mxu0
  %6758 = vdwg.mxu0
  %6759 = vmatpush.bf16.msra.mxu0 %v4883
  %6760 = vmatpush.bf16.msra.mxu0 %v4867
  %6761 = vmatpush.bf16.msra.mxu0 %v4851
  %6762 = vmatpush.bf16.msra.mxu0 %v4835
  %6763 = vmatpush.bf16.msra.mxu0 %v4819
  %6764 = vmatpush.bf16.msra.mxu0 %v4803
  %6765 = vmatpush.bf16.msra.mxu0 %v4787
  %6766 = vmatpush.bf16.msra.mxu0 %v4771
  %6767 = vmatmul.bf16.gmra.mxu0 %v1043
  %v6768 = vpop.f32.mrf.mxu0
  %v6769 = vadd.f32 %v6756, %v6768
  %v6770 = vpop.f32.mrf.mxu0
  %6771 = vdwg.mxu0
  %6772 = vmatpush.bf16.msra.mxu0 %v5011
  %6773 = vmatpush.bf16.msra.mxu0 %v4995
  %6774 = vmatpush.bf16.msra.mxu0 %v4979
  %6775 = vmatpush.bf16.msra.mxu0 %v4963
  %6776 = vmatpush.bf16.msra.mxu0 %v4947
  %6777 = vmatpush.bf16.msra.mxu0 %v4931
  %6778 = vmatpush.bf16.msra.mxu0 %v4915
  %6779 = vmatpush.bf16.msra.mxu0 %v4899
  %6780 = vmatmul.bf16.gmra.mxu0 %v1044
  %v6781 = vpop.f32.mrf.mxu0
  %v6782 = vadd.f32 %v6769, %v6781
  %v6783 = vpop.f32.mrf.mxu0
  %6784 = vdwg.mxu0
  %6785 = vmatpush.bf16.msra.mxu0 %v5139
  %6786 = vmatpush.bf16.msra.mxu0 %v5123
  %6787 = vmatpush.bf16.msra.mxu0 %v5107
  %6788 = vmatpush.bf16.msra.mxu0 %v5091
  %6789 = vmatpush.bf16.msra.mxu0 %v5075
  %6790 = vmatpush.bf16.msra.mxu0 %v5059
  %6791 = vmatpush.bf16.msra.mxu0 %v5043
  %6792 = vmatpush.bf16.msra.mxu0 %v5027
  %6793 = vmatmul.bf16.gmra.mxu0 %v1045
  %v6794 = vpop.f32.mrf.mxu0
  %v6795 = vadd.f32 %v6782, %v6794
  %v6796 = vpop.f32.mrf.mxu0
  %6797 = vdwg.mxu0
  %6798 = vmatpush.bf16.msra.mxu0 %v4244
  %6799 = vmatpush.bf16.msra.mxu0 %v4228
  %6800 = vmatpush.bf16.msra.mxu0 %v4212
  %6801 = vmatpush.bf16.msra.mxu0 %v4196
  %6802 = vmatpush.bf16.msra.mxu0 %v4180
  %6803 = vmatpush.bf16.msra.mxu0 %v4164
  %6804 = vmatpush.bf16.msra.mxu0 %v4148
  %6805 = vmatpush.bf16.msra.mxu0 %v4132
  %6806 = vmatmul.bf16.gmra.mxu0 %v1038
  %v6807 = vpop.f32.mrf.mxu0
  %v6808 = vadd.f32 0.0, %v6807
  %v6809 = vpop.f32.mrf.mxu0
  %6810 = vdwg.mxu0
  %6811 = vmatpush.bf16.msra.mxu0 %v4372
  %6812 = vmatpush.bf16.msra.mxu0 %v4356
  %6813 = vmatpush.bf16.msra.mxu0 %v4340
  %6814 = vmatpush.bf16.msra.mxu0 %v4324
  %6815 = vmatpush.bf16.msra.mxu0 %v4308
  %6816 = vmatpush.bf16.msra.mxu0 %v4292
  %6817 = vmatpush.bf16.msra.mxu0 %v4276
  %6818 = vmatpush.bf16.msra.mxu0 %v4260
  %6819 = vmatmul.bf16.gmra.mxu0 %v1039
  %v6820 = vpop.f32.mrf.mxu0
  %v6821 = vadd.f32 %v6808, %v6820
  %v6822 = vpop.f32.mrf.mxu0
  %6823 = vdwg.mxu0
  %6824 = vmatpush.bf16.msra.mxu0 %v4500
  %6825 = vmatpush.bf16.msra.mxu0 %v4484
  %6826 = vmatpush.bf16.msra.mxu0 %v4468
  %6827 = vmatpush.bf16.msra.mxu0 %v4452
  %6828 = vmatpush.bf16.msra.mxu0 %v4436
  %6829 = vmatpush.bf16.msra.mxu0 %v4420
  %6830 = vmatpush.bf16.msra.mxu0 %v4404
  %6831 = vmatpush.bf16.msra.mxu0 %v4388
  %6832 = vmatmul.bf16.gmra.mxu0 %v1040
  %v6833 = vpop.f32.mrf.mxu0
  %v6834 = vadd.f32 %v6821, %v6833
  %v6835 = vpop.f32.mrf.mxu0
  %6836 = vdwg.mxu0
  %6837 = vmatpush.bf16.msra.mxu0 %v4628
  %6838 = vmatpush.bf16.msra.mxu0 %v4612
  %6839 = vmatpush.bf16.msra.mxu0 %v4596
  %6840 = vmatpush.bf16.msra.mxu0 %v4580
  %6841 = vmatpush.bf16.msra.mxu0 %v4564
  %6842 = vmatpush.bf16.msra.mxu0 %v4548
  %6843 = vmatpush.bf16.msra.mxu0 %v4532
  %6844 = vmatpush.bf16.msra.mxu0 %v4516
  %6845 = vmatmul.bf16.gmra.mxu0 %v1041
  %v6846 = vpop.f32.mrf.mxu0
  %v6847 = vadd.f32 %v6834, %v6846
  %v6848 = vpop.f32.mrf.mxu0
  %6849 = vdwg.mxu0
  %6850 = vmatpush.bf16.msra.mxu0 %v4756
  %6851 = vmatpush.bf16.msra.mxu0 %v4740
  %6852 = vmatpush.bf16.msra.mxu0 %v4724
  %6853 = vmatpush.bf16.msra.mxu0 %v4708
  %6854 = vmatpush.bf16.msra.mxu0 %v4692
  %6855 = vmatpush.bf16.msra.mxu0 %v4676
  %6856 = vmatpush.bf16.msra.mxu0 %v4660
  %6857 = vmatpush.bf16.msra.mxu0 %v4644
  %6858 = vmatmul.bf16.gmra.mxu0 %v1042
  %v6859 = vpop.f32.mrf.mxu0
  %v6860 = vadd.f32 %v6847, %v6859
  %v6861 = vpop.f32.mrf.mxu0
  %6862 = vdwg.mxu0
  %6863 = vmatpush.bf16.msra.mxu0 %v4884
  %6864 = vmatpush.bf16.msra.mxu0 %v4868
  %6865 = vmatpush.bf16.msra.mxu0 %v4852
  %6866 = vmatpush.bf16.msra.mxu0 %v4836
  %6867 = vmatpush.bf16.msra.mxu0 %v4820
  %6868 = vmatpush.bf16.msra.mxu0 %v4804
  %6869 = vmatpush.bf16.msra.mxu0 %v4788
  %6870 = vmatpush.bf16.msra.mxu0 %v4772
  %6871 = vmatmul.bf16.gmra.mxu0 %v1043
  %v6872 = vpop.f32.mrf.mxu0
  %v6873 = vadd.f32 %v6860, %v6872
  %v6874 = vpop.f32.mrf.mxu0
  %6875 = vdwg.mxu0
  %6876 = vmatpush.bf16.msra.mxu0 %v5012
  %6877 = vmatpush.bf16.msra.mxu0 %v4996
  %6878 = vmatpush.bf16.msra.mxu0 %v4980
  %6879 = vmatpush.bf16.msra.mxu0 %v4964
  %6880 = vmatpush.bf16.msra.mxu0 %v4948
  %6881 = vmatpush.bf16.msra.mxu0 %v4932
  %6882 = vmatpush.bf16.msra.mxu0 %v4916
  %6883 = vmatpush.bf16.msra.mxu0 %v4900
  %6884 = vmatmul.bf16.gmra.mxu0 %v1044
  %v6885 = vpop.f32.mrf.mxu0
  %v6886 = vadd.f32 %v6873, %v6885
  %v6887 = vpop.f32.mrf.mxu0
  %6888 = vdwg.mxu0
  %6889 = vmatpush.bf16.msra.mxu0 %v5140
  %6890 = vmatpush.bf16.msra.mxu0 %v5124
  %6891 = vmatpush.bf16.msra.mxu0 %v5108
  %6892 = vmatpush.bf16.msra.mxu0 %v5092
  %6893 = vmatpush.bf16.msra.mxu0 %v5076
  %6894 = vmatpush.bf16.msra.mxu0 %v5060
  %6895 = vmatpush.bf16.msra.mxu0 %v5044
  %6896 = vmatpush.bf16.msra.mxu0 %v5028
  %6897 = vmatmul.bf16.gmra.mxu0 %v1045
  %v6898 = vpop.f32.mrf.mxu0
  %v6899 = vadd.f32 %v6886, %v6898
  %v6900 = vpop.f32.mrf.mxu0
  %6901 = vdwg.mxu0
  %6902 = vmatpush.bf16.msra.mxu0 %v4245
  %6903 = vmatpush.bf16.msra.mxu0 %v4229
  %6904 = vmatpush.bf16.msra.mxu0 %v4213
  %6905 = vmatpush.bf16.msra.mxu0 %v4197
  %6906 = vmatpush.bf16.msra.mxu0 %v4181
  %6907 = vmatpush.bf16.msra.mxu0 %v4165
  %6908 = vmatpush.bf16.msra.mxu0 %v4149
  %6909 = vmatpush.bf16.msra.mxu0 %v4133
  %6910 = vmatmul.bf16.gmra.mxu0 %v1038
  %v6911 = vpop.f32.mrf.mxu0
  %v6912 = vadd.f32 0.0, %v6911
  %v6913 = vpop.f32.mrf.mxu0
  %6914 = vdwg.mxu0
  %6915 = vmatpush.bf16.msra.mxu0 %v4373
  %6916 = vmatpush.bf16.msra.mxu0 %v4357
  %6917 = vmatpush.bf16.msra.mxu0 %v4341
  %6918 = vmatpush.bf16.msra.mxu0 %v4325
  %6919 = vmatpush.bf16.msra.mxu0 %v4309
  %6920 = vmatpush.bf16.msra.mxu0 %v4293
  %6921 = vmatpush.bf16.msra.mxu0 %v4277
  %6922 = vmatpush.bf16.msra.mxu0 %v4261
  %6923 = vmatmul.bf16.gmra.mxu0 %v1039
  %v6924 = vpop.f32.mrf.mxu0
  %v6925 = vadd.f32 %v6912, %v6924
  %v6926 = vpop.f32.mrf.mxu0
  %6927 = vdwg.mxu0
  %6928 = vmatpush.bf16.msra.mxu0 %v4501
  %6929 = vmatpush.bf16.msra.mxu0 %v4485
  %6930 = vmatpush.bf16.msra.mxu0 %v4469
  %6931 = vmatpush.bf16.msra.mxu0 %v4453
  %6932 = vmatpush.bf16.msra.mxu0 %v4437
  %6933 = vmatpush.bf16.msra.mxu0 %v4421
  %6934 = vmatpush.bf16.msra.mxu0 %v4405
  %6935 = vmatpush.bf16.msra.mxu0 %v4389
  %6936 = vmatmul.bf16.gmra.mxu0 %v1040
  %v6937 = vpop.f32.mrf.mxu0
  %v6938 = vadd.f32 %v6925, %v6937
  %v6939 = vpop.f32.mrf.mxu0
  %6940 = vdwg.mxu0
  %6941 = vmatpush.bf16.msra.mxu0 %v4629
  %6942 = vmatpush.bf16.msra.mxu0 %v4613
  %6943 = vmatpush.bf16.msra.mxu0 %v4597
  %6944 = vmatpush.bf16.msra.mxu0 %v4581
  %6945 = vmatpush.bf16.msra.mxu0 %v4565
  %6946 = vmatpush.bf16.msra.mxu0 %v4549
  %6947 = vmatpush.bf16.msra.mxu0 %v4533
  %6948 = vmatpush.bf16.msra.mxu0 %v4517
  %6949 = vmatmul.bf16.gmra.mxu0 %v1041
  %v6950 = vpop.f32.mrf.mxu0
  %v6951 = vadd.f32 %v6938, %v6950
  %v6952 = vpop.f32.mrf.mxu0
  %6953 = vdwg.mxu0
  %6954 = vmatpush.bf16.msra.mxu0 %v4757
  %6955 = vmatpush.bf16.msra.mxu0 %v4741
  %6956 = vmatpush.bf16.msra.mxu0 %v4725
  %6957 = vmatpush.bf16.msra.mxu0 %v4709
  %6958 = vmatpush.bf16.msra.mxu0 %v4693
  %6959 = vmatpush.bf16.msra.mxu0 %v4677
  %6960 = vmatpush.bf16.msra.mxu0 %v4661
  %6961 = vmatpush.bf16.msra.mxu0 %v4645
  %6962 = vmatmul.bf16.gmra.mxu0 %v1042
  %v6963 = vpop.f32.mrf.mxu0
  %v6964 = vadd.f32 %v6951, %v6963
  %v6965 = vpop.f32.mrf.mxu0
  %6966 = vdwg.mxu0
  %6967 = vmatpush.bf16.msra.mxu0 %v4885
  %6968 = vmatpush.bf16.msra.mxu0 %v4869
  %6969 = vmatpush.bf16.msra.mxu0 %v4853
  %6970 = vmatpush.bf16.msra.mxu0 %v4837
  %6971 = vmatpush.bf16.msra.mxu0 %v4821
  %6972 = vmatpush.bf16.msra.mxu0 %v4805
  %6973 = vmatpush.bf16.msra.mxu0 %v4789
  %6974 = vmatpush.bf16.msra.mxu0 %v4773
  %6975 = vmatmul.bf16.gmra.mxu0 %v1043
  %v6976 = vpop.f32.mrf.mxu0
  %v6977 = vadd.f32 %v6964, %v6976
  %v6978 = vpop.f32.mrf.mxu0
  %6979 = vdwg.mxu0
  %6980 = vmatpush.bf16.msra.mxu0 %v5013
  %6981 = vmatpush.bf16.msra.mxu0 %v4997
  %6982 = vmatpush.bf16.msra.mxu0 %v4981
  %6983 = vmatpush.bf16.msra.mxu0 %v4965
  %6984 = vmatpush.bf16.msra.mxu0 %v4949
  %6985 = vmatpush.bf16.msra.mxu0 %v4933
  %6986 = vmatpush.bf16.msra.mxu0 %v4917
  %6987 = vmatpush.bf16.msra.mxu0 %v4901
  %6988 = vmatmul.bf16.gmra.mxu0 %v1044
  %v6989 = vpop.f32.mrf.mxu0
  %v6990 = vadd.f32 %v6977, %v6989
  %v6991 = vpop.f32.mrf.mxu0
  %6992 = vdwg.mxu0
  %6993 = vmatpush.bf16.msra.mxu0 %v5141
  %6994 = vmatpush.bf16.msra.mxu0 %v5125
  %6995 = vmatpush.bf16.msra.mxu0 %v5109
  %6996 = vmatpush.bf16.msra.mxu0 %v5093
  %6997 = vmatpush.bf16.msra.mxu0 %v5077
  %6998 = vmatpush.bf16.msra.mxu0 %v5061
  %6999 = vmatpush.bf16.msra.mxu0 %v5045
  %7000 = vmatpush.bf16.msra.mxu0 %v5029
  %7001 = vmatmul.bf16.gmra.mxu0 %v1045
  %v7002 = vpop.f32.mrf.mxu0
  %v7003 = vadd.f32 %v6990, %v7002
  %v7004 = vpop.f32.mrf.mxu0
  %7005 = vdwg.mxu0
  %7006 = vmatpush.bf16.msra.mxu0 %v4246
  %7007 = vmatpush.bf16.msra.mxu0 %v4230
  %7008 = vmatpush.bf16.msra.mxu0 %v4214
  %7009 = vmatpush.bf16.msra.mxu0 %v4198
  %7010 = vmatpush.bf16.msra.mxu0 %v4182
  %7011 = vmatpush.bf16.msra.mxu0 %v4166
  %7012 = vmatpush.bf16.msra.mxu0 %v4150
  %7013 = vmatpush.bf16.msra.mxu0 %v4134
  %7014 = vmatmul.bf16.gmra.mxu0 %v1038
  %v7015 = vpop.f32.mrf.mxu0
  %v7016 = vadd.f32 0.0, %v7015
  %v7017 = vpop.f32.mrf.mxu0
  %7018 = vdwg.mxu0
  %7019 = vmatpush.bf16.msra.mxu0 %v4374
  %7020 = vmatpush.bf16.msra.mxu0 %v4358
  %7021 = vmatpush.bf16.msra.mxu0 %v4342
  %7022 = vmatpush.bf16.msra.mxu0 %v4326
  %7023 = vmatpush.bf16.msra.mxu0 %v4310
  %7024 = vmatpush.bf16.msra.mxu0 %v4294
  %7025 = vmatpush.bf16.msra.mxu0 %v4278
  %7026 = vmatpush.bf16.msra.mxu0 %v4262
  %7027 = vmatmul.bf16.gmra.mxu0 %v1039
  %v7028 = vpop.f32.mrf.mxu0
  %v7029 = vadd.f32 %v7016, %v7028
  %v7030 = vpop.f32.mrf.mxu0
  %7031 = vdwg.mxu0
  %7032 = vmatpush.bf16.msra.mxu0 %v4502
  %7033 = vmatpush.bf16.msra.mxu0 %v4486
  %7034 = vmatpush.bf16.msra.mxu0 %v4470
  %7035 = vmatpush.bf16.msra.mxu0 %v4454
  %7036 = vmatpush.bf16.msra.mxu0 %v4438
  %7037 = vmatpush.bf16.msra.mxu0 %v4422
  %7038 = vmatpush.bf16.msra.mxu0 %v4406
  %7039 = vmatpush.bf16.msra.mxu0 %v4390
  %7040 = vmatmul.bf16.gmra.mxu0 %v1040
  %v7041 = vpop.f32.mrf.mxu0
  %v7042 = vadd.f32 %v7029, %v7041
  %v7043 = vpop.f32.mrf.mxu0
  %7044 = vdwg.mxu0
  %7045 = vmatpush.bf16.msra.mxu0 %v4630
  %7046 = vmatpush.bf16.msra.mxu0 %v4614
  %7047 = vmatpush.bf16.msra.mxu0 %v4598
  %7048 = vmatpush.bf16.msra.mxu0 %v4582
  %7049 = vmatpush.bf16.msra.mxu0 %v4566
  %7050 = vmatpush.bf16.msra.mxu0 %v4550
  %7051 = vmatpush.bf16.msra.mxu0 %v4534
  %7052 = vmatpush.bf16.msra.mxu0 %v4518
  %7053 = vmatmul.bf16.gmra.mxu0 %v1041
  %v7054 = vpop.f32.mrf.mxu0
  %v7055 = vadd.f32 %v7042, %v7054
  %v7056 = vpop.f32.mrf.mxu0
  %7057 = vdwg.mxu0
  %7058 = vmatpush.bf16.msra.mxu0 %v4758
  %7059 = vmatpush.bf16.msra.mxu0 %v4742
  %7060 = vmatpush.bf16.msra.mxu0 %v4726
  %7061 = vmatpush.bf16.msra.mxu0 %v4710
  %7062 = vmatpush.bf16.msra.mxu0 %v4694
  %7063 = vmatpush.bf16.msra.mxu0 %v4678
  %7064 = vmatpush.bf16.msra.mxu0 %v4662
  %7065 = vmatpush.bf16.msra.mxu0 %v4646
  %7066 = vmatmul.bf16.gmra.mxu0 %v1042
  %v7067 = vpop.f32.mrf.mxu0
  %v7068 = vadd.f32 %v7055, %v7067
  %v7069 = vpop.f32.mrf.mxu0
  %7070 = vdwg.mxu0
  %7071 = vmatpush.bf16.msra.mxu0 %v4886
  %7072 = vmatpush.bf16.msra.mxu0 %v4870
  %7073 = vmatpush.bf16.msra.mxu0 %v4854
  %7074 = vmatpush.bf16.msra.mxu0 %v4838
  %7075 = vmatpush.bf16.msra.mxu0 %v4822
  %7076 = vmatpush.bf16.msra.mxu0 %v4806
  %7077 = vmatpush.bf16.msra.mxu0 %v4790
  %7078 = vmatpush.bf16.msra.mxu0 %v4774
  %7079 = vmatmul.bf16.gmra.mxu0 %v1043
  %v7080 = vpop.f32.mrf.mxu0
  %v7081 = vadd.f32 %v7068, %v7080
  %v7082 = vpop.f32.mrf.mxu0
  %7083 = vdwg.mxu0
  %7084 = vmatpush.bf16.msra.mxu0 %v5014
  %7085 = vmatpush.bf16.msra.mxu0 %v4998
  %7086 = vmatpush.bf16.msra.mxu0 %v4982
  %7087 = vmatpush.bf16.msra.mxu0 %v4966
  %7088 = vmatpush.bf16.msra.mxu0 %v4950
  %7089 = vmatpush.bf16.msra.mxu0 %v4934
  %7090 = vmatpush.bf16.msra.mxu0 %v4918
  %7091 = vmatpush.bf16.msra.mxu0 %v4902
  %7092 = vmatmul.bf16.gmra.mxu0 %v1044
  %v7093 = vpop.f32.mrf.mxu0
  %v7094 = vadd.f32 %v7081, %v7093
  %v7095 = vpop.f32.mrf.mxu0
  %7096 = vdwg.mxu0
  %7097 = vmatpush.bf16.msra.mxu0 %v5142
  %7098 = vmatpush.bf16.msra.mxu0 %v5126
  %7099 = vmatpush.bf16.msra.mxu0 %v5110
  %7100 = vmatpush.bf16.msra.mxu0 %v5094
  %7101 = vmatpush.bf16.msra.mxu0 %v5078
  %7102 = vmatpush.bf16.msra.mxu0 %v5062
  %7103 = vmatpush.bf16.msra.mxu0 %v5046
  %7104 = vmatpush.bf16.msra.mxu0 %v5030
  %7105 = vmatmul.bf16.gmra.mxu0 %v1045
  %v7106 = vpop.f32.mrf.mxu0
  %v7107 = vadd.f32 %v7094, %v7106
  %v7108 = vpop.f32.mrf.mxu0
  %7109 = vdwg.mxu0
  %7110 = vmatpush.bf16.msra.mxu0 %v4247
  %7111 = vmatpush.bf16.msra.mxu0 %v4231
  %7112 = vmatpush.bf16.msra.mxu0 %v4215
  %7113 = vmatpush.bf16.msra.mxu0 %v4199
  %7114 = vmatpush.bf16.msra.mxu0 %v4183
  %7115 = vmatpush.bf16.msra.mxu0 %v4167
  %7116 = vmatpush.bf16.msra.mxu0 %v4151
  %7117 = vmatpush.bf16.msra.mxu0 %v4135
  %7118 = vmatmul.bf16.gmra.mxu0 %v1038
  %v7119 = vpop.f32.mrf.mxu0
  %v7120 = vadd.f32 0.0, %v7119
  %v7121 = vpop.f32.mrf.mxu0
  %7122 = vdwg.mxu0
  %7123 = vmatpush.bf16.msra.mxu0 %v4375
  %7124 = vmatpush.bf16.msra.mxu0 %v4359
  %7125 = vmatpush.bf16.msra.mxu0 %v4343
  %7126 = vmatpush.bf16.msra.mxu0 %v4327
  %7127 = vmatpush.bf16.msra.mxu0 %v4311
  %7128 = vmatpush.bf16.msra.mxu0 %v4295
  %7129 = vmatpush.bf16.msra.mxu0 %v4279
  %7130 = vmatpush.bf16.msra.mxu0 %v4263
  %7131 = vmatmul.bf16.gmra.mxu0 %v1039
  %v7132 = vpop.f32.mrf.mxu0
  %v7133 = vadd.f32 %v7120, %v7132
  %v7134 = vpop.f32.mrf.mxu0
  %7135 = vdwg.mxu0
  %7136 = vmatpush.bf16.msra.mxu0 %v4503
  %7137 = vmatpush.bf16.msra.mxu0 %v4487
  %7138 = vmatpush.bf16.msra.mxu0 %v4471
  %7139 = vmatpush.bf16.msra.mxu0 %v4455
  %7140 = vmatpush.bf16.msra.mxu0 %v4439
  %7141 = vmatpush.bf16.msra.mxu0 %v4423
  %7142 = vmatpush.bf16.msra.mxu0 %v4407
  %7143 = vmatpush.bf16.msra.mxu0 %v4391
  %7144 = vmatmul.bf16.gmra.mxu0 %v1040
  %v7145 = vpop.f32.mrf.mxu0
  %v7146 = vadd.f32 %v7133, %v7145
  %v7147 = vpop.f32.mrf.mxu0
  %7148 = vdwg.mxu0
  %7149 = vmatpush.bf16.msra.mxu0 %v4631
  %7150 = vmatpush.bf16.msra.mxu0 %v4615
  %7151 = vmatpush.bf16.msra.mxu0 %v4599
  %7152 = vmatpush.bf16.msra.mxu0 %v4583
  %7153 = vmatpush.bf16.msra.mxu0 %v4567
  %7154 = vmatpush.bf16.msra.mxu0 %v4551
  %7155 = vmatpush.bf16.msra.mxu0 %v4535
  %7156 = vmatpush.bf16.msra.mxu0 %v4519
  %7157 = vmatmul.bf16.gmra.mxu0 %v1041
  %v7158 = vpop.f32.mrf.mxu0
  %v7159 = vadd.f32 %v7146, %v7158
  %v7160 = vpop.f32.mrf.mxu0
  %7161 = vdwg.mxu0
  %7162 = vmatpush.bf16.msra.mxu0 %v4759
  %7163 = vmatpush.bf16.msra.mxu0 %v4743
  %7164 = vmatpush.bf16.msra.mxu0 %v4727
  %7165 = vmatpush.bf16.msra.mxu0 %v4711
  %7166 = vmatpush.bf16.msra.mxu0 %v4695
  %7167 = vmatpush.bf16.msra.mxu0 %v4679
  %7168 = vmatpush.bf16.msra.mxu0 %v4663
  %7169 = vmatpush.bf16.msra.mxu0 %v4647
  %7170 = vmatmul.bf16.gmra.mxu0 %v1042
  %v7171 = vpop.f32.mrf.mxu0
  %v7172 = vadd.f32 %v7159, %v7171
  %v7173 = vpop.f32.mrf.mxu0
  %7174 = vdwg.mxu0
  %7175 = vmatpush.bf16.msra.mxu0 %v4887
  %7176 = vmatpush.bf16.msra.mxu0 %v4871
  %7177 = vmatpush.bf16.msra.mxu0 %v4855
  %7178 = vmatpush.bf16.msra.mxu0 %v4839
  %7179 = vmatpush.bf16.msra.mxu0 %v4823
  %7180 = vmatpush.bf16.msra.mxu0 %v4807
  %7181 = vmatpush.bf16.msra.mxu0 %v4791
  %7182 = vmatpush.bf16.msra.mxu0 %v4775
  %7183 = vmatmul.bf16.gmra.mxu0 %v1043
  %v7184 = vpop.f32.mrf.mxu0
  %v7185 = vadd.f32 %v7172, %v7184
  %v7186 = vpop.f32.mrf.mxu0
  %7187 = vdwg.mxu0
  %7188 = vmatpush.bf16.msra.mxu0 %v5015
  %7189 = vmatpush.bf16.msra.mxu0 %v4999
  %7190 = vmatpush.bf16.msra.mxu0 %v4983
  %7191 = vmatpush.bf16.msra.mxu0 %v4967
  %7192 = vmatpush.bf16.msra.mxu0 %v4951
  %7193 = vmatpush.bf16.msra.mxu0 %v4935
  %7194 = vmatpush.bf16.msra.mxu0 %v4919
  %7195 = vmatpush.bf16.msra.mxu0 %v4903
  %7196 = vmatmul.bf16.gmra.mxu0 %v1044
  %v7197 = vpop.f32.mrf.mxu0
  %v7198 = vadd.f32 %v7185, %v7197
  %v7199 = vpop.f32.mrf.mxu0
  %7200 = vdwg.mxu0
  %7201 = vmatpush.bf16.msra.mxu0 %v5143
  %7202 = vmatpush.bf16.msra.mxu0 %v5127
  %7203 = vmatpush.bf16.msra.mxu0 %v5111
  %7204 = vmatpush.bf16.msra.mxu0 %v5095
  %7205 = vmatpush.bf16.msra.mxu0 %v5079
  %7206 = vmatpush.bf16.msra.mxu0 %v5063
  %7207 = vmatpush.bf16.msra.mxu0 %v5047
  %7208 = vmatpush.bf16.msra.mxu0 %v5031
  %7209 = vmatmul.bf16.gmra.mxu0 %v1045
  %v7210 = vpop.f32.mrf.mxu0
  %v7211 = vadd.f32 %v7198, %v7210
  %v7212 = vpop.f32.mrf.mxu0
  %7213 = vdwg.mxu0
  %7214 = vmatpush.bf16.msra.mxu0 %v4248
  %7215 = vmatpush.bf16.msra.mxu0 %v4232
  %7216 = vmatpush.bf16.msra.mxu0 %v4216
  %7217 = vmatpush.bf16.msra.mxu0 %v4200
  %7218 = vmatpush.bf16.msra.mxu0 %v4184
  %7219 = vmatpush.bf16.msra.mxu0 %v4168
  %7220 = vmatpush.bf16.msra.mxu0 %v4152
  %7221 = vmatpush.bf16.msra.mxu0 %v4136
  %7222 = vmatmul.bf16.gmra.mxu0 %v1038
  %v7223 = vpop.f32.mrf.mxu0
  %v7224 = vadd.f32 0.0, %v7223
  %v7225 = vpop.f32.mrf.mxu0
  %7226 = vdwg.mxu0
  %7227 = vmatpush.bf16.msra.mxu0 %v4376
  %7228 = vmatpush.bf16.msra.mxu0 %v4360
  %7229 = vmatpush.bf16.msra.mxu0 %v4344
  %7230 = vmatpush.bf16.msra.mxu0 %v4328
  %7231 = vmatpush.bf16.msra.mxu0 %v4312
  %7232 = vmatpush.bf16.msra.mxu0 %v4296
  %7233 = vmatpush.bf16.msra.mxu0 %v4280
  %7234 = vmatpush.bf16.msra.mxu0 %v4264
  %7235 = vmatmul.bf16.gmra.mxu0 %v1039
  %v7236 = vpop.f32.mrf.mxu0
  %v7237 = vadd.f32 %v7224, %v7236
  %v7238 = vpop.f32.mrf.mxu0
  %7239 = vdwg.mxu0
  %7240 = vmatpush.bf16.msra.mxu0 %v4504
  %7241 = vmatpush.bf16.msra.mxu0 %v4488
  %7242 = vmatpush.bf16.msra.mxu0 %v4472
  %7243 = vmatpush.bf16.msra.mxu0 %v4456
  %7244 = vmatpush.bf16.msra.mxu0 %v4440
  %7245 = vmatpush.bf16.msra.mxu0 %v4424
  %7246 = vmatpush.bf16.msra.mxu0 %v4408
  %7247 = vmatpush.bf16.msra.mxu0 %v4392
  %7248 = vmatmul.bf16.gmra.mxu0 %v1040
  %v7249 = vpop.f32.mrf.mxu0
  %v7250 = vadd.f32 %v7237, %v7249
  %v7251 = vpop.f32.mrf.mxu0
  %7252 = vdwg.mxu0
  %7253 = vmatpush.bf16.msra.mxu0 %v4632
  %7254 = vmatpush.bf16.msra.mxu0 %v4616
  %7255 = vmatpush.bf16.msra.mxu0 %v4600
  %7256 = vmatpush.bf16.msra.mxu0 %v4584
  %7257 = vmatpush.bf16.msra.mxu0 %v4568
  %7258 = vmatpush.bf16.msra.mxu0 %v4552
  %7259 = vmatpush.bf16.msra.mxu0 %v4536
  %7260 = vmatpush.bf16.msra.mxu0 %v4520
  %7261 = vmatmul.bf16.gmra.mxu0 %v1041
  %v7262 = vpop.f32.mrf.mxu0
  %v7263 = vadd.f32 %v7250, %v7262
  %v7264 = vpop.f32.mrf.mxu0
  %7265 = vdwg.mxu0
  %7266 = vmatpush.bf16.msra.mxu0 %v4760
  %7267 = vmatpush.bf16.msra.mxu0 %v4744
  %7268 = vmatpush.bf16.msra.mxu0 %v4728
  %7269 = vmatpush.bf16.msra.mxu0 %v4712
  %7270 = vmatpush.bf16.msra.mxu0 %v4696
  %7271 = vmatpush.bf16.msra.mxu0 %v4680
  %7272 = vmatpush.bf16.msra.mxu0 %v4664
  %7273 = vmatpush.bf16.msra.mxu0 %v4648
  %7274 = vmatmul.bf16.gmra.mxu0 %v1042
  %v7275 = vpop.f32.mrf.mxu0
  %v7276 = vadd.f32 %v7263, %v7275
  %v7277 = vpop.f32.mrf.mxu0
  %7278 = vdwg.mxu0
  %7279 = vmatpush.bf16.msra.mxu0 %v4888
  %7280 = vmatpush.bf16.msra.mxu0 %v4872
  %7281 = vmatpush.bf16.msra.mxu0 %v4856
  %7282 = vmatpush.bf16.msra.mxu0 %v4840
  %7283 = vmatpush.bf16.msra.mxu0 %v4824
  %7284 = vmatpush.bf16.msra.mxu0 %v4808
  %7285 = vmatpush.bf16.msra.mxu0 %v4792
  %7286 = vmatpush.bf16.msra.mxu0 %v4776
  %7287 = vmatmul.bf16.gmra.mxu0 %v1043
  %v7288 = vpop.f32.mrf.mxu0
  %v7289 = vadd.f32 %v7276, %v7288
  %v7290 = vpop.f32.mrf.mxu0
  %7291 = vdwg.mxu0
  %7292 = vmatpush.bf16.msra.mxu0 %v5016
  %7293 = vmatpush.bf16.msra.mxu0 %v5000
  %7294 = vmatpush.bf16.msra.mxu0 %v4984
  %7295 = vmatpush.bf16.msra.mxu0 %v4968
  %7296 = vmatpush.bf16.msra.mxu0 %v4952
  %7297 = vmatpush.bf16.msra.mxu0 %v4936
  %7298 = vmatpush.bf16.msra.mxu0 %v4920
  %7299 = vmatpush.bf16.msra.mxu0 %v4904
  %7300 = vmatmul.bf16.gmra.mxu0 %v1044
  %v7301 = vpop.f32.mrf.mxu0
  %v7302 = vadd.f32 %v7289, %v7301
  %v7303 = vpop.f32.mrf.mxu0
  %7304 = vdwg.mxu0
  %7305 = vmatpush.bf16.msra.mxu0 %v5144
  %7306 = vmatpush.bf16.msra.mxu0 %v5128
  %7307 = vmatpush.bf16.msra.mxu0 %v5112
  %7308 = vmatpush.bf16.msra.mxu0 %v5096
  %7309 = vmatpush.bf16.msra.mxu0 %v5080
  %7310 = vmatpush.bf16.msra.mxu0 %v5064
  %7311 = vmatpush.bf16.msra.mxu0 %v5048
  %7312 = vmatpush.bf16.msra.mxu0 %v5032
  %7313 = vmatmul.bf16.gmra.mxu0 %v1045
  %v7314 = vpop.f32.mrf.mxu0
  %v7315 = vadd.f32 %v7302, %v7314
  %v7316 = vpop.f32.mrf.mxu0
  %7317 = vdwg.mxu0
  %7318 = vmatpush.bf16.msra.mxu0 %v4249
  %7319 = vmatpush.bf16.msra.mxu0 %v4233
  %7320 = vmatpush.bf16.msra.mxu0 %v4217
  %7321 = vmatpush.bf16.msra.mxu0 %v4201
  %7322 = vmatpush.bf16.msra.mxu0 %v4185
  %7323 = vmatpush.bf16.msra.mxu0 %v4169
  %7324 = vmatpush.bf16.msra.mxu0 %v4153
  %7325 = vmatpush.bf16.msra.mxu0 %v4137
  %7326 = vmatmul.bf16.gmra.mxu0 %v1038
  %v7327 = vpop.f32.mrf.mxu0
  %v7328 = vadd.f32 0.0, %v7327
  %v7329 = vpop.f32.mrf.mxu0
  %7330 = vdwg.mxu0
  %7331 = vmatpush.bf16.msra.mxu0 %v4377
  %7332 = vmatpush.bf16.msra.mxu0 %v4361
  %7333 = vmatpush.bf16.msra.mxu0 %v4345
  %7334 = vmatpush.bf16.msra.mxu0 %v4329
  %7335 = vmatpush.bf16.msra.mxu0 %v4313
  %7336 = vmatpush.bf16.msra.mxu0 %v4297
  %7337 = vmatpush.bf16.msra.mxu0 %v4281
  %7338 = vmatpush.bf16.msra.mxu0 %v4265
  %7339 = vmatmul.bf16.gmra.mxu0 %v1039
  %v7340 = vpop.f32.mrf.mxu0
  %v7341 = vadd.f32 %v7328, %v7340
  %v7342 = vpop.f32.mrf.mxu0
  %7343 = vdwg.mxu0
  %7344 = vmatpush.bf16.msra.mxu0 %v4505
  %7345 = vmatpush.bf16.msra.mxu0 %v4489
  %7346 = vmatpush.bf16.msra.mxu0 %v4473
  %7347 = vmatpush.bf16.msra.mxu0 %v4457
  %7348 = vmatpush.bf16.msra.mxu0 %v4441
  %7349 = vmatpush.bf16.msra.mxu0 %v4425
  %7350 = vmatpush.bf16.msra.mxu0 %v4409
  %7351 = vmatpush.bf16.msra.mxu0 %v4393
  %7352 = vmatmul.bf16.gmra.mxu0 %v1040
  %v7353 = vpop.f32.mrf.mxu0
  %v7354 = vadd.f32 %v7341, %v7353
  %v7355 = vpop.f32.mrf.mxu0
  %7356 = vdwg.mxu0
  %7357 = vmatpush.bf16.msra.mxu0 %v4633
  %7358 = vmatpush.bf16.msra.mxu0 %v4617
  %7359 = vmatpush.bf16.msra.mxu0 %v4601
  %7360 = vmatpush.bf16.msra.mxu0 %v4585
  %7361 = vmatpush.bf16.msra.mxu0 %v4569
  %7362 = vmatpush.bf16.msra.mxu0 %v4553
  %7363 = vmatpush.bf16.msra.mxu0 %v4537
  %7364 = vmatpush.bf16.msra.mxu0 %v4521
  %7365 = vmatmul.bf16.gmra.mxu0 %v1041
  %v7366 = vpop.f32.mrf.mxu0
  %v7367 = vadd.f32 %v7354, %v7366
  %v7368 = vpop.f32.mrf.mxu0
  %7369 = vdwg.mxu0
  %7370 = vmatpush.bf16.msra.mxu0 %v4761
  %7371 = vmatpush.bf16.msra.mxu0 %v4745
  %7372 = vmatpush.bf16.msra.mxu0 %v4729
  %7373 = vmatpush.bf16.msra.mxu0 %v4713
  %7374 = vmatpush.bf16.msra.mxu0 %v4697
  %7375 = vmatpush.bf16.msra.mxu0 %v4681
  %7376 = vmatpush.bf16.msra.mxu0 %v4665
  %7377 = vmatpush.bf16.msra.mxu0 %v4649
  %7378 = vmatmul.bf16.gmra.mxu0 %v1042
  %v7379 = vpop.f32.mrf.mxu0
  %v7380 = vadd.f32 %v7367, %v7379
  %v7381 = vpop.f32.mrf.mxu0
  %7382 = vdwg.mxu0
  %7383 = vmatpush.bf16.msra.mxu0 %v4889
  %7384 = vmatpush.bf16.msra.mxu0 %v4873
  %7385 = vmatpush.bf16.msra.mxu0 %v4857
  %7386 = vmatpush.bf16.msra.mxu0 %v4841
  %7387 = vmatpush.bf16.msra.mxu0 %v4825
  %7388 = vmatpush.bf16.msra.mxu0 %v4809
  %7389 = vmatpush.bf16.msra.mxu0 %v4793
  %7390 = vmatpush.bf16.msra.mxu0 %v4777
  %7391 = vmatmul.bf16.gmra.mxu0 %v1043
  %v7392 = vpop.f32.mrf.mxu0
  %v7393 = vadd.f32 %v7380, %v7392
  %v7394 = vpop.f32.mrf.mxu0
  %7395 = vdwg.mxu0
  %7396 = vmatpush.bf16.msra.mxu0 %v5017
  %7397 = vmatpush.bf16.msra.mxu0 %v5001
  %7398 = vmatpush.bf16.msra.mxu0 %v4985
  %7399 = vmatpush.bf16.msra.mxu0 %v4969
  %7400 = vmatpush.bf16.msra.mxu0 %v4953
  %7401 = vmatpush.bf16.msra.mxu0 %v4937
  %7402 = vmatpush.bf16.msra.mxu0 %v4921
  %7403 = vmatpush.bf16.msra.mxu0 %v4905
  %7404 = vmatmul.bf16.gmra.mxu0 %v1044
  %v7405 = vpop.f32.mrf.mxu0
  %v7406 = vadd.f32 %v7393, %v7405
  %v7407 = vpop.f32.mrf.mxu0
  %7408 = vdwg.mxu0
  %7409 = vmatpush.bf16.msra.mxu0 %v5145
  %7410 = vmatpush.bf16.msra.mxu0 %v5129
  %7411 = vmatpush.bf16.msra.mxu0 %v5113
  %7412 = vmatpush.bf16.msra.mxu0 %v5097
  %7413 = vmatpush.bf16.msra.mxu0 %v5081
  %7414 = vmatpush.bf16.msra.mxu0 %v5065
  %7415 = vmatpush.bf16.msra.mxu0 %v5049
  %7416 = vmatpush.bf16.msra.mxu0 %v5033
  %7417 = vmatmul.bf16.gmra.mxu0 %v1045
  %v7418 = vpop.f32.mrf.mxu0
  %v7419 = vadd.f32 %v7406, %v7418
  %v7420 = vpop.f32.mrf.mxu0
  %7421 = vdwg.mxu0
  %7422 = vmatpush.bf16.msra.mxu0 %v4250
  %7423 = vmatpush.bf16.msra.mxu0 %v4234
  %7424 = vmatpush.bf16.msra.mxu0 %v4218
  %7425 = vmatpush.bf16.msra.mxu0 %v4202
  %7426 = vmatpush.bf16.msra.mxu0 %v4186
  %7427 = vmatpush.bf16.msra.mxu0 %v4170
  %7428 = vmatpush.bf16.msra.mxu0 %v4154
  %7429 = vmatpush.bf16.msra.mxu0 %v4138
  %7430 = vmatmul.bf16.gmra.mxu0 %v1038
  %v7431 = vpop.f32.mrf.mxu0
  %v7432 = vadd.f32 0.0, %v7431
  %v7433 = vpop.f32.mrf.mxu0
  %7434 = vdwg.mxu0
  %7435 = vmatpush.bf16.msra.mxu0 %v4378
  %7436 = vmatpush.bf16.msra.mxu0 %v4362
  %7437 = vmatpush.bf16.msra.mxu0 %v4346
  %7438 = vmatpush.bf16.msra.mxu0 %v4330
  %7439 = vmatpush.bf16.msra.mxu0 %v4314
  %7440 = vmatpush.bf16.msra.mxu0 %v4298
  %7441 = vmatpush.bf16.msra.mxu0 %v4282
  %7442 = vmatpush.bf16.msra.mxu0 %v4266
  %7443 = vmatmul.bf16.gmra.mxu0 %v1039
  %v7444 = vpop.f32.mrf.mxu0
  %v7445 = vadd.f32 %v7432, %v7444
  %v7446 = vpop.f32.mrf.mxu0
  %7447 = vdwg.mxu0
  %7448 = vmatpush.bf16.msra.mxu0 %v4506
  %7449 = vmatpush.bf16.msra.mxu0 %v4490
  %7450 = vmatpush.bf16.msra.mxu0 %v4474
  %7451 = vmatpush.bf16.msra.mxu0 %v4458
  %7452 = vmatpush.bf16.msra.mxu0 %v4442
  %7453 = vmatpush.bf16.msra.mxu0 %v4426
  %7454 = vmatpush.bf16.msra.mxu0 %v4410
  %7455 = vmatpush.bf16.msra.mxu0 %v4394
  %7456 = vmatmul.bf16.gmra.mxu0 %v1040
  %v7457 = vpop.f32.mrf.mxu0
  %v7458 = vadd.f32 %v7445, %v7457
  %v7459 = vpop.f32.mrf.mxu0
  %7460 = vdwg.mxu0
  %7461 = vmatpush.bf16.msra.mxu0 %v4634
  %7462 = vmatpush.bf16.msra.mxu0 %v4618
  %7463 = vmatpush.bf16.msra.mxu0 %v4602
  %7464 = vmatpush.bf16.msra.mxu0 %v4586
  %7465 = vmatpush.bf16.msra.mxu0 %v4570
  %7466 = vmatpush.bf16.msra.mxu0 %v4554
  %7467 = vmatpush.bf16.msra.mxu0 %v4538
  %7468 = vmatpush.bf16.msra.mxu0 %v4522
  %7469 = vmatmul.bf16.gmra.mxu0 %v1041
  %v7470 = vpop.f32.mrf.mxu0
  %v7471 = vadd.f32 %v7458, %v7470
  %v7472 = vpop.f32.mrf.mxu0
  %7473 = vdwg.mxu0
  %7474 = vmatpush.bf16.msra.mxu0 %v4762
  %7475 = vmatpush.bf16.msra.mxu0 %v4746
  %7476 = vmatpush.bf16.msra.mxu0 %v4730
  %7477 = vmatpush.bf16.msra.mxu0 %v4714
  %7478 = vmatpush.bf16.msra.mxu0 %v4698
  %7479 = vmatpush.bf16.msra.mxu0 %v4682
  %7480 = vmatpush.bf16.msra.mxu0 %v4666
  %7481 = vmatpush.bf16.msra.mxu0 %v4650
  %7482 = vmatmul.bf16.gmra.mxu0 %v1042
  %v7483 = vpop.f32.mrf.mxu0
  %v7484 = vadd.f32 %v7471, %v7483
  %v7485 = vpop.f32.mrf.mxu0
  %7486 = vdwg.mxu0
  %7487 = vmatpush.bf16.msra.mxu0 %v4890
  %7488 = vmatpush.bf16.msra.mxu0 %v4874
  %7489 = vmatpush.bf16.msra.mxu0 %v4858
  %7490 = vmatpush.bf16.msra.mxu0 %v4842
  %7491 = vmatpush.bf16.msra.mxu0 %v4826
  %7492 = vmatpush.bf16.msra.mxu0 %v4810
  %7493 = vmatpush.bf16.msra.mxu0 %v4794
  %7494 = vmatpush.bf16.msra.mxu0 %v4778
  %7495 = vmatmul.bf16.gmra.mxu0 %v1043
  %v7496 = vpop.f32.mrf.mxu0
  %v7497 = vadd.f32 %v7484, %v7496
  %v7498 = vpop.f32.mrf.mxu0
  %7499 = vdwg.mxu0
  %7500 = vmatpush.bf16.msra.mxu0 %v5018
  %7501 = vmatpush.bf16.msra.mxu0 %v5002
  %7502 = vmatpush.bf16.msra.mxu0 %v4986
  %7503 = vmatpush.bf16.msra.mxu0 %v4970
  %7504 = vmatpush.bf16.msra.mxu0 %v4954
  %7505 = vmatpush.bf16.msra.mxu0 %v4938
  %7506 = vmatpush.bf16.msra.mxu0 %v4922
  %7507 = vmatpush.bf16.msra.mxu0 %v4906
  %7508 = vmatmul.bf16.gmra.mxu0 %v1044
  %v7509 = vpop.f32.mrf.mxu0
  %v7510 = vadd.f32 %v7497, %v7509
  %v7511 = vpop.f32.mrf.mxu0
  %7512 = vdwg.mxu0
  %7513 = vmatpush.bf16.msra.mxu0 %v5146
  %7514 = vmatpush.bf16.msra.mxu0 %v5130
  %7515 = vmatpush.bf16.msra.mxu0 %v5114
  %7516 = vmatpush.bf16.msra.mxu0 %v5098
  %7517 = vmatpush.bf16.msra.mxu0 %v5082
  %7518 = vmatpush.bf16.msra.mxu0 %v5066
  %7519 = vmatpush.bf16.msra.mxu0 %v5050
  %7520 = vmatpush.bf16.msra.mxu0 %v5034
  %7521 = vmatmul.bf16.gmra.mxu0 %v1045
  %v7522 = vpop.f32.mrf.mxu0
  %v7523 = vadd.f32 %v7510, %v7522
  %v7524 = vpop.f32.mrf.mxu0
  %7525 = vdwg.mxu0
  %7526 = vmatpush.bf16.msra.mxu0 %v4251
  %7527 = vmatpush.bf16.msra.mxu0 %v4235
  %7528 = vmatpush.bf16.msra.mxu0 %v4219
  %7529 = vmatpush.bf16.msra.mxu0 %v4203
  %7530 = vmatpush.bf16.msra.mxu0 %v4187
  %7531 = vmatpush.bf16.msra.mxu0 %v4171
  %7532 = vmatpush.bf16.msra.mxu0 %v4155
  %7533 = vmatpush.bf16.msra.mxu0 %v4139
  %7534 = vmatmul.bf16.gmra.mxu0 %v1038
  %v7535 = vpop.f32.mrf.mxu0
  %v7536 = vadd.f32 0.0, %v7535
  %v7537 = vpop.f32.mrf.mxu0
  %7538 = vdwg.mxu0
  %7539 = vmatpush.bf16.msra.mxu0 %v4379
  %7540 = vmatpush.bf16.msra.mxu0 %v4363
  %7541 = vmatpush.bf16.msra.mxu0 %v4347
  %7542 = vmatpush.bf16.msra.mxu0 %v4331
  %7543 = vmatpush.bf16.msra.mxu0 %v4315
  %7544 = vmatpush.bf16.msra.mxu0 %v4299
  %7545 = vmatpush.bf16.msra.mxu0 %v4283
  %7546 = vmatpush.bf16.msra.mxu0 %v4267
  %7547 = vmatmul.bf16.gmra.mxu0 %v1039
  %v7548 = vpop.f32.mrf.mxu0
  %v7549 = vadd.f32 %v7536, %v7548
  %v7550 = vpop.f32.mrf.mxu0
  %7551 = vdwg.mxu0
  %7552 = vmatpush.bf16.msra.mxu0 %v4507
  %7553 = vmatpush.bf16.msra.mxu0 %v4491
  %7554 = vmatpush.bf16.msra.mxu0 %v4475
  %7555 = vmatpush.bf16.msra.mxu0 %v4459
  %7556 = vmatpush.bf16.msra.mxu0 %v4443
  %7557 = vmatpush.bf16.msra.mxu0 %v4427
  %7558 = vmatpush.bf16.msra.mxu0 %v4411
  %7559 = vmatpush.bf16.msra.mxu0 %v4395
  %7560 = vmatmul.bf16.gmra.mxu0 %v1040
  %v7561 = vpop.f32.mrf.mxu0
  %v7562 = vadd.f32 %v7549, %v7561
  %v7563 = vpop.f32.mrf.mxu0
  %7564 = vdwg.mxu0
  %7565 = vmatpush.bf16.msra.mxu0 %v4635
  %7566 = vmatpush.bf16.msra.mxu0 %v4619
  %7567 = vmatpush.bf16.msra.mxu0 %v4603
  %7568 = vmatpush.bf16.msra.mxu0 %v4587
  %7569 = vmatpush.bf16.msra.mxu0 %v4571
  %7570 = vmatpush.bf16.msra.mxu0 %v4555
  %7571 = vmatpush.bf16.msra.mxu0 %v4539
  %7572 = vmatpush.bf16.msra.mxu0 %v4523
  %7573 = vmatmul.bf16.gmra.mxu0 %v1041
  %v7574 = vpop.f32.mrf.mxu0
  %v7575 = vadd.f32 %v7562, %v7574
  %v7576 = vpop.f32.mrf.mxu0
  %7577 = vdwg.mxu0
  %7578 = vmatpush.bf16.msra.mxu0 %v4763
  %7579 = vmatpush.bf16.msra.mxu0 %v4747
  %7580 = vmatpush.bf16.msra.mxu0 %v4731
  %7581 = vmatpush.bf16.msra.mxu0 %v4715
  %7582 = vmatpush.bf16.msra.mxu0 %v4699
  %7583 = vmatpush.bf16.msra.mxu0 %v4683
  %7584 = vmatpush.bf16.msra.mxu0 %v4667
  %7585 = vmatpush.bf16.msra.mxu0 %v4651
  %7586 = vmatmul.bf16.gmra.mxu0 %v1042
  %v7587 = vpop.f32.mrf.mxu0
  %v7588 = vadd.f32 %v7575, %v7587
  %v7589 = vpop.f32.mrf.mxu0
  %7590 = vdwg.mxu0
  %7591 = vmatpush.bf16.msra.mxu0 %v4891
  %7592 = vmatpush.bf16.msra.mxu0 %v4875
  %7593 = vmatpush.bf16.msra.mxu0 %v4859
  %7594 = vmatpush.bf16.msra.mxu0 %v4843
  %7595 = vmatpush.bf16.msra.mxu0 %v4827
  %7596 = vmatpush.bf16.msra.mxu0 %v4811
  %7597 = vmatpush.bf16.msra.mxu0 %v4795
  %7598 = vmatpush.bf16.msra.mxu0 %v4779
  %7599 = vmatmul.bf16.gmra.mxu0 %v1043
  %v7600 = vpop.f32.mrf.mxu0
  %v7601 = vadd.f32 %v7588, %v7600
  %v7602 = vpop.f32.mrf.mxu0
  %7603 = vdwg.mxu0
  %7604 = vmatpush.bf16.msra.mxu0 %v5019
  %7605 = vmatpush.bf16.msra.mxu0 %v5003
  %7606 = vmatpush.bf16.msra.mxu0 %v4987
  %7607 = vmatpush.bf16.msra.mxu0 %v4971
  %7608 = vmatpush.bf16.msra.mxu0 %v4955
  %7609 = vmatpush.bf16.msra.mxu0 %v4939
  %7610 = vmatpush.bf16.msra.mxu0 %v4923
  %7611 = vmatpush.bf16.msra.mxu0 %v4907
  %7612 = vmatmul.bf16.gmra.mxu0 %v1044
  %v7613 = vpop.f32.mrf.mxu0
  %v7614 = vadd.f32 %v7601, %v7613
  %v7615 = vpop.f32.mrf.mxu0
  %7616 = vdwg.mxu0
  %7617 = vmatpush.bf16.msra.mxu0 %v5147
  %7618 = vmatpush.bf16.msra.mxu0 %v5131
  %7619 = vmatpush.bf16.msra.mxu0 %v5115
  %7620 = vmatpush.bf16.msra.mxu0 %v5099
  %7621 = vmatpush.bf16.msra.mxu0 %v5083
  %7622 = vmatpush.bf16.msra.mxu0 %v5067
  %7623 = vmatpush.bf16.msra.mxu0 %v5051
  %7624 = vmatpush.bf16.msra.mxu0 %v5035
  %7625 = vmatmul.bf16.gmra.mxu0 %v1045
  %v7626 = vpop.f32.mrf.mxu0
  %v7627 = vadd.f32 %v7614, %v7626
  %v7628 = vpop.f32.mrf.mxu0
  %7629 = vdwg.mxu0
  %7630 = vmatpush.bf16.msra.mxu0 %v4252
  %7631 = vmatpush.bf16.msra.mxu0 %v4236
  %7632 = vmatpush.bf16.msra.mxu0 %v4220
  %7633 = vmatpush.bf16.msra.mxu0 %v4204
  %7634 = vmatpush.bf16.msra.mxu0 %v4188
  %7635 = vmatpush.bf16.msra.mxu0 %v4172
  %7636 = vmatpush.bf16.msra.mxu0 %v4156
  %7637 = vmatpush.bf16.msra.mxu0 %v4140
  %7638 = vmatmul.bf16.gmra.mxu0 %v1038
  %v7639 = vpop.f32.mrf.mxu0
  %v7640 = vadd.f32 0.0, %v7639
  %v7641 = vpop.f32.mrf.mxu0
  %7642 = vdwg.mxu0
  %7643 = vmatpush.bf16.msra.mxu0 %v4380
  %7644 = vmatpush.bf16.msra.mxu0 %v4364
  %7645 = vmatpush.bf16.msra.mxu0 %v4348
  %7646 = vmatpush.bf16.msra.mxu0 %v4332
  %7647 = vmatpush.bf16.msra.mxu0 %v4316
  %7648 = vmatpush.bf16.msra.mxu0 %v4300
  %7649 = vmatpush.bf16.msra.mxu0 %v4284
  %7650 = vmatpush.bf16.msra.mxu0 %v4268
  %7651 = vmatmul.bf16.gmra.mxu0 %v1039
  %v7652 = vpop.f32.mrf.mxu0
  %v7653 = vadd.f32 %v7640, %v7652
  %v7654 = vpop.f32.mrf.mxu0
  %7655 = vdwg.mxu0
  %7656 = vmatpush.bf16.msra.mxu0 %v4508
  %7657 = vmatpush.bf16.msra.mxu0 %v4492
  %7658 = vmatpush.bf16.msra.mxu0 %v4476
  %7659 = vmatpush.bf16.msra.mxu0 %v4460
  %7660 = vmatpush.bf16.msra.mxu0 %v4444
  %7661 = vmatpush.bf16.msra.mxu0 %v4428
  %7662 = vmatpush.bf16.msra.mxu0 %v4412
  %7663 = vmatpush.bf16.msra.mxu0 %v4396
  %7664 = vmatmul.bf16.gmra.mxu0 %v1040
  %v7665 = vpop.f32.mrf.mxu0
  %v7666 = vadd.f32 %v7653, %v7665
  %v7667 = vpop.f32.mrf.mxu0
  %7668 = vdwg.mxu0
  %7669 = vmatpush.bf16.msra.mxu0 %v4636
  %7670 = vmatpush.bf16.msra.mxu0 %v4620
  %7671 = vmatpush.bf16.msra.mxu0 %v4604
  %7672 = vmatpush.bf16.msra.mxu0 %v4588
  %7673 = vmatpush.bf16.msra.mxu0 %v4572
  %7674 = vmatpush.bf16.msra.mxu0 %v4556
  %7675 = vmatpush.bf16.msra.mxu0 %v4540
  %7676 = vmatpush.bf16.msra.mxu0 %v4524
  %7677 = vmatmul.bf16.gmra.mxu0 %v1041
  %v7678 = vpop.f32.mrf.mxu0
  %v7679 = vadd.f32 %v7666, %v7678
  %v7680 = vpop.f32.mrf.mxu0
  %7681 = vdwg.mxu0
  %7682 = vmatpush.bf16.msra.mxu0 %v4764
  %7683 = vmatpush.bf16.msra.mxu0 %v4748
  %7684 = vmatpush.bf16.msra.mxu0 %v4732
  %7685 = vmatpush.bf16.msra.mxu0 %v4716
  %7686 = vmatpush.bf16.msra.mxu0 %v4700
  %7687 = vmatpush.bf16.msra.mxu0 %v4684
  %7688 = vmatpush.bf16.msra.mxu0 %v4668
  %7689 = vmatpush.bf16.msra.mxu0 %v4652
  %7690 = vmatmul.bf16.gmra.mxu0 %v1042
  %v7691 = vpop.f32.mrf.mxu0
  %v7692 = vadd.f32 %v7679, %v7691
  %v7693 = vpop.f32.mrf.mxu0
  %7694 = vdwg.mxu0
  %7695 = vmatpush.bf16.msra.mxu0 %v4892
  %7696 = vmatpush.bf16.msra.mxu0 %v4876
  %7697 = vmatpush.bf16.msra.mxu0 %v4860
  %7698 = vmatpush.bf16.msra.mxu0 %v4844
  %7699 = vmatpush.bf16.msra.mxu0 %v4828
  %7700 = vmatpush.bf16.msra.mxu0 %v4812
  %7701 = vmatpush.bf16.msra.mxu0 %v4796
  %7702 = vmatpush.bf16.msra.mxu0 %v4780
  %7703 = vmatmul.bf16.gmra.mxu0 %v1043
  %v7704 = vpop.f32.mrf.mxu0
  %v7705 = vadd.f32 %v7692, %v7704
  %v7706 = vpop.f32.mrf.mxu0
  %7707 = vdwg.mxu0
  %7708 = vmatpush.bf16.msra.mxu0 %v5020
  %7709 = vmatpush.bf16.msra.mxu0 %v5004
  %7710 = vmatpush.bf16.msra.mxu0 %v4988
  %7711 = vmatpush.bf16.msra.mxu0 %v4972
  %7712 = vmatpush.bf16.msra.mxu0 %v4956
  %7713 = vmatpush.bf16.msra.mxu0 %v4940
  %7714 = vmatpush.bf16.msra.mxu0 %v4924
  %7715 = vmatpush.bf16.msra.mxu0 %v4908
  %7716 = vmatmul.bf16.gmra.mxu0 %v1044
  %v7717 = vpop.f32.mrf.mxu0
  %v7718 = vadd.f32 %v7705, %v7717
  %v7719 = vpop.f32.mrf.mxu0
  %7720 = vdwg.mxu0
  %7721 = vmatpush.bf16.msra.mxu0 %v5148
  %7722 = vmatpush.bf16.msra.mxu0 %v5132
  %7723 = vmatpush.bf16.msra.mxu0 %v5116
  %7724 = vmatpush.bf16.msra.mxu0 %v5100
  %7725 = vmatpush.bf16.msra.mxu0 %v5084
  %7726 = vmatpush.bf16.msra.mxu0 %v5068
  %7727 = vmatpush.bf16.msra.mxu0 %v5052
  %7728 = vmatpush.bf16.msra.mxu0 %v5036
  %7729 = vmatmul.bf16.gmra.mxu0 %v1045
  %v7730 = vpop.f32.mrf.mxu0
  %v7731 = vadd.f32 %v7718, %v7730
  %v7732 = vpop.f32.mrf.mxu0
  %7733 = vdwg.mxu0
  %7734 = vmatpush.bf16.msra.mxu0 %v4253
  %7735 = vmatpush.bf16.msra.mxu0 %v4237
  %7736 = vmatpush.bf16.msra.mxu0 %v4221
  %7737 = vmatpush.bf16.msra.mxu0 %v4205
  %7738 = vmatpush.bf16.msra.mxu0 %v4189
  %7739 = vmatpush.bf16.msra.mxu0 %v4173
  %7740 = vmatpush.bf16.msra.mxu0 %v4157
  %7741 = vmatpush.bf16.msra.mxu0 %v4141
  %7742 = vmatmul.bf16.gmra.mxu0 %v1038
  %v7743 = vpop.f32.mrf.mxu0
  %v7744 = vadd.f32 0.0, %v7743
  %v7745 = vpop.f32.mrf.mxu0
  %7746 = vdwg.mxu0
  %7747 = vmatpush.bf16.msra.mxu0 %v4381
  %7748 = vmatpush.bf16.msra.mxu0 %v4365
  %7749 = vmatpush.bf16.msra.mxu0 %v4349
  %7750 = vmatpush.bf16.msra.mxu0 %v4333
  %7751 = vmatpush.bf16.msra.mxu0 %v4317
  %7752 = vmatpush.bf16.msra.mxu0 %v4301
  %7753 = vmatpush.bf16.msra.mxu0 %v4285
  %7754 = vmatpush.bf16.msra.mxu0 %v4269
  %7755 = vmatmul.bf16.gmra.mxu0 %v1039
  %v7756 = vpop.f32.mrf.mxu0
  %v7757 = vadd.f32 %v7744, %v7756
  %v7758 = vpop.f32.mrf.mxu0
  %7759 = vdwg.mxu0
  %7760 = vmatpush.bf16.msra.mxu0 %v4509
  %7761 = vmatpush.bf16.msra.mxu0 %v4493
  %7762 = vmatpush.bf16.msra.mxu0 %v4477
  %7763 = vmatpush.bf16.msra.mxu0 %v4461
  %7764 = vmatpush.bf16.msra.mxu0 %v4445
  %7765 = vmatpush.bf16.msra.mxu0 %v4429
  %7766 = vmatpush.bf16.msra.mxu0 %v4413
  %7767 = vmatpush.bf16.msra.mxu0 %v4397
  %7768 = vmatmul.bf16.gmra.mxu0 %v1040
  %v7769 = vpop.f32.mrf.mxu0
  %v7770 = vadd.f32 %v7757, %v7769
  %v7771 = vpop.f32.mrf.mxu0
  %7772 = vdwg.mxu0
  %7773 = vmatpush.bf16.msra.mxu0 %v4637
  %7774 = vmatpush.bf16.msra.mxu0 %v4621
  %7775 = vmatpush.bf16.msra.mxu0 %v4605
  %7776 = vmatpush.bf16.msra.mxu0 %v4589
  %7777 = vmatpush.bf16.msra.mxu0 %v4573
  %7778 = vmatpush.bf16.msra.mxu0 %v4557
  %7779 = vmatpush.bf16.msra.mxu0 %v4541
  %7780 = vmatpush.bf16.msra.mxu0 %v4525
  %7781 = vmatmul.bf16.gmra.mxu0 %v1041
  %v7782 = vpop.f32.mrf.mxu0
  %v7783 = vadd.f32 %v7770, %v7782
  %v7784 = vpop.f32.mrf.mxu0
  %7785 = vdwg.mxu0
  %7786 = vmatpush.bf16.msra.mxu0 %v4765
  %7787 = vmatpush.bf16.msra.mxu0 %v4749
  %7788 = vmatpush.bf16.msra.mxu0 %v4733
  %7789 = vmatpush.bf16.msra.mxu0 %v4717
  %7790 = vmatpush.bf16.msra.mxu0 %v4701
  %7791 = vmatpush.bf16.msra.mxu0 %v4685
  %7792 = vmatpush.bf16.msra.mxu0 %v4669
  %7793 = vmatpush.bf16.msra.mxu0 %v4653
  %7794 = vmatmul.bf16.gmra.mxu0 %v1042
  %v7795 = vpop.f32.mrf.mxu0
  %v7796 = vadd.f32 %v7783, %v7795
  %v7797 = vpop.f32.mrf.mxu0
  %7798 = vdwg.mxu0
  %7799 = vmatpush.bf16.msra.mxu0 %v4893
  %7800 = vmatpush.bf16.msra.mxu0 %v4877
  %7801 = vmatpush.bf16.msra.mxu0 %v4861
  %7802 = vmatpush.bf16.msra.mxu0 %v4845
  %7803 = vmatpush.bf16.msra.mxu0 %v4829
  %7804 = vmatpush.bf16.msra.mxu0 %v4813
  %7805 = vmatpush.bf16.msra.mxu0 %v4797
  %7806 = vmatpush.bf16.msra.mxu0 %v4781
  %7807 = vmatmul.bf16.gmra.mxu0 %v1043
  %v7808 = vpop.f32.mrf.mxu0
  %v7809 = vadd.f32 %v7796, %v7808
  %v7810 = vpop.f32.mrf.mxu0
  %7811 = vdwg.mxu0
  %7812 = vmatpush.bf16.msra.mxu0 %v5021
  %7813 = vmatpush.bf16.msra.mxu0 %v5005
  %7814 = vmatpush.bf16.msra.mxu0 %v4989
  %7815 = vmatpush.bf16.msra.mxu0 %v4973
  %7816 = vmatpush.bf16.msra.mxu0 %v4957
  %7817 = vmatpush.bf16.msra.mxu0 %v4941
  %7818 = vmatpush.bf16.msra.mxu0 %v4925
  %7819 = vmatpush.bf16.msra.mxu0 %v4909
  %7820 = vmatmul.bf16.gmra.mxu0 %v1044
  %v7821 = vpop.f32.mrf.mxu0
  %v7822 = vadd.f32 %v7809, %v7821
  %v7823 = vpop.f32.mrf.mxu0
  %7824 = vdwg.mxu0
  %7825 = vmatpush.bf16.msra.mxu0 %v5149
  %7826 = vmatpush.bf16.msra.mxu0 %v5133
  %7827 = vmatpush.bf16.msra.mxu0 %v5117
  %7828 = vmatpush.bf16.msra.mxu0 %v5101
  %7829 = vmatpush.bf16.msra.mxu0 %v5085
  %7830 = vmatpush.bf16.msra.mxu0 %v5069
  %7831 = vmatpush.bf16.msra.mxu0 %v5053
  %7832 = vmatpush.bf16.msra.mxu0 %v5037
  %7833 = vmatmul.bf16.gmra.mxu0 %v1045
  %v7834 = vpop.f32.mrf.mxu0
  %v7835 = vadd.f32 %v7822, %v7834
  %v7836 = vpop.f32.mrf.mxu0
  %7837 = vdwg.mxu0
  %v7854 = vrot.slane %v6379, 6
  %v7855 = vrot.slane %v6483, 4
  %v7856 = vrot.slane %v6587, 2
  %v7857 = vrot.slane %v6795, 6
  %v7858 = vrot.slane %v6899, 4
  %v7859 = vrot.slane %v7003, 2
  %v7860 = vrot.slane %v7211, 6
  %v7861 = vrot.slane %v7315, 4
  %v7862 = vrot.slane %v7419, 2
  %v7863 = vrot.slane %v7627, 6
  %v7864 = vrot.slane %v7731, 4
  %v7865 = vrot.slane %v7835, 2
  %vm7866 = vcmask 1041408
  %v7867 = vsel %vm7866, %v6275, %v7854
  %vm7868 = vcmask 1045508
  %v7869 = vsel %vm7868, %v7855, %v7856
  %vm7870 = vcmask 1043456
  %v7871 = vsel %vm7870, %v7867, %v7869
  %v7872 = vsel %vm7866, %v6691, %v7857
  %v7873 = vsel %vm7868, %v7858, %v7859
  %v7874 = vsel %vm7870, %v7872, %v7873
  %v7875 = vsel %vm7866, %v7107, %v7860
  %v7876 = vsel %vm7868, %v7861, %v7862
  %v7877 = vsel %vm7870, %v7875, %v7876
  %v7878 = vsel %vm7866, %v7523, %v7863
  %v7879 = vsel %vm7868, %v7864, %v7865
  %v7880 = vsel %vm7870, %v7878, %v7879
  %7885 = vst [vmem:[%s2] sm:$0xff] %v7871
  %7886 = vst [vmem:[%s2 + $0x8] sm:$0xff] %v7874
  %7887 = vst [vmem:[%s2 + $0x10] sm:$0xff] %v7877
  %7888 = vst [vmem:[%s2 + $0x18] sm:$0xff] %v7880
  // Predicated region
  $region10: #{compositional_val_forward.2} parent=0 // pred_check
    _
  $region11: #{compositional_val_forward.2} parent=0 // pred_check_branch
    %7890 = sbr.rel (0) target = $region13
  $region12: #{compositional_val_forward.2} parent=0 // pred_region
    _
  $region13: #{compositional_val_forward.2} parent=0 // pred_fallthru
    _
  // Predicated region
  $region14: #{compositional_val_forward.2} parent=0 // pred_check
    _
  $region15: #{compositional_val_forward.2} parent=0 // pred_check_branch
    %7892 = sbr.rel (0) target = $region17
  $region16: #{compositional_val_forward.2} parent=0 // pred_region
    _
  $region17: #{compositional_val_forward.2} parent=0 // pred_fallthru
    _

</llo_original>
